<compile_context>
chip_gen: v7x
topology: tpu7x:2x2x1
jax: 0.10.0
libtpu: 0.0.40
codegen_flags: <defaults>
</compile_context>

<pallas_src>
import functools

import numpy as np
import jax
import jax.numpy as jnp
from jax.experimental import pallas as pl
from jax.experimental.pallas import tpu as pltpu


def _round_up(x, m):
    return (x + m - 1) // m * m


# ----------------------------------------------------------------------------
# Pallas kernel 1: tiled GEMM + bias (+ReLU)  (used for the three conv layers)
# ----------------------------------------------------------------------------
def _gemm_bias_act_kernel(x_ref, w_ref, b_ref, o_ref, *, relu):
    acc = jnp.dot(x_ref[...], w_ref[...], preferred_element_type=jnp.float32)
    acc = acc + b_ref[...]                       # (1, N) broadcast over rows
    if relu:
        acc = jnp.maximum(acc, 0.0)
    o_ref[...] = acc.astype(o_ref.dtype)


def _gemm_bias_act(x, w, b, *, relu, tm, out_dtype):
    """y = relu?(x @ w + b); x:(Mp,Kp) bf16, w:(Kp,Np) bf16, b:(1,Np) f32."""
    Mp, Kp = x.shape
    Kp2, Np = w.shape
    assert Kp == Kp2 and Mp % tm == 0
    return pl.pallas_call(
        functools.partial(_gemm_bias_act_kernel, relu=relu),
        out_shape=jax.ShapeDtypeStruct((Mp, Np), out_dtype),
        grid=(Mp // tm,),
        in_specs=[
            pl.BlockSpec((tm, Kp), lambda i: (i, 0)),
            pl.BlockSpec((Kp, Np), lambda i: (0, 0)),
            pl.BlockSpec((1, Np), lambda i: (0, 0)),
        ],
        out_specs=pl.BlockSpec((tm, Np), lambda i: (i, 0)),
        compiler_params=pltpu.CompilerParams(
            dimension_semantics=("parallel",)),
    )(x, w, b)


# ----------------------------------------------------------------------------
# Pallas kernel 2: fused ensemble heads (FC1 + ReLU + FC2), grid over heads.
# The (B,512) hidden stays in registers/VMEM; one pallas_call for all heads.
# ----------------------------------------------------------------------------
def _heads_kernel(feat_ref, w1_ref, b1_ref, w2_ref, b2_ref, o_ref):
    h = jnp.dot(feat_ref[...], w1_ref[...], preferred_element_type=jnp.float32)
    h = jnp.maximum(h + b1_ref[...], 0.0)
    q = jnp.dot(h.astype(w2_ref.dtype), w2_ref[...],
                preferred_element_type=jnp.float32)
    o_ref[...] = (q + b2_ref[...]).astype(o_ref.dtype)


def _heads_gemm(featp, w1, b1, w2, b2):
    E, K1p, H1 = w1.shape
    Mp = featp.shape[0]
    Np = w2.shape[2]
    return pl.pallas_call(
        _heads_kernel,
        out_shape=jax.ShapeDtypeStruct((E, Mp, Np), jnp.float32),
        grid=(E,),
        in_specs=[
            pl.BlockSpec((Mp, K1p), lambda h: (0, 0)),            # shared feat
            pl.BlockSpec((None, K1p, H1), lambda h: (h, 0, 0)),   # fc1 w (head)
            pl.BlockSpec((None, 1, H1), lambda h: (h, 0, 0)),     # fc1 b
            pl.BlockSpec((None, H1, Np), lambda h: (h, 0, 0)),    # fc2 w
            pl.BlockSpec((None, 1, Np), lambda h: (h, 0, 0)),     # fc2 b
        ],
        out_specs=pl.BlockSpec((None, Mp, Np), lambda h: (h, 0, 0)),
        compiler_params=pltpu.CompilerParams(
            dimension_semantics=("parallel",)),
    )(featp, w1, b1, w2, b2)


# ----------------------------------------------------------------------------
# Conv2d (valid, stride s) in NHWC via fused patches op + Pallas GEMM
# ----------------------------------------------------------------------------
def _pick_row_tiles(m):
    mp = _round_up(m, 16)
    if mp <= 512:
        return mp, mp            # single block
    tm = 256                     # MXU-friendly row tile, "parallel" grid axis
    return _round_up(m, tm), tm


def _conv2d_nhwc(x, w_gemm, b_gemm, *, k, stride, oc):
    """x: (B,H,W,C) bf16; w_gemm: (Kp, Np) bf16 packed as (C,KH,KW)->OC."""
    B, H, W, C = x.shape
    oh = (H - k) // stride + 1
    ow = (W - k) // stride + 1
    # One fused XLA op; output channel ordering is (C, KH, KW) which matches
    # PyTorch's weight.reshape(OC, C*KH*KW).
    patches = jax.lax.conv_general_dilated_patches(
        x, (k, k), (stride, stride), "VALID",
        dimension_numbers=("NHWC", "HWIO", "NHWC"))
    M = B * oh * ow
    K = C * k * k
    Kp = w_gemm.shape[0]
    Mp, tm = _pick_row_tiles(M)
    p = jnp.pad(patches.reshape(M, K), ((0, Mp - M), (0, Kp - K)))
    y = _gemm_bias_act(p, w_gemm, b_gemm, relu=True, tm=tm,
                       out_dtype=jnp.bfloat16)
    return y[:M, :oc].reshape(B, oh, ow, oc)


# ----------------------------------------------------------------------------
# Parameter initialization (PyTorch layout) and one-time GEMM packing
# ----------------------------------------------------------------------------
def _uniform(key, shape, fan_in):
    bound = 1.0 / jnp.sqrt(float(fan_in))
    return jax.random.uniform(key, shape, jnp.float32, -bound, bound)


def init_params(key, in_channels, n_actions, n_ensemble):
    keys = jax.random.split(key, 6 + 4 * n_ensemble)
    p = {}
    p["conv1_w"] = _uniform(keys[0], (32, in_channels, 8, 8), in_channels * 64)
    p["conv1_b"] = _uniform(keys[1], (32,), in_channels * 64)
    p["conv2_w"] = _uniform(keys[2], (64, 32, 4, 4), 32 * 16)
    p["conv2_b"] = _uniform(keys[3], (64,), 32 * 16)
    p["conv3_w"] = _uniform(keys[4], (64, 64, 3, 3), 64 * 9)
    p["conv3_b"] = _uniform(keys[5], (64,), 64 * 9)
    mult = 64 * 7 * 7
    heads = []
    for h in range(n_ensemble):
        k = keys[6 + 4 * h: 6 + 4 * (h + 1)]
        heads.append({
            # fc weights stored as (in, out) = transposed PyTorch layout,
            # rows indexed by the PyTorch NCHW flatten order (c*49 + h*7 + w).
            "fc1_w": _uniform(k[0], (mult, 512), mult),
            "fc1_b": _uniform(k[1], (512,), mult),
            "fc2_w": _uniform(k[2], (512, n_actions), 512),
            "fc2_b": _uniform(k[3], (n_actions,), 512),
        })
    p["heads"] = heads
    return p


def pack_params(params, *, n_actions, feat_hw=(7, 7), feat_c=64):
    """One-time: pad to (8,128)-friendly shapes, cast weights to bf16,
    reshape convs to GEMM layout, permute fc1 rows NCHW->NHWC flatten."""
    def pack_conv(w, b):
        oc, c, kh, kw = w.shape
        K = c * kh * kw
        Kp = _round_up(K, 128)
        Np = _round_up(oc, 128)
        wm = jnp.pad(w.reshape(oc, K).T, ((0, Kp - K), (0, Np - oc)))
        bm = jnp.pad(b, (0, Np - oc)).reshape(1, Np)
        return wm.astype(jnp.bfloat16), bm.astype(jnp.float32)

    packed = {}
    for i in (1, 2, 3):
        w, b = pack_conv(params[f"conv{i}_w"], params[f"conv{i}_b"])
        packed[f"conv{i}_w"] = w
        packed[f"conv{i}_b"] = b

    # fc1 rows permuted so that NHWC-flattened features reproduce the PyTorch
    # x.view(-1, 64*7*7) (NCHW) matmul exactly.
    fh, fw = feat_hw
    hh, ww, cc = jnp.meshgrid(jnp.arange(fh), jnp.arange(fw),
                              jnp.arange(feat_c), indexing="ij")
    perm = (cc * (fh * fw) + hh * fw + ww).reshape(-1)

    F = fh * fw * feat_c
    Fp = _round_up(F, 128)
    H1 = params["heads"][0]["fc1_w"].shape[1]
    NAp = _round_up(n_actions, 128)

    w1 = jnp.stack([hp["fc1_w"][perm, :] for hp in params["heads"]])
    w1 = jnp.pad(w1, ((0, 0), (0, Fp - F), (0, 0))).astype(jnp.bfloat16)
    b1 = jnp.stack([hp["fc1_b"] for hp in params["heads"]])
    b1 = b1.reshape(-1, 1, H1).astype(jnp.float32)
    w2 = jnp.stack([hp["fc2_w"] for hp in params["heads"]])
    w2 = jnp.pad(w2, ((0, 0), (0, 0), (0, NAp - n_actions))).astype(jnp.bfloat16)
    b2 = jnp.stack([hp["fc2_b"] for hp in params["heads"]])
    b2 = jnp.pad(b2, ((0, 0), (0, NAp - n_actions))).reshape(-1, 1, NAp)
    b2 = b2.astype(jnp.float32)
    packed.update(fc1_w=w1, fc1_b=b1, fc2_w=w2, fc2_b=b2)
    return packed


# ----------------------------------------------------------------------------
# EnsembleNet forward (fully jitted)
# ----------------------------------------------------------------------------
def _core_forward(packed, x_nchw):
    x = jnp.transpose(x_nchw, (0, 2, 3, 1)).astype(jnp.bfloat16)   # NHWC
    x = _conv2d_nhwc(x, packed["conv1_w"], packed["conv1_b"], k=8, stride=4, oc=32)
    x = _conv2d_nhwc(x, packed["conv2_w"], packed["conv2_b"], k=4, stride=2, oc=64)
    x = _conv2d_nhwc(x, packed["conv3_w"], packed["conv3_b"], k=3, stride=1, oc=64)
    return x.reshape(x.shape[0], -1)         # (B, 7*7*64), NHWC flatten


@functools.partial(jax.jit, static_argnames=("head", "n_actions"))
def _forward(packed, x, *, head, n_actions):
    feat = _core_forward(packed, x)                       # (B, 3136) bf16
    B, F = feat.shape
    K1p = packed["fc1_w"].shape[1]
    Mp = _round_up(B, 16)
    featp = jnp.pad(feat, ((0, Mp - B), (0, K1p - F)))
    if head is None:
        w1, b1, w2, b2 = (packed["fc1_w"], packed["fc1_b"],
                          packed["fc2_w"], packed["fc2_b"])
    else:
        w1 = packed["fc1_w"][head:head + 1]
        b1 = packed["fc1_b"][head:head + 1]
        w2 = packed["fc2_w"][head:head + 1]
        b2 = packed["fc2_b"][head:head + 1]
    q = _heads_gemm(featp, w1, b1, w2, b2)[:, :B, :n_actions]
    return q if head is None else q[0]


def ensemble_forward(packed, x, head=None, *, n_actions):
    q = _forward(packed, x, head=head, n_actions=n_actions)
    if head is None:
        return [q[i] for i in range(q.shape[0])]          # list, like PyTorch
    return q


# ----------------------------------------------------------------------------
# Pure-JAX (non-Pallas) reference with matching bf16 quantization, for checks
# ----------------------------------------------------------------------------
def reference_forward(params, x):
    def conv(h, w, b, stride):
        y = jax.lax.conv_general_dilated(
            h.astype(jnp.bfloat16), w.astype(jnp.bfloat16),
            (stride, stride), "VALID",
            dimension_numbers=("NCHW", "OIHW", "NCHW"),
            preferred_element_type=jnp.float32)
        y = jnp.maximum(y + b.reshape(1, -1, 1, 1), 0.0)
        return y.astype(jnp.bfloat16)

    h = conv(x, params["conv1_w"], params["conv1_b"], 4)
    h = conv(h, params["conv2_w"], params["conv2_b"], 2)
    h = conv(h, params["conv3_w"], params["conv3_b"], 1)
    feat = h.reshape(h.shape[0], -1)                       # NCHW flatten
    outs = []
    for hp in params["heads"]:
        z = jnp.dot(feat, hp["fc1_w"].astype(jnp.bfloat16),
                    preferred_element_type=jnp.float32)
        z = jnp.maximum(z + hp["fc1_b"], 0.0).astype(jnp.bfloat16)
        q = jnp.dot(z, hp["fc2_w"].astype(jnp.bfloat16),
                    preferred_element_type=jnp.float32) + hp["fc2_b"]
        outs.append(q)
    return outs


# ----------------------------------------------------------------------------
if __name__ == "__main__":
    key = jax.random.PRNGKey(0)
    k_param, k_x = jax.random.split(key)

    B, C, H, W = 2, 4, 84, 84       # 84x84 required by hard-coded 64*7*7 flatten
    n_ensemble, n_actions = 3, 6

    params = init_params(k_param, in_channels=C, n_actions=n_actions,
                         n_ensemble=n_ensemble)
    packed = pack_params(params, n_actions=n_actions)
    x = jax.random.normal(k_x, (B, C, H, W), dtype=jnp.float32)

    # forward(x, head=None) -> list of per-head Q-values
    outs = ensemble_forward(packed, x, head=None, n_actions=n_actions)
    outs = [jax.block_until_ready(o) for o in outs]
    assert len(outs) == n_ensemble
    for o in outs:
        assert o.shape == (B, n_actions) and o.dtype == jnp.float32

    # forward(x, head=1) -> single head's Q-values (same math, same kernels)
    out1 = jax.block_until_ready(
        ensemble_forward(packed, x, head=1, n_actions=n_actions))
    assert out1.shape == (B, n_actions)
    assert bool(jnp.allclose(out1, outs[1], atol=1e-4))

    # Cross-check against a plain-JAX reference with matching bf16 rounding.
    refs = reference_forward(params, x)
    for o, r in zip(outs, refs):
        assert np.allclose(np.asarray(o), np.asarray(r), rtol=2e-2, atol=2e-2)

    print("KERNEL_OK")
</pallas_src>

<mosaic_0001>
module attributes {stable_mosaic.version = 11 : i64} {
  func.func @_gemm_bias_act_kernel(%arg0: i32, %arg1: memref<256x256xbf16, #tpu.memory_space<vmem>>, %arg2: memref<256x128xbf16, #tpu.memory_space<vmem>>, %arg3: memref<1x128xf32, #tpu.memory_space<vmem>>, %arg4: memref<256x128xbf16, #tpu.memory_space<vmem>>) attributes {dimension_semantics = [#tpu.dimension_semantics<parallel>], iteration_bounds = array<i64: 4>, scalar_prefetch = 0 : i64, scratch_operands = 0 : i64, tpu.core_type = #tpu.core_type<tc>, window_params = [{transform_indices = @transform_0, window_bounds = array<i64: 256, 256>}, {pipeline_mode = #tpu.pipeline_mode<synchronous>, transform_indices = @transform_1, window_bounds = array<i64: 256, 128>}, {pipeline_mode = #tpu.pipeline_mode<synchronous>, transform_indices = @transform_2, window_bounds = array<i64: 1, 128>}, {transform_indices = @transform_3, window_bounds = array<i64: 256, 128>}]} {
    %c0 = arith.constant 0 : index
    %c0_0 = arith.constant 0 : index
    %0 = vector.load %arg1[%c0, %c0_0] : memref<256x256xbf16, #tpu.memory_space<vmem>>, vector<256x256xbf16>
    %c0_1 = arith.constant 0 : index
    %c0_2 = arith.constant 0 : index
    %1 = vector.load %arg2[%c0_1, %c0_2] : memref<256x128xbf16, #tpu.memory_space<vmem>>, vector<256x128xbf16>
    %cst = arith.constant dense<0.000000e+00> : vector<256x128xf32>
    %2 = tpu.matmul %0, %1, %cst {dimension_numbers = #tpu.dot_dimension_numbers<[1], [0], [0], [1], [0, 0, 1, 1], [], []>} : vector<256x256xbf16>, vector<256x128xbf16>, vector<256x128xf32> -> vector<256x128xf32>
    %c0_3 = arith.constant 0 : index
    %c0_4 = arith.constant 0 : index
    %3 = vector.load %arg3[%c0_3, %c0_4] : memref<1x128xf32, #tpu.memory_space<vmem>>, vector<1x128xf32>
    %4 = vector.broadcast %3 : vector<1x128xf32> to vector<256x128xf32>
    %5 = arith.addf %2, %4 : vector<256x128xf32>
    %cst_5 = arith.constant 0.000000e+00 : f32
    %6 = vector.broadcast %cst_5 : f32 to vector<256x128xf32>
    %7 = arith.maximumf %5, %6 : vector<256x128xf32>
    %8 = arith.truncf %7 : vector<256x128xf32> to vector<256x128xbf16>
    %c0_6 = arith.constant 0 : index
    %c0_7 = arith.constant 0 : index
    %9 = vector.load %arg4[%c0_6, %c0_7] : memref<256x128xbf16, #tpu.memory_space<vmem>>, vector<256x128xbf16>
    tpu.vector_store %arg4[%c0_6, %c0_7], %8 {strides = array<i32>} : memref<256x128xbf16, #tpu.memory_space<vmem>>, vector<256x128xbf16>,
    return
  }
  func.func @transform_0(%arg0: i32) -> (i32, i32) {
    %c0_i32 = arith.constant 0 : i32
    %c0_i32_0 = arith.constant 0 : i32
    return %arg0, %c0_i32 : i32, i32
  }
  func.func @transform_1(%arg0: i32) -> (i32, i32) {
    %c0_i32 = arith.constant 0 : i32
    %c0_i32_0 = arith.constant 0 : i32
    %c0_i32_1 = arith.constant 0 : i32
    return %c0_i32, %c0_i32_0 : i32, i32
  }
  func.func @transform_2(%arg0: i32) -> (i32, i32) {
    %c0_i32 = arith.constant 0 : i32
    %c0_i32_0 = arith.constant 0 : i32
    %c0_i32_1 = arith.constant 0 : i32
    return %c0_i32, %c0_i32_0 : i32, i32
  }
  func.func @transform_3(%arg0: i32) -> (i32, i32) {
    %c0_i32 = arith.constant 0 : i32
    %c0_i32_0 = arith.constant 0 : i32
    return %arg0, %c0_i32 : i32, i32
  }
}

module attributes {stable_mosaic.version = 11 : i64} {
  func.func @_gemm_bias_act_kernel(%arg0: i32, %arg1: memref<176x512xbf16, #tpu.memory_space<vmem>>, %arg2: memref<512x128xbf16, #tpu.memory_space<vmem>>, %arg3: memref<1x128xf32, #tpu.memory_space<vmem>>, %arg4: memref<176x128xbf16, #tpu.memory_space<vmem>>) attributes {dimension_semantics = [#tpu.dimension_semantics<parallel>], iteration_bounds = array<i64: 1>, scalar_prefetch = 0 : i64, scratch_operands = 0 : i64, tpu.core_type = #tpu.core_type<tc>, window_params = [{transform_indices = @transform_0, window_bounds = array<i64: 176, 512>}, {pipeline_mode = #tpu.pipeline_mode<synchronous>, transform_indices = @transform_1, window_bounds = array<i64: 512, 128>}, {pipeline_mode = #tpu.pipeline_mode<synchronous>, transform_indices = @transform_2, window_bounds = array<i64: 1, 128>}, {transform_indices = @transform_3, window_bounds = array<i64: 176, 128>}]} {
    %c0 = arith.constant 0 : index
    %c0_0 = arith.constant 0 : index
    %0 = vector.load %arg1[%c0, %c0_0] : memref<176x512xbf16, #tpu.memory_space<vmem>>, vector<176x512xbf16>
    %c0_1 = arith.constant 0 : index
    %c0_2 = arith.constant 0 : index
    %1 = vector.load %arg2[%c0_1, %c0_2] : memref<512x128xbf16, #tpu.memory_space<vmem>>, vector<512x128xbf16>
    %cst = arith.constant dense<0.000000e+00> : vector<176x128xf32>
    %2 = tpu.matmul %0, %1, %cst {dimension_numbers = #tpu.dot_dimension_numbers<[1], [0], [0], [1], [0, 0, 1, 1], [], []>} : vector<176x512xbf16>, vector<512x128xbf16>, vector<176x128xf32> -> vector<176x128xf32>
    %c0_3 = arith.constant 0 : index
    %c0_4 = arith.constant 0 : index
    %3 = vector.load %arg3[%c0_3, %c0_4] : memref<1x128xf32, #tpu.memory_space<vmem>>, vector<1x128xf32>
    %4 = vector.broadcast %3 : vector<1x128xf32> to vector<176x128xf32>
    %5 = arith.addf %2, %4 : vector<176x128xf32>
    %cst_5 = arith.constant 0.000000e+00 : f32
    %6 = vector.broadcast %cst_5 : f32 to vector<176x128xf32>
    %7 = arith.maximumf %5, %6 : vector<176x128xf32>
    %8 = arith.truncf %7 : vector<176x128xf32> to vector<176x128xbf16>
    %c0_6 = arith.constant 0 : index
    %c0_7 = arith.constant 0 : index
    %9 = vector.load %arg4[%c0_6, %c0_7] : memref<176x128xbf16, #tpu.memory_space<vmem>>, vector<176x128xbf16>
    tpu.vector_store %arg4[%c0_6, %c0_7], %8 {strides = array<i32>} : memref<176x128xbf16, #tpu.memory_space<vmem>>, vector<176x128xbf16>,
    return
  }
  func.func @transform_0(%arg0: i32) -> (i32, i32) {
    %c0_i32 = arith.constant 0 : i32
    %c0_i32_0 = arith.constant 0 : i32
    return %arg0, %c0_i32 : i32, i32
  }
  func.func @transform_1(%arg0: i32) -> (i32, i32) {
    %c0_i32 = arith.constant 0 : i32
    %c0_i32_0 = arith.constant 0 : i32
    %c0_i32_1 = arith.constant 0 : i32
    return %c0_i32, %c0_i32_0 : i32, i32
  }
  func.func @transform_2(%arg0: i32) -> (i32, i32) {
    %c0_i32 = arith.constant 0 : i32
    %c0_i32_0 = arith.constant 0 : i32
    %c0_i32_1 = arith.constant 0 : i32
    return %c0_i32, %c0_i32_0 : i32, i32
  }
  func.func @transform_3(%arg0: i32) -> (i32, i32) {
    %c0_i32 = arith.constant 0 : i32
    %c0_i32_0 = arith.constant 0 : i32
    return %arg0, %c0_i32 : i32, i32
  }
}

module attributes {stable_mosaic.version = 11 : i64} {
  func.func @_gemm_bias_act_kernel(%arg0: i32, %arg1: memref<112x640xbf16, #tpu.memory_space<vmem>>, %arg2: memref<640x128xbf16, #tpu.memory_space<vmem>>, %arg3: memref<1x128xf32, #tpu.memory_space<vmem>>, %arg4: memref<112x128xbf16, #tpu.memory_space<vmem>>) attributes {dimension_semantics = [#tpu.dimension_semantics<parallel>], iteration_bounds = array<i64: 1>, scalar_prefetch = 0 : i64, scratch_operands = 0 : i64, tpu.core_type = #tpu.core_type<tc>, window_params = [{transform_indices = @transform_0, window_bounds = array<i64: 112, 640>}, {pipeline_mode = #tpu.pipeline_mode<synchronous>, transform_indices = @transform_1, window_bounds = array<i64: 640, 128>}, {pipeline_mode = #tpu.pipeline_mode<synchronous>, transform_indices = @transform_2, window_bounds = array<i64: 1, 128>}, {transform_indices = @transform_3, window_bounds = array<i64: 112, 128>}]} {
    %c0 = arith.constant 0 : index
    %c0_0 = arith.constant 0 : index
    %0 = vector.load %arg1[%c0, %c0_0] : memref<112x640xbf16, #tpu.memory_space<vmem>>, vector<112x640xbf16>
    %c0_1 = arith.constant 0 : index
    %c0_2 = arith.constant 0 : index
    %1 = vector.load %arg2[%c0_1, %c0_2] : memref<640x128xbf16, #tpu.memory_space<vmem>>, vector<640x128xbf16>
    %cst = arith.constant dense<0.000000e+00> : vector<112x128xf32>
    %2 = tpu.matmul %0, %1, %cst {dimension_numbers = #tpu.dot_dimension_numbers<[1], [0], [0], [1], [0, 0, 1, 1], [], []>} : vector<112x640xbf16>, vector<640x128xbf16>, vector<112x128xf32> -> vector<112x128xf32>
    %c0_3 = arith.constant 0 : index
    %c0_4 = arith.constant 0 : index
    %3 = vector.load %arg3[%c0_3, %c0_4] : memref<1x128xf32, #tpu.memory_space<vmem>>, vector<1x128xf32>
    %4 = vector.broadcast %3 : vector<1x128xf32> to vector<112x128xf32>
    %5 = arith.addf %2, %4 : vector<112x128xf32>
    %cst_5 = arith.constant 0.000000e+00 : f32
    %6 = vector.broadcast %cst_5 : f32 to vector<112x128xf32>
    %7 = arith.maximumf %5, %6 : vector<112x128xf32>
    %8 = arith.truncf %7 : vector<112x128xf32> to vector<112x128xbf16>
    %c0_6 = arith.constant 0 : index
    %c0_7 = arith.constant 0 : index
    %9 = vector.load %arg4[%c0_6, %c0_7] : memref<112x128xbf16, #tpu.memory_space<vmem>>, vector<112x128xbf16>
    tpu.vector_store %arg4[%c0_6, %c0_7], %8 {strides = array<i32>} : memref<112x128xbf16, #tpu.memory_space<vmem>>, vector<112x128xbf16>,
    return
  }
  func.func @transform_0(%arg0: i32) -> (i32, i32) {
    %c0_i32 = arith.constant 0 : i32
    %c0_i32_0 = arith.constant 0 : i32
    return %arg0, %c0_i32 : i32, i32
  }
  func.func @transform_1(%arg0: i32) -> (i32, i32) {
    %c0_i32 = arith.constant 0 : i32
    %c0_i32_0 = arith.constant 0 : i32
    %c0_i32_1 = arith.constant 0 : i32
    return %c0_i32, %c0_i32_0 : i32, i32
  }
  func.func @transform_2(%arg0: i32) -> (i32, i32) {
    %c0_i32 = arith.constant 0 : i32
    %c0_i32_0 = arith.constant 0 : i32
    %c0_i32_1 = arith.constant 0 : i32
    return %c0_i32, %c0_i32_0 : i32, i32
  }
  func.func @transform_3(%arg0: i32) -> (i32, i32) {
    %c0_i32 = arith.constant 0 : i32
    %c0_i32_0 = arith.constant 0 : i32
    return %arg0, %c0_i32 : i32, i32
  }
}

module attributes {stable_mosaic.version = 11 : i64} {
  func.func @_heads_kernel(%arg0: i32, %arg1: memref<16x3200xbf16, #tpu.memory_space<vmem>>, %arg2: memref<1x3200x512xbf16, #tpu.memory_space<vmem>>, %arg3: memref<1x1x512xf32, #tpu.memory_space<vmem>>, %arg4: memref<1x512x128xbf16, #tpu.memory_space<vmem>>, %arg5: memref<1x1x128xf32, #tpu.memory_space<vmem>>, %arg6: memref<1x16x128xf32, #tpu.memory_space<vmem>>) attributes {dimension_semantics = [#tpu.dimension_semantics<parallel>], iteration_bounds = array<i64: 3>, scalar_prefetch = 0 : i64, scratch_operands = 0 : i64, tpu.core_type = #tpu.core_type<tc>, window_params = [{pipeline_mode = #tpu.pipeline_mode<synchronous>, transform_indices = @transform_0, window_bounds = array<i64: 16, 3200>}, {transform_indices = @transform_1, window_bounds = array<i64: 1, 3200, 512>}, {transform_indices = @transform_2, window_bounds = array<i64: 1, 1, 512>}, {transform_indices = @transform_3, window_bounds = array<i64: 1, 512, 128>}, {transform_indices = @transform_4, window_bounds = array<i64: 1, 1, 128>}, {transform_indices = @transform_5, window_bounds = array<i64: 1, 16, 128>}]} {
    %c0 = arith.constant 0 : index
    %c0_0 = arith.constant 0 : index
    %0 = vector.load %arg1[%c0, %c0_0] : memref<16x3200xbf16, #tpu.memory_space<vmem>>, vector<16x3200xbf16>
    %c0_1 = arith.constant 0 : index
    %c0_2 = arith.constant 0 : index
    %c0_3 = arith.constant 0 : index
    %1 = vector.load %arg2[%c0_1, %c0_2, %c0_3] : memref<1x3200x512xbf16, #tpu.memory_space<vmem>>, vector<1x3200x512xbf16>
    %2 = vector.shape_cast %1 : vector<1x3200x512xbf16> to vector<3200x512xbf16>
    %cst = arith.constant dense<0.000000e+00> : vector<16x512xf32>
    %3 = tpu.matmul %0, %2, %cst {dimension_numbers = #tpu.dot_dimension_numbers<[1], [0], [0], [1], [0, 0, 1, 1], [], []>} : vector<16x3200xbf16>, vector<3200x512xbf16>, vector<16x512xf32> -> vector<16x512xf32>
    %c0_4 = arith.constant 0 : index
    %c0_5 = arith.constant 0 : index
    %c0_6 = arith.constant 0 : index
    %4 = vector.load %arg3[%c0_4, %c0_5, %c0_6] : memref<1x1x512xf32, #tpu.memory_space<vmem>>, vector<1x1x512xf32>
    %5 = vector.shape_cast %4 : vector<1x1x512xf32> to vector<1x512xf32>
    %6 = vector.broadcast %5 : vector<1x512xf32> to vector<16x512xf32>
    %7 = arith.addf %3, %6 : vector<16x512xf32>
    %cst_7 = arith.constant 0.000000e+00 : f32
    %8 = vector.broadcast %cst_7 : f32 to vector<16x512xf32>
    %9 = arith.maximumf %7, %8 : vector<16x512xf32>
    %10 = arith.truncf %9 : vector<16x512xf32> to vector<16x512xbf16>
    %c0_8 = arith.constant 0 : index
    %c0_9 = arith.constant 0 : index
    %c0_10 = arith.constant 0 : index
    %11 = vector.load %arg4[%c0_8, %c0_9, %c0_10] : memref<1x512x128xbf16, #tpu.memory_space<vmem>>, vector<1x512x128xbf16>
    %12 = vector.shape_cast %11 : vector<1x512x128xbf16> to vector<512x128xbf16>
    %cst_11 = arith.constant dense<0.000000e+00> : vector<16x128xf32>
    %13 = tpu.matmul %10, %12, %cst_11 {dimension_numbers = #tpu.dot_dimension_numbers<[1], [0], [0], [1], [0, 0, 1, 1], [], []>} : vector<16x512xbf16>, vector<512x128xbf16>, vector<16x128xf32> -> vector<16x128xf32>
    %c0_12 = arith.constant 0 : index
    %c0_13 = arith.constant 0 : index
    %c0_14 = arith.constant 0 : index
    %14 = vector.load %arg5[%c0_12, %c0_13, %c0_14] : memref<1x1x128xf32, #tpu.memory_space<vmem>>, vector<1x1x128xf32>
    %15 = vector.shape_cast %14 : vector<1x1x128xf32> to vector<1x128xf32>
    %16 = vector.broadcast %15 : vector<1x128xf32> to vector<16x128xf32>
    %17 = arith.addf %13, %16 : vector<16x128xf32>
    %c0_15 = arith.constant 0 : index
    %c0_16 = arith.constant 0 : index
    %c0_17 = arith.constant 0 : index
    %18 = vector.load %arg6[%c0_15, %c0_16, %c0_17] : memref<1x16x128xf32, #tpu.memory_space<vmem>>, vector<1x16x128xf32>
    %19 = vector.shape_cast %18 : vector<1x16x128xf32> to vector<16x128xf32>
    %20 = vector.shape_cast %17 : vector<16x128xf32> to vector<1x16x128xf32>
    tpu.vector_store %arg6[%c0_15, %c0_16, %c0_17], %20 {strides = array<i32>} : memref<1x16x128xf32, #tpu.memory_space<vmem>>, vector<1x16x128xf32>,
    return
  }
  func.func @transform_0(%arg0: i32) -> (i32, i32) {
    %c0_i32 = arith.constant 0 : i32
    %c0_i32_0 = arith.constant 0 : i32
    %c0_i32_1 = arith.constant 0 : i32
    return %c0_i32, %c0_i32_0 : i32, i32
  }
  func.func @transform_1(%arg0: i32) -> (i32, i32, i32) {
    %c0_i32 = arith.constant 0 : i32
    %c0_i32_0 = arith.constant 0 : i32
    %c0_i32_1 = arith.constant 0 : i32
    return %arg0, %c0_i32, %c0_i32_0 : i32, i32, i32
  }
  func.func @transform_2(%arg0: i32) -> (i32, i32, i32) {
    %c0_i32 = arith.constant 0 : i32
    %c0_i32_0 = arith.constant 0 : i32
    %c0_i32_1 = arith.constant 0 : i32
    return %arg0, %c0_i32, %c0_i32_0 : i32, i32, i32
  }
  func.func @transform_3(%arg0: i32) -> (i32, i32, i32) {
    %c0_i32 = arith.constant 0 : i32
    %c0_i32_0 = arith.constant 0 : i32
    %c0_i32_1 = arith.constant 0 : i32
    return %arg0, %c0_i32, %c0_i32_0 : i32, i32, i32
  }
  func.func @transform_4(%arg0: i32) -> (i32, i32, i32) {
    %c0_i32 = arith.constant 0 : i32
    %c0_i32_0 = arith.constant 0 : i32
    %c0_i32_1 = arith.constant 0 : i32
    return %arg0, %c0_i32, %c0_i32_0 : i32, i32, i32
  }
  func.func @transform_5(%arg0: i32) -> (i32, i32, i32) {
    %c0_i32 = arith.constant 0 : i32
    %c0_i32_0 = arith.constant 0 : i32
    %c0_i32_1 = arith.constant 0 : i32
    return %arg0, %c0_i32, %c0_i32_0 : i32, i32, i32
  }
}

</mosaic_0001>

<llo_original>
// kernel: _forward.4
$region0: #{_forward.4}
  #allocation0 [shape = 'u32[]', space=smem, size = 0x4, offset = 0x4, fixed_abs, tag = 'smem constant byte address 0x4 - core index']
  #allocation1 [shape = 'u32[144,128]{1,0:T(1,128)}', space=vmem, size = 0x12000, scoped, tag = 'internal scratch']
  %s0 = inlined_call_operand.vmem [shape: bf16[1024,256], index: 0, kind: input, shape index: {}]
  %s1 = inlined_call_operand.vmem [shape: bf16[256,128], index: 1, kind: input, shape index: {}]
  %s2 = inlined_call_operand.vmem [shape: f32[1,128], index: 2, kind: input, shape index: {}]
  %s3 = inlined_call_operand.vmem [shape: bf16[1024,128], index: 3, kind: output, shape index: {}]
  %s4 = sld [smem:[#allocation0]]
  $region45: #{_forward.4} parent=0
    _
  %s6 = ssub.s32 1, %s4
  %s7 = scalar_select 0, %s6, %s4
  loop: start=0, step=1, limit=6
  $region2: #{_forward.4} parent=0 // loop_pre_header
    _
  $region3: #{_forward.4} parent=0 // loop_header
    %s9 = sphi 0, %s13
    %p10 = scmp.ge.s32.totalorder %s9, 6
    %s19 = sphi 0, %s21
    %s22 = sphi 0, %s19
    %s23 = sphi 0, %s22
    %s39 = sphi 0, %s23
    %s43 = sphi 0, %s43
    %s45 = sphi 0, %s43
    %s46 = sphi 0, %s45
    %s60 = sphi 0, %s46
    %s64 = sphi 0, %s64
    %s66 = sphi 0, %s64
    %s67 = sphi 0, %s66
    %s81 = sphi 0, %s67
    %s87 = sphi 0, %s89
    %s90 = sphi 0, %s87
    %s91 = sphi 0, %s90
    %s107 = sphi 0, %s91
  $region4: #{_forward.4} parent=0 // loop_header_branch
    %12 = sbr.rel (%p10) target = $region8
  $region5: #{_forward.4} parent=0 // loop_body
    %s14 = ssub.s32 %s9, 1
    %s15 = ssub.s32 %s9, 2
    %s16 = sadd.s32 %s9, 1
    %s17 = ssub.s32 %s9, %s16
    %p18 = scmp.eq.s32.totalorder %s17, 0
    %s20 = sadd.s32 %s19, 1
    %s21 = scalar_select %p18, %s19, %s20
    %p24 = pneg %p18
    %p25 = scmp.eq.s32.totalorder %s9, 3
    %p26 = por %p24, %p25
    %p27 = scmp.ne.s32.totalorder %s19, %s22
    %p28 = scmp.eq.s32.totalorder %s9, 0
    %p29 = por %p27, %p28
    %p30 = scmp.ne.s32.totalorder %s19, %s22
    %p31 = scmp.eq.s32.totalorder %s14, 3
    %p32 = por %p30, %p31
    %p33 = scmp.ne.s32.totalorder %s22, %s23
    %p34 = scmp.eq.s32.totalorder %s14, 0
    %p35 = por %p33, %p34
    %p36 = scmp.ne.s32.totalorder %s22, %s23
    %p37 = scmp.eq.s32.totalorder %s15, 3
    %p38 = por %p36, %p37
    %p40 = scmp.ne.s32.totalorder %s23, %s39
    %p41 = scmp.eq.s32.totalorder %s15, 0
    %p42 = por %p40, %p41
    %s44 = sadd.s32 %s43, 1
    %p47 = scmp.eq.s32.totalorder %s9, 3
    %p48 = scmp.ne.s32.totalorder %s43, %s45
    %p49 = scmp.eq.s32.totalorder %s9, 0
    %p50 = por %p48, %p49
    %p51 = scmp.ne.s32.totalorder %s43, %s45
    %p52 = scmp.eq.s32.totalorder %s14, 3
    %p53 = por %p51, %p52
    %p54 = scmp.ne.s32.totalorder %s45, %s46
    %p55 = scmp.eq.s32.totalorder %s14, 0
    %p56 = por %p54, %p55
    %p57 = scmp.ne.s32.totalorder %s45, %s46
    %p58 = scmp.eq.s32.totalorder %s15, 3
    %p59 = por %p57, %p58
    %p61 = scmp.ne.s32.totalorder %s46, %s60
    %p62 = scmp.eq.s32.totalorder %s15, 0
    %p63 = por %p61, %p62
    %s65 = sadd.s32 %s64, 1
    %p68 = scmp.eq.s32.totalorder %s9, 3
    %p69 = scmp.ne.s32.totalorder %s64, %s66
    %p70 = scmp.eq.s32.totalorder %s9, 0
    %p71 = por %p69, %p70
    %p72 = scmp.ne.s32.totalorder %s64, %s66
    %p73 = scmp.eq.s32.totalorder %s14, 3
    %p74 = por %p72, %p73
    %p75 = scmp.ne.s32.totalorder %s66, %s67
    %p76 = scmp.eq.s32.totalorder %s14, 0
    %p77 = por %p75, %p76
    %p78 = scmp.ne.s32.totalorder %s66, %s67
    %p79 = scmp.eq.s32.totalorder %s15, 3
    %p80 = por %p78, %p79
    %p82 = scmp.ne.s32.totalorder %s67, %s81
    %p83 = scmp.eq.s32.totalorder %s15, 0
    %p84 = por %p82, %p83
    %s85 = ssub.s32 %s9, %s16
    %p86 = scmp.eq.s32.totalorder %s85, 0
    %s88 = sadd.s32 %s87, 1
    %s89 = scalar_select %p86, %s87, %s88
    %p92 = pneg %p86
    %p93 = scmp.eq.s32.totalorder %s9, 3
    %p94 = por %p92, %p93
    %p95 = scmp.ne.s32.totalorder %s87, %s90
    %p96 = scmp.eq.s32.totalorder %s9, 0
    %p97 = por %p95, %p96
    %p98 = scmp.ne.s32.totalorder %s87, %s90
    %p99 = scmp.eq.s32.totalorder %s14, 3
    %p100 = por %p98, %p99
    %p101 = scmp.ne.s32.totalorder %s90, %s91
    %p102 = scmp.eq.s32.totalorder %s14, 0
    %p103 = por %p101, %p102
    %p104 = scmp.ne.s32.totalorder %s90, %s91
    %p105 = scmp.eq.s32.totalorder %s15, 3
    %p106 = por %p104, %p105
    %p108 = scmp.ne.s32.totalorder %s91, %s107
    %p109 = scmp.eq.s32.totalorder %s15, 0
    %p110 = por %p108, %p109
    %p111 = scmp.le.s32.totalorder 1, %s9
    %p112 = scmp.lt.s32.totalorder %s9, 5
    %p113 = pnand %p111, %p112
    %p114 = pneg %p113
    // Predicated region
    $region9: #{_forward.4} parent=5 // pred_check
      _
    $region10: #{_forward.4} parent=5 // pred_check_branch
      %116 = sbr.rel (%p113) target = $region12
    $region11: #{_forward.4} parent=5 // pred_region
      %s117 = ssub.s32 %s9, 1
      // Predicated region
      $region13: #{_forward.4} parent=11 // pred_check
        %p118 = pneg %p56
      $region14: #{_forward.4} parent=11 // pred_check_branch
        %120 = sbr.rel (%p118) target = $region16
      $region15: #{_forward.4} parent=11 // pred_region
        _
      $region16: #{_forward.4} parent=11 // pred_fallthru
        _
      // Predicated region
      $region17: #{_forward.4} parent=11 // pred_check
        %p121 = pneg %p77
      $region18: #{_forward.4} parent=11 // pred_check_branch
        %123 = sbr.rel (%p121) target = $region20
      $region19: #{_forward.4} parent=11 // pred_region
        _
      $region20: #{_forward.4} parent=11 // pred_fallthru
        _
    $region12: #{_forward.4} parent=5 // pred_fallthru
      _
    %p124 = scmp.lt.s32.totalorder %s9, 4
    // Predicated region
    $region21: #{_forward.4} parent=5 // pred_check
      %p125 = pneg %p124
    $region22: #{_forward.4} parent=5 // pred_check_branch
      %127 = sbr.rel (%p125) target = $region24
    $region23: #{_forward.4} parent=5 // pred_region
      // Predicated region
      $region25: #{_forward.4} parent=23 // pred_check
        %p128 = pneg %p29
      $region26: #{_forward.4} parent=23 // pred_check_branch
        %130 = sbr.rel (%p128) target = $region28
      $region27: #{_forward.4} parent=23 // pred_region
        %s131 = smul.u32 32, %s9
        %p132 = scmp.lt.s32.totalorder %s131, 127
        %s133 = scalar_select %p132, %s131, 127
        %s134 = smul.addr %s133, 2
        %s135 = smul.addr %s134, 4
        %s136 = scalar_lea.vmem %s0, %s135
        %s137 = smul.u32 32, %s9
      $region28: #{_forward.4} parent=23 // pred_fallthru
        _
    $region24: #{_forward.4} parent=5 // pred_fallthru
      _
    %p138 = scmp.le.s32.totalorder 1, %s9
    %p139 = scmp.lt.s32.totalorder %s9, 5
    %p140 = pnand %p138, %p139
    %p141 = pneg %p140
    // Predicated region
    $region29: #{_forward.4} parent=5 // pred_check
      _
    $region30: #{_forward.4} parent=5 // pred_check_branch
      %143 = sbr.rel (%p140) target = $region32
    $region31: #{_forward.4} parent=5 // pred_region
      %s144 = ssub.s32 %s9, 1
      %s145 = smul.u32 32, %s14
      %p146 = scmp.lt.s32.totalorder %s145, 127
      %s147 = scalar_select %p146, %s145, 127
      %s148 = smul.addr %s147, 2
      %s149 = smul.addr %s148, 4
      %s150 = scalar_lea.vmem %s0, %s149
      %p151 = pneg %p35
      %p152 = pneg %p32
      %p153 = pneg %p56
      %p154 = pneg %p53
      %p155 = pneg %p77
      %p156 = pneg %p74
      %p157 = pneg %p103
      %p158 = pneg %p100
      %s159 = smul.u32 32, %s14
      %p160 = scmp.lt.s32.totalorder %s159, 127
      %s161 = scalar_select %p160, %s159, 127
      %s162 = smul.addr %s161, 4
      %s163 = scalar_lea.vmem %s3, %s162
      %s164 = smul.u32 32, %s14
      %p165 = scmp.lt.s32.totalorder %s164, 127
      %s166 = scalar_select %p165, %s164, 127
      %s167 = smul.addr %s166, 2
      %s168 = smul.addr %s167, 4
      %s169 = scalar_lea.vmem %s0, %s168
      %s170 = smul.u32 32, %s14
      %s171 = smul.u32 32, %s14
      %p172 = scmp.lt.s32.totalorder %s171, 127
      %s173 = scalar_select %p172, %s171, 127
      %s174 = smul.addr %s173, 4
      %s175 = scalar_lea.vmem %s3, %s174
      %s176 = smul.u32 32, %s14
      %v178 = vld [vmem:[%s169] sm:$0xff]
      %v179 = vld [vmem:[%s169 + $0x8] sm:$0xff]
      %v180 = vld [vmem:[%s169 + $0x10] sm:$0xff]
      %v181 = vld [vmem:[%s169 + $0x18] sm:$0xff]
      %v182 = vld [vmem:[%s169 + $0x20] sm:$0xff]
      %v183 = vld [vmem:[%s169 + $0x28] sm:$0xff]
      %v184 = vld [vmem:[%s169 + $0x30] sm:$0xff]
      %v185 = vld [vmem:[%s169 + $0x38] sm:$0xff]
      %v186 = vld [vmem:[%s169 + $0x40] sm:$0xff]
      %v187 = vld [vmem:[%s169 + $0x48] sm:$0xff]
      %v188 = vld [vmem:[%s169 + $0x50] sm:$0xff]
      %v189 = vld [vmem:[%s169 + $0x58] sm:$0xff]
      %v190 = vld [vmem:[%s169 + $0x60] sm:$0xff]
      %v191 = vld [vmem:[%s169 + $0x68] sm:$0xff]
      %v192 = vld [vmem:[%s169 + $0x70] sm:$0xff]
      %v193 = vld [vmem:[%s169 + $0x78] sm:$0xff]
      %v194 = vld [vmem:[%s169 + $0x80] sm:$0xff]
      %v195 = vld [vmem:[%s169 + $0x88] sm:$0xff]
      %v196 = vld [vmem:[%s169 + $0x90] sm:$0xff]
      %v197 = vld [vmem:[%s169 + $0x98] sm:$0xff]
      %v198 = vld [vmem:[%s169 + $0xa0] sm:$0xff]
      %v199 = vld [vmem:[%s169 + $0xa8] sm:$0xff]
      %v200 = vld [vmem:[%s169 + $0xb0] sm:$0xff]
      %v201 = vld [vmem:[%s169 + $0xb8] sm:$0xff]
      %v202 = vld [vmem:[%s169 + $0xc0] sm:$0xff]
      %v203 = vld [vmem:[%s169 + $0xc8] sm:$0xff]
      %v204 = vld [vmem:[%s169 + $0xd0] sm:$0xff]
      %v205 = vld [vmem:[%s169 + $0xd8] sm:$0xff]
      %v206 = vld [vmem:[%s169 + $0xe0] sm:$0xff]
      %v207 = vld [vmem:[%s169 + $0xe8] sm:$0xff]
      %v208 = vld [vmem:[%s169 + $0xf0] sm:$0xff]
      %v209 = vld [vmem:[%s169 + $0xf8] sm:$0xff]
      %v210 = vld [vmem:[%s1] sm:$0xf]
      %v211 = vld [vmem:[%s1 + $0x4] sm:$0xf]
      %v212 = vld [vmem:[%s1 + $0x8] sm:$0xf]
      %v213 = vld [vmem:[%s1 + $0xc] sm:$0xf]
      %v214 = vld [vmem:[%s1 + $0x10] sm:$0xf]
      %v215 = vld [vmem:[%s1 + $0x14] sm:$0xf]
      %v216 = vld [vmem:[%s1 + $0x18] sm:$0xf]
      %v217 = vld [vmem:[%s1 + $0x1c] sm:$0xf]
      %v218 = vld [vmem:[%s1 + $0x20] sm:$0xf]
      %v219 = vld [vmem:[%s1 + $0x24] sm:$0xf]
      %v220 = vld [vmem:[%s1 + $0x28] sm:$0xf]
      %v221 = vld [vmem:[%s1 + $0x2c] sm:$0xf]
      %v222 = vld [vmem:[%s1 + $0x30] sm:$0xf]
      %v223 = vld [vmem:[%s1 + $0x34] sm:$0xf]
      %v224 = vld [vmem:[%s1 + $0x38] sm:$0xf]
      %v225 = vld [vmem:[%s1 + $0x3c] sm:$0xf]
      %v226 = vld [vmem:[%s1 + $0x40] sm:$0xf]
      %v227 = vld [vmem:[%s1 + $0x44] sm:$0xf]
      %v228 = vld [vmem:[%s1 + $0x48] sm:$0xf]
      %v229 = vld [vmem:[%s1 + $0x4c] sm:$0xf]
      %v230 = vld [vmem:[%s1 + $0x50] sm:$0xf]
      %v231 = vld [vmem:[%s1 + $0x54] sm:$0xf]
      %v232 = vld [vmem:[%s1 + $0x58] sm:$0xf]
      %v233 = vld [vmem:[%s1 + $0x5c] sm:$0xf]
      %v234 = vld [vmem:[%s1 + $0x60] sm:$0xf]
      %v235 = vld [vmem:[%s1 + $0x64] sm:$0xf]
      %v236 = vld [vmem:[%s1 + $0x68] sm:$0xf]
      %v237 = vld [vmem:[%s1 + $0x6c] sm:$0xf]
      %v238 = vld [vmem:[%s1 + $0x70] sm:$0xf]
      %v239 = vld [vmem:[%s1 + $0x74] sm:$0xf]
      %v240 = vld [vmem:[%s1 + $0x78] sm:$0xf]
      %v241 = vld [vmem:[%s1 + $0x7c] sm:$0xf]
      %v242 = vld [vmem:[%s2] sm:$0x1]
      %v244 = vlaneseq
      %v245 = vshrl.u32 %v244, 7
      %v246 = vsub.s32 0, %v245
      %v247 = vrot.slane %v242, %v246
      %v281 = vunpack.c.l.b16 %v178
      %v282 = vunpack.c.h.b16 %v178
      %v283 = vunpack.c.l.b16 %v179
      %v284 = vunpack.c.h.b16 %v179
      %v285 = vunpack.c.l.b16 %v180
      %v286 = vunpack.c.h.b16 %v180
      %v287 = vunpack.c.l.b16 %v181
      %v288 = vunpack.c.h.b16 %v181
      %v289 = vunpack.c.l.b16 %v182
      %v290 = vunpack.c.h.b16 %v182
      %v291 = vunpack.c.l.b16 %v183
      %v292 = vunpack.c.h.b16 %v183
      %v293 = vunpack.c.l.b16 %v184
      %v294 = vunpack.c.h.b16 %v184
      %v295 = vunpack.c.l.b16 %v185
      %v296 = vunpack.c.h.b16 %v185
      %v297 = vunpack.c.l.b16 %v186
      %v298 = vunpack.c.h.b16 %v186
      %v299 = vunpack.c.l.b16 %v187
      %v300 = vunpack.c.h.b16 %v187
      %v301 = vunpack.c.l.b16 %v188
      %v302 = vunpack.c.h.b16 %v188
      %v303 = vunpack.c.l.b16 %v189
      %v304 = vunpack.c.h.b16 %v189
      %v305 = vunpack.c.l.b16 %v190
      %v306 = vunpack.c.h.b16 %v190
      %v307 = vunpack.c.l.b16 %v191
      %v308 = vunpack.c.h.b16 %v191
      %v309 = vunpack.c.l.b16 %v192
      %v310 = vunpack.c.h.b16 %v192
      %v311 = vunpack.c.l.b16 %v193
      %v312 = vunpack.c.h.b16 %v193
      %v313 = vunpack.c.l.b16 %v194
      %v314 = vunpack.c.h.b16 %v194
      %v315 = vunpack.c.l.b16 %v195
      %v316 = vunpack.c.h.b16 %v195
      %v317 = vunpack.c.l.b16 %v196
      %v318 = vunpack.c.h.b16 %v196
      %v319 = vunpack.c.l.b16 %v197
      %v320 = vunpack.c.h.b16 %v197
      %v321 = vunpack.c.l.b16 %v198
      %v322 = vunpack.c.h.b16 %v198
      %v323 = vunpack.c.l.b16 %v199
      %v324 = vunpack.c.h.b16 %v199
      %v325 = vunpack.c.l.b16 %v200
      %v326 = vunpack.c.h.b16 %v200
      %v327 = vunpack.c.l.b16 %v201
      %v328 = vunpack.c.h.b16 %v201
      %v329 = vunpack.c.l.b16 %v202
      %v330 = vunpack.c.h.b16 %v202
      %v331 = vunpack.c.l.b16 %v203
      %v332 = vunpack.c.h.b16 %v203
      %v333 = vunpack.c.l.b16 %v204
      %v334 = vunpack.c.h.b16 %v204
      %v335 = vunpack.c.l.b16 %v205
      %v336 = vunpack.c.h.b16 %v205
      %v337 = vunpack.c.l.b16 %v206
      %v338 = vunpack.c.h.b16 %v206
      %v339 = vunpack.c.l.b16 %v207
      %v340 = vunpack.c.h.b16 %v207
      %v341 = vunpack.c.l.b16 %v208
      %v342 = vunpack.c.h.b16 %v208
      %v343 = vunpack.c.l.b16 %v209
      %v344 = vunpack.c.h.b16 %v209
      %v345 = vpack.c.b16 %v283, %v281
      %v346 = vpack.c.b16 %v284, %v282
      %v347 = vpack.c.b16 %v287, %v285
      %v348 = vpack.c.b16 %v288, %v286
      %v349 = vpack.c.b16 %v291, %v289
      %v350 = vpack.c.b16 %v292, %v290
      %v351 = vpack.c.b16 %v295, %v293
      %v352 = vpack.c.b16 %v296, %v294
      %v353 = vpack.c.b16 %v299, %v297
      %v354 = vpack.c.b16 %v300, %v298
      %v355 = vpack.c.b16 %v303, %v301
      %v356 = vpack.c.b16 %v304, %v302
      %v357 = vpack.c.b16 %v307, %v305
      %v358 = vpack.c.b16 %v308, %v306
      %v359 = vpack.c.b16 %v311, %v309
      %v360 = vpack.c.b16 %v312, %v310
      %v361 = vpack.c.b16 %v315, %v313
      %v362 = vpack.c.b16 %v316, %v314
      %v363 = vpack.c.b16 %v319, %v317
      %v364 = vpack.c.b16 %v320, %v318
      %v365 = vpack.c.b16 %v323, %v321
      %v366 = vpack.c.b16 %v324, %v322
      %v367 = vpack.c.b16 %v327, %v325
      %v368 = vpack.c.b16 %v328, %v326
      %v369 = vpack.c.b16 %v331, %v329
      %v370 = vpack.c.b16 %v332, %v330
      %v371 = vpack.c.b16 %v335, %v333
      %v372 = vpack.c.b16 %v336, %v334
      %v373 = vpack.c.b16 %v339, %v337
      %v374 = vpack.c.b16 %v340, %v338
      %v375 = vpack.c.b16 %v343, %v341
      %v376 = vpack.c.b16 %v344, %v342
      %v441 = vunpack.c.l.b16 %v210
      %v442 = vunpack.c.l.b16 %v211
      %v443 = vunpack.c.l.b16 %v212
      %v444 = vunpack.c.l.b16 %v213
      %v445 = vunpack.c.l.b16 %v214
      %v446 = vunpack.c.l.b16 %v215
      %v447 = vunpack.c.l.b16 %v216
      %v448 = vunpack.c.l.b16 %v217
      %v449 = vunpack.c.l.b16 %v218
      %v450 = vunpack.c.l.b16 %v219
      %v451 = vunpack.c.l.b16 %v220
      %v452 = vunpack.c.l.b16 %v221
      %v453 = vunpack.c.l.b16 %v222
      %v454 = vunpack.c.l.b16 %v223
      %v455 = vunpack.c.l.b16 %v224
      %v456 = vunpack.c.l.b16 %v225
      %v457 = vunpack.c.l.b16 %v226
      %v458 = vunpack.c.l.b16 %v227
      %v459 = vunpack.c.l.b16 %v228
      %v460 = vunpack.c.l.b16 %v229
      %v461 = vunpack.c.l.b16 %v230
      %v462 = vunpack.c.l.b16 %v231
      %v463 = vunpack.c.l.b16 %v232
      %v464 = vunpack.c.l.b16 %v233
      %v465 = vunpack.c.l.b16 %v234
      %v466 = vunpack.c.l.b16 %v235
      %v467 = vunpack.c.l.b16 %v236
      %v468 = vunpack.c.l.b16 %v237
      %v469 = vunpack.c.l.b16 %v238
      %v470 = vunpack.c.l.b16 %v239
      %v471 = vunpack.c.l.b16 %v240
      %v472 = vunpack.c.l.b16 %v241
      %v473 = vpack.c.b16 %v442, %v441
      %v474 = vpack.c.b16 %v444, %v443
      %v475 = vpack.c.b16 %v446, %v445
      %v476 = vpack.c.b16 %v448, %v447
      %v477 = vpack.c.b16 %v450, %v449
      %v478 = vpack.c.b16 %v452, %v451
      %v479 = vpack.c.b16 %v454, %v453
      %v480 = vpack.c.b16 %v456, %v455
      %v481 = vpack.c.b16 %v458, %v457
      %v482 = vpack.c.b16 %v460, %v459
      %v483 = vpack.c.b16 %v462, %v461
      %v484 = vpack.c.b16 %v464, %v463
      %v485 = vpack.c.b16 %v466, %v465
      %v486 = vpack.c.b16 %v468, %v467
      %v487 = vpack.c.b16 %v470, %v469
      %v488 = vpack.c.b16 %v472, %v471
      %505 = vmatprep.subr.bf16.mxu0 0
      %506 = vmatpush1.bf16.msra.mxu0 %v473
      %507 = vmatprep.subr.bf16.mxu0 0
      %508 = vmatpush1.bf16.msra.mxu0 %v474
      %509 = vmatprep.subr.bf16.mxu0 0
      %510 = vmatpush1.bf16.msra.mxu0 %v475
      %511 = vmatprep.subr.bf16.mxu0 0
      %512 = vmatpush1.bf16.msra.mxu0 %v476
      %513 = vmatprep.subr.bf16.mxu0 0
      %514 = vmatpush1.bf16.msra.mxu0 %v477
      %515 = vmatprep.subr.bf16.mxu0 0
      %516 = vmatpush1.bf16.msra.mxu0 %v478
      %517 = vmatprep.subr.bf16.mxu0 0
      %518 = vmatpush1.bf16.msra.mxu0 %v479
      %519 = vmatprep.subr.bf16.mxu0 0
      %520 = vmatpush1.bf16.msra.mxu0 %v480
      %521 = vmatprep.subr.bf16.mxu0 0
      %522 = vmatpush1.bf16.msra.mxu0 %v481
      %523 = vmatprep.subr.bf16.mxu0 0
      %524 = vmatpush1.bf16.msra.mxu0 %v482
      %525 = vmatprep.subr.bf16.mxu0 0
      %526 = vmatpush1.bf16.msra.mxu0 %v483
      %527 = vmatprep.subr.bf16.mxu0 0
      %528 = vmatpush1.bf16.msra.mxu0 %v484
      %529 = vmatprep.subr.bf16.mxu0 0
      %530 = vmatpush1.bf16.msra.mxu0 %v485
      %531 = vmatprep.subr.bf16.mxu0 0
      %532 = vmatpush1.bf16.msra.mxu0 %v486
      %533 = vmatprep.subr.bf16.mxu0 0
      %534 = vmatpush1.bf16.msra.mxu0 %v487
      %535 = vmatprep.subr.bf16.mxu0 0
      %536 = vmatpush1.bf16.msra.mxu0 %v488
      %537 = vmatprep.mubr.bf16.mxu0 %v346
      %538 = vmatmul.mubr.bf16.gmra.mrb[0].mxu0 %v345
      %v539 = vpop.f32.mrb[0].mxu0
      %v540 = vadd.f32 %v247, %v539
      %v541 = vpop.f32.mrb[0].mxu0
      %v542 = vpop.f32.mrb[0].mxu0
      %v543 = vadd.f32 %v247, %v542
      %v544 = vpop.f32.mrb[0].mxu0
      %545 = vmatprep.mubr.bf16.mxu0 %v348
      %546 = vmatmul.mubr.bf16.gmra.mrb[0].mxu0 %v347
      %v547 = vpop.f32.mrb[0].mxu0
      %v548 = vadd.f32 %v247, %v547
      %v549 = vpop.f32.mrb[0].mxu0
      %v550 = vpop.f32.mrb[0].mxu0
      %v551 = vadd.f32 %v247, %v550
      %v552 = vpop.f32.mrb[0].mxu0
      %553 = vmatprep.mubr.bf16.mxu0 %v350
      %554 = vmatmul.mubr.bf16.gmra.mrb[0].mxu0 %v349
      %v555 = vpop.f32.mrb[0].mxu0
      %v556 = vadd.f32 %v247, %v555
      %v557 = vpop.f32.mrb[0].mxu0
      %v558 = vpop.f32.mrb[0].mxu0
      %v559 = vadd.f32 %v247, %v558
      %v560 = vpop.f32.mrb[0].mxu0
      %561 = vmatprep.mubr.bf16.mxu0 %v352
      %562 = vmatmul.mubr.bf16.gmra.mrb[0].mxu0 %v351
      %v563 = vpop.f32.mrb[0].mxu0
      %v564 = vadd.f32 %v247, %v563
      %v565 = vpop.f32.mrb[0].mxu0
      %v566 = vpop.f32.mrb[0].mxu0
      %v567 = vadd.f32 %v247, %v566
      %v568 = vpop.f32.mrb[0].mxu0
      %569 = vmatprep.mubr.bf16.mxu0 %v354
      %570 = vmatmul.mubr.bf16.gmra.mrb[0].mxu0 %v353
      %v571 = vpop.f32.mrb[0].mxu0
      %v572 = vadd.f32 %v247, %v571
      %v573 = vpop.f32.mrb[0].mxu0
      %v574 = vpop.f32.mrb[0].mxu0
      %v575 = vadd.f32 %v247, %v574
      %v576 = vpop.f32.mrb[0].mxu0
      %577 = vmatprep.mubr.bf16.mxu0 %v356
      %578 = vmatmul.mubr.bf16.gmra.mrb[0].mxu0 %v355
      %v579 = vpop.f32.mrb[0].mxu0
      %v580 = vadd.f32 %v247, %v579
      %v581 = vpop.f32.mrb[0].mxu0
      %v582 = vpop.f32.mrb[0].mxu0
      %v583 = vadd.f32 %v247, %v582
      %v584 = vpop.f32.mrb[0].mxu0
      %585 = vmatprep.mubr.bf16.mxu0 %v358
      %586 = vmatmul.mubr.bf16.gmra.mrb[0].mxu0 %v357
      %v587 = vpop.f32.mrb[0].mxu0
      %v588 = vadd.f32 %v247, %v587
      %v589 = vpop.f32.mrb[0].mxu0
      %v590 = vpop.f32.mrb[0].mxu0
      %v591 = vadd.f32 %v247, %v590
      %v592 = vpop.f32.mrb[0].mxu0
      %593 = vmatprep.mubr.bf16.mxu0 %v360
      %594 = vmatmul.mubr.bf16.gmra.mrb[0].mxu0 %v359
      %v595 = vpop.f32.mrb[0].mxu0
      %v596 = vadd.f32 %v247, %v595
      %v597 = vpop.f32.mrb[0].mxu0
      %v598 = vpop.f32.mrb[0].mxu0
      %v599 = vadd.f32 %v247, %v598
      %v600 = vpop.f32.mrb[0].mxu0
      %601 = vmatprep.mubr.bf16.mxu0 %v362
      %602 = vmatmul.mubr.bf16.gmra.mrb[0].mxu0 %v361
      %v603 = vpop.f32.mrb[0].mxu0
      %v604 = vadd.f32 %v247, %v603
      %v605 = vpop.f32.mrb[0].mxu0
      %v606 = vpop.f32.mrb[0].mxu0
      %v607 = vadd.f32 %v247, %v606
      %v608 = vpop.f32.mrb[0].mxu0
      %609 = vmatprep.mubr.bf16.mxu0 %v364
      %610 = vmatmul.mubr.bf16.gmra.mrb[0].mxu0 %v363
      %v611 = vpop.f32.mrb[0].mxu0
      %v612 = vadd.f32 %v247, %v611
      %v613 = vpop.f32.mrb[0].mxu0
      %v614 = vpop.f32.mrb[0].mxu0
      %v615 = vadd.f32 %v247, %v614
      %v616 = vpop.f32.mrb[0].mxu0
      %617 = vmatprep.mubr.bf16.mxu0 %v366
      %618 = vmatmul.mubr.bf16.gmra.mrb[0].mxu0 %v365
      %v619 = vpop.f32.mrb[0].mxu0
      %v620 = vadd.f32 %v247, %v619
      %v621 = vpop.f32.mrb[0].mxu0
      %v622 = vpop.f32.mrb[0].mxu0
      %v623 = vadd.f32 %v247, %v622
      %v624 = vpop.f32.mrb[0].mxu0
      %625 = vmatprep.mubr.bf16.mxu0 %v368
      %626 = vmatmul.mubr.bf16.gmra.mrb[0].mxu0 %v367
      %v627 = vpop.f32.mrb[0].mxu0
      %v628 = vadd.f32 %v247, %v627
      %v629 = vpop.f32.mrb[0].mxu0
      %v630 = vpop.f32.mrb[0].mxu0
      %v631 = vadd.f32 %v247, %v630
      %v632 = vpop.f32.mrb[0].mxu0
      %633 = vmatprep.mubr.bf16.mxu0 %v370
      %634 = vmatmul.mubr.bf16.gmra.mrb[0].mxu0 %v369
      %v635 = vpop.f32.mrb[0].mxu0
      %v636 = vadd.f32 %v247, %v635
      %v637 = vpop.f32.mrb[0].mxu0
      %v638 = vpop.f32.mrb[0].mxu0
      %v639 = vadd.f32 %v247, %v638
      %v640 = vpop.f32.mrb[0].mxu0
      %641 = vmatprep.mubr.bf16.mxu0 %v372
      %642 = vmatmul.mubr.bf16.gmra.mrb[0].mxu0 %v371
      %v643 = vpop.f32.mrb[0].mxu0
      %v644 = vadd.f32 %v247, %v643
      %v645 = vpop.f32.mrb[0].mxu0
      %v646 = vpop.f32.mrb[0].mxu0
      %v647 = vadd.f32 %v247, %v646
      %v648 = vpop.f32.mrb[0].mxu0
      %649 = vmatprep.mubr.bf16.mxu0 %v374
      %650 = vmatmul.mubr.bf16.gmra.mrb[0].mxu0 %v373
      %v651 = vpop.f32.mrb[0].mxu0
      %v652 = vadd.f32 %v247, %v651
      %v653 = vpop.f32.mrb[0].mxu0
      %v654 = vpop.f32.mrb[0].mxu0
      %v655 = vadd.f32 %v247, %v654
      %v656 = vpop.f32.mrb[0].mxu0
      %657 = vmatprep.mubr.bf16.mxu0 %v376
      %658 = vmatmul.mubr.bf16.gmra.mrb[0].mxu0 %v375
      %v659 = vpop.f32.mrb[0].mxu0
      %v660 = vadd.f32 %v247, %v659
      %v661 = vpop.f32.mrb[0].mxu0
      %v662 = vpop.f32.mrb[0].mxu0
      %v663 = vadd.f32 %v247, %v662
      %v664 = vpop.f32.mrb[0].mxu0
      %665 = vdwg.mxu0
      %v666 = vmax.f32 %v540, 0.0
      %v667 = vmax.f32 %v543, 0.0
      %v668 = vmax.f32 %v548, 0.0
      %v669 = vmax.f32 %v551, 0.0
      %v670 = vmax.f32 %v556, 0.0
      %v671 = vmax.f32 %v559, 0.0
      %v672 = vmax.f32 %v564, 0.0
      %v673 = vmax.f32 %v567, 0.0
      %v674 = vmax.f32 %v572, 0.0
      %v675 = vmax.f32 %v575, 0.0
      %v676 = vmax.f32 %v580, 0.0
      %v677 = vmax.f32 %v583, 0.0
      %v678 = vmax.f32 %v588, 0.0
      %v679 = vmax.f32 %v591, 0.0
      %v680 = vmax.f32 %v596, 0.0
      %v681 = vmax.f32 %v599, 0.0
      %v682 = vmax.f32 %v604, 0.0
      %v683 = vmax.f32 %v607, 0.0
      %v684 = vmax.f32 %v612, 0.0
      %v685 = vmax.f32 %v615, 0.0
      %v686 = vmax.f32 %v620, 0.0
      %v687 = vmax.f32 %v623, 0.0
      %v688 = vmax.f32 %v628, 0.0
      %v689 = vmax.f32 %v631, 0.0
      %v690 = vmax.f32 %v636, 0.0
      %v691 = vmax.f32 %v639, 0.0
      %v692 = vmax.f32 %v644, 0.0
      %v693 = vmax.f32 %v647, 0.0
      %v694 = vmax.f32 %v652, 0.0
      %v695 = vmax.f32 %v655, 0.0
      %v696 = vmax.f32 %v660, 0.0
      %v697 = vmax.f32 %v663, 0.0
      %v698 = vpack.c.bf16 %v667, %v666
      %v699 = vpack.c.bf16 %v669, %v668
      %v700 = vpack.c.bf16 %v671, %v670
      %v701 = vpack.c.bf16 %v673, %v672
      %v702 = vpack.c.bf16 %v675, %v674
      %v703 = vpack.c.bf16 %v677, %v676
      %v704 = vpack.c.bf16 %v679, %v678
      %v705 = vpack.c.bf16 %v681, %v680
      %v706 = vpack.c.bf16 %v683, %v682
      %v707 = vpack.c.bf16 %v685, %v684
      %v708 = vpack.c.bf16 %v687, %v686
      %v709 = vpack.c.bf16 %v689, %v688
      %v710 = vpack.c.bf16 %v691, %v690
      %v711 = vpack.c.bf16 %v693, %v692
      %v712 = vpack.c.bf16 %v695, %v694
      %v713 = vpack.c.bf16 %v697, %v696
      %v730 = vunpack.c.l.b16 %v698
      %v731 = vunpack.c.h.b16 %v698
      %v732 = vunpack.c.l.b16 %v699
      %v733 = vunpack.c.h.b16 %v699
      %v734 = vunpack.c.l.b16 %v700
      %v735 = vunpack.c.h.b16 %v700
      %v736 = vunpack.c.l.b16 %v701
      %v737 = vunpack.c.h.b16 %v701
      %v738 = vunpack.c.l.b16 %v702
      %v739 = vunpack.c.h.b16 %v702
      %v740 = vunpack.c.l.b16 %v703
      %v741 = vunpack.c.h.b16 %v703
      %v742 = vunpack.c.l.b16 %v704
      %v743 = vunpack.c.h.b16 %v704
      %v744 = vunpack.c.l.b16 %v705
      %v745 = vunpack.c.h.b16 %v705
      %v746 = vunpack.c.l.b16 %v706
      %v747 = vunpack.c.h.b16 %v706
      %v748 = vunpack.c.l.b16 %v707
      %v749 = vunpack.c.h.b16 %v707
      %v750 = vunpack.c.l.b16 %v708
      %v751 = vunpack.c.h.b16 %v708
      %v752 = vunpack.c.l.b16 %v709
      %v753 = vunpack.c.h.b16 %v709
      %v754 = vunpack.c.l.b16 %v710
      %v755 = vunpack.c.h.b16 %v710
      %v756 = vunpack.c.l.b16 %v711
      %v757 = vunpack.c.h.b16 %v711
      %v758 = vunpack.c.l.b16 %v712
      %v759 = vunpack.c.h.b16 %v712
      %v760 = vunpack.c.l.b16 %v713
      %v761 = vunpack.c.h.b16 %v713
      %v762 = vpack.c.b16 %v730, %v730
      %v763 = vpack.c.b16 %v731, %v731
      %v764 = vpack.c.b16 %v732, %v732
      %v765 = vpack.c.b16 %v733, %v733
      %v766 = vpack.c.b16 %v734, %v734
      %v767 = vpack.c.b16 %v735, %v735
      %v768 = vpack.c.b16 %v736, %v736
      %v769 = vpack.c.b16 %v737, %v737
      %v770 = vpack.c.b16 %v738, %v738
      %v771 = vpack.c.b16 %v739, %v739
      %v772 = vpack.c.b16 %v740, %v740
      %v773 = vpack.c.b16 %v741, %v741
      %v774 = vpack.c.b16 %v742, %v742
      %v775 = vpack.c.b16 %v743, %v743
      %v776 = vpack.c.b16 %v744, %v744
      %v777 = vpack.c.b16 %v745, %v745
      %v778 = vpack.c.b16 %v746, %v746
      %v779 = vpack.c.b16 %v747, %v747
      %v780 = vpack.c.b16 %v748, %v748
      %v781 = vpack.c.b16 %v749, %v749
      %v782 = vpack.c.b16 %v750, %v750
      %v783 = vpack.c.b16 %v751, %v751
      %v784 = vpack.c.b16 %v752, %v752
      %v785 = vpack.c.b16 %v753, %v753
      %v786 = vpack.c.b16 %v754, %v754
      %v787 = vpack.c.b16 %v755, %v755
      %v788 = vpack.c.b16 %v756, %v756
      %v789 = vpack.c.b16 %v757, %v757
      %v790 = vpack.c.b16 %v758, %v758
      %v791 = vpack.c.b16 %v759, %v759
      %v792 = vpack.c.b16 %v760, %v760
      %v793 = vpack.c.b16 %v761, %v761
      %826 = vst [vmem:[%s175] sm:$0xf] %v762
      %827 = vst [vmem:[%s175 + $0x4] sm:$0xf] %v763
      %828 = vst [vmem:[%s175 + $0x8] sm:$0xf] %v764
      %829 = vst [vmem:[%s175 + $0xc] sm:$0xf] %v765
      %830 = vst [vmem:[%s175 + $0x10] sm:$0xf] %v766
      %831 = vst [vmem:[%s175 + $0x14] sm:$0xf] %v767
      %832 = vst [vmem:[%s175 + $0x18] sm:$0xf] %v768
      %833 = vst [vmem:[%s175 + $0x1c] sm:$0xf] %v769
      %834 = vst [vmem:[%s175 + $0x20] sm:$0xf] %v770
      %835 = vst [vmem:[%s175 + $0x24] sm:$0xf] %v771
      %836 = vst [vmem:[%s175 + $0x28] sm:$0xf] %v772
      %837 = vst [vmem:[%s175 + $0x2c] sm:$0xf] %v773
      %838 = vst [vmem:[%s175 + $0x30] sm:$0xf] %v774
      %839 = vst [vmem:[%s175 + $0x34] sm:$0xf] %v775
      %840 = vst [vmem:[%s175 + $0x38] sm:$0xf] %v776
      %841 = vst [vmem:[%s175 + $0x3c] sm:$0xf] %v777
      %842 = vst [vmem:[%s175 + $0x40] sm:$0xf] %v778
      %843 = vst [vmem:[%s175 + $0x44] sm:$0xf] %v779
      %844 = vst [vmem:[%s175 + $0x48] sm:$0xf] %v780
      %845 = vst [vmem:[%s175 + $0x4c] sm:$0xf] %v781
      %846 = vst [vmem:[%s175 + $0x50] sm:$0xf] %v782
      %847 = vst [vmem:[%s175 + $0x54] sm:$0xf] %v783
      %848 = vst [vmem:[%s175 + $0x58] sm:$0xf] %v784
      %849 = vst [vmem:[%s175 + $0x5c] sm:$0xf] %v785
      %850 = vst [vmem:[%s175 + $0x60] sm:$0xf] %v786
      %851 = vst [vmem:[%s175 + $0x64] sm:$0xf] %v787
      %852 = vst [vmem:[%s175 + $0x68] sm:$0xf] %v788
      %853 = vst [vmem:[%s175 + $0x6c] sm:$0xf] %v789
      %854 = vst [vmem:[%s175 + $0x70] sm:$0xf] %v790
      %855 = vst [vmem:[%s175 + $0x74] sm:$0xf] %v791
      %856 = vst [vmem:[%s175 + $0x78] sm:$0xf] %v792
      %857 = vst [vmem:[%s175 + $0x7c] sm:$0xf] %v793
      %s858 = smul.u32 32, %s14
      %p859 = scmp.lt.s32.totalorder %s858, 127
      %s860 = scalar_select %p859, %s858, 127
      %s861 = smul.addr %s860, 4
      %s862 = scalar_lea.vmem %s3, %s861
      // Predicated region
      $region33: #{_forward.4} parent=31 // pred_check
        %p863 = pneg %p100
      $region34: #{_forward.4} parent=31 // pred_check_branch
        %865 = sbr.rel (%p863) target = $region36
      $region35: #{_forward.4} parent=31 // pred_region
        %s866 = smul.u32 32, %s14
      $region36: #{_forward.4} parent=31 // pred_fallthru
        _
    $region32: #{_forward.4} parent=5 // pred_fallthru
      _
    %p867 = scmp.le.s32.totalorder 2, %s9
    // Predicated region
    $region37: #{_forward.4} parent=5 // pred_check
      %p868 = pneg %p867
    $region38: #{_forward.4} parent=5 // pred_check_branch
      %870 = sbr.rel (%p868) target = $region40
    $region39: #{_forward.4} parent=5 // pred_region
      %s871 = ssub.s32 %s9, 2
      // Predicated region
      $region41: #{_forward.4} parent=39 // pred_check
        %p872 = pneg %p106
      $region42: #{_forward.4} parent=39 // pred_check_branch
        %874 = sbr.rel (%p872) target = $region44
      $region43: #{_forward.4} parent=39 // pred_region
        %s875 = smul.u32 32, %s15
        %p876 = scmp.lt.s32.totalorder %s875, 127
        %s877 = scalar_select %p876, %s875, 127
        %s878 = smul.addr %s877, 4
        %s879 = scalar_lea.vmem %s3, %s878
      $region44: #{_forward.4} parent=39 // pred_fallthru
        _
    $region40: #{_forward.4} parent=5 // pred_fallthru
      _
  $region6: #{_forward.4} parent=0 // loop_footer
    %s13 = sadd.s32 1, %s9
  $region7: #{_forward.4} parent=0 // loop_footer_branch
    %8 = sbr.rel target = $region3
  $region8: #{_forward.4} parent=0 // loop_exit
    _

// kernel: _forward.5
$region0: #{_forward.5}
  #allocation0 [shape = 'u32[]', space=smem, size = 0x4, offset = 0x4, fixed_abs, tag = 'smem constant byte address 0x4 - core index']
  #allocation1 [shape = 'u32[144,128]{1,0:T(1,128)}', space=vmem, size = 0x12000, scoped, tag = 'internal scratch']
  %s0 = inlined_call_operand.vmem [shape: bf16[176,512], index: 0, kind: input, shape index: {}]
  %s1 = inlined_call_operand.vmem [shape: bf16[512,128], index: 1, kind: input, shape index: {}]
  %s2 = inlined_call_operand.vmem [shape: f32[1,128], index: 2, kind: input, shape index: {}]
  %s3 = inlined_call_operand.vmem [shape: bf16[176,128], index: 3, kind: output, shape index: {}]
  %s4 = sld [smem:[#allocation0]]
  $region22: #{_forward.5} parent=0
    _
  %s6 = ssub.s32 1, %s4
  %s7 = scalar_select 0, %s6, %s4
  // Predicated region
  $region2: #{_forward.5} parent=0 // pred_check
    _
  $region3: #{_forward.5} parent=0 // pred_check_branch
    %9 = sbr.rel (0) target = $region5
  $region4: #{_forward.5} parent=0 // pred_region
    _
  $region5: #{_forward.5} parent=0 // pred_fallthru
    _
  // Predicated region
  $region6: #{_forward.5} parent=0 // pred_check
    _
  $region7: #{_forward.5} parent=0 // pred_check_branch
    %11 = sbr.rel (0) target = $region9
  $region8: #{_forward.5} parent=0 // pred_region
    _
  $region9: #{_forward.5} parent=0 // pred_fallthru
    _
  // Predicated region
  $region10: #{_forward.5} parent=0 // pred_check
    _
  $region11: #{_forward.5} parent=0 // pred_check_branch
    %13 = sbr.rel (0) target = $region13
  $region12: #{_forward.5} parent=0 // pred_region
    _
  $region13: #{_forward.5} parent=0 // pred_fallthru
    _
  %v15 = vld [vmem:[%s0] sm:$0xff]
  %v16 = vld [vmem:[%s0 + $0x8] sm:$0xff]
  %v17 = vld [vmem:[%s0 + $0x10] sm:$0xff]
  %v18 = vld [vmem:[%s0 + $0x18] sm:$0xff]
  %v19 = vld [vmem:[%s0 + $0x20] sm:$0xff]
  %v20 = vld [vmem:[%s0 + $0x28] sm:$0xff]
  %v21 = vld [vmem:[%s0 + $0x30] sm:$0xff]
  %v22 = vld [vmem:[%s0 + $0x38] sm:$0xff]
  %v23 = vld [vmem:[%s0 + $0x40] sm:$0xff]
  %v24 = vld [vmem:[%s0 + $0x48] sm:$0xff]
  %v25 = vld [vmem:[%s0 + $0x50] sm:$0xff]
  %v26 = vld [vmem:[%s0 + $0x58] sm:$0xff]
  %v27 = vld [vmem:[%s0 + $0x60] sm:$0xff]
  %v28 = vld [vmem:[%s0 + $0x68] sm:$0xff]
  %v29 = vld [vmem:[%s0 + $0x70] sm:$0xff]
  %v30 = vld [vmem:[%s0 + $0x78] sm:$0xff]
  %v31 = vld [vmem:[%s0 + $0x80] sm:$0xff]
  %v32 = vld [vmem:[%s0 + $0x88] sm:$0xff]
  %v33 = vld [vmem:[%s0 + $0x90] sm:$0xff]
  %v34 = vld [vmem:[%s0 + $0x98] sm:$0xff]
  %v35 = vld [vmem:[%s0 + $0xa0] sm:$0xff]
  %v36 = vld [vmem:[%s0 + $0xa8] sm:$0xff]
  %v37 = vld [vmem:[%s0 + $0xb0] sm:$0xff]
  %v38 = vld [vmem:[%s0 + $0xb8] sm:$0xff]
  %v39 = vld [vmem:[%s0 + $0xc0] sm:$0xff]
  %v40 = vld [vmem:[%s0 + $0xc8] sm:$0xff]
  %v41 = vld [vmem:[%s0 + $0xd0] sm:$0xff]
  %v42 = vld [vmem:[%s0 + $0xd8] sm:$0xff]
  %v43 = vld [vmem:[%s0 + $0xe0] sm:$0xff]
  %v44 = vld [vmem:[%s0 + $0xe8] sm:$0xff]
  %v45 = vld [vmem:[%s0 + $0xf0] sm:$0xff]
  %v46 = vld [vmem:[%s0 + $0xf8] sm:$0xff]
  %v47 = vld [vmem:[%s0 + $0x100] sm:$0xff]
  %v48 = vld [vmem:[%s0 + $0x108] sm:$0xff]
  %v49 = vld [vmem:[%s0 + $0x110] sm:$0xff]
  %v50 = vld [vmem:[%s0 + $0x118] sm:$0xff]
  %v51 = vld [vmem:[%s0 + $0x120] sm:$0xff]
  %v52 = vld [vmem:[%s0 + $0x128] sm:$0xff]
  %v53 = vld [vmem:[%s0 + $0x130] sm:$0xff]
  %v54 = vld [vmem:[%s0 + $0x138] sm:$0xff]
  %v55 = vld [vmem:[%s0 + $0x140] sm:$0xff]
  %v56 = vld [vmem:[%s0 + $0x148] sm:$0xff]
  %v57 = vld [vmem:[%s0 + $0x150] sm:$0xff]
  %v58 = vld [vmem:[%s0 + $0x158] sm:$0xff]
  %v59 = vld [vmem:[%s1] sm:$0xf]
  %v60 = vld [vmem:[%s1 + $0x4] sm:$0xf]
  %v61 = vld [vmem:[%s1 + $0x8] sm:$0xf]
  %v62 = vld [vmem:[%s1 + $0xc] sm:$0xf]
  %v63 = vld [vmem:[%s1 + $0x10] sm:$0xf]
  %v64 = vld [vmem:[%s1 + $0x14] sm:$0xf]
  %v65 = vld [vmem:[%s1 + $0x18] sm:$0xf]
  %v66 = vld [vmem:[%s1 + $0x1c] sm:$0xf]
  %v67 = vld [vmem:[%s1 + $0x20] sm:$0xf]
  %v68 = vld [vmem:[%s1 + $0x24] sm:$0xf]
  %v69 = vld [vmem:[%s1 + $0x28] sm:$0xf]
  %v70 = vld [vmem:[%s1 + $0x2c] sm:$0xf]
  %v71 = vld [vmem:[%s1 + $0x30] sm:$0xf]
  %v72 = vld [vmem:[%s1 + $0x34] sm:$0xf]
  %v73 = vld [vmem:[%s1 + $0x38] sm:$0xf]
  %v74 = vld [vmem:[%s1 + $0x3c] sm:$0xf]
  %v75 = vld [vmem:[%s1 + $0x40] sm:$0xf]
  %v76 = vld [vmem:[%s1 + $0x44] sm:$0xf]
  %v77 = vld [vmem:[%s1 + $0x48] sm:$0xf]
  %v78 = vld [vmem:[%s1 + $0x4c] sm:$0xf]
  %v79 = vld [vmem:[%s1 + $0x50] sm:$0xf]
  %v80 = vld [vmem:[%s1 + $0x54] sm:$0xf]
  %v81 = vld [vmem:[%s1 + $0x58] sm:$0xf]
  %v82 = vld [vmem:[%s1 + $0x5c] sm:$0xf]
  %v83 = vld [vmem:[%s1 + $0x60] sm:$0xf]
  %v84 = vld [vmem:[%s1 + $0x64] sm:$0xf]
  %v85 = vld [vmem:[%s1 + $0x68] sm:$0xf]
  %v86 = vld [vmem:[%s1 + $0x6c] sm:$0xf]
  %v87 = vld [vmem:[%s1 + $0x70] sm:$0xf]
  %v88 = vld [vmem:[%s1 + $0x74] sm:$0xf]
  %v89 = vld [vmem:[%s1 + $0x78] sm:$0xf]
  %v90 = vld [vmem:[%s1 + $0x7c] sm:$0xf]
  %v91 = vld [vmem:[%s1 + $0x80] sm:$0xf]
  %v92 = vld [vmem:[%s1 + $0x84] sm:$0xf]
  %v93 = vld [vmem:[%s1 + $0x88] sm:$0xf]
  %v94 = vld [vmem:[%s1 + $0x8c] sm:$0xf]
  %v95 = vld [vmem:[%s1 + $0x90] sm:$0xf]
  %v96 = vld [vmem:[%s1 + $0x94] sm:$0xf]
  %v97 = vld [vmem:[%s1 + $0x98] sm:$0xf]
  %v98 = vld [vmem:[%s1 + $0x9c] sm:$0xf]
  %v99 = vld [vmem:[%s1 + $0xa0] sm:$0xf]
  %v100 = vld [vmem:[%s1 + $0xa4] sm:$0xf]
  %v101 = vld [vmem:[%s1 + $0xa8] sm:$0xf]
  %v102 = vld [vmem:[%s1 + $0xac] sm:$0xf]
  %v103 = vld [vmem:[%s1 + $0xb0] sm:$0xf]
  %v104 = vld [vmem:[%s1 + $0xb4] sm:$0xf]
  %v105 = vld [vmem:[%s1 + $0xb8] sm:$0xf]
  %v106 = vld [vmem:[%s1 + $0xbc] sm:$0xf]
  %v107 = vld [vmem:[%s1 + $0xc0] sm:$0xf]
  %v108 = vld [vmem:[%s1 + $0xc4] sm:$0xf]
  %v109 = vld [vmem:[%s1 + $0xc8] sm:$0xf]
  %v110 = vld [vmem:[%s1 + $0xcc] sm:$0xf]
  %v111 = vld [vmem:[%s1 + $0xd0] sm:$0xf]
  %v112 = vld [vmem:[%s1 + $0xd4] sm:$0xf]
  %v113 = vld [vmem:[%s1 + $0xd8] sm:$0xf]
  %v114 = vld [vmem:[%s1 + $0xdc] sm:$0xf]
  %v115 = vld [vmem:[%s1 + $0xe0] sm:$0xf]
  %v116 = vld [vmem:[%s1 + $0xe4] sm:$0xf]
  %v117 = vld [vmem:[%s1 + $0xe8] sm:$0xf]
  %v118 = vld [vmem:[%s1 + $0xec] sm:$0xf]
  %v119 = vld [vmem:[%s1 + $0xf0] sm:$0xf]
  %v120 = vld [vmem:[%s1 + $0xf4] sm:$0xf]
  %v121 = vld [vmem:[%s1 + $0xf8] sm:$0xf]
  %v122 = vld [vmem:[%s1 + $0xfc] sm:$0xf]
  %v123 = vld [vmem:[%s2] sm:$0x1]
  %v125 = vlaneseq
  %v126 = vshrl.u32 %v125, 7
  %v127 = vsub.s32 0, %v126
  %v128 = vrot.slane %v123, %v127
  %v174 = vunpack.c.l.b16 %v15
  %v175 = vunpack.c.h.b16 %v15
  %v176 = vunpack.c.l.b16 %v16
  %v177 = vunpack.c.h.b16 %v16
  %v178 = vunpack.c.l.b16 %v17
  %v179 = vunpack.c.h.b16 %v17
  %v180 = vunpack.c.l.b16 %v18
  %v181 = vunpack.c.h.b16 %v18
  %v182 = vunpack.c.l.b16 %v19
  %v183 = vunpack.c.h.b16 %v19
  %v184 = vunpack.c.l.b16 %v20
  %v185 = vunpack.c.h.b16 %v20
  %v186 = vunpack.c.l.b16 %v21
  %v187 = vunpack.c.h.b16 %v21
  %v188 = vunpack.c.l.b16 %v22
  %v189 = vunpack.c.h.b16 %v22
  %v190 = vunpack.c.l.b16 %v23
  %v191 = vunpack.c.h.b16 %v23
  %v192 = vunpack.c.l.b16 %v24
  %v193 = vunpack.c.h.b16 %v24
  %v194 = vunpack.c.l.b16 %v25
  %v195 = vunpack.c.h.b16 %v25
  %v196 = vunpack.c.l.b16 %v26
  %v197 = vunpack.c.h.b16 %v26
  %v198 = vunpack.c.l.b16 %v27
  %v199 = vunpack.c.h.b16 %v27
  %v200 = vunpack.c.l.b16 %v28
  %v201 = vunpack.c.h.b16 %v28
  %v202 = vunpack.c.l.b16 %v29
  %v203 = vunpack.c.h.b16 %v29
  %v204 = vunpack.c.l.b16 %v30
  %v205 = vunpack.c.h.b16 %v30
  %v206 = vunpack.c.l.b16 %v31
  %v207 = vunpack.c.h.b16 %v31
  %v208 = vunpack.c.l.b16 %v32
  %v209 = vunpack.c.h.b16 %v32
  %v210 = vunpack.c.l.b16 %v33
  %v211 = vunpack.c.h.b16 %v33
  %v212 = vunpack.c.l.b16 %v34
  %v213 = vunpack.c.h.b16 %v34
  %v214 = vunpack.c.l.b16 %v35
  %v215 = vunpack.c.h.b16 %v35
  %v216 = vunpack.c.l.b16 %v36
  %v217 = vunpack.c.h.b16 %v36
  %v218 = vunpack.c.l.b16 %v37
  %v219 = vunpack.c.h.b16 %v37
  %v220 = vunpack.c.l.b16 %v38
  %v221 = vunpack.c.h.b16 %v38
  %v222 = vunpack.c.l.b16 %v39
  %v223 = vunpack.c.h.b16 %v39
  %v224 = vunpack.c.l.b16 %v40
  %v225 = vunpack.c.h.b16 %v40
  %v226 = vunpack.c.l.b16 %v41
  %v227 = vunpack.c.h.b16 %v41
  %v228 = vunpack.c.l.b16 %v42
  %v229 = vunpack.c.h.b16 %v42
  %v230 = vunpack.c.l.b16 %v43
  %v231 = vunpack.c.h.b16 %v43
  %v232 = vunpack.c.l.b16 %v44
  %v233 = vunpack.c.h.b16 %v44
  %v234 = vunpack.c.l.b16 %v45
  %v235 = vunpack.c.h.b16 %v45
  %v236 = vunpack.c.l.b16 %v46
  %v237 = vunpack.c.h.b16 %v46
  %v238 = vunpack.c.l.b16 %v47
  %v239 = vunpack.c.h.b16 %v47
  %v240 = vunpack.c.l.b16 %v48
  %v241 = vunpack.c.h.b16 %v48
  %v242 = vunpack.c.l.b16 %v49
  %v243 = vunpack.c.h.b16 %v49
  %v244 = vunpack.c.l.b16 %v50
  %v245 = vunpack.c.h.b16 %v50
  %v246 = vunpack.c.l.b16 %v51
  %v247 = vunpack.c.h.b16 %v51
  %v248 = vunpack.c.l.b16 %v52
  %v249 = vunpack.c.h.b16 %v52
  %v250 = vunpack.c.l.b16 %v53
  %v251 = vunpack.c.h.b16 %v53
  %v252 = vunpack.c.l.b16 %v54
  %v253 = vunpack.c.h.b16 %v54
  %v254 = vunpack.c.l.b16 %v55
  %v255 = vunpack.c.h.b16 %v55
  %v256 = vunpack.c.l.b16 %v56
  %v257 = vunpack.c.h.b16 %v56
  %v258 = vunpack.c.l.b16 %v57
  %v259 = vunpack.c.h.b16 %v57
  %v260 = vunpack.c.l.b16 %v58
  %v261 = vunpack.c.h.b16 %v58
  %v262 = vpack.c.b16 %v178, %v174
  %v263 = vpack.c.b16 %v179, %v175
  %v264 = vpack.c.b16 %v180, %v176
  %v265 = vpack.c.b16 %v181, %v177
  %v266 = vpack.c.b16 %v186, %v182
  %v267 = vpack.c.b16 %v187, %v183
  %v268 = vpack.c.b16 %v188, %v184
  %v269 = vpack.c.b16 %v189, %v185
  %v270 = vpack.c.b16 %v194, %v190
  %v271 = vpack.c.b16 %v195, %v191
  %v272 = vpack.c.b16 %v196, %v192
  %v273 = vpack.c.b16 %v197, %v193
  %v274 = vpack.c.b16 %v202, %v198
  %v275 = vpack.c.b16 %v203, %v199
  %v276 = vpack.c.b16 %v204, %v200
  %v277 = vpack.c.b16 %v205, %v201
  %v278 = vpack.c.b16 %v210, %v206
  %v279 = vpack.c.b16 %v211, %v207
  %v280 = vpack.c.b16 %v212, %v208
  %v281 = vpack.c.b16 %v213, %v209
  %v282 = vpack.c.b16 %v218, %v214
  %v283 = vpack.c.b16 %v219, %v215
  %v284 = vpack.c.b16 %v220, %v216
  %v285 = vpack.c.b16 %v221, %v217
  %v286 = vpack.c.b16 %v226, %v222
  %v287 = vpack.c.b16 %v227, %v223
  %v288 = vpack.c.b16 %v228, %v224
  %v289 = vpack.c.b16 %v229, %v225
  %v290 = vpack.c.b16 %v234, %v230
  %v291 = vpack.c.b16 %v235, %v231
  %v292 = vpack.c.b16 %v236, %v232
  %v293 = vpack.c.b16 %v237, %v233
  %v294 = vpack.c.b16 %v242, %v238
  %v295 = vpack.c.b16 %v243, %v239
  %v296 = vpack.c.b16 %v244, %v240
  %v297 = vpack.c.b16 %v245, %v241
  %v298 = vpack.c.b16 %v250, %v246
  %v299 = vpack.c.b16 %v251, %v247
  %v300 = vpack.c.b16 %v252, %v248
  %v301 = vpack.c.b16 %v253, %v249
  %v302 = vpack.c.b16 %v258, %v254
  %v303 = vpack.c.b16 %v259, %v255
  %v304 = vpack.c.b16 %v260, %v256
  %v305 = vpack.c.b16 %v261, %v257
  %v414 = vunpack.c.l.b16 %v59
  %v415 = vunpack.c.l.b16 %v60
  %v416 = vunpack.c.l.b16 %v61
  %v417 = vunpack.c.l.b16 %v62
  %v418 = vunpack.c.l.b16 %v63
  %v419 = vunpack.c.l.b16 %v64
  %v420 = vunpack.c.l.b16 %v65
  %v421 = vunpack.c.l.b16 %v66
  %v422 = vunpack.c.l.b16 %v67
  %v423 = vunpack.c.l.b16 %v68
  %v424 = vunpack.c.l.b16 %v69
  %v425 = vunpack.c.l.b16 %v70
  %v426 = vunpack.c.l.b16 %v71
  %v427 = vunpack.c.l.b16 %v72
  %v428 = vunpack.c.l.b16 %v73
  %v429 = vunpack.c.l.b16 %v74
  %v430 = vunpack.c.l.b16 %v75
  %v431 = vunpack.c.l.b16 %v76
  %v432 = vunpack.c.l.b16 %v77
  %v433 = vunpack.c.l.b16 %v78
  %v434 = vunpack.c.l.b16 %v79
  %v435 = vunpack.c.l.b16 %v80
  %v436 = vunpack.c.l.b16 %v81
  %v437 = vunpack.c.l.b16 %v82
  %v438 = vunpack.c.l.b16 %v83
  %v439 = vunpack.c.l.b16 %v84
  %v440 = vunpack.c.l.b16 %v85
  %v441 = vunpack.c.l.b16 %v86
  %v442 = vunpack.c.l.b16 %v87
  %v443 = vunpack.c.l.b16 %v88
  %v444 = vunpack.c.l.b16 %v89
  %v445 = vunpack.c.l.b16 %v90
  %v446 = vunpack.c.l.b16 %v91
  %v447 = vunpack.c.l.b16 %v92
  %v448 = vunpack.c.l.b16 %v93
  %v449 = vunpack.c.l.b16 %v94
  %v450 = vunpack.c.l.b16 %v95
  %v451 = vunpack.c.l.b16 %v96
  %v452 = vunpack.c.l.b16 %v97
  %v453 = vunpack.c.l.b16 %v98
  %v454 = vunpack.c.l.b16 %v99
  %v455 = vunpack.c.l.b16 %v100
  %v456 = vunpack.c.l.b16 %v101
  %v457 = vunpack.c.l.b16 %v102
  %v458 = vunpack.c.l.b16 %v103
  %v459 = vunpack.c.l.b16 %v104
  %v460 = vunpack.c.l.b16 %v105
  %v461 = vunpack.c.l.b16 %v106
  %v462 = vunpack.c.l.b16 %v107
  %v463 = vunpack.c.l.b16 %v108
  %v464 = vunpack.c.l.b16 %v109
  %v465 = vunpack.c.l.b16 %v110
  %v466 = vunpack.c.l.b16 %v111
  %v467 = vunpack.c.l.b16 %v112
  %v468 = vunpack.c.l.b16 %v113
  %v469 = vunpack.c.l.b16 %v114
  %v470 = vunpack.c.l.b16 %v115
  %v471 = vunpack.c.l.b16 %v116
  %v472 = vunpack.c.l.b16 %v117
  %v473 = vunpack.c.l.b16 %v118
  %v474 = vunpack.c.l.b16 %v119
  %v475 = vunpack.c.l.b16 %v120
  %v476 = vunpack.c.l.b16 %v121
  %v477 = vunpack.c.l.b16 %v122
  %v478 = vpack.c.b16 %v415, %v414
  %v479 = vpack.c.b16 %v417, %v416
  %v480 = vpack.c.b16 %v419, %v418
  %v481 = vpack.c.b16 %v421, %v420
  %v482 = vpack.c.b16 %v423, %v422
  %v483 = vpack.c.b16 %v425, %v424
  %v484 = vpack.c.b16 %v427, %v426
  %v485 = vpack.c.b16 %v429, %v428
  %v486 = vpack.c.b16 %v431, %v430
  %v487 = vpack.c.b16 %v433, %v432
  %v488 = vpack.c.b16 %v435, %v434
  %v489 = vpack.c.b16 %v437, %v436
  %v490 = vpack.c.b16 %v439, %v438
  %v491 = vpack.c.b16 %v441, %v440
  %v492 = vpack.c.b16 %v443, %v442
  %v493 = vpack.c.b16 %v445, %v444
  %v494 = vpack.c.b16 %v447, %v446
  %v495 = vpack.c.b16 %v449, %v448
  %v496 = vpack.c.b16 %v451, %v450
  %v497 = vpack.c.b16 %v453, %v452
  %v498 = vpack.c.b16 %v455, %v454
  %v499 = vpack.c.b16 %v457, %v456
  %v500 = vpack.c.b16 %v459, %v458
  %v501 = vpack.c.b16 %v461, %v460
  %v502 = vpack.c.b16 %v463, %v462
  %v503 = vpack.c.b16 %v465, %v464
  %v504 = vpack.c.b16 %v467, %v466
  %v505 = vpack.c.b16 %v469, %v468
  %v506 = vpack.c.b16 %v471, %v470
  %v507 = vpack.c.b16 %v473, %v472
  %v508 = vpack.c.b16 %v475, %v474
  %v509 = vpack.c.b16 %v477, %v476
  %542 = vmatprep.subr.bf16.mxu0 0
  %543 = vmatpush1.bf16.msra.mxu0 %v478
  %544 = vmatprep.subr.bf16.mxu0 0
  %545 = vmatpush1.bf16.msra.mxu0 %v479
  %546 = vmatprep.subr.bf16.mxu0 0
  %547 = vmatpush1.bf16.msra.mxu0 %v480
  %548 = vmatprep.subr.bf16.mxu0 0
  %549 = vmatpush1.bf16.msra.mxu0 %v481
  %550 = vmatprep.subr.bf16.mxu0 0
  %551 = vmatpush1.bf16.msra.mxu0 %v482
  %552 = vmatprep.subr.bf16.mxu0 0
  %553 = vmatpush1.bf16.msra.mxu0 %v483
  %554 = vmatprep.subr.bf16.mxu0 0
  %555 = vmatpush1.bf16.msra.mxu0 %v484
  %556 = vmatprep.subr.bf16.mxu0 0
  %557 = vmatpush1.bf16.msra.mxu0 %v485
  %558 = vmatprep.subr.bf16.mxu0 0
  %559 = vmatpush1.bf16.msra.mxu0 %v486
  %560 = vmatprep.subr.bf16.mxu0 0
  %561 = vmatpush1.bf16.msra.mxu0 %v487
  %562 = vmatprep.subr.bf16.mxu0 0
  %563 = vmatpush1.bf16.msra.mxu0 %v488
  %564 = vmatprep.subr.bf16.mxu0 0
  %565 = vmatpush1.bf16.msra.mxu0 %v489
  %566 = vmatprep.subr.bf16.mxu0 0
  %567 = vmatpush1.bf16.msra.mxu0 %v490
  %568 = vmatprep.subr.bf16.mxu0 0
  %569 = vmatpush1.bf16.msra.mxu0 %v491
  %570 = vmatprep.subr.bf16.mxu0 0
  %571 = vmatpush1.bf16.msra.mxu0 %v492
  %572 = vmatprep.subr.bf16.mxu0 0
  %573 = vmatpush1.bf16.msra.mxu0 %v493
  %574 = vmatprep.mubr.bf16.mxu0 %v263
  %575 = vmatmul.mubr.bf16.gmra.mrb[0].mxu0 %v262
  %v576 = vpop.f32.mrb[0].mxu0
  %v577 = vadd.f32 %v128, %v576
  %v578 = vpop.f32.mrb[0].mxu0
  %v579 = vpop.f32.mrb[0].mxu0
  %v580 = vadd.f32 %v128, %v579
  %v581 = vpop.f32.mrb[0].mxu0
  %582 = vmatprep.mubr.bf16.mxu0 %v267
  %583 = vmatmul.mubr.bf16.gmra.mrb[0].mxu0 %v266
  %v584 = vpop.f32.mrb[0].mxu0
  %v585 = vadd.f32 %v128, %v584
  %v586 = vpop.f32.mrb[0].mxu0
  %v587 = vpop.f32.mrb[0].mxu0
  %v588 = vadd.f32 %v128, %v587
  %v589 = vpop.f32.mrb[0].mxu0
  %590 = vmatprep.mubr.bf16.mxu0 %v271
  %591 = vmatmul.mubr.bf16.gmra.mrb[0].mxu0 %v270
  %v592 = vpop.f32.mrb[0].mxu0
  %v593 = vadd.f32 %v128, %v592
  %v594 = vpop.f32.mrb[0].mxu0
  %v595 = vpop.f32.mrb[0].mxu0
  %v596 = vadd.f32 %v128, %v595
  %v597 = vpop.f32.mrb[0].mxu0
  %598 = vmatprep.mubr.bf16.mxu0 %v275
  %599 = vmatmul.mubr.bf16.gmra.mrb[0].mxu0 %v274
  %v600 = vpop.f32.mrb[0].mxu0
  %v601 = vadd.f32 %v128, %v600
  %v602 = vpop.f32.mrb[0].mxu0
  %v603 = vpop.f32.mrb[0].mxu0
  %v604 = vadd.f32 %v128, %v603
  %v605 = vpop.f32.mrb[0].mxu0
  %606 = vmatprep.mubr.bf16.mxu0 %v279
  %607 = vmatmul.mubr.bf16.gmra.mrb[0].mxu0 %v278
  %v608 = vpop.f32.mrb[0].mxu0
  %v609 = vadd.f32 %v128, %v608
  %v610 = vpop.f32.mrb[0].mxu0
  %v611 = vpop.f32.mrb[0].mxu0
  %v612 = vadd.f32 %v128, %v611
  %v613 = vpop.f32.mrb[0].mxu0
  %614 = vmatprep.mubr.bf16.mxu0 %v283
  %615 = vmatmul.mubr.bf16.gmra.mrb[0].mxu0 %v282
  %v616 = vpop.f32.mrb[0].mxu0
  %v617 = vadd.f32 %v128, %v616
  %v618 = vpop.f32.mrb[0].mxu0
  %v619 = vpop.f32.mrb[0].mxu0
  %v620 = vadd.f32 %v128, %v619
  %v621 = vpop.f32.mrb[0].mxu0
  %622 = vmatprep.mubr.bf16.mxu0 %v287
  %623 = vmatmul.mubr.bf16.gmra.mrb[0].mxu0 %v286
  %v624 = vpop.f32.mrb[0].mxu0
  %v625 = vadd.f32 %v128, %v624
  %v626 = vpop.f32.mrb[0].mxu0
  %v627 = vpop.f32.mrb[0].mxu0
  %v628 = vadd.f32 %v128, %v627
  %v629 = vpop.f32.mrb[0].mxu0
  %630 = vmatprep.mubr.bf16.mxu0 %v291
  %631 = vmatmul.mubr.bf16.gmra.mrb[0].mxu0 %v290
  %v632 = vpop.f32.mrb[0].mxu0
  %v633 = vadd.f32 %v128, %v632
  %v634 = vpop.f32.mrb[0].mxu0
  %v635 = vpop.f32.mrb[0].mxu0
  %v636 = vadd.f32 %v128, %v635
  %v637 = vpop.f32.mrb[0].mxu0
  %638 = vmatprep.mubr.bf16.mxu0 %v295
  %639 = vmatmul.mubr.bf16.gmra.mrb[0].mxu0 %v294
  %v640 = vpop.f32.mrb[0].mxu0
  %v641 = vadd.f32 %v128, %v640
  %v642 = vpop.f32.mrb[0].mxu0
  %v643 = vpop.f32.mrb[0].mxu0
  %v644 = vadd.f32 %v128, %v643
  %v645 = vpop.f32.mrb[0].mxu0
  %646 = vmatprep.mubr.bf16.mxu0 %v299
  %647 = vmatmul.mubr.bf16.gmra.mrb[0].mxu0 %v298
  %v648 = vpop.f32.mrb[0].mxu0
  %v649 = vadd.f32 %v128, %v648
  %v650 = vpop.f32.mrb[0].mxu0
  %v651 = vpop.f32.mrb[0].mxu0
  %v652 = vadd.f32 %v128, %v651
  %v653 = vpop.f32.mrb[0].mxu0
  %654 = vmatprep.mubr.bf16.mxu0 %v303
  %655 = vmatmul.mubr.bf16.gmra.mrb[0].mxu0 %v302
  %v656 = vpop.f32.mrb[0].mxu0
  %v657 = vadd.f32 %v128, %v656
  %v658 = vpop.f32.mrb[0].mxu0
  %v659 = vpop.f32.mrb[0].mxu0
  %v660 = vadd.f32 %v128, %v659
  %v661 = vpop.f32.mrb[0].mxu0
  %662 = vdwg.mxu0
  %663 = vmatprep.subr.bf16.mxu0 0
  %664 = vmatpush1.bf16.msra.mxu0 %v494
  %665 = vmatprep.subr.bf16.mxu0 0
  %666 = vmatpush1.bf16.msra.mxu0 %v495
  %667 = vmatprep.subr.bf16.mxu0 0
  %668 = vmatpush1.bf16.msra.mxu0 %v496
  %669 = vmatprep.subr.bf16.mxu0 0
  %670 = vmatpush1.bf16.msra.mxu0 %v497
  %671 = vmatprep.subr.bf16.mxu0 0
  %672 = vmatpush1.bf16.msra.mxu0 %v498
  %673 = vmatprep.subr.bf16.mxu0 0
  %674 = vmatpush1.bf16.msra.mxu0 %v499
  %675 = vmatprep.subr.bf16.mxu0 0
  %676 = vmatpush1.bf16.msra.mxu0 %v500
  %677 = vmatprep.subr.bf16.mxu0 0
  %678 = vmatpush1.bf16.msra.mxu0 %v501
  %679 = vmatprep.subr.bf16.mxu0 0
  %680 = vmatpush1.bf16.msra.mxu0 %v502
  %681 = vmatprep.subr.bf16.mxu0 0
  %682 = vmatpush1.bf16.msra.mxu0 %v503
  %683 = vmatprep.subr.bf16.mxu0 0
  %684 = vmatpush1.bf16.msra.mxu0 %v504
  %685 = vmatprep.subr.bf16.mxu0 0
  %686 = vmatpush1.bf16.msra.mxu0 %v505
  %687 = vmatprep.subr.bf16.mxu0 0
  %688 = vmatpush1.bf16.msra.mxu0 %v506
  %689 = vmatprep.subr.bf16.mxu0 0
  %690 = vmatpush1.bf16.msra.mxu0 %v507
  %691 = vmatprep.subr.bf16.mxu0 0
  %692 = vmatpush1.bf16.msra.mxu0 %v508
  %693 = vmatprep.subr.bf16.mxu0 0
  %694 = vmatpush1.bf16.msra.mxu0 %v509
  %695 = vmatprep.mubr.bf16.mxu0 %v265
  %696 = vmatmul.mubr.bf16.gmra.mrb[0].mxu0 %v264
  %v697 = vpop.f32.mrb[0].mxu0
  %v698 = vadd.f32 %v577, %v697
  %v699 = vpop.f32.mrb[0].mxu0
  %v700 = vpop.f32.mrb[0].mxu0
  %v701 = vadd.f32 %v580, %v700
  %v702 = vpop.f32.mrb[0].mxu0
  %703 = vmatprep.mubr.bf16.mxu0 %v269
  %704 = vmatmul.mubr.bf16.gmra.mrb[0].mxu0 %v268
  %v705 = vpop.f32.mrb[0].mxu0
  %v706 = vadd.f32 %v585, %v705
  %v707 = vpop.f32.mrb[0].mxu0
  %v708 = vpop.f32.mrb[0].mxu0
  %v709 = vadd.f32 %v588, %v708
  %v710 = vpop.f32.mrb[0].mxu0
  %711 = vmatprep.mubr.bf16.mxu0 %v273
  %712 = vmatmul.mubr.bf16.gmra.mrb[0].mxu0 %v272
  %v713 = vpop.f32.mrb[0].mxu0
  %v714 = vadd.f32 %v593, %v713
  %v715 = vpop.f32.mrb[0].mxu0
  %v716 = vpop.f32.mrb[0].mxu0
  %v717 = vadd.f32 %v596, %v716
  %v718 = vpop.f32.mrb[0].mxu0
  %719 = vmatprep.mubr.bf16.mxu0 %v277
  %720 = vmatmul.mubr.bf16.gmra.mrb[0].mxu0 %v276
  %v721 = vpop.f32.mrb[0].mxu0
  %v722 = vadd.f32 %v601, %v721
  %v723 = vpop.f32.mrb[0].mxu0
  %v724 = vpop.f32.mrb[0].mxu0
  %v725 = vadd.f32 %v604, %v724
  %v726 = vpop.f32.mrb[0].mxu0
  %727 = vmatprep.mubr.bf16.mxu0 %v281
  %728 = vmatmul.mubr.bf16.gmra.mrb[0].mxu0 %v280
  %v729 = vpop.f32.mrb[0].mxu0
  %v730 = vadd.f32 %v609, %v729
  %v731 = vpop.f32.mrb[0].mxu0
  %v732 = vpop.f32.mrb[0].mxu0
  %v733 = vadd.f32 %v612, %v732
  %v734 = vpop.f32.mrb[0].mxu0
  %735 = vmatprep.mubr.bf16.mxu0 %v285
  %736 = vmatmul.mubr.bf16.gmra.mrb[0].mxu0 %v284
  %v737 = vpop.f32.mrb[0].mxu0
  %v738 = vadd.f32 %v617, %v737
  %v739 = vpop.f32.mrb[0].mxu0
  %v740 = vpop.f32.mrb[0].mxu0
  %v741 = vadd.f32 %v620, %v740
  %v742 = vpop.f32.mrb[0].mxu0
  %743 = vmatprep.mubr.bf16.mxu0 %v289
  %744 = vmatmul.mubr.bf16.gmra.mrb[0].mxu0 %v288
  %v745 = vpop.f32.mrb[0].mxu0
  %v746 = vadd.f32 %v625, %v745
  %v747 = vpop.f32.mrb[0].mxu0
  %v748 = vpop.f32.mrb[0].mxu0
  %v749 = vadd.f32 %v628, %v748
  %v750 = vpop.f32.mrb[0].mxu0
  %751 = vmatprep.mubr.bf16.mxu0 %v293
  %752 = vmatmul.mubr.bf16.gmra.mrb[0].mxu0 %v292
  %v753 = vpop.f32.mrb[0].mxu0
  %v754 = vadd.f32 %v633, %v753
  %v755 = vpop.f32.mrb[0].mxu0
  %v756 = vpop.f32.mrb[0].mxu0
  %v757 = vadd.f32 %v636, %v756
  %v758 = vpop.f32.mrb[0].mxu0
  %759 = vmatprep.mubr.bf16.mxu0 %v297
  %760 = vmatmul.mubr.bf16.gmra.mrb[0].mxu0 %v296
  %v761 = vpop.f32.mrb[0].mxu0
  %v762 = vadd.f32 %v641, %v761
  %v763 = vpop.f32.mrb[0].mxu0
  %v764 = vpop.f32.mrb[0].mxu0
  %v765 = vadd.f32 %v644, %v764
  %v766 = vpop.f32.mrb[0].mxu0
  %767 = vmatprep.mubr.bf16.mxu0 %v301
  %768 = vmatmul.mubr.bf16.gmra.mrb[0].mxu0 %v300
  %v769 = vpop.f32.mrb[0].mxu0
  %v770 = vadd.f32 %v649, %v769
  %v771 = vpop.f32.mrb[0].mxu0
  %v772 = vpop.f32.mrb[0].mxu0
  %v773 = vadd.f32 %v652, %v772
  %v774 = vpop.f32.mrb[0].mxu0
  %775 = vmatprep.mubr.bf16.mxu0 %v305
  %776 = vmatmul.mubr.bf16.gmra.mrb[0].mxu0 %v304
  %v777 = vpop.f32.mrb[0].mxu0
  %v778 = vadd.f32 %v657, %v777
  %v779 = vpop.f32.mrb[0].mxu0
  %v780 = vpop.f32.mrb[0].mxu0
  %v781 = vadd.f32 %v660, %v780
  %v782 = vpop.f32.mrb[0].mxu0
  %783 = vdwg.mxu0
  %v784 = vmax.f32 %v698, 0.0
  %v785 = vmax.f32 %v701, 0.0
  %v786 = vmax.f32 %v706, 0.0
  %v787 = vmax.f32 %v709, 0.0
  %v788 = vmax.f32 %v714, 0.0
  %v789 = vmax.f32 %v717, 0.0
  %v790 = vmax.f32 %v722, 0.0
  %v791 = vmax.f32 %v725, 0.0
  %v792 = vmax.f32 %v730, 0.0
  %v793 = vmax.f32 %v733, 0.0
  %v794 = vmax.f32 %v738, 0.0
  %v795 = vmax.f32 %v741, 0.0
  %v796 = vmax.f32 %v746, 0.0
  %v797 = vmax.f32 %v749, 0.0
  %v798 = vmax.f32 %v754, 0.0
  %v799 = vmax.f32 %v757, 0.0
  %v800 = vmax.f32 %v762, 0.0
  %v801 = vmax.f32 %v765, 0.0
  %v802 = vmax.f32 %v770, 0.0
  %v803 = vmax.f32 %v773, 0.0
  %v804 = vmax.f32 %v778, 0.0
  %v805 = vmax.f32 %v781, 0.0
  %v806 = vpack.c.bf16 %v785, %v784
  %v807 = vpack.c.bf16 %v787, %v786
  %v808 = vpack.c.bf16 %v789, %v788
  %v809 = vpack.c.bf16 %v791, %v790
  %v810 = vpack.c.bf16 %v793, %v792
  %v811 = vpack.c.bf16 %v795, %v794
  %v812 = vpack.c.bf16 %v797, %v796
  %v813 = vpack.c.bf16 %v799, %v798
  %v814 = vpack.c.bf16 %v801, %v800
  %v815 = vpack.c.bf16 %v803, %v802
  %v816 = vpack.c.bf16 %v805, %v804
  %v828 = vunpack.c.l.b16 %v806
  %v829 = vunpack.c.h.b16 %v806
  %v830 = vunpack.c.l.b16 %v807
  %v831 = vunpack.c.h.b16 %v807
  %v832 = vunpack.c.l.b16 %v808
  %v833 = vunpack.c.h.b16 %v808
  %v834 = vunpack.c.l.b16 %v809
  %v835 = vunpack.c.h.b16 %v809
  %v836 = vunpack.c.l.b16 %v810
  %v837 = vunpack.c.h.b16 %v810
  %v838 = vunpack.c.l.b16 %v811
  %v839 = vunpack.c.h.b16 %v811
  %v840 = vunpack.c.l.b16 %v812
  %v841 = vunpack.c.h.b16 %v812
  %v842 = vunpack.c.l.b16 %v813
  %v843 = vunpack.c.h.b16 %v813
  %v844 = vunpack.c.l.b16 %v814
  %v845 = vunpack.c.h.b16 %v814
  %v846 = vunpack.c.l.b16 %v815
  %v847 = vunpack.c.h.b16 %v815
  %v848 = vunpack.c.l.b16 %v816
  %v849 = vunpack.c.h.b16 %v816
  %v850 = vpack.c.b16 %v828, %v828
  %v851 = vpack.c.b16 %v829, %v829
  %v852 = vpack.c.b16 %v830, %v830
  %v853 = vpack.c.b16 %v831, %v831
  %v854 = vpack.c.b16 %v832, %v832
  %v855 = vpack.c.b16 %v833, %v833
  %v856 = vpack.c.b16 %v834, %v834
  %v857 = vpack.c.b16 %v835, %v835
  %v858 = vpack.c.b16 %v836, %v836
  %v859 = vpack.c.b16 %v837, %v837
  %v860 = vpack.c.b16 %v838, %v838
  %v861 = vpack.c.b16 %v839, %v839
  %v862 = vpack.c.b16 %v840, %v840
  %v863 = vpack.c.b16 %v841, %v841
  %v864 = vpack.c.b16 %v842, %v842
  %v865 = vpack.c.b16 %v843, %v843
  %v866 = vpack.c.b16 %v844, %v844
  %v867 = vpack.c.b16 %v845, %v845
  %v868 = vpack.c.b16 %v846, %v846
  %v869 = vpack.c.b16 %v847, %v847
  %v870 = vpack.c.b16 %v848, %v848
  %v871 = vpack.c.b16 %v849, %v849
  %894 = vst [vmem:[%s3] sm:$0xf] %v850
  %895 = vst [vmem:[%s3 + $0x4] sm:$0xf] %v851
  %896 = vst [vmem:[%s3 + $0x8] sm:$0xf] %v852
  %897 = vst [vmem:[%s3 + $0xc] sm:$0xf] %v853
  %898 = vst [vmem:[%s3 + $0x10] sm:$0xf] %v854
  %899 = vst [vmem:[%s3 + $0x14] sm:$0xf] %v855
  %900 = vst [vmem:[%s3 + $0x18] sm:$0xf] %v856
  %901 = vst [vmem:[%s3 + $0x1c] sm:$0xf] %v857
  %902 = vst [vmem:[%s3 + $0x20] sm:$0xf] %v858
  %903 = vst [vmem:[%s3 + $0x24] sm:$0xf] %v859
  %904 = vst [vmem:[%s3 + $0x28] sm:$0xf] %v860
  %905 = vst [vmem:[%s3 + $0x2c] sm:$0xf] %v861
  %906 = vst [vmem:[%s3 + $0x30] sm:$0xf] %v862
  %907 = vst [vmem:[%s3 + $0x34] sm:$0xf] %v863
  %908 = vst [vmem:[%s3 + $0x38] sm:$0xf] %v864
  %909 = vst [vmem:[%s3 + $0x3c] sm:$0xf] %v865
  %910 = vst [vmem:[%s3 + $0x40] sm:$0xf] %v866
  %911 = vst [vmem:[%s3 + $0x44] sm:$0xf] %v867
  %912 = vst [vmem:[%s3 + $0x48] sm:$0xf] %v868
  %913 = vst [vmem:[%s3 + $0x4c] sm:$0xf] %v869
  %914 = vst [vmem:[%s3 + $0x50] sm:$0xf] %v870
  %915 = vst [vmem:[%s3 + $0x54] sm:$0xf] %v871
  // Predicated region
  $region14: #{_forward.5} parent=0 // pred_check
    _
  $region15: #{_forward.5} parent=0 // pred_check_branch
    %917 = sbr.rel (0) target = $region17
  $region16: #{_forward.5} parent=0 // pred_region
    _
  $region17: #{_forward.5} parent=0 // pred_fallthru
    _
  // Predicated region
  $region18: #{_forward.5} parent=0 // pred_check
    _
  $region19: #{_forward.5} parent=0 // pred_check_branch
    %919 = sbr.rel (0) target = $region21
  $region20: #{_forward.5} parent=0 // pred_region
    _
  $region21: #{_forward.5} parent=0 // pred_fallthru
    _

// kernel: _forward.6
$region0: #{_forward.6}
  #allocation0 [shape = 'u32[]', space=smem, size = 0x4, offset = 0x4, fixed_abs, tag = 'smem constant byte address 0x4 - core index']
  #allocation1 [shape = 'u32[144,128]{1,0:T(1,128)}', space=vmem, size = 0x12000, scoped, tag = 'internal scratch']
  %s0 = inlined_call_operand.vmem [shape: bf16[112,640], index: 0, kind: input, shape index: {}]
  %s1 = inlined_call_operand.vmem [shape: bf16[640,128], index: 1, kind: input, shape index: {}]
  %s2 = inlined_call_operand.vmem [shape: f32[1,128], index: 2, kind: input, shape index: {}]
  %s3 = inlined_call_operand.vmem [shape: bf16[112,128], index: 3, kind: output, shape index: {}]
  %s4 = sld [smem:[#allocation0]]
  $region22: #{_forward.6} parent=0
    _
  %s6 = ssub.s32 1, %s4
  %s7 = scalar_select 0, %s6, %s4
  // Predicated region
  $region2: #{_forward.6} parent=0 // pred_check
    _
  $region3: #{_forward.6} parent=0 // pred_check_branch
    %9 = sbr.rel (0) target = $region5
  $region4: #{_forward.6} parent=0 // pred_region
    _
  $region5: #{_forward.6} parent=0 // pred_fallthru
    _
  // Predicated region
  $region6: #{_forward.6} parent=0 // pred_check
    _
  $region7: #{_forward.6} parent=0 // pred_check_branch
    %11 = sbr.rel (0) target = $region9
  $region8: #{_forward.6} parent=0 // pred_region
    _
  $region9: #{_forward.6} parent=0 // pred_fallthru
    _
  // Predicated region
  $region10: #{_forward.6} parent=0 // pred_check
    _
  $region11: #{_forward.6} parent=0 // pred_check_branch
    %13 = sbr.rel (0) target = $region13
  $region12: #{_forward.6} parent=0 // pred_region
    _
  $region13: #{_forward.6} parent=0 // pred_fallthru
    _
  %v15 = vld [vmem:[%s0] sm:$0xff]
  %v16 = vld [vmem:[%s0 + $0x8] sm:$0xff]
  %v17 = vld [vmem:[%s0 + $0x10] sm:$0xf]
  %v18 = vld [vmem:[%s0 + $0x14] sm:$0xff]
  %v19 = vld [vmem:[%s0 + $0x1c] sm:$0xff]
  %v20 = vld [vmem:[%s0 + $0x24] sm:$0xf]
  %v21 = vld [vmem:[%s0 + $0x28] sm:$0xff]
  %v22 = vld [vmem:[%s0 + $0x30] sm:$0xff]
  %v23 = vld [vmem:[%s0 + $0x38] sm:$0xf]
  %v24 = vld [vmem:[%s0 + $0x3c] sm:$0xff]
  %v25 = vld [vmem:[%s0 + $0x44] sm:$0xff]
  %v26 = vld [vmem:[%s0 + $0x4c] sm:$0xf]
  %v27 = vld [vmem:[%s0 + $0x50] sm:$0xff]
  %v28 = vld [vmem:[%s0 + $0x58] sm:$0xff]
  %v29 = vld [vmem:[%s0 + $0x60] sm:$0xf]
  %v30 = vld [vmem:[%s0 + $0x64] sm:$0xff]
  %v31 = vld [vmem:[%s0 + $0x6c] sm:$0xff]
  %v32 = vld [vmem:[%s0 + $0x74] sm:$0xf]
  %v33 = vld [vmem:[%s0 + $0x78] sm:$0xff]
  %v34 = vld [vmem:[%s0 + $0x80] sm:$0xff]
  %v35 = vld [vmem:[%s0 + $0x88] sm:$0xf]
  %v36 = vld [vmem:[%s0 + $0x8c] sm:$0xff]
  %v37 = vld [vmem:[%s0 + $0x94] sm:$0xff]
  %v38 = vld [vmem:[%s0 + $0x9c] sm:$0xf]
  %v39 = vld [vmem:[%s0 + $0xa0] sm:$0xff]
  %v40 = vld [vmem:[%s0 + $0xa8] sm:$0xff]
  %v41 = vld [vmem:[%s0 + $0xb0] sm:$0xf]
  %v42 = vld [vmem:[%s0 + $0xb4] sm:$0xff]
  %v43 = vld [vmem:[%s0 + $0xbc] sm:$0xff]
  %v44 = vld [vmem:[%s0 + $0xc4] sm:$0xf]
  %v45 = vld [vmem:[%s0 + $0xc8] sm:$0xff]
  %v46 = vld [vmem:[%s0 + $0xd0] sm:$0xff]
  %v47 = vld [vmem:[%s0 + $0xd8] sm:$0xf]
  %v48 = vld [vmem:[%s0 + $0xdc] sm:$0xff]
  %v49 = vld [vmem:[%s0 + $0xe4] sm:$0xff]
  %v50 = vld [vmem:[%s0 + $0xec] sm:$0xf]
  %v51 = vld [vmem:[%s0 + $0xf0] sm:$0xff]
  %v52 = vld [vmem:[%s0 + $0xf8] sm:$0xff]
  %v53 = vld [vmem:[%s0 + $0x100] sm:$0xf]
  %v54 = vld [vmem:[%s0 + $0x104] sm:$0xff]
  %v55 = vld [vmem:[%s0 + $0x10c] sm:$0xff]
  %v56 = vld [vmem:[%s0 + $0x114] sm:$0xf]
  %v57 = vld [vmem:[%s1] sm:$0xf]
  %v58 = vld [vmem:[%s1 + $0x4] sm:$0xf]
  %v59 = vld [vmem:[%s1 + $0x8] sm:$0xf]
  %v60 = vld [vmem:[%s1 + $0xc] sm:$0xf]
  %v61 = vld [vmem:[%s1 + $0x10] sm:$0xf]
  %v62 = vld [vmem:[%s1 + $0x14] sm:$0xf]
  %v63 = vld [vmem:[%s1 + $0x18] sm:$0xf]
  %v64 = vld [vmem:[%s1 + $0x1c] sm:$0xf]
  %v65 = vld [vmem:[%s1 + $0x20] sm:$0xf]
  %v66 = vld [vmem:[%s1 + $0x24] sm:$0xf]
  %v67 = vld [vmem:[%s1 + $0x28] sm:$0xf]
  %v68 = vld [vmem:[%s1 + $0x2c] sm:$0xf]
  %v69 = vld [vmem:[%s1 + $0x30] sm:$0xf]
  %v70 = vld [vmem:[%s1 + $0x34] sm:$0xf]
  %v71 = vld [vmem:[%s1 + $0x38] sm:$0xf]
  %v72 = vld [vmem:[%s1 + $0x3c] sm:$0xf]
  %v73 = vld [vmem:[%s1 + $0x40] sm:$0xf]
  %v74 = vld [vmem:[%s1 + $0x44] sm:$0xf]
  %v75 = vld [vmem:[%s1 + $0x48] sm:$0xf]
  %v76 = vld [vmem:[%s1 + $0x4c] sm:$0xf]
  %v77 = vld [vmem:[%s1 + $0x50] sm:$0xf]
  %v78 = vld [vmem:[%s1 + $0x54] sm:$0xf]
  %v79 = vld [vmem:[%s1 + $0x58] sm:$0xf]
  %v80 = vld [vmem:[%s1 + $0x5c] sm:$0xf]
  %v81 = vld [vmem:[%s1 + $0x60] sm:$0xf]
  %v82 = vld [vmem:[%s1 + $0x64] sm:$0xf]
  %v83 = vld [vmem:[%s1 + $0x68] sm:$0xf]
  %v84 = vld [vmem:[%s1 + $0x6c] sm:$0xf]
  %v85 = vld [vmem:[%s1 + $0x70] sm:$0xf]
  %v86 = vld [vmem:[%s1 + $0x74] sm:$0xf]
  %v87 = vld [vmem:[%s1 + $0x78] sm:$0xf]
  %v88 = vld [vmem:[%s1 + $0x7c] sm:$0xf]
  %v89 = vld [vmem:[%s1 + $0x80] sm:$0xf]
  %v90 = vld [vmem:[%s1 + $0x84] sm:$0xf]
  %v91 = vld [vmem:[%s1 + $0x88] sm:$0xf]
  %v92 = vld [vmem:[%s1 + $0x8c] sm:$0xf]
  %v93 = vld [vmem:[%s1 + $0x90] sm:$0xf]
  %v94 = vld [vmem:[%s1 + $0x94] sm:$0xf]
  %v95 = vld [vmem:[%s1 + $0x98] sm:$0xf]
  %v96 = vld [vmem:[%s1 + $0x9c] sm:$0xf]
  %v97 = vld [vmem:[%s1 + $0xa0] sm:$0xf]
  %v98 = vld [vmem:[%s1 + $0xa4] sm:$0xf]
  %v99 = vld [vmem:[%s1 + $0xa8] sm:$0xf]
  %v100 = vld [vmem:[%s1 + $0xac] sm:$0xf]
  %v101 = vld [vmem:[%s1 + $0xb0] sm:$0xf]
  %v102 = vld [vmem:[%s1 + $0xb4] sm:$0xf]
  %v103 = vld [vmem:[%s1 + $0xb8] sm:$0xf]
  %v104 = vld [vmem:[%s1 + $0xbc] sm:$0xf]
  %v105 = vld [vmem:[%s1 + $0xc0] sm:$0xf]
  %v106 = vld [vmem:[%s1 + $0xc4] sm:$0xf]
  %v107 = vld [vmem:[%s1 + $0xc8] sm:$0xf]
  %v108 = vld [vmem:[%s1 + $0xcc] sm:$0xf]
  %v109 = vld [vmem:[%s1 + $0xd0] sm:$0xf]
  %v110 = vld [vmem:[%s1 + $0xd4] sm:$0xf]
  %v111 = vld [vmem:[%s1 + $0xd8] sm:$0xf]
  %v112 = vld [vmem:[%s1 + $0xdc] sm:$0xf]
  %v113 = vld [vmem:[%s1 + $0xe0] sm:$0xf]
  %v114 = vld [vmem:[%s1 + $0xe4] sm:$0xf]
  %v115 = vld [vmem:[%s1 + $0xe8] sm:$0xf]
  %v116 = vld [vmem:[%s1 + $0xec] sm:$0xf]
  %v117 = vld [vmem:[%s1 + $0xf0] sm:$0xf]
  %v118 = vld [vmem:[%s1 + $0xf4] sm:$0xf]
  %v119 = vld [vmem:[%s1 + $0xf8] sm:$0xf]
  %v120 = vld [vmem:[%s1 + $0xfc] sm:$0xf]
  %v121 = vld [vmem:[%s1 + $0x100] sm:$0xf]
  %v122 = vld [vmem:[%s1 + $0x104] sm:$0xf]
  %v123 = vld [vmem:[%s1 + $0x108] sm:$0xf]
  %v124 = vld [vmem:[%s1 + $0x10c] sm:$0xf]
  %v125 = vld [vmem:[%s1 + $0x110] sm:$0xf]
  %v126 = vld [vmem:[%s1 + $0x114] sm:$0xf]
  %v127 = vld [vmem:[%s1 + $0x118] sm:$0xf]
  %v128 = vld [vmem:[%s1 + $0x11c] sm:$0xf]
  %v129 = vld [vmem:[%s1 + $0x120] sm:$0xf]
  %v130 = vld [vmem:[%s1 + $0x124] sm:$0xf]
  %v131 = vld [vmem:[%s1 + $0x128] sm:$0xf]
  %v132 = vld [vmem:[%s1 + $0x12c] sm:$0xf]
  %v133 = vld [vmem:[%s1 + $0x130] sm:$0xf]
  %v134 = vld [vmem:[%s1 + $0x134] sm:$0xf]
  %v135 = vld [vmem:[%s1 + $0x138] sm:$0xf]
  %v136 = vld [vmem:[%s1 + $0x13c] sm:$0xf]
  %v137 = vld [vmem:[%s2] sm:$0x1]
  %v139 = vlaneseq
  %v140 = vshrl.u32 %v139, 7
  %v141 = vsub.s32 0, %v140
  %v142 = vrot.slane %v137, %v141
  %v186 = vunpack.c.l.b16 %v15
  %v187 = vunpack.c.h.b16 %v15
  %v188 = vunpack.c.l.b16 %v16
  %v189 = vunpack.c.h.b16 %v16
  %v190 = vunpack.c.l.b16 %v17
  %v191 = vunpack.c.l.b16 %v18
  %v192 = vunpack.c.h.b16 %v18
  %v193 = vunpack.c.l.b16 %v19
  %v194 = vunpack.c.h.b16 %v19
  %v195 = vunpack.c.l.b16 %v20
  %v196 = vunpack.c.l.b16 %v21
  %v197 = vunpack.c.h.b16 %v21
  %v198 = vunpack.c.l.b16 %v22
  %v199 = vunpack.c.h.b16 %v22
  %v200 = vunpack.c.l.b16 %v23
  %v201 = vunpack.c.l.b16 %v24
  %v202 = vunpack.c.h.b16 %v24
  %v203 = vunpack.c.l.b16 %v25
  %v204 = vunpack.c.h.b16 %v25
  %v205 = vunpack.c.l.b16 %v26
  %v206 = vunpack.c.l.b16 %v27
  %v207 = vunpack.c.h.b16 %v27
  %v208 = vunpack.c.l.b16 %v28
  %v209 = vunpack.c.h.b16 %v28
  %v210 = vunpack.c.l.b16 %v29
  %v211 = vunpack.c.l.b16 %v30
  %v212 = vunpack.c.h.b16 %v30
  %v213 = vunpack.c.l.b16 %v31
  %v214 = vunpack.c.h.b16 %v31
  %v215 = vunpack.c.l.b16 %v32
  %v216 = vunpack.c.l.b16 %v33
  %v217 = vunpack.c.h.b16 %v33
  %v218 = vunpack.c.l.b16 %v34
  %v219 = vunpack.c.h.b16 %v34
  %v220 = vunpack.c.l.b16 %v35
  %v221 = vunpack.c.l.b16 %v36
  %v222 = vunpack.c.h.b16 %v36
  %v223 = vunpack.c.l.b16 %v37
  %v224 = vunpack.c.h.b16 %v37
  %v225 = vunpack.c.l.b16 %v38
  %v226 = vunpack.c.l.b16 %v39
  %v227 = vunpack.c.h.b16 %v39
  %v228 = vunpack.c.l.b16 %v40
  %v229 = vunpack.c.h.b16 %v40
  %v230 = vunpack.c.l.b16 %v41
  %v231 = vunpack.c.l.b16 %v42
  %v232 = vunpack.c.h.b16 %v42
  %v233 = vunpack.c.l.b16 %v43
  %v234 = vunpack.c.h.b16 %v43
  %v235 = vunpack.c.l.b16 %v44
  %v236 = vunpack.c.l.b16 %v45
  %v237 = vunpack.c.h.b16 %v45
  %v238 = vunpack.c.l.b16 %v46
  %v239 = vunpack.c.h.b16 %v46
  %v240 = vunpack.c.l.b16 %v47
  %v241 = vunpack.c.l.b16 %v48
  %v242 = vunpack.c.h.b16 %v48
  %v243 = vunpack.c.l.b16 %v49
  %v244 = vunpack.c.h.b16 %v49
  %v245 = vunpack.c.l.b16 %v50
  %v246 = vunpack.c.l.b16 %v51
  %v247 = vunpack.c.h.b16 %v51
  %v248 = vunpack.c.l.b16 %v52
  %v249 = vunpack.c.h.b16 %v52
  %v250 = vunpack.c.l.b16 %v53
  %v251 = vunpack.c.l.b16 %v54
  %v252 = vunpack.c.h.b16 %v54
  %v253 = vunpack.c.l.b16 %v55
  %v254 = vunpack.c.h.b16 %v55
  %v255 = vunpack.c.l.b16 %v56
  %v256 = vpack.c.b16 %v191, %v186
  %v257 = vpack.c.b16 %v192, %v187
  %v258 = vpack.c.b16 %v193, %v188
  %v259 = vpack.c.b16 %v194, %v189
  %v260 = vpack.c.b16 %v195, %v190
  %v261 = vpack.c.b16 %v201, %v196
  %v262 = vpack.c.b16 %v202, %v197
  %v263 = vpack.c.b16 %v203, %v198
  %v264 = vpack.c.b16 %v204, %v199
  %v265 = vpack.c.b16 %v205, %v200
  %v266 = vpack.c.b16 %v211, %v206
  %v267 = vpack.c.b16 %v212, %v207
  %v268 = vpack.c.b16 %v213, %v208
  %v269 = vpack.c.b16 %v214, %v209
  %v270 = vpack.c.b16 %v215, %v210
  %v271 = vpack.c.b16 %v221, %v216
  %v272 = vpack.c.b16 %v222, %v217
  %v273 = vpack.c.b16 %v223, %v218
  %v274 = vpack.c.b16 %v224, %v219
  %v275 = vpack.c.b16 %v225, %v220
  %v276 = vpack.c.b16 %v231, %v226
  %v277 = vpack.c.b16 %v232, %v227
  %v278 = vpack.c.b16 %v233, %v228
  %v279 = vpack.c.b16 %v234, %v229
  %v280 = vpack.c.b16 %v235, %v230
  %v281 = vpack.c.b16 %v241, %v236
  %v282 = vpack.c.b16 %v242, %v237
  %v283 = vpack.c.b16 %v243, %v238
  %v284 = vpack.c.b16 %v244, %v239
  %v285 = vpack.c.b16 %v245, %v240
  %v286 = vpack.c.b16 %v251, %v246
  %v287 = vpack.c.b16 %v252, %v247
  %v288 = vpack.c.b16 %v253, %v248
  %v289 = vpack.c.b16 %v254, %v249
  %v290 = vpack.c.b16 %v255, %v250
  %v406 = vunpack.c.l.b16 %v57
  %v407 = vunpack.c.l.b16 %v58
  %v408 = vunpack.c.l.b16 %v59
  %v409 = vunpack.c.l.b16 %v60
  %v410 = vunpack.c.l.b16 %v61
  %v411 = vunpack.c.l.b16 %v62
  %v412 = vunpack.c.l.b16 %v63
  %v413 = vunpack.c.l.b16 %v64
  %v414 = vunpack.c.l.b16 %v65
  %v415 = vunpack.c.l.b16 %v66
  %v416 = vunpack.c.l.b16 %v67
  %v417 = vunpack.c.l.b16 %v68
  %v418 = vunpack.c.l.b16 %v69
  %v419 = vunpack.c.l.b16 %v70
  %v420 = vunpack.c.l.b16 %v71
  %v421 = vunpack.c.l.b16 %v72
  %v422 = vunpack.c.l.b16 %v73
  %v423 = vunpack.c.l.b16 %v74
  %v424 = vunpack.c.l.b16 %v75
  %v425 = vunpack.c.l.b16 %v76
  %v426 = vunpack.c.l.b16 %v77
  %v427 = vunpack.c.l.b16 %v78
  %v428 = vunpack.c.l.b16 %v79
  %v429 = vunpack.c.l.b16 %v80
  %v430 = vunpack.c.l.b16 %v81
  %v431 = vunpack.c.l.b16 %v82
  %v432 = vunpack.c.l.b16 %v83
  %v433 = vunpack.c.l.b16 %v84
  %v434 = vunpack.c.l.b16 %v85
  %v435 = vunpack.c.l.b16 %v86
  %v436 = vunpack.c.l.b16 %v87
  %v437 = vunpack.c.l.b16 %v88
  %v438 = vunpack.c.l.b16 %v89
  %v439 = vunpack.c.l.b16 %v90
  %v440 = vunpack.c.l.b16 %v91
  %v441 = vunpack.c.l.b16 %v92
  %v442 = vunpack.c.l.b16 %v93
  %v443 = vunpack.c.l.b16 %v94
  %v444 = vunpack.c.l.b16 %v95
  %v445 = vunpack.c.l.b16 %v96
  %v446 = vunpack.c.l.b16 %v97
  %v447 = vunpack.c.l.b16 %v98
  %v448 = vunpack.c.l.b16 %v99
  %v449 = vunpack.c.l.b16 %v100
  %v450 = vunpack.c.l.b16 %v101
  %v451 = vunpack.c.l.b16 %v102
  %v452 = vunpack.c.l.b16 %v103
  %v453 = vunpack.c.l.b16 %v104
  %v454 = vunpack.c.l.b16 %v105
  %v455 = vunpack.c.l.b16 %v106
  %v456 = vunpack.c.l.b16 %v107
  %v457 = vunpack.c.l.b16 %v108
  %v458 = vunpack.c.l.b16 %v109
  %v459 = vunpack.c.l.b16 %v110
  %v460 = vunpack.c.l.b16 %v111
  %v461 = vunpack.c.l.b16 %v112
  %v462 = vunpack.c.l.b16 %v113
  %v463 = vunpack.c.l.b16 %v114
  %v464 = vunpack.c.l.b16 %v115
  %v465 = vunpack.c.l.b16 %v116
  %v466 = vunpack.c.l.b16 %v117
  %v467 = vunpack.c.l.b16 %v118
  %v468 = vunpack.c.l.b16 %v119
  %v469 = vunpack.c.l.b16 %v120
  %v470 = vunpack.c.l.b16 %v121
  %v471 = vunpack.c.l.b16 %v122
  %v472 = vunpack.c.l.b16 %v123
  %v473 = vunpack.c.l.b16 %v124
  %v474 = vunpack.c.l.b16 %v125
  %v475 = vunpack.c.l.b16 %v126
  %v476 = vunpack.c.l.b16 %v127
  %v477 = vunpack.c.l.b16 %v128
  %v478 = vunpack.c.l.b16 %v129
  %v479 = vunpack.c.l.b16 %v130
  %v480 = vunpack.c.l.b16 %v131
  %v481 = vunpack.c.l.b16 %v132
  %v482 = vunpack.c.l.b16 %v133
  %v483 = vunpack.c.l.b16 %v134
  %v484 = vunpack.c.l.b16 %v135
  %v485 = vunpack.c.l.b16 %v136
  %v486 = vpack.c.b16 %v407, %v406
  %v487 = vpack.c.b16 %v409, %v408
  %v488 = vpack.c.b16 %v411, %v410
  %v489 = vpack.c.b16 %v413, %v412
  %v490 = vpack.c.b16 %v415, %v414
  %v491 = vpack.c.b16 %v417, %v416
  %v492 = vpack.c.b16 %v419, %v418
  %v493 = vpack.c.b16 %v421, %v420
  %v494 = vpack.c.b16 %v423, %v422
  %v495 = vpack.c.b16 %v425, %v424
  %v496 = vpack.c.b16 %v427, %v426
  %v497 = vpack.c.b16 %v429, %v428
  %v498 = vpack.c.b16 %v431, %v430
  %v499 = vpack.c.b16 %v433, %v432
  %v500 = vpack.c.b16 %v435, %v434
  %v501 = vpack.c.b16 %v437, %v436
  %v502 = vpack.c.b16 %v439, %v438
  %v503 = vpack.c.b16 %v441, %v440
  %v504 = vpack.c.b16 %v443, %v442
  %v505 = vpack.c.b16 %v445, %v444
  %v506 = vpack.c.b16 %v447, %v446
  %v507 = vpack.c.b16 %v449, %v448
  %v508 = vpack.c.b16 %v451, %v450
  %v509 = vpack.c.b16 %v453, %v452
  %v510 = vpack.c.b16 %v455, %v454
  %v511 = vpack.c.b16 %v457, %v456
  %v512 = vpack.c.b16 %v459, %v458
  %v513 = vpack.c.b16 %v461, %v460
  %v514 = vpack.c.b16 %v463, %v462
  %v515 = vpack.c.b16 %v465, %v464
  %v516 = vpack.c.b16 %v467, %v466
  %v517 = vpack.c.b16 %v469, %v468
  %v518 = vpack.c.b16 %v471, %v470
  %v519 = vpack.c.b16 %v473, %v472
  %v520 = vpack.c.b16 %v475, %v474
  %v521 = vpack.c.b16 %v477, %v476
  %v522 = vpack.c.b16 %v479, %v478
  %v523 = vpack.c.b16 %v481, %v480
  %v524 = vpack.c.b16 %v483, %v482
  %v525 = vpack.c.b16 %v485, %v484
  %566 = vmatprep.subr.bf16.mxu0 0
  %567 = vmatpush1.bf16.msra.mxu0 %v486
  %568 = vmatprep.subr.bf16.mxu0 0
  %569 = vmatpush1.bf16.msra.mxu0 %v487
  %570 = vmatprep.subr.bf16.mxu0 0
  %571 = vmatpush1.bf16.msra.mxu0 %v488
  %572 = vmatprep.subr.bf16.mxu0 0
  %573 = vmatpush1.bf16.msra.mxu0 %v489
  %574 = vmatprep.subr.bf16.mxu0 0
  %575 = vmatpush1.bf16.msra.mxu0 %v490
  %576 = vmatprep.subr.bf16.mxu0 0
  %577 = vmatpush1.bf16.msra.mxu0 %v491
  %578 = vmatprep.subr.bf16.mxu0 0
  %579 = vmatpush1.bf16.msra.mxu0 %v492
  %580 = vmatprep.subr.bf16.mxu0 0
  %581 = vmatpush1.bf16.msra.mxu0 %v493
  %582 = vmatprep.subr.bf16.mxu0 0
  %583 = vmatpush1.bf16.msra.mxu0 %v494
  %584 = vmatprep.subr.bf16.mxu0 0
  %585 = vmatpush1.bf16.msra.mxu0 %v495
  %586 = vmatprep.subr.bf16.mxu0 0
  %587 = vmatpush1.bf16.msra.mxu0 %v496
  %588 = vmatprep.subr.bf16.mxu0 0
  %589 = vmatpush1.bf16.msra.mxu0 %v497
  %590 = vmatprep.subr.bf16.mxu0 0
  %591 = vmatpush1.bf16.msra.mxu0 %v498
  %592 = vmatprep.subr.bf16.mxu0 0
  %593 = vmatpush1.bf16.msra.mxu0 %v499
  %594 = vmatprep.subr.bf16.mxu0 0
  %595 = vmatpush1.bf16.msra.mxu0 %v500
  %596 = vmatprep.subr.bf16.mxu0 0
  %597 = vmatpush1.bf16.msra.mxu0 %v501
  %598 = vmatprep.mubr.bf16.mxu0 %v257
  %599 = vmatmul.mubr.bf16.gmra.mrb[0].mxu0 %v256
  %v600 = vpop.f32.mrb[0].mxu0
  %v601 = vadd.f32 %v142, %v600
  %v602 = vpop.f32.mrb[0].mxu0
  %v603 = vpop.f32.mrb[0].mxu0
  %v604 = vadd.f32 %v142, %v603
  %v605 = vpop.f32.mrb[0].mxu0
  %606 = vmatprep.mubr.bf16.mxu0 %v262
  %607 = vmatmul.mubr.bf16.gmra.mrb[0].mxu0 %v261
  %v608 = vpop.f32.mrb[0].mxu0
  %v609 = vadd.f32 %v142, %v608
  %v610 = vpop.f32.mrb[0].mxu0
  %v611 = vpop.f32.mrb[0].mxu0
  %v612 = vadd.f32 %v142, %v611
  %v613 = vpop.f32.mrb[0].mxu0
  %614 = vmatprep.mubr.bf16.mxu0 %v267
  %615 = vmatmul.mubr.bf16.gmra.mrb[0].mxu0 %v266
  %v616 = vpop.f32.mrb[0].mxu0
  %v617 = vadd.f32 %v142, %v616
  %v618 = vpop.f32.mrb[0].mxu0
  %v619 = vpop.f32.mrb[0].mxu0
  %v620 = vadd.f32 %v142, %v619
  %v621 = vpop.f32.mrb[0].mxu0
  %622 = vmatprep.mubr.bf16.mxu0 %v272
  %623 = vmatmul.mubr.bf16.gmra.mrb[0].mxu0 %v271
  %v624 = vpop.f32.mrb[0].mxu0
  %v625 = vadd.f32 %v142, %v624
  %v626 = vpop.f32.mrb[0].mxu0
  %v627 = vpop.f32.mrb[0].mxu0
  %v628 = vadd.f32 %v142, %v627
  %v629 = vpop.f32.mrb[0].mxu0
  %630 = vmatprep.mubr.bf16.mxu0 %v277
  %631 = vmatmul.mubr.bf16.gmra.mrb[0].mxu0 %v276
  %v632 = vpop.f32.mrb[0].mxu0
  %v633 = vadd.f32 %v142, %v632
  %v634 = vpop.f32.mrb[0].mxu0
  %v635 = vpop.f32.mrb[0].mxu0
  %v636 = vadd.f32 %v142, %v635
  %v637 = vpop.f32.mrb[0].mxu0
  %638 = vmatprep.mubr.bf16.mxu0 %v282
  %639 = vmatmul.mubr.bf16.gmra.mrb[0].mxu0 %v281
  %v640 = vpop.f32.mrb[0].mxu0
  %v641 = vadd.f32 %v142, %v640
  %v642 = vpop.f32.mrb[0].mxu0
  %v643 = vpop.f32.mrb[0].mxu0
  %v644 = vadd.f32 %v142, %v643
  %v645 = vpop.f32.mrb[0].mxu0
  %646 = vmatprep.mubr.bf16.mxu0 %v287
  %647 = vmatmul.mubr.bf16.gmra.mrb[0].mxu0 %v286
  %v648 = vpop.f32.mrb[0].mxu0
  %v649 = vadd.f32 %v142, %v648
  %v650 = vpop.f32.mrb[0].mxu0
  %v651 = vpop.f32.mrb[0].mxu0
  %v652 = vadd.f32 %v142, %v651
  %v653 = vpop.f32.mrb[0].mxu0
  %654 = vdwg.mxu0
  %655 = vmatprep.subr.bf16.mxu0 0
  %656 = vmatpush1.bf16.msra.mxu0 %v502
  %657 = vmatprep.subr.bf16.mxu0 0
  %658 = vmatpush1.bf16.msra.mxu0 %v503
  %659 = vmatprep.subr.bf16.mxu0 0
  %660 = vmatpush1.bf16.msra.mxu0 %v504
  %661 = vmatprep.subr.bf16.mxu0 0
  %662 = vmatpush1.bf16.msra.mxu0 %v505
  %663 = vmatprep.subr.bf16.mxu0 0
  %664 = vmatpush1.bf16.msra.mxu0 %v506
  %665 = vmatprep.subr.bf16.mxu0 0
  %666 = vmatpush1.bf16.msra.mxu0 %v507
  %667 = vmatprep.subr.bf16.mxu0 0
  %668 = vmatpush1.bf16.msra.mxu0 %v508
  %669 = vmatprep.subr.bf16.mxu0 0
  %670 = vmatpush1.bf16.msra.mxu0 %v509
  %671 = vmatprep.subr.bf16.mxu0 0
  %672 = vmatpush1.bf16.msra.mxu0 %v510
  %673 = vmatprep.subr.bf16.mxu0 0
  %674 = vmatpush1.bf16.msra.mxu0 %v511
  %675 = vmatprep.subr.bf16.mxu0 0
  %676 = vmatpush1.bf16.msra.mxu0 %v512
  %677 = vmatprep.subr.bf16.mxu0 0
  %678 = vmatpush1.bf16.msra.mxu0 %v513
  %679 = vmatprep.subr.bf16.mxu0 0
  %680 = vmatpush1.bf16.msra.mxu0 %v514
  %681 = vmatprep.subr.bf16.mxu0 0
  %682 = vmatpush1.bf16.msra.mxu0 %v515
  %683 = vmatprep.subr.bf16.mxu0 0
  %684 = vmatpush1.bf16.msra.mxu0 %v516
  %685 = vmatprep.subr.bf16.mxu0 0
  %686 = vmatpush1.bf16.msra.mxu0 %v517
  %687 = vmatprep.mubr.bf16.mxu0 %v259
  %688 = vmatmul.mubr.bf16.gmra.mrb[0].mxu0 %v258
  %v689 = vpop.f32.mrb[0].mxu0
  %v690 = vadd.f32 %v601, %v689
  %v691 = vpop.f32.mrb[0].mxu0
  %v692 = vpop.f32.mrb[0].mxu0
  %v693 = vadd.f32 %v604, %v692
  %v694 = vpop.f32.mrb[0].mxu0
  %695 = vmatprep.mubr.bf16.mxu0 %v264
  %696 = vmatmul.mubr.bf16.gmra.mrb[0].mxu0 %v263
  %v697 = vpop.f32.mrb[0].mxu0
  %v698 = vadd.f32 %v609, %v697
  %v699 = vpop.f32.mrb[0].mxu0
  %v700 = vpop.f32.mrb[0].mxu0
  %v701 = vadd.f32 %v612, %v700
  %v702 = vpop.f32.mrb[0].mxu0
  %703 = vmatprep.mubr.bf16.mxu0 %v269
  %704 = vmatmul.mubr.bf16.gmra.mrb[0].mxu0 %v268
  %v705 = vpop.f32.mrb[0].mxu0
  %v706 = vadd.f32 %v617, %v705
  %v707 = vpop.f32.mrb[0].mxu0
  %v708 = vpop.f32.mrb[0].mxu0
  %v709 = vadd.f32 %v620, %v708
  %v710 = vpop.f32.mrb[0].mxu0
  %711 = vmatprep.mubr.bf16.mxu0 %v274
  %712 = vmatmul.mubr.bf16.gmra.mrb[0].mxu0 %v273
  %v713 = vpop.f32.mrb[0].mxu0
  %v714 = vadd.f32 %v625, %v713
  %v715 = vpop.f32.mrb[0].mxu0
  %v716 = vpop.f32.mrb[0].mxu0
  %v717 = vadd.f32 %v628, %v716
  %v718 = vpop.f32.mrb[0].mxu0
  %719 = vmatprep.mubr.bf16.mxu0 %v279
  %720 = vmatmul.mubr.bf16.gmra.mrb[0].mxu0 %v278
  %v721 = vpop.f32.mrb[0].mxu0
  %v722 = vadd.f32 %v633, %v721
  %v723 = vpop.f32.mrb[0].mxu0
  %v724 = vpop.f32.mrb[0].mxu0
  %v725 = vadd.f32 %v636, %v724
  %v726 = vpop.f32.mrb[0].mxu0
  %727 = vmatprep.mubr.bf16.mxu0 %v284
  %728 = vmatmul.mubr.bf16.gmra.mrb[0].mxu0 %v283
  %v729 = vpop.f32.mrb[0].mxu0
  %v730 = vadd.f32 %v641, %v729
  %v731 = vpop.f32.mrb[0].mxu0
  %v732 = vpop.f32.mrb[0].mxu0
  %v733 = vadd.f32 %v644, %v732
  %v734 = vpop.f32.mrb[0].mxu0
  %735 = vmatprep.mubr.bf16.mxu0 %v289
  %736 = vmatmul.mubr.bf16.gmra.mrb[0].mxu0 %v288
  %v737 = vpop.f32.mrb[0].mxu0
  %v738 = vadd.f32 %v649, %v737
  %v739 = vpop.f32.mrb[0].mxu0
  %v740 = vpop.f32.mrb[0].mxu0
  %v741 = vadd.f32 %v652, %v740
  %v742 = vpop.f32.mrb[0].mxu0
  %743 = vdwg.mxu0
  %744 = vmatprep.subr.bf16.mxu0 0
  %745 = vmatpush1.bf16.msra.mxu0 %v518
  %746 = vmatprep.subr.bf16.mxu0 0
  %747 = vmatpush1.bf16.msra.mxu0 %v519
  %748 = vmatprep.subr.bf16.mxu0 0
  %749 = vmatpush1.bf16.msra.mxu0 %v520
  %750 = vmatprep.subr.bf16.mxu0 0
  %751 = vmatpush1.bf16.msra.mxu0 %v521
  %752 = vmatprep.subr.bf16.mxu0 0
  %753 = vmatpush1.bf16.msra.mxu0 %v522
  %754 = vmatprep.subr.bf16.mxu0 0
  %755 = vmatpush1.bf16.msra.mxu0 %v523
  %756 = vmatprep.subr.bf16.mxu0 0
  %757 = vmatpush1.bf16.msra.mxu0 %v524
  %758 = vmatprep.subr.bf16.mxu0 0
  %759 = vmatpush1.bf16.msra.mxu0 %v525
  %760 = vmatprep.subr.bf16.mxu0 0
  %761 = vmatpush1.bf16.msra.mxu0 0
  %762 = vmatprep.subr.bf16.mxu0 0
  %763 = vmatpush1.bf16.msra.mxu0 0
  %764 = vmatprep.subr.bf16.mxu0 0
  %765 = vmatpush1.bf16.msra.mxu0 0
  %766 = vmatprep.subr.bf16.mxu0 0
  %767 = vmatpush1.bf16.msra.mxu0 0
  %768 = vmatprep.subr.bf16.mxu0 0
  %769 = vmatpush1.bf16.msra.mxu0 0
  %770 = vmatprep.subr.bf16.mxu0 0
  %771 = vmatpush1.bf16.msra.mxu0 0
  %772 = vmatprep.subr.bf16.mxu0 0
  %773 = vmatpush1.bf16.msra.mxu0 0
  %774 = vmatprep.subr.bf16.mxu0 0
  %775 = vmatpush1.bf16.msra.mxu0 0
  %776 = vmatprep.mubr.bf16.mxu0 0
  %777 = vmatmul.mubr.bf16.gmra.mrb[0].mxu0 %v260
  %v778 = vpop.f32.mrb[0].mxu0
  %v779 = vadd.f32 %v690, %v778
  %v780 = vpop.f32.mrb[0].mxu0
  %v781 = vpop.f32.mrb[0].mxu0
  %v782 = vadd.f32 %v693, %v781
  %v783 = vpop.f32.mrb[0].mxu0
  %784 = vmatprep.mubr.bf16.mxu0 0
  %785 = vmatmul.mubr.bf16.gmra.mrb[0].mxu0 %v265
  %v786 = vpop.f32.mrb[0].mxu0
  %v787 = vadd.f32 %v698, %v786
  %v788 = vpop.f32.mrb[0].mxu0
  %v789 = vpop.f32.mrb[0].mxu0
  %v790 = vadd.f32 %v701, %v789
  %v791 = vpop.f32.mrb[0].mxu0
  %792 = vmatprep.mubr.bf16.mxu0 0
  %793 = vmatmul.mubr.bf16.gmra.mrb[0].mxu0 %v270
  %v794 = vpop.f32.mrb[0].mxu0
  %v795 = vadd.f32 %v706, %v794
  %v796 = vpop.f32.mrb[0].mxu0
  %v797 = vpop.f32.mrb[0].mxu0
  %v798 = vadd.f32 %v709, %v797
  %v799 = vpop.f32.mrb[0].mxu0
  %800 = vmatprep.mubr.bf16.mxu0 0
  %801 = vmatmul.mubr.bf16.gmra.mrb[0].mxu0 %v275
  %v802 = vpop.f32.mrb[0].mxu0
  %v803 = vadd.f32 %v714, %v802
  %v804 = vpop.f32.mrb[0].mxu0
  %v805 = vpop.f32.mrb[0].mxu0
  %v806 = vadd.f32 %v717, %v805
  %v807 = vpop.f32.mrb[0].mxu0
  %808 = vmatprep.mubr.bf16.mxu0 0
  %809 = vmatmul.mubr.bf16.gmra.mrb[0].mxu0 %v280
  %v810 = vpop.f32.mrb[0].mxu0
  %v811 = vadd.f32 %v722, %v810
  %v812 = vpop.f32.mrb[0].mxu0
  %v813 = vpop.f32.mrb[0].mxu0
  %v814 = vadd.f32 %v725, %v813
  %v815 = vpop.f32.mrb[0].mxu0
  %816 = vmatprep.mubr.bf16.mxu0 0
  %817 = vmatmul.mubr.bf16.gmra.mrb[0].mxu0 %v285
  %v818 = vpop.f32.mrb[0].mxu0
  %v819 = vadd.f32 %v730, %v818
  %v820 = vpop.f32.mrb[0].mxu0
  %v821 = vpop.f32.mrb[0].mxu0
  %v822 = vadd.f32 %v733, %v821
  %v823 = vpop.f32.mrb[0].mxu0
  %824 = vmatprep.mubr.bf16.mxu0 0
  %825 = vmatmul.mubr.bf16.gmra.mrb[0].mxu0 %v290
  %v826 = vpop.f32.mrb[0].mxu0
  %v827 = vadd.f32 %v738, %v826
  %v828 = vpop.f32.mrb[0].mxu0
  %v829 = vpop.f32.mrb[0].mxu0
  %v830 = vadd.f32 %v741, %v829
  %v831 = vpop.f32.mrb[0].mxu0
  %832 = vdwg.mxu0
  %v833 = vmax.f32 %v779, 0.0
  %v834 = vmax.f32 %v782, 0.0
  %v835 = vmax.f32 %v787, 0.0
  %v836 = vmax.f32 %v790, 0.0
  %v837 = vmax.f32 %v795, 0.0
  %v838 = vmax.f32 %v798, 0.0
  %v839 = vmax.f32 %v803, 0.0
  %v840 = vmax.f32 %v806, 0.0
  %v841 = vmax.f32 %v811, 0.0
  %v842 = vmax.f32 %v814, 0.0
  %v843 = vmax.f32 %v819, 0.0
  %v844 = vmax.f32 %v822, 0.0
  %v845 = vmax.f32 %v827, 0.0
  %v846 = vmax.f32 %v830, 0.0
  %v847 = vpack.c.bf16 %v834, %v833
  %v848 = vpack.c.bf16 %v836, %v835
  %v849 = vpack.c.bf16 %v838, %v837
  %v850 = vpack.c.bf16 %v840, %v839
  %v851 = vpack.c.bf16 %v842, %v841
  %v852 = vpack.c.bf16 %v844, %v843
  %v853 = vpack.c.bf16 %v846, %v845
  %v861 = vunpack.c.l.b16 %v847
  %v862 = vunpack.c.h.b16 %v847
  %v863 = vunpack.c.l.b16 %v848
  %v864 = vunpack.c.h.b16 %v848
  %v865 = vunpack.c.l.b16 %v849
  %v866 = vunpack.c.h.b16 %v849
  %v867 = vunpack.c.l.b16 %v850
  %v868 = vunpack.c.h.b16 %v850
  %v869 = vunpack.c.l.b16 %v851
  %v870 = vunpack.c.h.b16 %v851
  %v871 = vunpack.c.l.b16 %v852
  %v872 = vunpack.c.h.b16 %v852
  %v873 = vunpack.c.l.b16 %v853
  %v874 = vunpack.c.h.b16 %v853
  %v875 = vpack.c.b16 %v861, %v861
  %v876 = vpack.c.b16 %v862, %v862
  %v877 = vpack.c.b16 %v863, %v863
  %v878 = vpack.c.b16 %v864, %v864
  %v879 = vpack.c.b16 %v865, %v865
  %v880 = vpack.c.b16 %v866, %v866
  %v881 = vpack.c.b16 %v867, %v867
  %v882 = vpack.c.b16 %v868, %v868
  %v883 = vpack.c.b16 %v869, %v869
  %v884 = vpack.c.b16 %v870, %v870
  %v885 = vpack.c.b16 %v871, %v871
  %v886 = vpack.c.b16 %v872, %v872
  %v887 = vpack.c.b16 %v873, %v873
  %v888 = vpack.c.b16 %v874, %v874
  %903 = vst [vmem:[%s3] sm:$0xf] %v875
  %904 = vst [vmem:[%s3 + $0x4] sm:$0xf] %v876
  %905 = vst [vmem:[%s3 + $0x8] sm:$0xf] %v877
  %906 = vst [vmem:[%s3 + $0xc] sm:$0xf] %v878
  %907 = vst [vmem:[%s3 + $0x10] sm:$0xf] %v879
  %908 = vst [vmem:[%s3 + $0x14] sm:$0xf] %v880
  %909 = vst [vmem:[%s3 + $0x18] sm:$0xf] %v881
  %910 = vst [vmem:[%s3 + $0x1c] sm:$0xf] %v882
  %911 = vst [vmem:[%s3 + $0x20] sm:$0xf] %v883
  %912 = vst [vmem:[%s3 + $0x24] sm:$0xf] %v884
  %913 = vst [vmem:[%s3 + $0x28] sm:$0xf] %v885
  %914 = vst [vmem:[%s3 + $0x2c] sm:$0xf] %v886
  %915 = vst [vmem:[%s3 + $0x30] sm:$0xf] %v887
  %916 = vst [vmem:[%s3 + $0x34] sm:$0xf] %v888
  // Predicated region
  $region14: #{_forward.6} parent=0 // pred_check
    _
  $region15: #{_forward.6} parent=0 // pred_check_branch
    %918 = sbr.rel (0) target = $region17
  $region16: #{_forward.6} parent=0 // pred_region
    _
  $region17: #{_forward.6} parent=0 // pred_fallthru
    _
  // Predicated region
  $region18: #{_forward.6} parent=0 // pred_check
    _
  $region19: #{_forward.6} parent=0 // pred_check_branch
    %920 = sbr.rel (0) target = $region21
  $region20: #{_forward.6} parent=0 // pred_region
    _
  $region21: #{_forward.6} parent=0 // pred_fallthru
    _

// kernel: _forward.7
$region0: #{_forward.7}
  #allocation0 [shape = 'u32[]', space=smem, size = 0x4, offset = 0x4, fixed_abs, tag = 'smem constant byte address 0x4 - core index']
  #allocation1 [shape = 'u32[144,128]{1,0:T(1,128)}', space=vmem, size = 0x12000, scoped, tag = 'internal scratch']
  %s0 = inlined_call_operand.vmem [shape: bf16[16,3200], index: 0, kind: input, shape index: {}]
  %s1 = inlined_call_operand.vmem [shape: bf16[3,3200,512], index: 1, kind: input, shape index: {}]
  %s2 = inlined_call_operand.vmem [shape: f32[3,1,512], index: 2, kind: input, shape index: {}]
  %s3 = inlined_call_operand.vmem [shape: bf16[3,512,128], index: 3, kind: input, shape index: {}]
  %s4 = inlined_call_operand.vmem [shape: f32[3,1,128], index: 4, kind: input, shape index: {}]
  %s5 = inlined_call_operand.vmem [shape: f32[3,16,128], index: 5, kind: output, shape index: {}]
  %s6 = sld [smem:[#allocation0]]
  $region53: #{_forward.7} parent=0
    _
  %s8 = ssub.s32 1, %s6
  %s9 = scalar_select 0, %s8, %s6
  loop: start=0, step=1, limit=5
  $region2: #{_forward.7} parent=0 // loop_pre_header
    _
  $region3: #{_forward.7} parent=0 // loop_header
    %s11 = sphi 0, %s15
    %p12 = scmp.ge.s32.totalorder %s11, 5
    %s19 = sphi 0, %s19
    %s21 = sphi 0, %s19
    %s22 = sphi 0, %s21
    %s36 = sphi 0, %s22
    %s42 = sphi 0, %s44
    %s45 = sphi 0, %s42
    %s46 = sphi 0, %s45
    %s62 = sphi 0, %s46
    %s68 = sphi 0, %s70
    %s71 = sphi 0, %s68
    %s72 = sphi 0, %s71
    %s88 = sphi 0, %s72
    %s94 = sphi 0, %s96
    %s97 = sphi 0, %s94
    %s98 = sphi 0, %s97
    %s114 = sphi 0, %s98
    %s120 = sphi 0, %s122
    %s123 = sphi 0, %s120
    %s124 = sphi 0, %s123
    %s140 = sphi 0, %s124
    %s146 = sphi 0, %s148
    %s149 = sphi 0, %s146
    %s150 = sphi 0, %s149
    %s166 = sphi 0, %s150
  $region4: #{_forward.7} parent=0 // loop_header_branch
    %14 = sbr.rel (%p12) target = $region8
  $region5: #{_forward.7} parent=0 // loop_body
    %s16 = ssub.s32 %s11, 1
    %s17 = ssub.s32 %s11, 2
    %s18 = sadd.s32 %s11, 1
    %s20 = sadd.s32 %s19, 1
    %p23 = scmp.eq.s32.totalorder %s11, 2
    %p24 = scmp.ne.s32.totalorder %s19, %s21
    %p25 = scmp.eq.s32.totalorder %s11, 0
    %p26 = por %p24, %p25
    %p27 = scmp.ne.s32.totalorder %s19, %s21
    %p28 = scmp.eq.s32.totalorder %s16, 2
    %p29 = por %p27, %p28
    %p30 = scmp.ne.s32.totalorder %s21, %s22
    %p31 = scmp.eq.s32.totalorder %s16, 0
    %p32 = por %p30, %p31
    %p33 = scmp.ne.s32.totalorder %s21, %s22
    %p34 = scmp.eq.s32.totalorder %s17, 2
    %p35 = por %p33, %p34
    %p37 = scmp.ne.s32.totalorder %s22, %s36
    %p38 = scmp.eq.s32.totalorder %s17, 0
    %p39 = por %p37, %p38
    %s40 = ssub.s32 %s11, %s18
    %p41 = scmp.eq.s32.totalorder %s40, 0
    %s43 = sadd.s32 %s42, 1
    %s44 = scalar_select %p41, %s42, %s43
    %p47 = pneg %p41
    %p48 = scmp.eq.s32.totalorder %s11, 2
    %p49 = por %p47, %p48
    %p50 = scmp.ne.s32.totalorder %s42, %s45
    %p51 = scmp.eq.s32.totalorder %s11, 0
    %p52 = por %p50, %p51
    %p53 = scmp.ne.s32.totalorder %s42, %s45
    %p54 = scmp.eq.s32.totalorder %s16, 2
    %p55 = por %p53, %p54
    %p56 = scmp.ne.s32.totalorder %s45, %s46
    %p57 = scmp.eq.s32.totalorder %s16, 0
    %p58 = por %p56, %p57
    %p59 = scmp.ne.s32.totalorder %s45, %s46
    %p60 = scmp.eq.s32.totalorder %s17, 2
    %p61 = por %p59, %p60
    %p63 = scmp.ne.s32.totalorder %s46, %s62
    %p64 = scmp.eq.s32.totalorder %s17, 0
    %p65 = por %p63, %p64
    %s66 = ssub.s32 %s11, %s18
    %p67 = scmp.eq.s32.totalorder %s66, 0
    %s69 = sadd.s32 %s68, 1
    %s70 = scalar_select %p67, %s68, %s69
    %p73 = pneg %p67
    %p74 = scmp.eq.s32.totalorder %s11, 2
    %p75 = por %p73, %p74
    %p76 = scmp.ne.s32.totalorder %s68, %s71
    %p77 = scmp.eq.s32.totalorder %s11, 0
    %p78 = por %p76, %p77
    %p79 = scmp.ne.s32.totalorder %s68, %s71
    %p80 = scmp.eq.s32.totalorder %s16, 2
    %p81 = por %p79, %p80
    %p82 = scmp.ne.s32.totalorder %s71, %s72
    %p83 = scmp.eq.s32.totalorder %s16, 0
    %p84 = por %p82, %p83
    %p85 = scmp.ne.s32.totalorder %s71, %s72
    %p86 = scmp.eq.s32.totalorder %s17, 2
    %p87 = por %p85, %p86
    %p89 = scmp.ne.s32.totalorder %s72, %s88
    %p90 = scmp.eq.s32.totalorder %s17, 0
    %p91 = por %p89, %p90
    %s92 = ssub.s32 %s11, %s18
    %p93 = scmp.eq.s32.totalorder %s92, 0
    %s95 = sadd.s32 %s94, 1
    %s96 = scalar_select %p93, %s94, %s95
    %p99 = pneg %p93
    %p100 = scmp.eq.s32.totalorder %s11, 2
    %p101 = por %p99, %p100
    %p102 = scmp.ne.s32.totalorder %s94, %s97
    %p103 = scmp.eq.s32.totalorder %s11, 0
    %p104 = por %p102, %p103
    %p105 = scmp.ne.s32.totalorder %s94, %s97
    %p106 = scmp.eq.s32.totalorder %s16, 2
    %p107 = por %p105, %p106
    %p108 = scmp.ne.s32.totalorder %s97, %s98
    %p109 = scmp.eq.s32.totalorder %s16, 0
    %p110 = por %p108, %p109
    %p111 = scmp.ne.s32.totalorder %s97, %s98
    %p112 = scmp.eq.s32.totalorder %s17, 2
    %p113 = por %p111, %p112
    %p115 = scmp.ne.s32.totalorder %s98, %s114
    %p116 = scmp.eq.s32.totalorder %s17, 0
    %p117 = por %p115, %p116
    %s118 = ssub.s32 %s11, %s18
    %p119 = scmp.eq.s32.totalorder %s118, 0
    %s121 = sadd.s32 %s120, 1
    %s122 = scalar_select %p119, %s120, %s121
    %p125 = pneg %p119
    %p126 = scmp.eq.s32.totalorder %s11, 2
    %p127 = por %p125, %p126
    %p128 = scmp.ne.s32.totalorder %s120, %s123
    %p129 = scmp.eq.s32.totalorder %s11, 0
    %p130 = por %p128, %p129
    %p131 = scmp.ne.s32.totalorder %s120, %s123
    %p132 = scmp.eq.s32.totalorder %s16, 2
    %p133 = por %p131, %p132
    %p134 = scmp.ne.s32.totalorder %s123, %s124
    %p135 = scmp.eq.s32.totalorder %s16, 0
    %p136 = por %p134, %p135
    %p137 = scmp.ne.s32.totalorder %s123, %s124
    %p138 = scmp.eq.s32.totalorder %s17, 2
    %p139 = por %p137, %p138
    %p141 = scmp.ne.s32.totalorder %s124, %s140
    %p142 = scmp.eq.s32.totalorder %s17, 0
    %p143 = por %p141, %p142
    %s144 = ssub.s32 %s11, %s18
    %p145 = scmp.eq.s32.totalorder %s144, 0
    %s147 = sadd.s32 %s146, 1
    %s148 = scalar_select %p145, %s146, %s147
    %p151 = pneg %p145
    %p152 = scmp.eq.s32.totalorder %s11, 2
    %p153 = por %p151, %p152
    %p154 = scmp.ne.s32.totalorder %s146, %s149
    %p155 = scmp.eq.s32.totalorder %s11, 0
    %p156 = por %p154, %p155
    %p157 = scmp.ne.s32.totalorder %s146, %s149
    %p158 = scmp.eq.s32.totalorder %s16, 2
    %p159 = por %p157, %p158
    %p160 = scmp.ne.s32.totalorder %s149, %s150
    %p161 = scmp.eq.s32.totalorder %s16, 0
    %p162 = por %p160, %p161
    %p163 = scmp.ne.s32.totalorder %s149, %s150
    %p164 = scmp.eq.s32.totalorder %s17, 2
    %p165 = por %p163, %p164
    %p167 = scmp.ne.s32.totalorder %s150, %s166
    %p168 = scmp.eq.s32.totalorder %s17, 0
    %p169 = por %p167, %p168
    %p170 = scmp.le.s32.totalorder 1, %s11
    %p171 = scmp.lt.s32.totalorder %s11, 4
    %p172 = pnand %p170, %p171
    %p173 = pneg %p172
    // Predicated region
    $region9: #{_forward.7} parent=5 // pred_check
      _
    $region10: #{_forward.7} parent=5 // pred_check_branch
      %175 = sbr.rel (%p172) target = $region12
    $region11: #{_forward.7} parent=5 // pred_region
      %s176 = ssub.s32 %s11, 1
      // Predicated region
      $region13: #{_forward.7} parent=11 // pred_check
        %p177 = pneg %p32
      $region14: #{_forward.7} parent=11 // pred_check_branch
        %179 = sbr.rel (%p177) target = $region16
      $region15: #{_forward.7} parent=11 // pred_region
        _
      $region16: #{_forward.7} parent=11 // pred_fallthru
        _
    $region12: #{_forward.7} parent=5 // pred_fallthru
      _
    %p180 = scmp.lt.s32.totalorder %s11, 3
    // Predicated region
    $region17: #{_forward.7} parent=5 // pred_check
      %p181 = pneg %p180
    $region18: #{_forward.7} parent=5 // pred_check_branch
      %183 = sbr.rel (%p181) target = $region20
    $region19: #{_forward.7} parent=5 // pred_region
      // Predicated region
      $region21: #{_forward.7} parent=19 // pred_check
        %p184 = pneg %p52
      $region22: #{_forward.7} parent=19 // pred_check_branch
        %186 = sbr.rel (%p184) target = $region24
      $region23: #{_forward.7} parent=19 // pred_region
        %p187 = scmp.lt.s32.totalorder %s11, 2
        %s188 = scalar_select %p187, %s11, 2
        %s189 = smul.addr %s188, 1600
        %s190 = smul.addr %s189, 4
        %s191 = scalar_lea.vmem %s1, %s190
      $region24: #{_forward.7} parent=19 // pred_fallthru
        _
      // Predicated region
      $region25: #{_forward.7} parent=19 // pred_check
        %p192 = pneg %p78
      $region26: #{_forward.7} parent=19 // pred_check_branch
        %194 = sbr.rel (%p192) target = $region28
      $region27: #{_forward.7} parent=19 // pred_region
        %p195 = scmp.lt.s32.totalorder %s11, 2
        %s196 = scalar_select %p195, %s11, 2
        %s197 = smul.addr %s196, 4
        %s198 = scalar_lea.vmem %s2, %s197
      $region28: #{_forward.7} parent=19 // pred_fallthru
        _
      // Predicated region
      $region29: #{_forward.7} parent=19 // pred_check
        %p199 = pneg %p104
      $region30: #{_forward.7} parent=19 // pred_check_branch
        %201 = sbr.rel (%p199) target = $region32
      $region31: #{_forward.7} parent=19 // pred_region
        %p202 = scmp.lt.s32.totalorder %s11, 2
        %s203 = scalar_select %p202, %s11, 2
        %s204 = smul.addr %s203, 64
        %s205 = smul.addr %s204, 4
        %s206 = scalar_lea.vmem %s3, %s205
      $region32: #{_forward.7} parent=19 // pred_fallthru
        _
      // Predicated region
      $region33: #{_forward.7} parent=19 // pred_check
        %p207 = pneg %p130
      $region34: #{_forward.7} parent=19 // pred_check_branch
        %209 = sbr.rel (%p207) target = $region36
      $region35: #{_forward.7} parent=19 // pred_region
        %p210 = scmp.lt.s32.totalorder %s11, 2
        %s211 = scalar_select %p210, %s11, 2
        %s212 = scalar_lea.vmem %s4, %s211
      $region36: #{_forward.7} parent=19 // pred_fallthru
        _
    $region20: #{_forward.7} parent=5 // pred_fallthru
      _
    %p213 = scmp.le.s32.totalorder 1, %s11
    %p214 = scmp.lt.s32.totalorder %s11, 4
    %p215 = pnand %p213, %p214
    %p216 = pneg %p215
    // Predicated region
    $region37: #{_forward.7} parent=5 // pred_check
      _
    $region38: #{_forward.7} parent=5 // pred_check_branch
      %218 = sbr.rel (%p215) target = $region40
    $region39: #{_forward.7} parent=5 // pred_region
      %s219 = ssub.s32 %s11, 1
      %p220 = pneg %p32
      %p221 = pneg %p29
      %p222 = scmp.lt.s32.totalorder %s16, 2
      %s223 = scalar_select %p222, %s16, 2
      %s224 = smul.addr %s223, 1600
      %s225 = smul.addr %s224, 4
      %s226 = scalar_lea.vmem %s1, %s225
      %p227 = pneg %p58
      %p228 = pneg %p55
      %p229 = scmp.lt.s32.totalorder %s16, 2
      %s230 = scalar_select %p229, %s16, 2
      %s231 = smul.addr %s230, 4
      %s232 = scalar_lea.vmem %s2, %s231
      %p233 = pneg %p84
      %p234 = pneg %p81
      %p235 = scmp.lt.s32.totalorder %s16, 2
      %s236 = scalar_select %p235, %s16, 2
      %s237 = smul.addr %s236, 64
      %s238 = smul.addr %s237, 4
      %s239 = scalar_lea.vmem %s3, %s238
      %p240 = pneg %p110
      %p241 = pneg %p107
      %p242 = scmp.lt.s32.totalorder %s16, 2
      %s243 = scalar_select %p242, %s16, 2
      %s244 = scalar_lea.vmem %s4, %s243
      %p245 = pneg %p136
      %p246 = pneg %p133
      %p247 = pneg %p162
      %p248 = pneg %p159
      %p249 = scmp.lt.s32.totalorder %s16, 2
      %s250 = scalar_select %p249, %s16, 2
      %s251 = smul.addr %s250, 2
      %s252 = smul.addr %s251, 8
      %s253 = scalar_lea.vmem %s5, %s252
      %p254 = scmp.lt.s32.totalorder %s16, 2
      %s255 = scalar_select %p254, %s16, 2
      %s256 = smul.addr %s255, 1600
      %s257 = smul.addr %s256, 4
      %s258 = scalar_lea.vmem %s1, %s257
      %p259 = scmp.lt.s32.totalorder %s16, 2
      %s260 = scalar_select %p259, %s16, 2
      %s261 = smul.addr %s260, 4
      %s262 = scalar_lea.vmem %s2, %s261
      %p263 = scmp.lt.s32.totalorder %s16, 2
      %s264 = scalar_select %p263, %s16, 2
      %s265 = smul.addr %s264, 64
      %s266 = smul.addr %s265, 4
      %s267 = scalar_lea.vmem %s3, %s266
      %p268 = scmp.lt.s32.totalorder %s16, 2
      %s269 = scalar_select %p268, %s16, 2
      %s270 = scalar_lea.vmem %s4, %s269
      %p271 = scmp.lt.s32.totalorder %s16, 2
      %s272 = scalar_select %p271, %s16, 2
      %s273 = smul.addr %s272, 2
      %s274 = smul.addr %s273, 8
      %s275 = scalar_lea.vmem %s5, %s274
      %v277 = vld [vmem:[%s0] sm:$0xff]
      %v278 = vld [vmem:[%s0 + $0x8] sm:$0xff]
      %v279 = vld [vmem:[%s0 + $0x10] sm:$0xff]
      %v280 = vld [vmem:[%s0 + $0x18] sm:$0xff]
      %v281 = vld [vmem:[%s0 + $0x20] sm:$0xff]
      %v282 = vld [vmem:[%s0 + $0x28] sm:$0xff]
      %v283 = vld [vmem:[%s0 + $0x30] sm:$0xff]
      %v284 = vld [vmem:[%s0 + $0x38] sm:$0xff]
      %v285 = vld [vmem:[%s0 + $0x40] sm:$0xff]
      %v286 = vld [vmem:[%s0 + $0x48] sm:$0xff]
      %v287 = vld [vmem:[%s0 + $0x50] sm:$0xff]
      %v288 = vld [vmem:[%s0 + $0x58] sm:$0xff]
      %v289 = vld [vmem:[%s0 + $0x60] sm:$0xf]
      %v290 = vld [vmem:[%s0 + $0x64] sm:$0xff]
      %v291 = vld [vmem:[%s0 + $0x6c] sm:$0xff]
      %v292 = vld [vmem:[%s0 + $0x74] sm:$0xff]
      %v293 = vld [vmem:[%s0 + $0x7c] sm:$0xff]
      %v294 = vld [vmem:[%s0 + $0x84] sm:$0xff]
      %v295 = vld [vmem:[%s0 + $0x8c] sm:$0xff]
      %v296 = vld [vmem:[%s0 + $0x94] sm:$0xff]
      %v297 = vld [vmem:[%s0 + $0x9c] sm:$0xff]
      %v298 = vld [vmem:[%s0 + $0xa4] sm:$0xff]
      %v299 = vld [vmem:[%s0 + $0xac] sm:$0xff]
      %v300 = vld [vmem:[%s0 + $0xb4] sm:$0xff]
      %v301 = vld [vmem:[%s0 + $0xbc] sm:$0xff]
      %v302 = vld [vmem:[%s0 + $0xc4] sm:$0xf]
      %v303 = vld [vmem:[%s258] sm:$0xff]
      %v304 = vld [vmem:[%s258 + $0x8] sm:$0xff]
      %v305 = vld [vmem:[%s258 + $0x10] sm:$0xff]
      %v306 = vld [vmem:[%s258 + $0x18] sm:$0xff]
      %v307 = vld [vmem:[%s258 + $0x20] sm:$0xff]
      %v308 = vld [vmem:[%s258 + $0x28] sm:$0xff]
      %v309 = vld [vmem:[%s258 + $0x30] sm:$0xff]
      %v310 = vld [vmem:[%s258 + $0x38] sm:$0xff]
      %v311 = vld [vmem:[%s258 + $0x40] sm:$0xff]
      %v312 = vld [vmem:[%s258 + $0x48] sm:$0xff]
      %v313 = vld [vmem:[%s258 + $0x50] sm:$0xff]
      %v314 = vld [vmem:[%s258 + $0x58] sm:$0xff]
      %v315 = vld [vmem:[%s258 + $0x60] sm:$0xff]
      %v316 = vld [vmem:[%s258 + $0x68] sm:$0xff]
      %v317 = vld [vmem:[%s258 + $0x70] sm:$0xff]
      %v318 = vld [vmem:[%s258 + $0x78] sm:$0xff]
      %v319 = vld [vmem:[%s258 + $0x80] sm:$0xff]
      %v320 = vld [vmem:[%s258 + $0x88] sm:$0xff]
      %v321 = vld [vmem:[%s258 + $0x90] sm:$0xff]
      %v322 = vld [vmem:[%s258 + $0x98] sm:$0xff]
      %v323 = vld [vmem:[%s258 + $0xa0] sm:$0xff]
      %v324 = vld [vmem:[%s258 + $0xa8] sm:$0xff]
      %v325 = vld [vmem:[%s258 + $0xb0] sm:$0xff]
      %v326 = vld [vmem:[%s258 + $0xb8] sm:$0xff]
      %v327 = vld [vmem:[%s258 + $0xc0] sm:$0xff]
      %v328 = vld [vmem:[%s258 + $0xc8] sm:$0xff]
      %v329 = vld [vmem:[%s258 + $0xd0] sm:$0xff]
      %v330 = vld [vmem:[%s258 + $0xd8] sm:$0xff]
      %v331 = vld [vmem:[%s258 + $0xe0] sm:$0xff]
      %v332 = vld [vmem:[%s258 + $0xe8] sm:$0xff]
      %v333 = vld [vmem:[%s258 + $0xf0] sm:$0xff]
      %v334 = vld [vmem:[%s258 + $0xf8] sm:$0xff]
      %v335 = vld [vmem:[%s258 + $0x100] sm:$0xff]
      %v336 = vld [vmem:[%s258 + $0x108] sm:$0xff]
      %v337 = vld [vmem:[%s258 + $0x110] sm:$0xff]
      %v338 = vld [vmem:[%s258 + $0x118] sm:$0xff]
      %v339 = vld [vmem:[%s258 + $0x120] sm:$0xff]
      %v340 = vld [vmem:[%s258 + $0x128] sm:$0xff]
      %v341 = vld [vmem:[%s258 + $0x130] sm:$0xff]
      %v342 = vld [vmem:[%s258 + $0x138] sm:$0xff]
      %v343 = vld [vmem:[%s258 + $0x140] sm:$0xff]
      %v344 = vld [vmem:[%s258 + $0x148] sm:$0xff]
      %v345 = vld [vmem:[%s258 + $0x150] sm:$0xff]
      %v346 = vld [vmem:[%s258 + $0x158] sm:$0xff]
      %v347 = vld [vmem:[%s258 + $0x160] sm:$0xff]
      %v348 = vld [vmem:[%s258 + $0x168] sm:$0xff]
      %v349 = vld [vmem:[%s258 + $0x170] sm:$0xff]
      %v350 = vld [vmem:[%s258 + $0x178] sm:$0xff]
      %v351 = vld [vmem:[%s258 + $0x180] sm:$0xff]
      %v352 = vld [vmem:[%s258 + $0x188] sm:$0xff]
      %v353 = vld [vmem:[%s258 + $0x190] sm:$0xff]
      %v354 = vld [vmem:[%s258 + $0x198] sm:$0xff]
      %v355 = vld [vmem:[%s258 + $0x1a0] sm:$0xff]
      %v356 = vld [vmem:[%s258 + $0x1a8] sm:$0xff]
      %v357 = vld [vmem:[%s258 + $0x1b0] sm:$0xff]
      %v358 = vld [vmem:[%s258 + $0x1b8] sm:$0xff]
      %v359 = vld [vmem:[%s258 + $0x1c0] sm:$0xff]
      %v360 = vld [vmem:[%s258 + $0x1c8] sm:$0xff]
      %v361 = vld [vmem:[%s258 + $0x1d0] sm:$0xff]
      %v362 = vld [vmem:[%s258 + $0x1d8] sm:$0xff]
      %v363 = vld [vmem:[%s258 + $0x1e0] sm:$0xff]
      %v364 = vld [vmem:[%s258 + $0x1e8] sm:$0xff]
      %v365 = vld [vmem:[%s258 + $0x1f0] sm:$0xff]
      %v366 = vld [vmem:[%s258 + $0x1f8] sm:$0xff]
      %v367 = vld [vmem:[%s258 + $0x200] sm:$0xff]
      %v368 = vld [vmem:[%s258 + $0x208] sm:$0xff]
      %v369 = vld [vmem:[%s258 + $0x210] sm:$0xff]
      %v370 = vld [vmem:[%s258 + $0x218] sm:$0xff]
      %v371 = vld [vmem:[%s258 + $0x220] sm:$0xff]
      %v372 = vld [vmem:[%s258 + $0x228] sm:$0xff]
      %v373 = vld [vmem:[%s258 + $0x230] sm:$0xff]
      %v374 = vld [vmem:[%s258 + $0x238] sm:$0xff]
      %v375 = vld [vmem:[%s258 + $0x240] sm:$0xff]
      %v376 = vld [vmem:[%s258 + $0x248] sm:$0xff]
      %v377 = vld [vmem:[%s258 + $0x250] sm:$0xff]
      %v378 = vld [vmem:[%s258 + $0x258] sm:$0xff]
      %v379 = vld [vmem:[%s258 + $0x260] sm:$0xff]
      %v380 = vld [vmem:[%s258 + $0x268] sm:$0xff]
      %v381 = vld [vmem:[%s258 + $0x270] sm:$0xff]
      %v382 = vld [vmem:[%s258 + $0x278] sm:$0xff]
      %v383 = vld [vmem:[%s258 + $0x280] sm:$0xff]
      %v384 = vld [vmem:[%s258 + $0x288] sm:$0xff]
      %v385 = vld [vmem:[%s258 + $0x290] sm:$0xff]
      %v386 = vld [vmem:[%s258 + $0x298] sm:$0xff]
      %v387 = vld [vmem:[%s258 + $0x2a0] sm:$0xff]
      %v388 = vld [vmem:[%s258 + $0x2a8] sm:$0xff]
      %v389 = vld [vmem:[%s258 + $0x2b0] sm:$0xff]
      %v390 = vld [vmem:[%s258 + $0x2b8] sm:$0xff]
      %v391 = vld [vmem:[%s258 + $0x2c0] sm:$0xff]
      %v392 = vld [vmem:[%s258 + $0x2c8] sm:$0xff]
      %v393 = vld [vmem:[%s258 + $0x2d0] sm:$0xff]
      %v394 = vld [vmem:[%s258 + $0x2d8] sm:$0xff]
      %v395 = vld [vmem:[%s258 + $0x2e0] sm:$0xff]
      %v396 = vld [vmem:[%s258 + $0x2e8] sm:$0xff]
      %v397 = vld [vmem:[%s258 + $0x2f0] sm:$0xff]
      %v398 = vld [vmem:[%s258 + $0x2f8] sm:$0xff]
      %v399 = vld [vmem:[%s258 + $0x300] sm:$0xff]
      %v400 = vld [vmem:[%s258 + $0x308] sm:$0xff]
      %v401 = vld [vmem:[%s258 + $0x310] sm:$0xff]
      %v402 = vld [vmem:[%s258 + $0x318] sm:$0xff]
      %v403 = vld [vmem:[%s258 + $0x320] sm:$0xff]
      %v404 = vld [vmem:[%s258 + $0x328] sm:$0xff]
      %v405 = vld [vmem:[%s258 + $0x330] sm:$0xff]
      %v406 = vld [vmem:[%s258 + $0x338] sm:$0xff]
      %v407 = vld [vmem:[%s258 + $0x340] sm:$0xff]
      %v408 = vld [vmem:[%s258 + $0x348] sm:$0xff]
      %v409 = vld [vmem:[%s258 + $0x350] sm:$0xff]
      %v410 = vld [vmem:[%s258 + $0x358] sm:$0xff]
      %v411 = vld [vmem:[%s258 + $0x360] sm:$0xff]
      %v412 = vld [vmem:[%s258 + $0x368] sm:$0xff]
      %v413 = vld [vmem:[%s258 + $0x370] sm:$0xff]
      %v414 = vld [vmem:[%s258 + $0x378] sm:$0xff]
      %v415 = vld [vmem:[%s258 + $0x380] sm:$0xff]
      %v416 = vld [vmem:[%s258 + $0x388] sm:$0xff]
      %v417 = vld [vmem:[%s258 + $0x390] sm:$0xff]
      %v418 = vld [vmem:[%s258 + $0x398] sm:$0xff]
      %v419 = vld [vmem:[%s258 + $0x3a0] sm:$0xff]
      %v420 = vld [vmem:[%s258 + $0x3a8] sm:$0xff]
      %v421 = vld [vmem:[%s258 + $0x3b0] sm:$0xff]
      %v422 = vld [vmem:[%s258 + $0x3b8] sm:$0xff]
      %v423 = vld [vmem:[%s258 + $0x3c0] sm:$0xff]
      %v424 = vld [vmem:[%s258 + $0x3c8] sm:$0xff]
      %v425 = vld [vmem:[%s258 + $0x3d0] sm:$0xff]
      %v426 = vld [vmem:[%s258 + $0x3d8] sm:$0xff]
      %v427 = vld [vmem:[%s258 + $0x3e0] sm:$0xff]
      %v428 = vld [vmem:[%s258 + $0x3e8] sm:$0xff]
      %v429 = vld [vmem:[%s258 + $0x3f0] sm:$0xff]
      %v430 = vld [vmem:[%s258 + $0x3f8] sm:$0xff]
      %v431 = vld [vmem:[%s258 + $0x400] sm:$0xff]
      %v432 = vld [vmem:[%s258 + $0x408] sm:$0xff]
      %v433 = vld [vmem:[%s258 + $0x410] sm:$0xff]
      %v434 = vld [vmem:[%s258 + $0x418] sm:$0xff]
      %v435 = vld [vmem:[%s258 + $0x420] sm:$0xff]
      %v436 = vld [vmem:[%s258 + $0x428] sm:$0xff]
      %v437 = vld [vmem:[%s258 + $0x430] sm:$0xff]
      %v438 = vld [vmem:[%s258 + $0x438] sm:$0xff]
      %v439 = vld [vmem:[%s258 + $0x440] sm:$0xff]
      %v440 = vld [vmem:[%s258 + $0x448] sm:$0xff]
      %v441 = vld [vmem:[%s258 + $0x450] sm:$0xff]
      %v442 = vld [vmem:[%s258 + $0x458] sm:$0xff]
      %v443 = vld [vmem:[%s258 + $0x460] sm:$0xff]
      %v444 = vld [vmem:[%s258 + $0x468] sm:$0xff]
      %v445 = vld [vmem:[%s258 + $0x470] sm:$0xff]
      %v446 = vld [vmem:[%s258 + $0x478] sm:$0xff]
      %v447 = vld [vmem:[%s258 + $0x480] sm:$0xff]
      %v448 = vld [vmem:[%s258 + $0x488] sm:$0xff]
      %v449 = vld [vmem:[%s258 + $0x490] sm:$0xff]
      %v450 = vld [vmem:[%s258 + $0x498] sm:$0xff]
      %v451 = vld [vmem:[%s258 + $0x4a0] sm:$0xff]
      %v452 = vld [vmem:[%s258 + $0x4a8] sm:$0xff]
      %v453 = vld [vmem:[%s258 + $0x4b0] sm:$0xff]
      %v454 = vld [vmem:[%s258 + $0x4b8] sm:$0xff]
      %v455 = vld [vmem:[%s258 + $0x4c0] sm:$0xff]
      %v456 = vld [vmem:[%s258 + $0x4c8] sm:$0xff]
      %v457 = vld [vmem:[%s258 + $0x4d0] sm:$0xff]
      %v458 = vld [vmem:[%s258 + $0x4d8] sm:$0xff]
      %v459 = vld [vmem:[%s258 + $0x4e0] sm:$0xff]
      %v460 = vld [vmem:[%s258 + $0x4e8] sm:$0xff]
      %v461 = vld [vmem:[%s258 + $0x4f0] sm:$0xff]
      %v462 = vld [vmem:[%s258 + $0x4f8] sm:$0xff]
      %v463 = vld [vmem:[%s258 + $0x500] sm:$0xff]
      %v464 = vld [vmem:[%s258 + $0x508] sm:$0xff]
      %v465 = vld [vmem:[%s258 + $0x510] sm:$0xff]
      %v466 = vld [vmem:[%s258 + $0x518] sm:$0xff]
      %v467 = vld [vmem:[%s258 + $0x520] sm:$0xff]
      %v468 = vld [vmem:[%s258 + $0x528] sm:$0xff]
      %v469 = vld [vmem:[%s258 + $0x530] sm:$0xff]
      %v470 = vld [vmem:[%s258 + $0x538] sm:$0xff]
      %v471 = vld [vmem:[%s258 + $0x540] sm:$0xff]
      %v472 = vld [vmem:[%s258 + $0x548] sm:$0xff]
      %v473 = vld [vmem:[%s258 + $0x550] sm:$0xff]
      %v474 = vld [vmem:[%s258 + $0x558] sm:$0xff]
      %v475 = vld [vmem:[%s258 + $0x560] sm:$0xff]
      %v476 = vld [vmem:[%s258 + $0x568] sm:$0xff]
      %v477 = vld [vmem:[%s258 + $0x570] sm:$0xff]
      %v478 = vld [vmem:[%s258 + $0x578] sm:$0xff]
      %v479 = vld [vmem:[%s258 + $0x580] sm:$0xff]
      %v480 = vld [vmem:[%s258 + $0x588] sm:$0xff]
      %v481 = vld [vmem:[%s258 + $0x590] sm:$0xff]
      %v482 = vld [vmem:[%s258 + $0x598] sm:$0xff]
      %v483 = vld [vmem:[%s258 + $0x5a0] sm:$0xff]
      %v484 = vld [vmem:[%s258 + $0x5a8] sm:$0xff]
      %v485 = vld [vmem:[%s258 + $0x5b0] sm:$0xff]
      %v486 = vld [vmem:[%s258 + $0x5b8] sm:$0xff]
      %v487 = vld [vmem:[%s258 + $0x5c0] sm:$0xff]
      %v488 = vld [vmem:[%s258 + $0x5c8] sm:$0xff]
      %v489 = vld [vmem:[%s258 + $0x5d0] sm:$0xff]
      %v490 = vld [vmem:[%s258 + $0x5d8] sm:$0xff]
      %v491 = vld [vmem:[%s258 + $0x5e0] sm:$0xff]
      %v492 = vld [vmem:[%s258 + $0x5e8] sm:$0xff]
      %v493 = vld [vmem:[%s258 + $0x5f0] sm:$0xff]
      %v494 = vld [vmem:[%s258 + $0x5f8] sm:$0xff]
      %v495 = vld [vmem:[%s258 + $0x600] sm:$0xff]
      %v496 = vld [vmem:[%s258 + $0x608] sm:$0xff]
      %v497 = vld [vmem:[%s258 + $0x610] sm:$0xff]
      %v498 = vld [vmem:[%s258 + $0x618] sm:$0xff]
      %v499 = vld [vmem:[%s258 + $0x620] sm:$0xff]
      %v500 = vld [vmem:[%s258 + $0x628] sm:$0xff]
      %v501 = vld [vmem:[%s258 + $0x630] sm:$0xff]
      %v502 = vld [vmem:[%s258 + $0x638] sm:$0xff]
      %v503 = vld [vmem:[%s258 + $0x640] sm:$0xff]
      %v504 = vld [vmem:[%s258 + $0x648] sm:$0xff]
      %v505 = vld [vmem:[%s258 + $0x650] sm:$0xff]
      %v506 = vld [vmem:[%s258 + $0x658] sm:$0xff]
      %v507 = vld [vmem:[%s258 + $0x660] sm:$0xff]
      %v508 = vld [vmem:[%s258 + $0x668] sm:$0xff]
      %v509 = vld [vmem:[%s258 + $0x670] sm:$0xff]
      %v510 = vld [vmem:[%s258 + $0x678] sm:$0xff]
      %v511 = vld [vmem:[%s258 + $0x680] sm:$0xff]
      %v512 = vld [vmem:[%s258 + $0x688] sm:$0xff]
      %v513 = vld [vmem:[%s258 + $0x690] sm:$0xff]
      %v514 = vld [vmem:[%s258 + $0x698] sm:$0xff]
      %v515 = vld [vmem:[%s258 + $0x6a0] sm:$0xff]
      %v516 = vld [vmem:[%s258 + $0x6a8] sm:$0xff]
      %v517 = vld [vmem:[%s258 + $0x6b0] sm:$0xff]
      %v518 = vld [vmem:[%s258 + $0x6b8] sm:$0xff]
      %v519 = vld [vmem:[%s258 + $0x6c0] sm:$0xff]
      %v520 = vld [vmem:[%s258 + $0x6c8] sm:$0xff]
      %v521 = vld [vmem:[%s258 + $0x6d0] sm:$0xff]
      %v522 = vld [vmem:[%s258 + $0x6d8] sm:$0xff]
      %v523 = vld [vmem:[%s258 + $0x6e0] sm:$0xff]
      %v524 = vld [vmem:[%s258 + $0x6e8] sm:$0xff]
      %v525 = vld [vmem:[%s258 + $0x6f0] sm:$0xff]
      %v526 = vld [vmem:[%s258 + $0x6f8] sm:$0xff]
      %v527 = vld [vmem:[%s258 + $0x700] sm:$0xff]
      %v528 = vld [vmem:[%s258 + $0x708] sm:$0xff]
      %v529 = vld [vmem:[%s258 + $0x710] sm:$0xff]
      %v530 = vld [vmem:[%s258 + $0x718] sm:$0xff]
      %v531 = vld [vmem:[%s258 + $0x720] sm:$0xff]
      %v532 = vld [vmem:[%s258 + $0x728] sm:$0xff]
      %v533 = vld [vmem:[%s258 + $0x730] sm:$0xff]
      %v534 = vld [vmem:[%s258 + $0x738] sm:$0xff]
      %v535 = vld [vmem:[%s258 + $0x740] sm:$0xff]
      %v536 = vld [vmem:[%s258 + $0x748] sm:$0xff]
      %v537 = vld [vmem:[%s258 + $0x750] sm:$0xff]
      %v538 = vld [vmem:[%s258 + $0x758] sm:$0xff]
      %v539 = vld [vmem:[%s258 + $0x760] sm:$0xff]
      %v540 = vld [vmem:[%s258 + $0x768] sm:$0xff]
      %v541 = vld [vmem:[%s258 + $0x770] sm:$0xff]
      %v542 = vld [vmem:[%s258 + $0x778] sm:$0xff]
      %v543 = vld [vmem:[%s258 + $0x780] sm:$0xff]
      %v544 = vld [vmem:[%s258 + $0x788] sm:$0xff]
      %v545 = vld [vmem:[%s258 + $0x790] sm:$0xff]
      %v546 = vld [vmem:[%s258 + $0x798] sm:$0xff]
      %v547 = vld [vmem:[%s258 + $0x7a0] sm:$0xff]
      %v548 = vld [vmem:[%s258 + $0x7a8] sm:$0xff]
      %v549 = vld [vmem:[%s258 + $0x7b0] sm:$0xff]
      %v550 = vld [vmem:[%s258 + $0x7b8] sm:$0xff]
      %v551 = vld [vmem:[%s258 + $0x7c0] sm:$0xff]
      %v552 = vld [vmem:[%s258 + $0x7c8] sm:$0xff]
      %v553 = vld [vmem:[%s258 + $0x7d0] sm:$0xff]
      %v554 = vld [vmem:[%s258 + $0x7d8] sm:$0xff]
      %v555 = vld [vmem:[%s258 + $0x7e0] sm:$0xff]
      %v556 = vld [vmem:[%s258 + $0x7e8] sm:$0xff]
      %v557 = vld [vmem:[%s258 + $0x7f0] sm:$0xff]
      %v558 = vld [vmem:[%s258 + $0x7f8] sm:$0xff]
      %v559 = vld [vmem:[%s258 + $0x800] sm:$0xff]
      %v560 = vld [vmem:[%s258 + $0x808] sm:$0xff]
      %v561 = vld [vmem:[%s258 + $0x810] sm:$0xff]
      %v562 = vld [vmem:[%s258 + $0x818] sm:$0xff]
      %v563 = vld [vmem:[%s258 + $0x820] sm:$0xff]
      %v564 = vld [vmem:[%s258 + $0x828] sm:$0xff]
      %v565 = vld [vmem:[%s258 + $0x830] sm:$0xff]
      %v566 = vld [vmem:[%s258 + $0x838] sm:$0xff]
      %v567 = vld [vmem:[%s258 + $0x840] sm:$0xff]
      %v568 = vld [vmem:[%s258 + $0x848] sm:$0xff]
      %v569 = vld [vmem:[%s258 + $0x850] sm:$0xff]
      %v570 = vld [vmem:[%s258 + $0x858] sm:$0xff]
      %v571 = vld [vmem:[%s258 + $0x860] sm:$0xff]
      %v572 = vld [vmem:[%s258 + $0x868] sm:$0xff]
      %v573 = vld [vmem:[%s258 + $0x870] sm:$0xff]
      %v574 = vld [vmem:[%s258 + $0x878] sm:$0xff]
      %v575 = vld [vmem:[%s258 + $0x880] sm:$0xff]
      %v576 = vld [vmem:[%s258 + $0x888] sm:$0xff]
      %v577 = vld [vmem:[%s258 + $0x890] sm:$0xff]
      %v578 = vld [vmem:[%s258 + $0x898] sm:$0xff]
      %v579 = vld [vmem:[%s258 + $0x8a0] sm:$0xff]
      %v580 = vld [vmem:[%s258 + $0x8a8] sm:$0xff]
      %v581 = vld [vmem:[%s258 + $0x8b0] sm:$0xff]
      %v582 = vld [vmem:[%s258 + $0x8b8] sm:$0xff]
      %v583 = vld [vmem:[%s258 + $0x8c0] sm:$0xff]
      %v584 = vld [vmem:[%s258 + $0x8c8] sm:$0xff]
      %v585 = vld [vmem:[%s258 + $0x8d0] sm:$0xff]
      %v586 = vld [vmem:[%s258 + $0x8d8] sm:$0xff]
      %v587 = vld [vmem:[%s258 + $0x8e0] sm:$0xff]
      %v588 = vld [vmem:[%s258 + $0x8e8] sm:$0xff]
      %v589 = vld [vmem:[%s258 + $0x8f0] sm:$0xff]
      %v590 = vld [vmem:[%s258 + $0x8f8] sm:$0xff]
      %v591 = vld [vmem:[%s258 + $0x900] sm:$0xff]
      %v592 = vld [vmem:[%s258 + $0x908] sm:$0xff]
      %v593 = vld [vmem:[%s258 + $0x910] sm:$0xff]
      %v594 = vld [vmem:[%s258 + $0x918] sm:$0xff]
      %v595 = vld [vmem:[%s258 + $0x920] sm:$0xff]
      %v596 = vld [vmem:[%s258 + $0x928] sm:$0xff]
      %v597 = vld [vmem:[%s258 + $0x930] sm:$0xff]
      %v598 = vld [vmem:[%s258 + $0x938] sm:$0xff]
      %v599 = vld [vmem:[%s258 + $0x940] sm:$0xff]
      %v600 = vld [vmem:[%s258 + $0x948] sm:$0xff]
      %v601 = vld [vmem:[%s258 + $0x950] sm:$0xff]
      %v602 = vld [vmem:[%s258 + $0x958] sm:$0xff]
      %v603 = vld [vmem:[%s258 + $0x960] sm:$0xff]
      %v604 = vld [vmem:[%s258 + $0x968] sm:$0xff]
      %v605 = vld [vmem:[%s258 + $0x970] sm:$0xff]
      %v606 = vld [vmem:[%s258 + $0x978] sm:$0xff]
      %v607 = vld [vmem:[%s258 + $0x980] sm:$0xff]
      %v608 = vld [vmem:[%s258 + $0x988] sm:$0xff]
      %v609 = vld [vmem:[%s258 + $0x990] sm:$0xff]
      %v610 = vld [vmem:[%s258 + $0x998] sm:$0xff]
      %v611 = vld [vmem:[%s258 + $0x9a0] sm:$0xff]
      %v612 = vld [vmem:[%s258 + $0x9a8] sm:$0xff]
      %v613 = vld [vmem:[%s258 + $0x9b0] sm:$0xff]
      %v614 = vld [vmem:[%s258 + $0x9b8] sm:$0xff]
      %v615 = vld [vmem:[%s258 + $0x9c0] sm:$0xff]
      %v616 = vld [vmem:[%s258 + $0x9c8] sm:$0xff]
      %v617 = vld [vmem:[%s258 + $0x9d0] sm:$0xff]
      %v618 = vld [vmem:[%s258 + $0x9d8] sm:$0xff]
      %v619 = vld [vmem:[%s258 + $0x9e0] sm:$0xff]
      %v620 = vld [vmem:[%s258 + $0x9e8] sm:$0xff]
      %v621 = vld [vmem:[%s258 + $0x9f0] sm:$0xff]
      %v622 = vld [vmem:[%s258 + $0x9f8] sm:$0xff]
      %v623 = vld [vmem:[%s258 + $0xa00] sm:$0xff]
      %v624 = vld [vmem:[%s258 + $0xa08] sm:$0xff]
      %v625 = vld [vmem:[%s258 + $0xa10] sm:$0xff]
      %v626 = vld [vmem:[%s258 + $0xa18] sm:$0xff]
      %v627 = vld [vmem:[%s258 + $0xa20] sm:$0xff]
      %v628 = vld [vmem:[%s258 + $0xa28] sm:$0xff]
      %v629 = vld [vmem:[%s258 + $0xa30] sm:$0xff]
      %v630 = vld [vmem:[%s258 + $0xa38] sm:$0xff]
      %v631 = vld [vmem:[%s258 + $0xa40] sm:$0xff]
      %v632 = vld [vmem:[%s258 + $0xa48] sm:$0xff]
      %v633 = vld [vmem:[%s258 + $0xa50] sm:$0xff]
      %v634 = vld [vmem:[%s258 + $0xa58] sm:$0xff]
      %v635 = vld [vmem:[%s258 + $0xa60] sm:$0xff]
      %v636 = vld [vmem:[%s258 + $0xa68] sm:$0xff]
      %v637 = vld [vmem:[%s258 + $0xa70] sm:$0xff]
      %v638 = vld [vmem:[%s258 + $0xa78] sm:$0xff]
      %v639 = vld [vmem:[%s258 + $0xa80] sm:$0xff]
      %v640 = vld [vmem:[%s258 + $0xa88] sm:$0xff]
      %v641 = vld [vmem:[%s258 + $0xa90] sm:$0xff]
      %v642 = vld [vmem:[%s258 + $0xa98] sm:$0xff]
      %v643 = vld [vmem:[%s258 + $0xaa0] sm:$0xff]
      %v644 = vld [vmem:[%s258 + $0xaa8] sm:$0xff]
      %v645 = vld [vmem:[%s258 + $0xab0] sm:$0xff]
      %v646 = vld [vmem:[%s258 + $0xab8] sm:$0xff]
      %v647 = vld [vmem:[%s258 + $0xac0] sm:$0xff]
      %v648 = vld [vmem:[%s258 + $0xac8] sm:$0xff]
      %v649 = vld [vmem:[%s258 + $0xad0] sm:$0xff]
      %v650 = vld [vmem:[%s258 + $0xad8] sm:$0xff]
      %v651 = vld [vmem:[%s258 + $0xae0] sm:$0xff]
      %v652 = vld [vmem:[%s258 + $0xae8] sm:$0xff]
      %v653 = vld [vmem:[%s258 + $0xaf0] sm:$0xff]
      %v654 = vld [vmem:[%s258 + $0xaf8] sm:$0xff]
      %v655 = vld [vmem:[%s258 + $0xb00] sm:$0xff]
      %v656 = vld [vmem:[%s258 + $0xb08] sm:$0xff]
      %v657 = vld [vmem:[%s258 + $0xb10] sm:$0xff]
      %v658 = vld [vmem:[%s258 + $0xb18] sm:$0xff]
      %v659 = vld [vmem:[%s258 + $0xb20] sm:$0xff]
      %v660 = vld [vmem:[%s258 + $0xb28] sm:$0xff]
      %v661 = vld [vmem:[%s258 + $0xb30] sm:$0xff]
      %v662 = vld [vmem:[%s258 + $0xb38] sm:$0xff]
      %v663 = vld [vmem:[%s258 + $0xb40] sm:$0xff]
      %v664 = vld [vmem:[%s258 + $0xb48] sm:$0xff]
      %v665 = vld [vmem:[%s258 + $0xb50] sm:$0xff]
      %v666 = vld [vmem:[%s258 + $0xb58] sm:$0xff]
      %v667 = vld [vmem:[%s258 + $0xb60] sm:$0xff]
      %v668 = vld [vmem:[%s258 + $0xb68] sm:$0xff]
      %v669 = vld [vmem:[%s258 + $0xb70] sm:$0xff]
      %v670 = vld [vmem:[%s258 + $0xb78] sm:$0xff]
      %v671 = vld [vmem:[%s258 + $0xb80] sm:$0xff]
      %v672 = vld [vmem:[%s258 + $0xb88] sm:$0xff]
      %v673 = vld [vmem:[%s258 + $0xb90] sm:$0xff]
      %v674 = vld [vmem:[%s258 + $0xb98] sm:$0xff]
      %v675 = vld [vmem:[%s258 + $0xba0] sm:$0xff]
      %v676 = vld [vmem:[%s258 + $0xba8] sm:$0xff]
      %v677 = vld [vmem:[%s258 + $0xbb0] sm:$0xff]
      %v678 = vld [vmem:[%s258 + $0xbb8] sm:$0xff]
      %v679 = vld [vmem:[%s258 + $0xbc0] sm:$0xff]
      %v680 = vld [vmem:[%s258 + $0xbc8] sm:$0xff]
      %v681 = vld [vmem:[%s258 + $0xbd0] sm:$0xff]
      %v682 = vld [vmem:[%s258 + $0xbd8] sm:$0xff]
      %v683 = vld [vmem:[%s258 + $0xbe0] sm:$0xff]
      %v684 = vld [vmem:[%s258 + $0xbe8] sm:$0xff]
      %v685 = vld [vmem:[%s258 + $0xbf0] sm:$0xff]
      %v686 = vld [vmem:[%s258 + $0xbf8] sm:$0xff]
      %v687 = vld [vmem:[%s258 + $0xc00] sm:$0xff]
      %v688 = vld [vmem:[%s258 + $0xc08] sm:$0xff]
      %v689 = vld [vmem:[%s258 + $0xc10] sm:$0xff]
      %v690 = vld [vmem:[%s258 + $0xc18] sm:$0xff]
      %v691 = vld [vmem:[%s258 + $0xc20] sm:$0xff]
      %v692 = vld [vmem:[%s258 + $0xc28] sm:$0xff]
      %v693 = vld [vmem:[%s258 + $0xc30] sm:$0xff]
      %v694 = vld [vmem:[%s258 + $0xc38] sm:$0xff]
      %v695 = vld [vmem:[%s258 + $0xc40] sm:$0xff]
      %v696 = vld [vmem:[%s258 + $0xc48] sm:$0xff]
      %v697 = vld [vmem:[%s258 + $0xc50] sm:$0xff]
      %v698 = vld [vmem:[%s258 + $0xc58] sm:$0xff]
      %v699 = vld [vmem:[%s258 + $0xc60] sm:$0xff]
      %v700 = vld [vmem:[%s258 + $0xc68] sm:$0xff]
      %v701 = vld [vmem:[%s258 + $0xc70] sm:$0xff]
      %v702 = vld [vmem:[%s258 + $0xc78] sm:$0xff]
      %v703 = vld [vmem:[%s258 + $0xc80] sm:$0xff]
      %v704 = vld [vmem:[%s258 + $0xc88] sm:$0xff]
      %v705 = vld [vmem:[%s258 + $0xc90] sm:$0xff]
      %v706 = vld [vmem:[%s258 + $0xc98] sm:$0xff]
      %v707 = vld [vmem:[%s258 + $0xca0] sm:$0xff]
      %v708 = vld [vmem:[%s258 + $0xca8] sm:$0xff]
      %v709 = vld [vmem:[%s258 + $0xcb0] sm:$0xff]
      %v710 = vld [vmem:[%s258 + $0xcb8] sm:$0xff]
      %v711 = vld [vmem:[%s258 + $0xcc0] sm:$0xff]
      %v712 = vld [vmem:[%s258 + $0xcc8] sm:$0xff]
      %v713 = vld [vmem:[%s258 + $0xcd0] sm:$0xff]
      %v714 = vld [vmem:[%s258 + $0xcd8] sm:$0xff]
      %v715 = vld [vmem:[%s258 + $0xce0] sm:$0xff]
      %v716 = vld [vmem:[%s258 + $0xce8] sm:$0xff]
      %v717 = vld [vmem:[%s258 + $0xcf0] sm:$0xff]
      %v718 = vld [vmem:[%s258 + $0xcf8] sm:$0xff]
      %v719 = vld [vmem:[%s258 + $0xd00] sm:$0xff]
      %v720 = vld [vmem:[%s258 + $0xd08] sm:$0xff]
      %v721 = vld [vmem:[%s258 + $0xd10] sm:$0xff]
      %v722 = vld [vmem:[%s258 + $0xd18] sm:$0xff]
      %v723 = vld [vmem:[%s258 + $0xd20] sm:$0xff]
      %v724 = vld [vmem:[%s258 + $0xd28] sm:$0xff]
      %v725 = vld [vmem:[%s258 + $0xd30] sm:$0xff]
      %v726 = vld [vmem:[%s258 + $0xd38] sm:$0xff]
      %v727 = vld [vmem:[%s258 + $0xd40] sm:$0xff]
      %v728 = vld [vmem:[%s258 + $0xd48] sm:$0xff]
      %v729 = vld [vmem:[%s258 + $0xd50] sm:$0xff]
      %v730 = vld [vmem:[%s258 + $0xd58] sm:$0xff]
      %v731 = vld [vmem:[%s258 + $0xd60] sm:$0xff]
      %v732 = vld [vmem:[%s258 + $0xd68] sm:$0xff]
      %v733 = vld [vmem:[%s258 + $0xd70] sm:$0xff]
      %v734 = vld [vmem:[%s258 + $0xd78] sm:$0xff]
      %v735 = vld [vmem:[%s258 + $0xd80] sm:$0xff]
      %v736 = vld [vmem:[%s258 + $0xd88] sm:$0xff]
      %v737 = vld [vmem:[%s258 + $0xd90] sm:$0xff]
      %v738 = vld [vmem:[%s258 + $0xd98] sm:$0xff]
      %v739 = vld [vmem:[%s258 + $0xda0] sm:$0xff]
      %v740 = vld [vmem:[%s258 + $0xda8] sm:$0xff]
      %v741 = vld [vmem:[%s258 + $0xdb0] sm:$0xff]
      %v742 = vld [vmem:[%s258 + $0xdb8] sm:$0xff]
      %v743 = vld [vmem:[%s258 + $0xdc0] sm:$0xff]
      %v744 = vld [vmem:[%s258 + $0xdc8] sm:$0xff]
      %v745 = vld [vmem:[%s258 + $0xdd0] sm:$0xff]
      %v746 = vld [vmem:[%s258 + $0xdd8] sm:$0xff]
      %v747 = vld [vmem:[%s258 + $0xde0] sm:$0xff]
      %v748 = vld [vmem:[%s258 + $0xde8] sm:$0xff]
      %v749 = vld [vmem:[%s258 + $0xdf0] sm:$0xff]
      %v750 = vld [vmem:[%s258 + $0xdf8] sm:$0xff]
      %v751 = vld [vmem:[%s258 + $0xe00] sm:$0xff]
      %v752 = vld [vmem:[%s258 + $0xe08] sm:$0xff]
      %v753 = vld [vmem:[%s258 + $0xe10] sm:$0xff]
      %v754 = vld [vmem:[%s258 + $0xe18] sm:$0xff]
      %v755 = vld [vmem:[%s258 + $0xe20] sm:$0xff]
      %v756 = vld [vmem:[%s258 + $0xe28] sm:$0xff]
      %v757 = vld [vmem:[%s258 + $0xe30] sm:$0xff]
      %v758 = vld [vmem:[%s258 + $0xe38] sm:$0xff]
      %v759 = vld [vmem:[%s258 + $0xe40] sm:$0xff]
      %v760 = vld [vmem:[%s258 + $0xe48] sm:$0xff]
      %v761 = vld [vmem:[%s258 + $0xe50] sm:$0xff]
      %v762 = vld [vmem:[%s258 + $0xe58] sm:$0xff]
      %v763 = vld [vmem:[%s258 + $0xe60] sm:$0xff]
      %v764 = vld [vmem:[%s258 + $0xe68] sm:$0xff]
      %v765 = vld [vmem:[%s258 + $0xe70] sm:$0xff]
      %v766 = vld [vmem:[%s258 + $0xe78] sm:$0xff]
      %v767 = vld [vmem:[%s258 + $0xe80] sm:$0xff]
      %v768 = vld [vmem:[%s258 + $0xe88] sm:$0xff]
      %v769 = vld [vmem:[%s258 + $0xe90] sm:$0xff]
      %v770 = vld [vmem:[%s258 + $0xe98] sm:$0xff]
      %v771 = vld [vmem:[%s258 + $0xea0] sm:$0xff]
      %v772 = vld [vmem:[%s258 + $0xea8] sm:$0xff]
      %v773 = vld [vmem:[%s258 + $0xeb0] sm:$0xff]
      %v774 = vld [vmem:[%s258 + $0xeb8] sm:$0xff]
      %v775 = vld [vmem:[%s258 + $0xec0] sm:$0xff]
      %v776 = vld [vmem:[%s258 + $0xec8] sm:$0xff]
      %v777 = vld [vmem:[%s258 + $0xed0] sm:$0xff]
      %v778 = vld [vmem:[%s258 + $0xed8] sm:$0xff]
      %v779 = vld [vmem:[%s258 + $0xee0] sm:$0xff]
      %v780 = vld [vmem:[%s258 + $0xee8] sm:$0xff]
      %v781 = vld [vmem:[%s258 + $0xef0] sm:$0xff]
      %v782 = vld [vmem:[%s258 + $0xef8] sm:$0xff]
      %v783 = vld [vmem:[%s258 + $0xf00] sm:$0xff]
      %v784 = vld [vmem:[%s258 + $0xf08] sm:$0xff]
      %v785 = vld [vmem:[%s258 + $0xf10] sm:$0xff]
      %v786 = vld [vmem:[%s258 + $0xf18] sm:$0xff]
      %v787 = vld [vmem:[%s258 + $0xf20] sm:$0xff]
      %v788 = vld [vmem:[%s258 + $0xf28] sm:$0xff]
      %v789 = vld [vmem:[%s258 + $0xf30] sm:$0xff]
      %v790 = vld [vmem:[%s258 + $0xf38] sm:$0xff]
      %v791 = vld [vmem:[%s258 + $0xf40] sm:$0xff]
      %v792 = vld [vmem:[%s258 + $0xf48] sm:$0xff]
      %v793 = vld [vmem:[%s258 + $0xf50] sm:$0xff]
      %v794 = vld [vmem:[%s258 + $0xf58] sm:$0xff]
      %v795 = vld [vmem:[%s258 + $0xf60] sm:$0xff]
      %v796 = vld [vmem:[%s258 + $0xf68] sm:$0xff]
      %v797 = vld [vmem:[%s258 + $0xf70] sm:$0xff]
      %v798 = vld [vmem:[%s258 + $0xf78] sm:$0xff]
      %v799 = vld [vmem:[%s258 + $0xf80] sm:$0xff]
      %v800 = vld [vmem:[%s258 + $0xf88] sm:$0xff]
      %v801 = vld [vmem:[%s258 + $0xf90] sm:$0xff]
      %v802 = vld [vmem:[%s258 + $0xf98] sm:$0xff]
      %v803 = vld [vmem:[%s258 + $0xfa0] sm:$0xff]
      %v804 = vld [vmem:[%s258 + $0xfa8] sm:$0xff]
      %v805 = vld [vmem:[%s258 + $0xfb0] sm:$0xff]
      %v806 = vld [vmem:[%s258 + $0xfb8] sm:$0xff]
      %v807 = vld [vmem:[%s258 + $0xfc0] sm:$0xff]
      %v808 = vld [vmem:[%s258 + $0xfc8] sm:$0xff]
      %v809 = vld [vmem:[%s258 + $0xfd0] sm:$0xff]
      %v810 = vld [vmem:[%s258 + $0xfd8] sm:$0xff]
      %v811 = vld [vmem:[%s258 + $0xfe0] sm:$0xff]
      %v812 = vld [vmem:[%s258 + $0xfe8] sm:$0xff]
      %v813 = vld [vmem:[%s258 + $0xff0] sm:$0xff]
      %v814 = vld [vmem:[%s258 + $0xff8] sm:$0xff]
      %v815 = vld [vmem:[%s258 + $0x1000] sm:$0xff]
      %v816 = vld [vmem:[%s258 + $0x1008] sm:$0xff]
      %v817 = vld [vmem:[%s258 + $0x1010] sm:$0xff]
      %v818 = vld [vmem:[%s258 + $0x1018] sm:$0xff]
      %v819 = vld [vmem:[%s258 + $0x1020] sm:$0xff]
      %v820 = vld [vmem:[%s258 + $0x1028] sm:$0xff]
      %v821 = vld [vmem:[%s258 + $0x1030] sm:$0xff]
      %v822 = vld [vmem:[%s258 + $0x1038] sm:$0xff]
      %v823 = vld [vmem:[%s258 + $0x1040] sm:$0xff]
      %v824 = vld [vmem:[%s258 + $0x1048] sm:$0xff]
      %v825 = vld [vmem:[%s258 + $0x1050] sm:$0xff]
      %v826 = vld [vmem:[%s258 + $0x1058] sm:$0xff]
      %v827 = vld [vmem:[%s258 + $0x1060] sm:$0xff]
      %v828 = vld [vmem:[%s258 + $0x1068] sm:$0xff]
      %v829 = vld [vmem:[%s258 + $0x1070] sm:$0xff]
      %v830 = vld [vmem:[%s258 + $0x1078] sm:$0xff]
      %v831 = vld [vmem:[%s258 + $0x1080] sm:$0xff]
      %v832 = vld [vmem:[%s258 + $0x1088] sm:$0xff]
      %v833 = vld [vmem:[%s258 + $0x1090] sm:$0xff]
      %v834 = vld [vmem:[%s258 + $0x1098] sm:$0xff]
      %v835 = vld [vmem:[%s258 + $0x10a0] sm:$0xff]
      %v836 = vld [vmem:[%s258 + $0x10a8] sm:$0xff]
      %v837 = vld [vmem:[%s258 + $0x10b0] sm:$0xff]
      %v838 = vld [vmem:[%s258 + $0x10b8] sm:$0xff]
      %v839 = vld [vmem:[%s258 + $0x10c0] sm:$0xff]
      %v840 = vld [vmem:[%s258 + $0x10c8] sm:$0xff]
      %v841 = vld [vmem:[%s258 + $0x10d0] sm:$0xff]
      %v842 = vld [vmem:[%s258 + $0x10d8] sm:$0xff]
      %v843 = vld [vmem:[%s258 + $0x10e0] sm:$0xff]
      %v844 = vld [vmem:[%s258 + $0x10e8] sm:$0xff]
      %v845 = vld [vmem:[%s258 + $0x10f0] sm:$0xff]
      %v846 = vld [vmem:[%s258 + $0x10f8] sm:$0xff]
      %v847 = vld [vmem:[%s258 + $0x1100] sm:$0xff]
      %v848 = vld [vmem:[%s258 + $0x1108] sm:$0xff]
      %v849 = vld [vmem:[%s258 + $0x1110] sm:$0xff]
      %v850 = vld [vmem:[%s258 + $0x1118] sm:$0xff]
      %v851 = vld [vmem:[%s258 + $0x1120] sm:$0xff]
      %v852 = vld [vmem:[%s258 + $0x1128] sm:$0xff]
      %v853 = vld [vmem:[%s258 + $0x1130] sm:$0xff]
      %v854 = vld [vmem:[%s258 + $0x1138] sm:$0xff]
      %v855 = vld [vmem:[%s258 + $0x1140] sm:$0xff]
      %v856 = vld [vmem:[%s258 + $0x1148] sm:$0xff]
      %v857 = vld [vmem:[%s258 + $0x1150] sm:$0xff]
      %v858 = vld [vmem:[%s258 + $0x1158] sm:$0xff]
      %v859 = vld [vmem:[%s258 + $0x1160] sm:$0xff]
      %v860 = vld [vmem:[%s258 + $0x1168] sm:$0xff]
      %v861 = vld [vmem:[%s258 + $0x1170] sm:$0xff]
      %v862 = vld [vmem:[%s258 + $0x1178] sm:$0xff]
      %v863 = vld [vmem:[%s258 + $0x1180] sm:$0xff]
      %v864 = vld [vmem:[%s258 + $0x1188] sm:$0xff]
      %v865 = vld [vmem:[%s258 + $0x1190] sm:$0xff]
      %v866 = vld [vmem:[%s258 + $0x1198] sm:$0xff]
      %v867 = vld [vmem:[%s258 + $0x11a0] sm:$0xff]
      %v868 = vld [vmem:[%s258 + $0x11a8] sm:$0xff]
      %v869 = vld [vmem:[%s258 + $0x11b0] sm:$0xff]
      %v870 = vld [vmem:[%s258 + $0x11b8] sm:$0xff]
      %v871 = vld [vmem:[%s258 + $0x11c0] sm:$0xff]
      %v872 = vld [vmem:[%s258 + $0x11c8] sm:$0xff]
      %v873 = vld [vmem:[%s258 + $0x11d0] sm:$0xff]
      %v874 = vld [vmem:[%s258 + $0x11d8] sm:$0xff]
      %v875 = vld [vmem:[%s258 + $0x11e0] sm:$0xff]
      %v876 = vld [vmem:[%s258 + $0x11e8] sm:$0xff]
      %v877 = vld [vmem:[%s258 + $0x11f0] sm:$0xff]
      %v878 = vld [vmem:[%s258 + $0x11f8] sm:$0xff]
      %v879 = vld [vmem:[%s258 + $0x1200] sm:$0xff]
      %v880 = vld [vmem:[%s258 + $0x1208] sm:$0xff]
      %v881 = vld [vmem:[%s258 + $0x1210] sm:$0xff]
      %v882 = vld [vmem:[%s258 + $0x1218] sm:$0xff]
      %v883 = vld [vmem:[%s258 + $0x1220] sm:$0xff]
      %v884 = vld [vmem:[%s258 + $0x1228] sm:$0xff]
      %v885 = vld [vmem:[%s258 + $0x1230] sm:$0xff]
      %v886 = vld [vmem:[%s258 + $0x1238] sm:$0xff]
      %v887 = vld [vmem:[%s258 + $0x1240] sm:$0xff]
      %v888 = vld [vmem:[%s258 + $0x1248] sm:$0xff]
      %v889 = vld [vmem:[%s258 + $0x1250] sm:$0xff]
      %v890 = vld [vmem:[%s258 + $0x1258] sm:$0xff]
      %v891 = vld [vmem:[%s258 + $0x1260] sm:$0xff]
      %v892 = vld [vmem:[%s258 + $0x1268] sm:$0xff]
      %v893 = vld [vmem:[%s258 + $0x1270] sm:$0xff]
      %v894 = vld [vmem:[%s258 + $0x1278] sm:$0xff]
      %v895 = vld [vmem:[%s258 + $0x1280] sm:$0xff]
      %v896 = vld [vmem:[%s258 + $0x1288] sm:$0xff]
      %v897 = vld [vmem:[%s258 + $0x1290] sm:$0xff]
      %v898 = vld [vmem:[%s258 + $0x1298] sm:$0xff]
      %v899 = vld [vmem:[%s258 + $0x12a0] sm:$0xff]
      %v900 = vld [vmem:[%s258 + $0x12a8] sm:$0xff]
      %v901 = vld [vmem:[%s258 + $0x12b0] sm:$0xff]
      %v902 = vld [vmem:[%s258 + $0x12b8] sm:$0xff]
      %v903 = vld [vmem:[%s258 + $0x12c0] sm:$0xff]
      %v904 = vld [vmem:[%s258 + $0x12c8] sm:$0xff]
      %v905 = vld [vmem:[%s258 + $0x12d0] sm:$0xff]
      %v906 = vld [vmem:[%s258 + $0x12d8] sm:$0xff]
      %v907 = vld [vmem:[%s258 + $0x12e0] sm:$0xff]
      %v908 = vld [vmem:[%s258 + $0x12e8] sm:$0xff]
      %v909 = vld [vmem:[%s258 + $0x12f0] sm:$0xff]
      %v910 = vld [vmem:[%s258 + $0x12f8] sm:$0xff]
      %v911 = vld [vmem:[%s258 + $0x1300] sm:$0xff]
      %v912 = vld [vmem:[%s258 + $0x1308] sm:$0xff]
      %v913 = vld [vmem:[%s258 + $0x1310] sm:$0xff]
      %v914 = vld [vmem:[%s258 + $0x1318] sm:$0xff]
      %v915 = vld [vmem:[%s258 + $0x1320] sm:$0xff]
      %v916 = vld [vmem:[%s258 + $0x1328] sm:$0xff]
      %v917 = vld [vmem:[%s258 + $0x1330] sm:$0xff]
      %v918 = vld [vmem:[%s258 + $0x1338] sm:$0xff]
      %v919 = vld [vmem:[%s258 + $0x1340] sm:$0xff]
      %v920 = vld [vmem:[%s258 + $0x1348] sm:$0xff]
      %v921 = vld [vmem:[%s258 + $0x1350] sm:$0xff]
      %v922 = vld [vmem:[%s258 + $0x1358] sm:$0xff]
      %v923 = vld [vmem:[%s258 + $0x1360] sm:$0xff]
      %v924 = vld [vmem:[%s258 + $0x1368] sm:$0xff]
      %v925 = vld [vmem:[%s258 + $0x1370] sm:$0xff]
      %v926 = vld [vmem:[%s258 + $0x1378] sm:$0xff]
      %v927 = vld [vmem:[%s258 + $0x1380] sm:$0xff]
      %v928 = vld [vmem:[%s258 + $0x1388] sm:$0xff]
      %v929 = vld [vmem:[%s258 + $0x1390] sm:$0xff]
      %v930 = vld [vmem:[%s258 + $0x1398] sm:$0xff]
      %v931 = vld [vmem:[%s258 + $0x13a0] sm:$0xff]
      %v932 = vld [vmem:[%s258 + $0x13a8] sm:$0xff]
      %v933 = vld [vmem:[%s258 + $0x13b0] sm:$0xff]
      %v934 = vld [vmem:[%s258 + $0x13b8] sm:$0xff]
      %v935 = vld [vmem:[%s258 + $0x13c0] sm:$0xff]
      %v936 = vld [vmem:[%s258 + $0x13c8] sm:$0xff]
      %v937 = vld [vmem:[%s258 + $0x13d0] sm:$0xff]
      %v938 = vld [vmem:[%s258 + $0x13d8] sm:$0xff]
      %v939 = vld [vmem:[%s258 + $0x13e0] sm:$0xff]
      %v940 = vld [vmem:[%s258 + $0x13e8] sm:$0xff]
      %v941 = vld [vmem:[%s258 + $0x13f0] sm:$0xff]
      %v942 = vld [vmem:[%s258 + $0x13f8] sm:$0xff]
      %v943 = vld [vmem:[%s258 + $0x1400] sm:$0xff]
      %v944 = vld [vmem:[%s258 + $0x1408] sm:$0xff]
      %v945 = vld [vmem:[%s258 + $0x1410] sm:$0xff]
      %v946 = vld [vmem:[%s258 + $0x1418] sm:$0xff]
      %v947 = vld [vmem:[%s258 + $0x1420] sm:$0xff]
      %v948 = vld [vmem:[%s258 + $0x1428] sm:$0xff]
      %v949 = vld [vmem:[%s258 + $0x1430] sm:$0xff]
      %v950 = vld [vmem:[%s258 + $0x1438] sm:$0xff]
      %v951 = vld [vmem:[%s258 + $0x1440] sm:$0xff]
      %v952 = vld [vmem:[%s258 + $0x1448] sm:$0xff]
      %v953 = vld [vmem:[%s258 + $0x1450] sm:$0xff]
      %v954 = vld [vmem:[%s258 + $0x1458] sm:$0xff]
      %v955 = vld [vmem:[%s258 + $0x1460] sm:$0xff]
      %v956 = vld [vmem:[%s258 + $0x1468] sm:$0xff]
      %v957 = vld [vmem:[%s258 + $0x1470] sm:$0xff]
      %v958 = vld [vmem:[%s258 + $0x1478] sm:$0xff]
      %v959 = vld [vmem:[%s258 + $0x1480] sm:$0xff]
      %v960 = vld [vmem:[%s258 + $0x1488] sm:$0xff]
      %v961 = vld [vmem:[%s258 + $0x1490] sm:$0xff]
      %v962 = vld [vmem:[%s258 + $0x1498] sm:$0xff]
      %v963 = vld [vmem:[%s258 + $0x14a0] sm:$0xff]
      %v964 = vld [vmem:[%s258 + $0x14a8] sm:$0xff]
      %v965 = vld [vmem:[%s258 + $0x14b0] sm:$0xff]
      %v966 = vld [vmem:[%s258 + $0x14b8] sm:$0xff]
      %v967 = vld [vmem:[%s258 + $0x14c0] sm:$0xff]
      %v968 = vld [vmem:[%s258 + $0x14c8] sm:$0xff]
      %v969 = vld [vmem:[%s258 + $0x14d0] sm:$0xff]
      %v970 = vld [vmem:[%s258 + $0x14d8] sm:$0xff]
      %v971 = vld [vmem:[%s258 + $0x14e0] sm:$0xff]
      %v972 = vld [vmem:[%s258 + $0x14e8] sm:$0xff]
      %v973 = vld [vmem:[%s258 + $0x14f0] sm:$0xff]
      %v974 = vld [vmem:[%s258 + $0x14f8] sm:$0xff]
      %v975 = vld [vmem:[%s258 + $0x1500] sm:$0xff]
      %v976 = vld [vmem:[%s258 + $0x1508] sm:$0xff]
      %v977 = vld [vmem:[%s258 + $0x1510] sm:$0xff]
      %v978 = vld [vmem:[%s258 + $0x1518] sm:$0xff]
      %v979 = vld [vmem:[%s258 + $0x1520] sm:$0xff]
      %v980 = vld [vmem:[%s258 + $0x1528] sm:$0xff]
      %v981 = vld [vmem:[%s258 + $0x1530] sm:$0xff]
      %v982 = vld [vmem:[%s258 + $0x1538] sm:$0xff]
      %v983 = vld [vmem:[%s258 + $0x1540] sm:$0xff]
      %v984 = vld [vmem:[%s258 + $0x1548] sm:$0xff]
      %v985 = vld [vmem:[%s258 + $0x1550] sm:$0xff]
      %v986 = vld [vmem:[%s258 + $0x1558] sm:$0xff]
      %v987 = vld [vmem:[%s258 + $0x1560] sm:$0xff]
      %v988 = vld [vmem:[%s258 + $0x1568] sm:$0xff]
      %v989 = vld [vmem:[%s258 + $0x1570] sm:$0xff]
      %v990 = vld [vmem:[%s258 + $0x1578] sm:$0xff]
      %v991 = vld [vmem:[%s258 + $0x1580] sm:$0xff]
      %v992 = vld [vmem:[%s258 + $0x1588] sm:$0xff]
      %v993 = vld [vmem:[%s258 + $0x1590] sm:$0xff]
      %v994 = vld [vmem:[%s258 + $0x1598] sm:$0xff]
      %v995 = vld [vmem:[%s258 + $0x15a0] sm:$0xff]
      %v996 = vld [vmem:[%s258 + $0x15a8] sm:$0xff]
      %v997 = vld [vmem:[%s258 + $0x15b0] sm:$0xff]
      %v998 = vld [vmem:[%s258 + $0x15b8] sm:$0xff]
      %v999 = vld [vmem:[%s258 + $0x15c0] sm:$0xff]
      %v1000 = vld [vmem:[%s258 + $0x15c8] sm:$0xff]
      %v1001 = vld [vmem:[%s258 + $0x15d0] sm:$0xff]
      %v1002 = vld [vmem:[%s258 + $0x15d8] sm:$0xff]
      %v1003 = vld [vmem:[%s258 + $0x15e0] sm:$0xff]
      %v1004 = vld [vmem:[%s258 + $0x15e8] sm:$0xff]
      %v1005 = vld [vmem:[%s258 + $0x15f0] sm:$0xff]
      %v1006 = vld [vmem:[%s258 + $0x15f8] sm:$0xff]
      %v1007 = vld [vmem:[%s258 + $0x1600] sm:$0xff]
      %v1008 = vld [vmem:[%s258 + $0x1608] sm:$0xff]
      %v1009 = vld [vmem:[%s258 + $0x1610] sm:$0xff]
      %v1010 = vld [vmem:[%s258 + $0x1618] sm:$0xff]
      %v1011 = vld [vmem:[%s258 + $0x1620] sm:$0xff]
      %v1012 = vld [vmem:[%s258 + $0x1628] sm:$0xff]
      %v1013 = vld [vmem:[%s258 + $0x1630] sm:$0xff]
      %v1014 = vld [vmem:[%s258 + $0x1638] sm:$0xff]
      %v1015 = vld [vmem:[%s258 + $0x1640] sm:$0xff]
      %v1016 = vld [vmem:[%s258 + $0x1648] sm:$0xff]
      %v1017 = vld [vmem:[%s258 + $0x1650] sm:$0xff]
      %v1018 = vld [vmem:[%s258 + $0x1658] sm:$0xff]
      %v1019 = vld [vmem:[%s258 + $0x1660] sm:$0xff]
      %v1020 = vld [vmem:[%s258 + $0x1668] sm:$0xff]
      %v1021 = vld [vmem:[%s258 + $0x1670] sm:$0xff]
      %v1022 = vld [vmem:[%s258 + $0x1678] sm:$0xff]
      %v1023 = vld [vmem:[%s258 + $0x1680] sm:$0xff]
      %v1024 = vld [vmem:[%s258 + $0x1688] sm:$0xff]
      %v1025 = vld [vmem:[%s258 + $0x1690] sm:$0xff]
      %v1026 = vld [vmem:[%s258 + $0x1698] sm:$0xff]
      %v1027 = vld [vmem:[%s258 + $0x16a0] sm:$0xff]
      %v1028 = vld [vmem:[%s258 + $0x16a8] sm:$0xff]
      %v1029 = vld [vmem:[%s258 + $0x16b0] sm:$0xff]
      %v1030 = vld [vmem:[%s258 + $0x16b8] sm:$0xff]
      %v1031 = vld [vmem:[%s258 + $0x16c0] sm:$0xff]
      %v1032 = vld [vmem:[%s258 + $0x16c8] sm:$0xff]
      %v1033 = vld [vmem:[%s258 + $0x16d0] sm:$0xff]
      %v1034 = vld [vmem:[%s258 + $0x16d8] sm:$0xff]
      %v1035 = vld [vmem:[%s258 + $0x16e0] sm:$0xff]
      %v1036 = vld [vmem:[%s258 + $0x16e8] sm:$0xff]
      %v1037 = vld [vmem:[%s258 + $0x16f0] sm:$0xff]
      %v1038 = vld [vmem:[%s258 + $0x16f8] sm:$0xff]
      %v1039 = vld [vmem:[%s258 + $0x1700] sm:$0xff]
      %v1040 = vld [vmem:[%s258 + $0x1708] sm:$0xff]
      %v1041 = vld [vmem:[%s258 + $0x1710] sm:$0xff]
      %v1042 = vld [vmem:[%s258 + $0x1718] sm:$0xff]
      %v1043 = vld [vmem:[%s258 + $0x1720] sm:$0xff]
      %v1044 = vld [vmem:[%s258 + $0x1728] sm:$0xff]
      %v1045 = vld [vmem:[%s258 + $0x1730] sm:$0xff]
      %v1046 = vld [vmem:[%s258 + $0x1738] sm:$0xff]
      %v1047 = vld [vmem:[%s258 + $0x1740] sm:$0xff]
      %v1048 = vld [vmem:[%s258 + $0x1748] sm:$0xff]
      %v1049 = vld [vmem:[%s258 + $0x1750] sm:$0xff]
      %v1050 = vld [vmem:[%s258 + $0x1758] sm:$0xff]
      %v1051 = vld [vmem:[%s258 + $0x1760] sm:$0xff]
      %v1052 = vld [vmem:[%s258 + $0x1768] sm:$0xff]
      %v1053 = vld [vmem:[%s258 + $0x1770] sm:$0xff]
      %v1054 = vld [vmem:[%s258 + $0x1778] sm:$0xff]
      %v1055 = vld [vmem:[%s258 + $0x1780] sm:$0xff]
      %v1056 = vld [vmem:[%s258 + $0x1788] sm:$0xff]
      %v1057 = vld [vmem:[%s258 + $0x1790] sm:$0xff]
      %v1058 = vld [vmem:[%s258 + $0x1798] sm:$0xff]
      %v1059 = vld [vmem:[%s258 + $0x17a0] sm:$0xff]
      %v1060 = vld [vmem:[%s258 + $0x17a8] sm:$0xff]
      %v1061 = vld [vmem:[%s258 + $0x17b0] sm:$0xff]
      %v1062 = vld [vmem:[%s258 + $0x17b8] sm:$0xff]
      %v1063 = vld [vmem:[%s258 + $0x17c0] sm:$0xff]
      %v1064 = vld [vmem:[%s258 + $0x17c8] sm:$0xff]
      %v1065 = vld [vmem:[%s258 + $0x17d0] sm:$0xff]
      %v1066 = vld [vmem:[%s258 + $0x17d8] sm:$0xff]
      %v1067 = vld [vmem:[%s258 + $0x17e0] sm:$0xff]
      %v1068 = vld [vmem:[%s258 + $0x17e8] sm:$0xff]
      %v1069 = vld [vmem:[%s258 + $0x17f0] sm:$0xff]
      %v1070 = vld [vmem:[%s258 + $0x17f8] sm:$0xff]
      %v1071 = vld [vmem:[%s258 + $0x1800] sm:$0xff]
      %v1072 = vld [vmem:[%s258 + $0x1808] sm:$0xff]
      %v1073 = vld [vmem:[%s258 + $0x1810] sm:$0xff]
      %v1074 = vld [vmem:[%s258 + $0x1818] sm:$0xff]
      %v1075 = vld [vmem:[%s258 + $0x1820] sm:$0xff]
      %v1076 = vld [vmem:[%s258 + $0x1828] sm:$0xff]
      %v1077 = vld [vmem:[%s258 + $0x1830] sm:$0xff]
      %v1078 = vld [vmem:[%s258 + $0x1838] sm:$0xff]
      %v1079 = vld [vmem:[%s258 + $0x1840] sm:$0xff]
      %v1080 = vld [vmem:[%s258 + $0x1848] sm:$0xff]
      %v1081 = vld [vmem:[%s258 + $0x1850] sm:$0xff]
      %v1082 = vld [vmem:[%s258 + $0x1858] sm:$0xff]
      %v1083 = vld [vmem:[%s258 + $0x1860] sm:$0xff]
      %v1084 = vld [vmem:[%s258 + $0x1868] sm:$0xff]
      %v1085 = vld [vmem:[%s258 + $0x1870] sm:$0xff]
      %v1086 = vld [vmem:[%s258 + $0x1878] sm:$0xff]
      %v1087 = vld [vmem:[%s258 + $0x1880] sm:$0xff]
      %v1088 = vld [vmem:[%s258 + $0x1888] sm:$0xff]
      %v1089 = vld [vmem:[%s258 + $0x1890] sm:$0xff]
      %v1090 = vld [vmem:[%s258 + $0x1898] sm:$0xff]
      %v1091 = vld [vmem:[%s258 + $0x18a0] sm:$0xff]
      %v1092 = vld [vmem:[%s258 + $0x18a8] sm:$0xff]
      %v1093 = vld [vmem:[%s258 + $0x18b0] sm:$0xff]
      %v1094 = vld [vmem:[%s258 + $0x18b8] sm:$0xff]
      %v1095 = vld [vmem:[%s258 + $0x18c0] sm:$0xff]
      %v1096 = vld [vmem:[%s258 + $0x18c8] sm:$0xff]
      %v1097 = vld [vmem:[%s258 + $0x18d0] sm:$0xff]
      %v1098 = vld [vmem:[%s258 + $0x18d8] sm:$0xff]
      %v1099 = vld [vmem:[%s258 + $0x18e0] sm:$0xff]
      %v1100 = vld [vmem:[%s258 + $0x18e8] sm:$0xff]
      %v1101 = vld [vmem:[%s258 + $0x18f0] sm:$0xff]
      %v1102 = vld [vmem:[%s258 + $0x18f8] sm:$0xff]
      %v1103 = vld [vmem:[%s262] sm:$0xf]
      %v1105 = vlaneseq
      %v1106 = vshrl.u32 %v1105, 7
      %v1107 = vsub.s32 0, %v1106
      %v1108 = vrot.slane %v1103, %v1107
      %v1109 = vlaneseq
      %v1110 = vshrl.u32 %v1109, 7
      %v1111 = vsub.s32 1, %v1110
      %v1112 = vrot.slane %v1103, %v1111
      %v1113 = vlaneseq
      %v1114 = vshrl.u32 %v1113, 7
      %v1115 = vsub.s32 2, %v1114
      %v1116 = vrot.slane %v1103, %v1115
      %v1117 = vlaneseq
      %v1118 = vshrl.u32 %v1117, 7
      %v1119 = vsub.s32 3, %v1118
      %v1120 = vrot.slane %v1103, %v1119
      %v1151 = vunpack.c.l.b16 %v277
      %v1152 = vunpack.c.h.b16 %v277
      %v1153 = vunpack.c.l.b16 %v278
      %v1154 = vunpack.c.h.b16 %v278
      %v1155 = vunpack.c.l.b16 %v279
      %v1156 = vunpack.c.h.b16 %v279
      %v1157 = vunpack.c.l.b16 %v280
      %v1158 = vunpack.c.h.b16 %v280
      %v1159 = vunpack.c.l.b16 %v281
      %v1160 = vunpack.c.h.b16 %v281
      %v1161 = vunpack.c.l.b16 %v282
      %v1162 = vunpack.c.h.b16 %v282
      %v1163 = vunpack.c.l.b16 %v283
      %v1164 = vunpack.c.h.b16 %v283
      %v1165 = vunpack.c.l.b16 %v284
      %v1166 = vunpack.c.h.b16 %v284
      %v1167 = vunpack.c.l.b16 %v285
      %v1168 = vunpack.c.h.b16 %v285
      %v1169 = vunpack.c.l.b16 %v286
      %v1170 = vunpack.c.h.b16 %v286
      %v1171 = vunpack.c.l.b16 %v287
      %v1172 = vunpack.c.h.b16 %v287
      %v1173 = vunpack.c.l.b16 %v288
      %v1174 = vunpack.c.h.b16 %v288
      %v1175 = vunpack.c.l.b16 %v289
      %v1176 = vunpack.c.l.b16 %v290
      %v1177 = vunpack.c.h.b16 %v290
      %v1178 = vunpack.c.l.b16 %v291
      %v1179 = vunpack.c.h.b16 %v291
      %v1180 = vunpack.c.l.b16 %v292
      %v1181 = vunpack.c.h.b16 %v292
      %v1182 = vunpack.c.l.b16 %v293
      %v1183 = vunpack.c.h.b16 %v293
      %v1184 = vunpack.c.l.b16 %v294
      %v1185 = vunpack.c.h.b16 %v294
      %v1186 = vunpack.c.l.b16 %v295
      %v1187 = vunpack.c.h.b16 %v295
      %v1188 = vunpack.c.l.b16 %v296
      %v1189 = vunpack.c.h.b16 %v296
      %v1190 = vunpack.c.l.b16 %v297
      %v1191 = vunpack.c.h.b16 %v297
      %v1192 = vunpack.c.l.b16 %v298
      %v1193 = vunpack.c.h.b16 %v298
      %v1194 = vunpack.c.l.b16 %v299
      %v1195 = vunpack.c.h.b16 %v299
      %v1196 = vunpack.c.l.b16 %v300
      %v1197 = vunpack.c.h.b16 %v300
      %v1198 = vunpack.c.l.b16 %v301
      %v1199 = vunpack.c.h.b16 %v301
      %v1200 = vunpack.c.l.b16 %v302
      %v1201 = vpack.c.b16 %v1176, %v1151
      %v1202 = vpack.c.b16 %v1177, %v1152
      %v1203 = vpack.c.b16 %v1178, %v1153
      %v1204 = vpack.c.b16 %v1179, %v1154
      %v1205 = vpack.c.b16 %v1180, %v1155
      %v1206 = vpack.c.b16 %v1181, %v1156
      %v1207 = vpack.c.b16 %v1182, %v1157
      %v1208 = vpack.c.b16 %v1183, %v1158
      %v1209 = vpack.c.b16 %v1184, %v1159
      %v1210 = vpack.c.b16 %v1185, %v1160
      %v1211 = vpack.c.b16 %v1186, %v1161
      %v1212 = vpack.c.b16 %v1187, %v1162
      %v1213 = vpack.c.b16 %v1188, %v1163
      %v1214 = vpack.c.b16 %v1189, %v1164
      %v1215 = vpack.c.b16 %v1190, %v1165
      %v1216 = vpack.c.b16 %v1191, %v1166
      %v1217 = vpack.c.b16 %v1192, %v1167
      %v1218 = vpack.c.b16 %v1193, %v1168
      %v1219 = vpack.c.b16 %v1194, %v1169
      %v1220 = vpack.c.b16 %v1195, %v1170
      %v1221 = vpack.c.b16 %v1196, %v1171
      %v1222 = vpack.c.b16 %v1197, %v1172
      %v1223 = vpack.c.b16 %v1198, %v1173
      %v1224 = vpack.c.b16 %v1199, %v1174
      %v1225 = vpack.c.b16 %v1200, %v1175
      %v2051 = vunpack.c.l.b16 %v303
      %v2052 = vunpack.c.h.b16 %v303
      %v2053 = vunpack.c.l.b16 %v304
      %v2054 = vunpack.c.h.b16 %v304
      %v2055 = vunpack.c.l.b16 %v305
      %v2056 = vunpack.c.h.b16 %v305
      %v2057 = vunpack.c.l.b16 %v306
      %v2058 = vunpack.c.h.b16 %v306
      %v2059 = vunpack.c.l.b16 %v307
      %v2060 = vunpack.c.h.b16 %v307
      %v2061 = vunpack.c.l.b16 %v308
      %v2062 = vunpack.c.h.b16 %v308
      %v2063 = vunpack.c.l.b16 %v309
      %v2064 = vunpack.c.h.b16 %v309
      %v2065 = vunpack.c.l.b16 %v310
      %v2066 = vunpack.c.h.b16 %v310
      %v2067 = vunpack.c.l.b16 %v311
      %v2068 = vunpack.c.h.b16 %v311
      %v2069 = vunpack.c.l.b16 %v312
      %v2070 = vunpack.c.h.b16 %v312
      %v2071 = vunpack.c.l.b16 %v313
      %v2072 = vunpack.c.h.b16 %v313
      %v2073 = vunpack.c.l.b16 %v314
      %v2074 = vunpack.c.h.b16 %v314
      %v2075 = vunpack.c.l.b16 %v315
      %v2076 = vunpack.c.h.b16 %v315
      %v2077 = vunpack.c.l.b16 %v316
      %v2078 = vunpack.c.h.b16 %v316
      %v2079 = vunpack.c.l.b16 %v317
      %v2080 = vunpack.c.h.b16 %v317
      %v2081 = vunpack.c.l.b16 %v318
      %v2082 = vunpack.c.h.b16 %v318
      %v2083 = vunpack.c.l.b16 %v319
      %v2084 = vunpack.c.h.b16 %v319
      %v2085 = vunpack.c.l.b16 %v320
      %v2086 = vunpack.c.h.b16 %v320
      %v2087 = vunpack.c.l.b16 %v321
      %v2088 = vunpack.c.h.b16 %v321
      %v2089 = vunpack.c.l.b16 %v322
      %v2090 = vunpack.c.h.b16 %v322
      %v2091 = vunpack.c.l.b16 %v323
      %v2092 = vunpack.c.h.b16 %v323
      %v2093 = vunpack.c.l.b16 %v324
      %v2094 = vunpack.c.h.b16 %v324
      %v2095 = vunpack.c.l.b16 %v325
      %v2096 = vunpack.c.h.b16 %v325
      %v2097 = vunpack.c.l.b16 %v326
      %v2098 = vunpack.c.h.b16 %v326
      %v2099 = vunpack.c.l.b16 %v327
      %v2100 = vunpack.c.h.b16 %v327
      %v2101 = vunpack.c.l.b16 %v328
      %v2102 = vunpack.c.h.b16 %v328
      %v2103 = vunpack.c.l.b16 %v329
      %v2104 = vunpack.c.h.b16 %v329
      %v2105 = vunpack.c.l.b16 %v330
      %v2106 = vunpack.c.h.b16 %v330
      %v2107 = vunpack.c.l.b16 %v331
      %v2108 = vunpack.c.h.b16 %v331
      %v2109 = vunpack.c.l.b16 %v332
      %v2110 = vunpack.c.h.b16 %v332
      %v2111 = vunpack.c.l.b16 %v333
      %v2112 = vunpack.c.h.b16 %v333
      %v2113 = vunpack.c.l.b16 %v334
      %v2114 = vunpack.c.h.b16 %v334
      %v2115 = vunpack.c.l.b16 %v335
      %v2116 = vunpack.c.h.b16 %v335
      %v2117 = vunpack.c.l.b16 %v336
      %v2118 = vunpack.c.h.b16 %v336
      %v2119 = vunpack.c.l.b16 %v337
      %v2120 = vunpack.c.h.b16 %v337
      %v2121 = vunpack.c.l.b16 %v338
      %v2122 = vunpack.c.h.b16 %v338
      %v2123 = vunpack.c.l.b16 %v339
      %v2124 = vunpack.c.h.b16 %v339
      %v2125 = vunpack.c.l.b16 %v340
      %v2126 = vunpack.c.h.b16 %v340
      %v2127 = vunpack.c.l.b16 %v341
      %v2128 = vunpack.c.h.b16 %v341
      %v2129 = vunpack.c.l.b16 %v342
      %v2130 = vunpack.c.h.b16 %v342
      %v2131 = vunpack.c.l.b16 %v343
      %v2132 = vunpack.c.h.b16 %v343
      %v2133 = vunpack.c.l.b16 %v344
      %v2134 = vunpack.c.h.b16 %v344
      %v2135 = vunpack.c.l.b16 %v345
      %v2136 = vunpack.c.h.b16 %v345
      %v2137 = vunpack.c.l.b16 %v346
      %v2138 = vunpack.c.h.b16 %v346
      %v2139 = vunpack.c.l.b16 %v347
      %v2140 = vunpack.c.h.b16 %v347
      %v2141 = vunpack.c.l.b16 %v348
      %v2142 = vunpack.c.h.b16 %v348
      %v2143 = vunpack.c.l.b16 %v349
      %v2144 = vunpack.c.h.b16 %v349
      %v2145 = vunpack.c.l.b16 %v350
      %v2146 = vunpack.c.h.b16 %v350
      %v2147 = vunpack.c.l.b16 %v351
      %v2148 = vunpack.c.h.b16 %v351
      %v2149 = vunpack.c.l.b16 %v352
      %v2150 = vunpack.c.h.b16 %v352
      %v2151 = vunpack.c.l.b16 %v353
      %v2152 = vunpack.c.h.b16 %v353
      %v2153 = vunpack.c.l.b16 %v354
      %v2154 = vunpack.c.h.b16 %v354
      %v2155 = vunpack.c.l.b16 %v355
      %v2156 = vunpack.c.h.b16 %v355
      %v2157 = vunpack.c.l.b16 %v356
      %v2158 = vunpack.c.h.b16 %v356
      %v2159 = vunpack.c.l.b16 %v357
      %v2160 = vunpack.c.h.b16 %v357
      %v2161 = vunpack.c.l.b16 %v358
      %v2162 = vunpack.c.h.b16 %v358
      %v2163 = vunpack.c.l.b16 %v359
      %v2164 = vunpack.c.h.b16 %v359
      %v2165 = vunpack.c.l.b16 %v360
      %v2166 = vunpack.c.h.b16 %v360
      %v2167 = vunpack.c.l.b16 %v361
      %v2168 = vunpack.c.h.b16 %v361
      %v2169 = vunpack.c.l.b16 %v362
      %v2170 = vunpack.c.h.b16 %v362
      %v2171 = vunpack.c.l.b16 %v363
      %v2172 = vunpack.c.h.b16 %v363
      %v2173 = vunpack.c.l.b16 %v364
      %v2174 = vunpack.c.h.b16 %v364
      %v2175 = vunpack.c.l.b16 %v365
      %v2176 = vunpack.c.h.b16 %v365
      %v2177 = vunpack.c.l.b16 %v366
      %v2178 = vunpack.c.h.b16 %v366
      %v2179 = vunpack.c.l.b16 %v367
      %v2180 = vunpack.c.h.b16 %v367
      %v2181 = vunpack.c.l.b16 %v368
      %v2182 = vunpack.c.h.b16 %v368
      %v2183 = vunpack.c.l.b16 %v369
      %v2184 = vunpack.c.h.b16 %v369
      %v2185 = vunpack.c.l.b16 %v370
      %v2186 = vunpack.c.h.b16 %v370
      %v2187 = vunpack.c.l.b16 %v371
      %v2188 = vunpack.c.h.b16 %v371
      %v2189 = vunpack.c.l.b16 %v372
      %v2190 = vunpack.c.h.b16 %v372
      %v2191 = vunpack.c.l.b16 %v373
      %v2192 = vunpack.c.h.b16 %v373
      %v2193 = vunpack.c.l.b16 %v374
      %v2194 = vunpack.c.h.b16 %v374
      %v2195 = vunpack.c.l.b16 %v375
      %v2196 = vunpack.c.h.b16 %v375
      %v2197 = vunpack.c.l.b16 %v376
      %v2198 = vunpack.c.h.b16 %v376
      %v2199 = vunpack.c.l.b16 %v377
      %v2200 = vunpack.c.h.b16 %v377
      %v2201 = vunpack.c.l.b16 %v378
      %v2202 = vunpack.c.h.b16 %v378
      %v2203 = vunpack.c.l.b16 %v379
      %v2204 = vunpack.c.h.b16 %v379
      %v2205 = vunpack.c.l.b16 %v380
      %v2206 = vunpack.c.h.b16 %v380
      %v2207 = vunpack.c.l.b16 %v381
      %v2208 = vunpack.c.h.b16 %v381
      %v2209 = vunpack.c.l.b16 %v382
      %v2210 = vunpack.c.h.b16 %v382
      %v2211 = vunpack.c.l.b16 %v383
      %v2212 = vunpack.c.h.b16 %v383
      %v2213 = vunpack.c.l.b16 %v384
      %v2214 = vunpack.c.h.b16 %v384
      %v2215 = vunpack.c.l.b16 %v385
      %v2216 = vunpack.c.h.b16 %v385
      %v2217 = vunpack.c.l.b16 %v386
      %v2218 = vunpack.c.h.b16 %v386
      %v2219 = vunpack.c.l.b16 %v387
      %v2220 = vunpack.c.h.b16 %v387
      %v2221 = vunpack.c.l.b16 %v388
      %v2222 = vunpack.c.h.b16 %v388
      %v2223 = vunpack.c.l.b16 %v389
      %v2224 = vunpack.c.h.b16 %v389
      %v2225 = vunpack.c.l.b16 %v390
      %v2226 = vunpack.c.h.b16 %v390
      %v2227 = vunpack.c.l.b16 %v391
      %v2228 = vunpack.c.h.b16 %v391
      %v2229 = vunpack.c.l.b16 %v392
      %v2230 = vunpack.c.h.b16 %v392
      %v2231 = vunpack.c.l.b16 %v393
      %v2232 = vunpack.c.h.b16 %v393
      %v2233 = vunpack.c.l.b16 %v394
      %v2234 = vunpack.c.h.b16 %v394
      %v2235 = vunpack.c.l.b16 %v395
      %v2236 = vunpack.c.h.b16 %v395
      %v2237 = vunpack.c.l.b16 %v396
      %v2238 = vunpack.c.h.b16 %v396
      %v2239 = vunpack.c.l.b16 %v397
      %v2240 = vunpack.c.h.b16 %v397
      %v2241 = vunpack.c.l.b16 %v398
      %v2242 = vunpack.c.h.b16 %v398
      %v2243 = vunpack.c.l.b16 %v399
      %v2244 = vunpack.c.h.b16 %v399
      %v2245 = vunpack.c.l.b16 %v400
      %v2246 = vunpack.c.h.b16 %v400
      %v2247 = vunpack.c.l.b16 %v401
      %v2248 = vunpack.c.h.b16 %v401
      %v2249 = vunpack.c.l.b16 %v402
      %v2250 = vunpack.c.h.b16 %v402
      %v2251 = vunpack.c.l.b16 %v403
      %v2252 = vunpack.c.h.b16 %v403
      %v2253 = vunpack.c.l.b16 %v404
      %v2254 = vunpack.c.h.b16 %v404
      %v2255 = vunpack.c.l.b16 %v405
      %v2256 = vunpack.c.h.b16 %v405
      %v2257 = vunpack.c.l.b16 %v406
      %v2258 = vunpack.c.h.b16 %v406
      %v2259 = vunpack.c.l.b16 %v407
      %v2260 = vunpack.c.h.b16 %v407
      %v2261 = vunpack.c.l.b16 %v408
      %v2262 = vunpack.c.h.b16 %v408
      %v2263 = vunpack.c.l.b16 %v409
      %v2264 = vunpack.c.h.b16 %v409
      %v2265 = vunpack.c.l.b16 %v410
      %v2266 = vunpack.c.h.b16 %v410
      %v2267 = vunpack.c.l.b16 %v411
      %v2268 = vunpack.c.h.b16 %v411
      %v2269 = vunpack.c.l.b16 %v412
      %v2270 = vunpack.c.h.b16 %v412
      %v2271 = vunpack.c.l.b16 %v413
      %v2272 = vunpack.c.h.b16 %v413
      %v2273 = vunpack.c.l.b16 %v414
      %v2274 = vunpack.c.h.b16 %v414
      %v2275 = vunpack.c.l.b16 %v415
      %v2276 = vunpack.c.h.b16 %v415
      %v2277 = vunpack.c.l.b16 %v416
      %v2278 = vunpack.c.h.b16 %v416
      %v2279 = vunpack.c.l.b16 %v417
      %v2280 = vunpack.c.h.b16 %v417
      %v2281 = vunpack.c.l.b16 %v418
      %v2282 = vunpack.c.h.b16 %v418
      %v2283 = vunpack.c.l.b16 %v419
      %v2284 = vunpack.c.h.b16 %v419
      %v2285 = vunpack.c.l.b16 %v420
      %v2286 = vunpack.c.h.b16 %v420
      %v2287 = vunpack.c.l.b16 %v421
      %v2288 = vunpack.c.h.b16 %v421
      %v2289 = vunpack.c.l.b16 %v422
      %v2290 = vunpack.c.h.b16 %v422
      %v2291 = vunpack.c.l.b16 %v423
      %v2292 = vunpack.c.h.b16 %v423
      %v2293 = vunpack.c.l.b16 %v424
      %v2294 = vunpack.c.h.b16 %v424
      %v2295 = vunpack.c.l.b16 %v425
      %v2296 = vunpack.c.h.b16 %v425
      %v2297 = vunpack.c.l.b16 %v426
      %v2298 = vunpack.c.h.b16 %v426
      %v2299 = vunpack.c.l.b16 %v427
      %v2300 = vunpack.c.h.b16 %v427
      %v2301 = vunpack.c.l.b16 %v428
      %v2302 = vunpack.c.h.b16 %v428
      %v2303 = vunpack.c.l.b16 %v429
      %v2304 = vunpack.c.h.b16 %v429
      %v2305 = vunpack.c.l.b16 %v430
      %v2306 = vunpack.c.h.b16 %v430
      %v2307 = vunpack.c.l.b16 %v431
      %v2308 = vunpack.c.h.b16 %v431
      %v2309 = vunpack.c.l.b16 %v432
      %v2310 = vunpack.c.h.b16 %v432
      %v2311 = vunpack.c.l.b16 %v433
      %v2312 = vunpack.c.h.b16 %v433
      %v2313 = vunpack.c.l.b16 %v434
      %v2314 = vunpack.c.h.b16 %v434
      %v2315 = vunpack.c.l.b16 %v435
      %v2316 = vunpack.c.h.b16 %v435
      %v2317 = vunpack.c.l.b16 %v436
      %v2318 = vunpack.c.h.b16 %v436
      %v2319 = vunpack.c.l.b16 %v437
      %v2320 = vunpack.c.h.b16 %v437
      %v2321 = vunpack.c.l.b16 %v438
      %v2322 = vunpack.c.h.b16 %v438
      %v2323 = vunpack.c.l.b16 %v439
      %v2324 = vunpack.c.h.b16 %v439
      %v2325 = vunpack.c.l.b16 %v440
      %v2326 = vunpack.c.h.b16 %v440
      %v2327 = vunpack.c.l.b16 %v441
      %v2328 = vunpack.c.h.b16 %v441
      %v2329 = vunpack.c.l.b16 %v442
      %v2330 = vunpack.c.h.b16 %v442
      %v2331 = vunpack.c.l.b16 %v443
      %v2332 = vunpack.c.h.b16 %v443
      %v2333 = vunpack.c.l.b16 %v444
      %v2334 = vunpack.c.h.b16 %v444
      %v2335 = vunpack.c.l.b16 %v445
      %v2336 = vunpack.c.h.b16 %v445
      %v2337 = vunpack.c.l.b16 %v446
      %v2338 = vunpack.c.h.b16 %v446
      %v2339 = vunpack.c.l.b16 %v447
      %v2340 = vunpack.c.h.b16 %v447
      %v2341 = vunpack.c.l.b16 %v448
      %v2342 = vunpack.c.h.b16 %v448
      %v2343 = vunpack.c.l.b16 %v449
      %v2344 = vunpack.c.h.b16 %v449
      %v2345 = vunpack.c.l.b16 %v450
      %v2346 = vunpack.c.h.b16 %v450
      %v2347 = vunpack.c.l.b16 %v451
      %v2348 = vunpack.c.h.b16 %v451
      %v2349 = vunpack.c.l.b16 %v452
      %v2350 = vunpack.c.h.b16 %v452
      %v2351 = vunpack.c.l.b16 %v453
      %v2352 = vunpack.c.h.b16 %v453
      %v2353 = vunpack.c.l.b16 %v454
      %v2354 = vunpack.c.h.b16 %v454
      %v2355 = vunpack.c.l.b16 %v455
      %v2356 = vunpack.c.h.b16 %v455
      %v2357 = vunpack.c.l.b16 %v456
      %v2358 = vunpack.c.h.b16 %v456
      %v2359 = vunpack.c.l.b16 %v457
      %v2360 = vunpack.c.h.b16 %v457
      %v2361 = vunpack.c.l.b16 %v458
      %v2362 = vunpack.c.h.b16 %v458
      %v2363 = vunpack.c.l.b16 %v459
      %v2364 = vunpack.c.h.b16 %v459
      %v2365 = vunpack.c.l.b16 %v460
      %v2366 = vunpack.c.h.b16 %v460
      %v2367 = vunpack.c.l.b16 %v461
      %v2368 = vunpack.c.h.b16 %v461
      %v2369 = vunpack.c.l.b16 %v462
      %v2370 = vunpack.c.h.b16 %v462
      %v2371 = vunpack.c.l.b16 %v463
      %v2372 = vunpack.c.h.b16 %v463
      %v2373 = vunpack.c.l.b16 %v464
      %v2374 = vunpack.c.h.b16 %v464
      %v2375 = vunpack.c.l.b16 %v465
      %v2376 = vunpack.c.h.b16 %v465
      %v2377 = vunpack.c.l.b16 %v466
      %v2378 = vunpack.c.h.b16 %v466
      %v2379 = vunpack.c.l.b16 %v467
      %v2380 = vunpack.c.h.b16 %v467
      %v2381 = vunpack.c.l.b16 %v468
      %v2382 = vunpack.c.h.b16 %v468
      %v2383 = vunpack.c.l.b16 %v469
      %v2384 = vunpack.c.h.b16 %v469
      %v2385 = vunpack.c.l.b16 %v470
      %v2386 = vunpack.c.h.b16 %v470
      %v2387 = vunpack.c.l.b16 %v471
      %v2388 = vunpack.c.h.b16 %v471
      %v2389 = vunpack.c.l.b16 %v472
      %v2390 = vunpack.c.h.b16 %v472
      %v2391 = vunpack.c.l.b16 %v473
      %v2392 = vunpack.c.h.b16 %v473
      %v2393 = vunpack.c.l.b16 %v474
      %v2394 = vunpack.c.h.b16 %v474
      %v2395 = vunpack.c.l.b16 %v475
      %v2396 = vunpack.c.h.b16 %v475
      %v2397 = vunpack.c.l.b16 %v476
      %v2398 = vunpack.c.h.b16 %v476
      %v2399 = vunpack.c.l.b16 %v477
      %v2400 = vunpack.c.h.b16 %v477
      %v2401 = vunpack.c.l.b16 %v478
      %v2402 = vunpack.c.h.b16 %v478
      %v2403 = vunpack.c.l.b16 %v479
      %v2404 = vunpack.c.h.b16 %v479
      %v2405 = vunpack.c.l.b16 %v480
      %v2406 = vunpack.c.h.b16 %v480
      %v2407 = vunpack.c.l.b16 %v481
      %v2408 = vunpack.c.h.b16 %v481
      %v2409 = vunpack.c.l.b16 %v482
      %v2410 = vunpack.c.h.b16 %v482
      %v2411 = vunpack.c.l.b16 %v483
      %v2412 = vunpack.c.h.b16 %v483
      %v2413 = vunpack.c.l.b16 %v484
      %v2414 = vunpack.c.h.b16 %v484
      %v2415 = vunpack.c.l.b16 %v485
      %v2416 = vunpack.c.h.b16 %v485
      %v2417 = vunpack.c.l.b16 %v486
      %v2418 = vunpack.c.h.b16 %v486
      %v2419 = vunpack.c.l.b16 %v487
      %v2420 = vunpack.c.h.b16 %v487
      %v2421 = vunpack.c.l.b16 %v488
      %v2422 = vunpack.c.h.b16 %v488
      %v2423 = vunpack.c.l.b16 %v489
      %v2424 = vunpack.c.h.b16 %v489
      %v2425 = vunpack.c.l.b16 %v490
      %v2426 = vunpack.c.h.b16 %v490
      %v2427 = vunpack.c.l.b16 %v491
      %v2428 = vunpack.c.h.b16 %v491
      %v2429 = vunpack.c.l.b16 %v492
      %v2430 = vunpack.c.h.b16 %v492
      %v2431 = vunpack.c.l.b16 %v493
      %v2432 = vunpack.c.h.b16 %v493
      %v2433 = vunpack.c.l.b16 %v494
      %v2434 = vunpack.c.h.b16 %v494
      %v2435 = vunpack.c.l.b16 %v495
      %v2436 = vunpack.c.h.b16 %v495
      %v2437 = vunpack.c.l.b16 %v496
      %v2438 = vunpack.c.h.b16 %v496
      %v2439 = vunpack.c.l.b16 %v497
      %v2440 = vunpack.c.h.b16 %v497
      %v2441 = vunpack.c.l.b16 %v498
      %v2442 = vunpack.c.h.b16 %v498
      %v2443 = vunpack.c.l.b16 %v499
      %v2444 = vunpack.c.h.b16 %v499
      %v2445 = vunpack.c.l.b16 %v500
      %v2446 = vunpack.c.h.b16 %v500
      %v2447 = vunpack.c.l.b16 %v501
      %v2448 = vunpack.c.h.b16 %v501
      %v2449 = vunpack.c.l.b16 %v502
      %v2450 = vunpack.c.h.b16 %v502
      %v2451 = vunpack.c.l.b16 %v503
      %v2452 = vunpack.c.h.b16 %v503
      %v2453 = vunpack.c.l.b16 %v504
      %v2454 = vunpack.c.h.b16 %v504
      %v2455 = vunpack.c.l.b16 %v505
      %v2456 = vunpack.c.h.b16 %v505
      %v2457 = vunpack.c.l.b16 %v506
      %v2458 = vunpack.c.h.b16 %v506
      %v2459 = vunpack.c.l.b16 %v507
      %v2460 = vunpack.c.h.b16 %v507
      %v2461 = vunpack.c.l.b16 %v508
      %v2462 = vunpack.c.h.b16 %v508
      %v2463 = vunpack.c.l.b16 %v509
      %v2464 = vunpack.c.h.b16 %v509
      %v2465 = vunpack.c.l.b16 %v510
      %v2466 = vunpack.c.h.b16 %v510
      %v2467 = vunpack.c.l.b16 %v511
      %v2468 = vunpack.c.h.b16 %v511
      %v2469 = vunpack.c.l.b16 %v512
      %v2470 = vunpack.c.h.b16 %v512
      %v2471 = vunpack.c.l.b16 %v513
      %v2472 = vunpack.c.h.b16 %v513
      %v2473 = vunpack.c.l.b16 %v514
      %v2474 = vunpack.c.h.b16 %v514
      %v2475 = vunpack.c.l.b16 %v515
      %v2476 = vunpack.c.h.b16 %v515
      %v2477 = vunpack.c.l.b16 %v516
      %v2478 = vunpack.c.h.b16 %v516
      %v2479 = vunpack.c.l.b16 %v517
      %v2480 = vunpack.c.h.b16 %v517
      %v2481 = vunpack.c.l.b16 %v518
      %v2482 = vunpack.c.h.b16 %v518
      %v2483 = vunpack.c.l.b16 %v519
      %v2484 = vunpack.c.h.b16 %v519
      %v2485 = vunpack.c.l.b16 %v520
      %v2486 = vunpack.c.h.b16 %v520
      %v2487 = vunpack.c.l.b16 %v521
      %v2488 = vunpack.c.h.b16 %v521
      %v2489 = vunpack.c.l.b16 %v522
      %v2490 = vunpack.c.h.b16 %v522
      %v2491 = vunpack.c.l.b16 %v523
      %v2492 = vunpack.c.h.b16 %v523
      %v2493 = vunpack.c.l.b16 %v524
      %v2494 = vunpack.c.h.b16 %v524
      %v2495 = vunpack.c.l.b16 %v525
      %v2496 = vunpack.c.h.b16 %v525
      %v2497 = vunpack.c.l.b16 %v526
      %v2498 = vunpack.c.h.b16 %v526
      %v2499 = vunpack.c.l.b16 %v527
      %v2500 = vunpack.c.h.b16 %v527
      %v2501 = vunpack.c.l.b16 %v528
      %v2502 = vunpack.c.h.b16 %v528
      %v2503 = vunpack.c.l.b16 %v529
      %v2504 = vunpack.c.h.b16 %v529
      %v2505 = vunpack.c.l.b16 %v530
      %v2506 = vunpack.c.h.b16 %v530
      %v2507 = vunpack.c.l.b16 %v531
      %v2508 = vunpack.c.h.b16 %v531
      %v2509 = vunpack.c.l.b16 %v532
      %v2510 = vunpack.c.h.b16 %v532
      %v2511 = vunpack.c.l.b16 %v533
      %v2512 = vunpack.c.h.b16 %v533
      %v2513 = vunpack.c.l.b16 %v534
      %v2514 = vunpack.c.h.b16 %v534
      %v2515 = vunpack.c.l.b16 %v535
      %v2516 = vunpack.c.h.b16 %v535
      %v2517 = vunpack.c.l.b16 %v536
      %v2518 = vunpack.c.h.b16 %v536
      %v2519 = vunpack.c.l.b16 %v537
      %v2520 = vunpack.c.h.b16 %v537
      %v2521 = vunpack.c.l.b16 %v538
      %v2522 = vunpack.c.h.b16 %v538
      %v2523 = vunpack.c.l.b16 %v539
      %v2524 = vunpack.c.h.b16 %v539
      %v2525 = vunpack.c.l.b16 %v540
      %v2526 = vunpack.c.h.b16 %v540
      %v2527 = vunpack.c.l.b16 %v541
      %v2528 = vunpack.c.h.b16 %v541
      %v2529 = vunpack.c.l.b16 %v542
      %v2530 = vunpack.c.h.b16 %v542
      %v2531 = vunpack.c.l.b16 %v543
      %v2532 = vunpack.c.h.b16 %v543
      %v2533 = vunpack.c.l.b16 %v544
      %v2534 = vunpack.c.h.b16 %v544
      %v2535 = vunpack.c.l.b16 %v545
      %v2536 = vunpack.c.h.b16 %v545
      %v2537 = vunpack.c.l.b16 %v546
      %v2538 = vunpack.c.h.b16 %v546
      %v2539 = vunpack.c.l.b16 %v547
      %v2540 = vunpack.c.h.b16 %v547
      %v2541 = vunpack.c.l.b16 %v548
      %v2542 = vunpack.c.h.b16 %v548
      %v2543 = vunpack.c.l.b16 %v549
      %v2544 = vunpack.c.h.b16 %v549
      %v2545 = vunpack.c.l.b16 %v550
      %v2546 = vunpack.c.h.b16 %v550
      %v2547 = vunpack.c.l.b16 %v551
      %v2548 = vunpack.c.h.b16 %v551
      %v2549 = vunpack.c.l.b16 %v552
      %v2550 = vunpack.c.h.b16 %v552
      %v2551 = vunpack.c.l.b16 %v553
      %v2552 = vunpack.c.h.b16 %v553
      %v2553 = vunpack.c.l.b16 %v554
      %v2554 = vunpack.c.h.b16 %v554
      %v2555 = vunpack.c.l.b16 %v555
      %v2556 = vunpack.c.h.b16 %v555
      %v2557 = vunpack.c.l.b16 %v556
      %v2558 = vunpack.c.h.b16 %v556
      %v2559 = vunpack.c.l.b16 %v557
      %v2560 = vunpack.c.h.b16 %v557
      %v2561 = vunpack.c.l.b16 %v558
      %v2562 = vunpack.c.h.b16 %v558
      %v2563 = vunpack.c.l.b16 %v559
      %v2564 = vunpack.c.h.b16 %v559
      %v2565 = vunpack.c.l.b16 %v560
      %v2566 = vunpack.c.h.b16 %v560
      %v2567 = vunpack.c.l.b16 %v561
      %v2568 = vunpack.c.h.b16 %v561
      %v2569 = vunpack.c.l.b16 %v562
      %v2570 = vunpack.c.h.b16 %v562
      %v2571 = vunpack.c.l.b16 %v563
      %v2572 = vunpack.c.h.b16 %v563
      %v2573 = vunpack.c.l.b16 %v564
      %v2574 = vunpack.c.h.b16 %v564
      %v2575 = vunpack.c.l.b16 %v565
      %v2576 = vunpack.c.h.b16 %v565
      %v2577 = vunpack.c.l.b16 %v566
      %v2578 = vunpack.c.h.b16 %v566
      %v2579 = vunpack.c.l.b16 %v567
      %v2580 = vunpack.c.h.b16 %v567
      %v2581 = vunpack.c.l.b16 %v568
      %v2582 = vunpack.c.h.b16 %v568
      %v2583 = vunpack.c.l.b16 %v569
      %v2584 = vunpack.c.h.b16 %v569
      %v2585 = vunpack.c.l.b16 %v570
      %v2586 = vunpack.c.h.b16 %v570
      %v2587 = vunpack.c.l.b16 %v571
      %v2588 = vunpack.c.h.b16 %v571
      %v2589 = vunpack.c.l.b16 %v572
      %v2590 = vunpack.c.h.b16 %v572
      %v2591 = vunpack.c.l.b16 %v573
      %v2592 = vunpack.c.h.b16 %v573
      %v2593 = vunpack.c.l.b16 %v574
      %v2594 = vunpack.c.h.b16 %v574
      %v2595 = vunpack.c.l.b16 %v575
      %v2596 = vunpack.c.h.b16 %v575
      %v2597 = vunpack.c.l.b16 %v576
      %v2598 = vunpack.c.h.b16 %v576
      %v2599 = vunpack.c.l.b16 %v577
      %v2600 = vunpack.c.h.b16 %v577
      %v2601 = vunpack.c.l.b16 %v578
      %v2602 = vunpack.c.h.b16 %v578
      %v2603 = vunpack.c.l.b16 %v579
      %v2604 = vunpack.c.h.b16 %v579
      %v2605 = vunpack.c.l.b16 %v580
      %v2606 = vunpack.c.h.b16 %v580
      %v2607 = vunpack.c.l.b16 %v581
      %v2608 = vunpack.c.h.b16 %v581
      %v2609 = vunpack.c.l.b16 %v582
      %v2610 = vunpack.c.h.b16 %v582
      %v2611 = vunpack.c.l.b16 %v583
      %v2612 = vunpack.c.h.b16 %v583
      %v2613 = vunpack.c.l.b16 %v584
      %v2614 = vunpack.c.h.b16 %v584
      %v2615 = vunpack.c.l.b16 %v585
      %v2616 = vunpack.c.h.b16 %v585
      %v2617 = vunpack.c.l.b16 %v586
      %v2618 = vunpack.c.h.b16 %v586
      %v2619 = vunpack.c.l.b16 %v587
      %v2620 = vunpack.c.h.b16 %v587
      %v2621 = vunpack.c.l.b16 %v588
      %v2622 = vunpack.c.h.b16 %v588
      %v2623 = vunpack.c.l.b16 %v589
      %v2624 = vunpack.c.h.b16 %v589
      %v2625 = vunpack.c.l.b16 %v590
      %v2626 = vunpack.c.h.b16 %v590
      %v2627 = vunpack.c.l.b16 %v591
      %v2628 = vunpack.c.h.b16 %v591
      %v2629 = vunpack.c.l.b16 %v592
      %v2630 = vunpack.c.h.b16 %v592
      %v2631 = vunpack.c.l.b16 %v593
      %v2632 = vunpack.c.h.b16 %v593
      %v2633 = vunpack.c.l.b16 %v594
      %v2634 = vunpack.c.h.b16 %v594
      %v2635 = vunpack.c.l.b16 %v595
      %v2636 = vunpack.c.h.b16 %v595
      %v2637 = vunpack.c.l.b16 %v596
      %v2638 = vunpack.c.h.b16 %v596
      %v2639 = vunpack.c.l.b16 %v597
      %v2640 = vunpack.c.h.b16 %v597
      %v2641 = vunpack.c.l.b16 %v598
      %v2642 = vunpack.c.h.b16 %v598
      %v2643 = vunpack.c.l.b16 %v599
      %v2644 = vunpack.c.h.b16 %v599
      %v2645 = vunpack.c.l.b16 %v600
      %v2646 = vunpack.c.h.b16 %v600
      %v2647 = vunpack.c.l.b16 %v601
      %v2648 = vunpack.c.h.b16 %v601
      %v2649 = vunpack.c.l.b16 %v602
      %v2650 = vunpack.c.h.b16 %v602
      %v2651 = vunpack.c.l.b16 %v603
      %v2652 = vunpack.c.h.b16 %v603
      %v2653 = vunpack.c.l.b16 %v604
      %v2654 = vunpack.c.h.b16 %v604
      %v2655 = vunpack.c.l.b16 %v605
      %v2656 = vunpack.c.h.b16 %v605
      %v2657 = vunpack.c.l.b16 %v606
      %v2658 = vunpack.c.h.b16 %v606
      %v2659 = vunpack.c.l.b16 %v607
      %v2660 = vunpack.c.h.b16 %v607
      %v2661 = vunpack.c.l.b16 %v608
      %v2662 = vunpack.c.h.b16 %v608
      %v2663 = vunpack.c.l.b16 %v609
      %v2664 = vunpack.c.h.b16 %v609
      %v2665 = vunpack.c.l.b16 %v610
      %v2666 = vunpack.c.h.b16 %v610
      %v2667 = vunpack.c.l.b16 %v611
      %v2668 = vunpack.c.h.b16 %v611
      %v2669 = vunpack.c.l.b16 %v612
      %v2670 = vunpack.c.h.b16 %v612
      %v2671 = vunpack.c.l.b16 %v613
      %v2672 = vunpack.c.h.b16 %v613
      %v2673 = vunpack.c.l.b16 %v614
      %v2674 = vunpack.c.h.b16 %v614
      %v2675 = vunpack.c.l.b16 %v615
      %v2676 = vunpack.c.h.b16 %v615
      %v2677 = vunpack.c.l.b16 %v616
      %v2678 = vunpack.c.h.b16 %v616
      %v2679 = vunpack.c.l.b16 %v617
      %v2680 = vunpack.c.h.b16 %v617
      %v2681 = vunpack.c.l.b16 %v618
      %v2682 = vunpack.c.h.b16 %v618
      %v2683 = vunpack.c.l.b16 %v619
      %v2684 = vunpack.c.h.b16 %v619
      %v2685 = vunpack.c.l.b16 %v620
      %v2686 = vunpack.c.h.b16 %v620
      %v2687 = vunpack.c.l.b16 %v621
      %v2688 = vunpack.c.h.b16 %v621
      %v2689 = vunpack.c.l.b16 %v622
      %v2690 = vunpack.c.h.b16 %v622
      %v2691 = vunpack.c.l.b16 %v623
      %v2692 = vunpack.c.h.b16 %v623
      %v2693 = vunpack.c.l.b16 %v624
      %v2694 = vunpack.c.h.b16 %v624
      %v2695 = vunpack.c.l.b16 %v625
      %v2696 = vunpack.c.h.b16 %v625
      %v2697 = vunpack.c.l.b16 %v626
      %v2698 = vunpack.c.h.b16 %v626
      %v2699 = vunpack.c.l.b16 %v627
      %v2700 = vunpack.c.h.b16 %v627
      %v2701 = vunpack.c.l.b16 %v628
      %v2702 = vunpack.c.h.b16 %v628
      %v2703 = vunpack.c.l.b16 %v629
      %v2704 = vunpack.c.h.b16 %v629
      %v2705 = vunpack.c.l.b16 %v630
      %v2706 = vunpack.c.h.b16 %v630
      %v2707 = vunpack.c.l.b16 %v631
      %v2708 = vunpack.c.h.b16 %v631
      %v2709 = vunpack.c.l.b16 %v632
      %v2710 = vunpack.c.h.b16 %v632
      %v2711 = vunpack.c.l.b16 %v633
      %v2712 = vunpack.c.h.b16 %v633
      %v2713 = vunpack.c.l.b16 %v634
      %v2714 = vunpack.c.h.b16 %v634
      %v2715 = vunpack.c.l.b16 %v635
      %v2716 = vunpack.c.h.b16 %v635
      %v2717 = vunpack.c.l.b16 %v636
      %v2718 = vunpack.c.h.b16 %v636
      %v2719 = vunpack.c.l.b16 %v637
      %v2720 = vunpack.c.h.b16 %v637
      %v2721 = vunpack.c.l.b16 %v638
      %v2722 = vunpack.c.h.b16 %v638
      %v2723 = vunpack.c.l.b16 %v639
      %v2724 = vunpack.c.h.b16 %v639
      %v2725 = vunpack.c.l.b16 %v640
      %v2726 = vunpack.c.h.b16 %v640
      %v2727 = vunpack.c.l.b16 %v641
      %v2728 = vunpack.c.h.b16 %v641
      %v2729 = vunpack.c.l.b16 %v642
      %v2730 = vunpack.c.h.b16 %v642
      %v2731 = vunpack.c.l.b16 %v643
      %v2732 = vunpack.c.h.b16 %v643
      %v2733 = vunpack.c.l.b16 %v644
      %v2734 = vunpack.c.h.b16 %v644
      %v2735 = vunpack.c.l.b16 %v645
      %v2736 = vunpack.c.h.b16 %v645
      %v2737 = vunpack.c.l.b16 %v646
      %v2738 = vunpack.c.h.b16 %v646
      %v2739 = vunpack.c.l.b16 %v647
      %v2740 = vunpack.c.h.b16 %v647
      %v2741 = vunpack.c.l.b16 %v648
      %v2742 = vunpack.c.h.b16 %v648
      %v2743 = vunpack.c.l.b16 %v649
      %v2744 = vunpack.c.h.b16 %v649
      %v2745 = vunpack.c.l.b16 %v650
      %v2746 = vunpack.c.h.b16 %v650
      %v2747 = vunpack.c.l.b16 %v651
      %v2748 = vunpack.c.h.b16 %v651
      %v2749 = vunpack.c.l.b16 %v652
      %v2750 = vunpack.c.h.b16 %v652
      %v2751 = vunpack.c.l.b16 %v653
      %v2752 = vunpack.c.h.b16 %v653
      %v2753 = vunpack.c.l.b16 %v654
      %v2754 = vunpack.c.h.b16 %v654
      %v2755 = vunpack.c.l.b16 %v655
      %v2756 = vunpack.c.h.b16 %v655
      %v2757 = vunpack.c.l.b16 %v656
      %v2758 = vunpack.c.h.b16 %v656
      %v2759 = vunpack.c.l.b16 %v657
      %v2760 = vunpack.c.h.b16 %v657
      %v2761 = vunpack.c.l.b16 %v658
      %v2762 = vunpack.c.h.b16 %v658
      %v2763 = vunpack.c.l.b16 %v659
      %v2764 = vunpack.c.h.b16 %v659
      %v2765 = vunpack.c.l.b16 %v660
      %v2766 = vunpack.c.h.b16 %v660
      %v2767 = vunpack.c.l.b16 %v661
      %v2768 = vunpack.c.h.b16 %v661
      %v2769 = vunpack.c.l.b16 %v662
      %v2770 = vunpack.c.h.b16 %v662
      %v2771 = vunpack.c.l.b16 %v663
      %v2772 = vunpack.c.h.b16 %v663
      %v2773 = vunpack.c.l.b16 %v664
      %v2774 = vunpack.c.h.b16 %v664
      %v2775 = vunpack.c.l.b16 %v665
      %v2776 = vunpack.c.h.b16 %v665
      %v2777 = vunpack.c.l.b16 %v666
      %v2778 = vunpack.c.h.b16 %v666
      %v2779 = vunpack.c.l.b16 %v667
      %v2780 = vunpack.c.h.b16 %v667
      %v2781 = vunpack.c.l.b16 %v668
      %v2782 = vunpack.c.h.b16 %v668
      %v2783 = vunpack.c.l.b16 %v669
      %v2784 = vunpack.c.h.b16 %v669
      %v2785 = vunpack.c.l.b16 %v670
      %v2786 = vunpack.c.h.b16 %v670
      %v2787 = vunpack.c.l.b16 %v671
      %v2788 = vunpack.c.h.b16 %v671
      %v2789 = vunpack.c.l.b16 %v672
      %v2790 = vunpack.c.h.b16 %v672
      %v2791 = vunpack.c.l.b16 %v673
      %v2792 = vunpack.c.h.b16 %v673
      %v2793 = vunpack.c.l.b16 %v674
      %v2794 = vunpack.c.h.b16 %v674
      %v2795 = vunpack.c.l.b16 %v675
      %v2796 = vunpack.c.h.b16 %v675
      %v2797 = vunpack.c.l.b16 %v676
      %v2798 = vunpack.c.h.b16 %v676
      %v2799 = vunpack.c.l.b16 %v677
      %v2800 = vunpack.c.h.b16 %v677
      %v2801 = vunpack.c.l.b16 %v678
      %v2802 = vunpack.c.h.b16 %v678
      %v2803 = vunpack.c.l.b16 %v679
      %v2804 = vunpack.c.h.b16 %v679
      %v2805 = vunpack.c.l.b16 %v680
      %v2806 = vunpack.c.h.b16 %v680
      %v2807 = vunpack.c.l.b16 %v681
      %v2808 = vunpack.c.h.b16 %v681
      %v2809 = vunpack.c.l.b16 %v682
      %v2810 = vunpack.c.h.b16 %v682
      %v2811 = vunpack.c.l.b16 %v683
      %v2812 = vunpack.c.h.b16 %v683
      %v2813 = vunpack.c.l.b16 %v684
      %v2814 = vunpack.c.h.b16 %v684
      %v2815 = vunpack.c.l.b16 %v685
      %v2816 = vunpack.c.h.b16 %v685
      %v2817 = vunpack.c.l.b16 %v686
      %v2818 = vunpack.c.h.b16 %v686
      %v2819 = vunpack.c.l.b16 %v687
      %v2820 = vunpack.c.h.b16 %v687
      %v2821 = vunpack.c.l.b16 %v688
      %v2822 = vunpack.c.h.b16 %v688
      %v2823 = vunpack.c.l.b16 %v689
      %v2824 = vunpack.c.h.b16 %v689
      %v2825 = vunpack.c.l.b16 %v690
      %v2826 = vunpack.c.h.b16 %v690
      %v2827 = vunpack.c.l.b16 %v691
      %v2828 = vunpack.c.h.b16 %v691
      %v2829 = vunpack.c.l.b16 %v692
      %v2830 = vunpack.c.h.b16 %v692
      %v2831 = vunpack.c.l.b16 %v693
      %v2832 = vunpack.c.h.b16 %v693
      %v2833 = vunpack.c.l.b16 %v694
      %v2834 = vunpack.c.h.b16 %v694
      %v2835 = vunpack.c.l.b16 %v695
      %v2836 = vunpack.c.h.b16 %v695
      %v2837 = vunpack.c.l.b16 %v696
      %v2838 = vunpack.c.h.b16 %v696
      %v2839 = vunpack.c.l.b16 %v697
      %v2840 = vunpack.c.h.b16 %v697
      %v2841 = vunpack.c.l.b16 %v698
      %v2842 = vunpack.c.h.b16 %v698
      %v2843 = vunpack.c.l.b16 %v699
      %v2844 = vunpack.c.h.b16 %v699
      %v2845 = vunpack.c.l.b16 %v700
      %v2846 = vunpack.c.h.b16 %v700
      %v2847 = vunpack.c.l.b16 %v701
      %v2848 = vunpack.c.h.b16 %v701
      %v2849 = vunpack.c.l.b16 %v702
      %v2850 = vunpack.c.h.b16 %v702
      %v2851 = vunpack.c.l.b16 %v703
      %v2852 = vunpack.c.h.b16 %v703
      %v2853 = vunpack.c.l.b16 %v704
      %v2854 = vunpack.c.h.b16 %v704
      %v2855 = vunpack.c.l.b16 %v705
      %v2856 = vunpack.c.h.b16 %v705
      %v2857 = vunpack.c.l.b16 %v706
      %v2858 = vunpack.c.h.b16 %v706
      %v2859 = vunpack.c.l.b16 %v707
      %v2860 = vunpack.c.h.b16 %v707
      %v2861 = vunpack.c.l.b16 %v708
      %v2862 = vunpack.c.h.b16 %v708
      %v2863 = vunpack.c.l.b16 %v709
      %v2864 = vunpack.c.h.b16 %v709
      %v2865 = vunpack.c.l.b16 %v710
      %v2866 = vunpack.c.h.b16 %v710
      %v2867 = vunpack.c.l.b16 %v711
      %v2868 = vunpack.c.h.b16 %v711
      %v2869 = vunpack.c.l.b16 %v712
      %v2870 = vunpack.c.h.b16 %v712
      %v2871 = vunpack.c.l.b16 %v713
      %v2872 = vunpack.c.h.b16 %v713
      %v2873 = vunpack.c.l.b16 %v714
      %v2874 = vunpack.c.h.b16 %v714
      %v2875 = vunpack.c.l.b16 %v715
      %v2876 = vunpack.c.h.b16 %v715
      %v2877 = vunpack.c.l.b16 %v716
      %v2878 = vunpack.c.h.b16 %v716
      %v2879 = vunpack.c.l.b16 %v717
      %v2880 = vunpack.c.h.b16 %v717
      %v2881 = vunpack.c.l.b16 %v718
      %v2882 = vunpack.c.h.b16 %v718
      %v2883 = vunpack.c.l.b16 %v719
      %v2884 = vunpack.c.h.b16 %v719
      %v2885 = vunpack.c.l.b16 %v720
      %v2886 = vunpack.c.h.b16 %v720
      %v2887 = vunpack.c.l.b16 %v721
      %v2888 = vunpack.c.h.b16 %v721
      %v2889 = vunpack.c.l.b16 %v722
      %v2890 = vunpack.c.h.b16 %v722
      %v2891 = vunpack.c.l.b16 %v723
      %v2892 = vunpack.c.h.b16 %v723
      %v2893 = vunpack.c.l.b16 %v724
      %v2894 = vunpack.c.h.b16 %v724
      %v2895 = vunpack.c.l.b16 %v725
      %v2896 = vunpack.c.h.b16 %v725
      %v2897 = vunpack.c.l.b16 %v726
      %v2898 = vunpack.c.h.b16 %v726
      %v2899 = vunpack.c.l.b16 %v727
      %v2900 = vunpack.c.h.b16 %v727
      %v2901 = vunpack.c.l.b16 %v728
      %v2902 = vunpack.c.h.b16 %v728
      %v2903 = vunpack.c.l.b16 %v729
      %v2904 = vunpack.c.h.b16 %v729
      %v2905 = vunpack.c.l.b16 %v730
      %v2906 = vunpack.c.h.b16 %v730
      %v2907 = vunpack.c.l.b16 %v731
      %v2908 = vunpack.c.h.b16 %v731
      %v2909 = vunpack.c.l.b16 %v732
      %v2910 = vunpack.c.h.b16 %v732
      %v2911 = vunpack.c.l.b16 %v733
      %v2912 = vunpack.c.h.b16 %v733
      %v2913 = vunpack.c.l.b16 %v734
      %v2914 = vunpack.c.h.b16 %v734
      %v2915 = vunpack.c.l.b16 %v735
      %v2916 = vunpack.c.h.b16 %v735
      %v2917 = vunpack.c.l.b16 %v736
      %v2918 = vunpack.c.h.b16 %v736
      %v2919 = vunpack.c.l.b16 %v737
      %v2920 = vunpack.c.h.b16 %v737
      %v2921 = vunpack.c.l.b16 %v738
      %v2922 = vunpack.c.h.b16 %v738
      %v2923 = vunpack.c.l.b16 %v739
      %v2924 = vunpack.c.h.b16 %v739
      %v2925 = vunpack.c.l.b16 %v740
      %v2926 = vunpack.c.h.b16 %v740
      %v2927 = vunpack.c.l.b16 %v741
      %v2928 = vunpack.c.h.b16 %v741
      %v2929 = vunpack.c.l.b16 %v742
      %v2930 = vunpack.c.h.b16 %v742
      %v2931 = vunpack.c.l.b16 %v743
      %v2932 = vunpack.c.h.b16 %v743
      %v2933 = vunpack.c.l.b16 %v744
      %v2934 = vunpack.c.h.b16 %v744
      %v2935 = vunpack.c.l.b16 %v745
      %v2936 = vunpack.c.h.b16 %v745
      %v2937 = vunpack.c.l.b16 %v746
      %v2938 = vunpack.c.h.b16 %v746
      %v2939 = vunpack.c.l.b16 %v747
      %v2940 = vunpack.c.h.b16 %v747
      %v2941 = vunpack.c.l.b16 %v748
      %v2942 = vunpack.c.h.b16 %v748
      %v2943 = vunpack.c.l.b16 %v749
      %v2944 = vunpack.c.h.b16 %v749
      %v2945 = vunpack.c.l.b16 %v750
      %v2946 = vunpack.c.h.b16 %v750
      %v2947 = vunpack.c.l.b16 %v751
      %v2948 = vunpack.c.h.b16 %v751
      %v2949 = vunpack.c.l.b16 %v752
      %v2950 = vunpack.c.h.b16 %v752
      %v2951 = vunpack.c.l.b16 %v753
      %v2952 = vunpack.c.h.b16 %v753
      %v2953 = vunpack.c.l.b16 %v754
      %v2954 = vunpack.c.h.b16 %v754
      %v2955 = vunpack.c.l.b16 %v755
      %v2956 = vunpack.c.h.b16 %v755
      %v2957 = vunpack.c.l.b16 %v756
      %v2958 = vunpack.c.h.b16 %v756
      %v2959 = vunpack.c.l.b16 %v757
      %v2960 = vunpack.c.h.b16 %v757
      %v2961 = vunpack.c.l.b16 %v758
      %v2962 = vunpack.c.h.b16 %v758
      %v2963 = vunpack.c.l.b16 %v759
      %v2964 = vunpack.c.h.b16 %v759
      %v2965 = vunpack.c.l.b16 %v760
      %v2966 = vunpack.c.h.b16 %v760
      %v2967 = vunpack.c.l.b16 %v761
      %v2968 = vunpack.c.h.b16 %v761
      %v2969 = vunpack.c.l.b16 %v762
      %v2970 = vunpack.c.h.b16 %v762
      %v2971 = vunpack.c.l.b16 %v763
      %v2972 = vunpack.c.h.b16 %v763
      %v2973 = vunpack.c.l.b16 %v764
      %v2974 = vunpack.c.h.b16 %v764
      %v2975 = vunpack.c.l.b16 %v765
      %v2976 = vunpack.c.h.b16 %v765
      %v2977 = vunpack.c.l.b16 %v766
      %v2978 = vunpack.c.h.b16 %v766
      %v2979 = vunpack.c.l.b16 %v767
      %v2980 = vunpack.c.h.b16 %v767
      %v2981 = vunpack.c.l.b16 %v768
      %v2982 = vunpack.c.h.b16 %v768
      %v2983 = vunpack.c.l.b16 %v769
      %v2984 = vunpack.c.h.b16 %v769
      %v2985 = vunpack.c.l.b16 %v770
      %v2986 = vunpack.c.h.b16 %v770
      %v2987 = vunpack.c.l.b16 %v771
      %v2988 = vunpack.c.h.b16 %v771
      %v2989 = vunpack.c.l.b16 %v772
      %v2990 = vunpack.c.h.b16 %v772
      %v2991 = vunpack.c.l.b16 %v773
      %v2992 = vunpack.c.h.b16 %v773
      %v2993 = vunpack.c.l.b16 %v774
      %v2994 = vunpack.c.h.b16 %v774
      %v2995 = vunpack.c.l.b16 %v775
      %v2996 = vunpack.c.h.b16 %v775
      %v2997 = vunpack.c.l.b16 %v776
      %v2998 = vunpack.c.h.b16 %v776
      %v2999 = vunpack.c.l.b16 %v777
      %v3000 = vunpack.c.h.b16 %v777
      %v3001 = vunpack.c.l.b16 %v778
      %v3002 = vunpack.c.h.b16 %v778
      %v3003 = vunpack.c.l.b16 %v779
      %v3004 = vunpack.c.h.b16 %v779
      %v3005 = vunpack.c.l.b16 %v780
      %v3006 = vunpack.c.h.b16 %v780
      %v3007 = vunpack.c.l.b16 %v781
      %v3008 = vunpack.c.h.b16 %v781
      %v3009 = vunpack.c.l.b16 %v782
      %v3010 = vunpack.c.h.b16 %v782
      %v3011 = vunpack.c.l.b16 %v783
      %v3012 = vunpack.c.h.b16 %v783
      %v3013 = vunpack.c.l.b16 %v784
      %v3014 = vunpack.c.h.b16 %v784
      %v3015 = vunpack.c.l.b16 %v785
      %v3016 = vunpack.c.h.b16 %v785
      %v3017 = vunpack.c.l.b16 %v786
      %v3018 = vunpack.c.h.b16 %v786
      %v3019 = vunpack.c.l.b16 %v787
      %v3020 = vunpack.c.h.b16 %v787
      %v3021 = vunpack.c.l.b16 %v788
      %v3022 = vunpack.c.h.b16 %v788
      %v3023 = vunpack.c.l.b16 %v789
      %v3024 = vunpack.c.h.b16 %v789
      %v3025 = vunpack.c.l.b16 %v790
      %v3026 = vunpack.c.h.b16 %v790
      %v3027 = vunpack.c.l.b16 %v791
      %v3028 = vunpack.c.h.b16 %v791
      %v3029 = vunpack.c.l.b16 %v792
      %v3030 = vunpack.c.h.b16 %v792
      %v3031 = vunpack.c.l.b16 %v793
      %v3032 = vunpack.c.h.b16 %v793
      %v3033 = vunpack.c.l.b16 %v794
      %v3034 = vunpack.c.h.b16 %v794
      %v3035 = vunpack.c.l.b16 %v795
      %v3036 = vunpack.c.h.b16 %v795
      %v3037 = vunpack.c.l.b16 %v796
      %v3038 = vunpack.c.h.b16 %v796
      %v3039 = vunpack.c.l.b16 %v797
      %v3040 = vunpack.c.h.b16 %v797
      %v3041 = vunpack.c.l.b16 %v798
      %v3042 = vunpack.c.h.b16 %v798
      %v3043 = vunpack.c.l.b16 %v799
      %v3044 = vunpack.c.h.b16 %v799
      %v3045 = vunpack.c.l.b16 %v800
      %v3046 = vunpack.c.h.b16 %v800
      %v3047 = vunpack.c.l.b16 %v801
      %v3048 = vunpack.c.h.b16 %v801
      %v3049 = vunpack.c.l.b16 %v802
      %v3050 = vunpack.c.h.b16 %v802
      %v3051 = vunpack.c.l.b16 %v803
      %v3052 = vunpack.c.h.b16 %v803
      %v3053 = vunpack.c.l.b16 %v804
      %v3054 = vunpack.c.h.b16 %v804
      %v3055 = vunpack.c.l.b16 %v805
      %v3056 = vunpack.c.h.b16 %v805
      %v3057 = vunpack.c.l.b16 %v806
      %v3058 = vunpack.c.h.b16 %v806
      %v3059 = vunpack.c.l.b16 %v807
      %v3060 = vunpack.c.h.b16 %v807
      %v3061 = vunpack.c.l.b16 %v808
      %v3062 = vunpack.c.h.b16 %v808
      %v3063 = vunpack.c.l.b16 %v809
      %v3064 = vunpack.c.h.b16 %v809
      %v3065 = vunpack.c.l.b16 %v810
      %v3066 = vunpack.c.h.b16 %v810
      %v3067 = vunpack.c.l.b16 %v811
      %v3068 = vunpack.c.h.b16 %v811
      %v3069 = vunpack.c.l.b16 %v812
      %v3070 = vunpack.c.h.b16 %v812
      %v3071 = vunpack.c.l.b16 %v813
      %v3072 = vunpack.c.h.b16 %v813
      %v3073 = vunpack.c.l.b16 %v814
      %v3074 = vunpack.c.h.b16 %v814
      %v3075 = vunpack.c.l.b16 %v815
      %v3076 = vunpack.c.h.b16 %v815
      %v3077 = vunpack.c.l.b16 %v816
      %v3078 = vunpack.c.h.b16 %v816
      %v3079 = vunpack.c.l.b16 %v817
      %v3080 = vunpack.c.h.b16 %v817
      %v3081 = vunpack.c.l.b16 %v818
      %v3082 = vunpack.c.h.b16 %v818
      %v3083 = vunpack.c.l.b16 %v819
      %v3084 = vunpack.c.h.b16 %v819
      %v3085 = vunpack.c.l.b16 %v820
      %v3086 = vunpack.c.h.b16 %v820
      %v3087 = vunpack.c.l.b16 %v821
      %v3088 = vunpack.c.h.b16 %v821
      %v3089 = vunpack.c.l.b16 %v822
      %v3090 = vunpack.c.h.b16 %v822
      %v3091 = vunpack.c.l.b16 %v823
      %v3092 = vunpack.c.h.b16 %v823
      %v3093 = vunpack.c.l.b16 %v824
      %v3094 = vunpack.c.h.b16 %v824
      %v3095 = vunpack.c.l.b16 %v825
      %v3096 = vunpack.c.h.b16 %v825
      %v3097 = vunpack.c.l.b16 %v826
      %v3098 = vunpack.c.h.b16 %v826
      %v3099 = vunpack.c.l.b16 %v827
      %v3100 = vunpack.c.h.b16 %v827
      %v3101 = vunpack.c.l.b16 %v828
      %v3102 = vunpack.c.h.b16 %v828
      %v3103 = vunpack.c.l.b16 %v829
      %v3104 = vunpack.c.h.b16 %v829
      %v3105 = vunpack.c.l.b16 %v830
      %v3106 = vunpack.c.h.b16 %v830
      %v3107 = vunpack.c.l.b16 %v831
      %v3108 = vunpack.c.h.b16 %v831
      %v3109 = vunpack.c.l.b16 %v832
      %v3110 = vunpack.c.h.b16 %v832
      %v3111 = vunpack.c.l.b16 %v833
      %v3112 = vunpack.c.h.b16 %v833
      %v3113 = vunpack.c.l.b16 %v834
      %v3114 = vunpack.c.h.b16 %v834
      %v3115 = vunpack.c.l.b16 %v835
      %v3116 = vunpack.c.h.b16 %v835
      %v3117 = vunpack.c.l.b16 %v836
      %v3118 = vunpack.c.h.b16 %v836
      %v3119 = vunpack.c.l.b16 %v837
      %v3120 = vunpack.c.h.b16 %v837
      %v3121 = vunpack.c.l.b16 %v838
      %v3122 = vunpack.c.h.b16 %v838
      %v3123 = vunpack.c.l.b16 %v839
      %v3124 = vunpack.c.h.b16 %v839
      %v3125 = vunpack.c.l.b16 %v840
      %v3126 = vunpack.c.h.b16 %v840
      %v3127 = vunpack.c.l.b16 %v841
      %v3128 = vunpack.c.h.b16 %v841
      %v3129 = vunpack.c.l.b16 %v842
      %v3130 = vunpack.c.h.b16 %v842
      %v3131 = vunpack.c.l.b16 %v843
      %v3132 = vunpack.c.h.b16 %v843
      %v3133 = vunpack.c.l.b16 %v844
      %v3134 = vunpack.c.h.b16 %v844
      %v3135 = vunpack.c.l.b16 %v845
      %v3136 = vunpack.c.h.b16 %v845
      %v3137 = vunpack.c.l.b16 %v846
      %v3138 = vunpack.c.h.b16 %v846
      %v3139 = vunpack.c.l.b16 %v847
      %v3140 = vunpack.c.h.b16 %v847
      %v3141 = vunpack.c.l.b16 %v848
      %v3142 = vunpack.c.h.b16 %v848
      %v3143 = vunpack.c.l.b16 %v849
      %v3144 = vunpack.c.h.b16 %v849
      %v3145 = vunpack.c.l.b16 %v850
      %v3146 = vunpack.c.h.b16 %v850
      %v3147 = vunpack.c.l.b16 %v851
      %v3148 = vunpack.c.h.b16 %v851
      %v3149 = vunpack.c.l.b16 %v852
      %v3150 = vunpack.c.h.b16 %v852
      %v3151 = vunpack.c.l.b16 %v853
      %v3152 = vunpack.c.h.b16 %v853
      %v3153 = vunpack.c.l.b16 %v854
      %v3154 = vunpack.c.h.b16 %v854
      %v3155 = vunpack.c.l.b16 %v855
      %v3156 = vunpack.c.h.b16 %v855
      %v3157 = vunpack.c.l.b16 %v856
      %v3158 = vunpack.c.h.b16 %v856
      %v3159 = vunpack.c.l.b16 %v857
      %v3160 = vunpack.c.h.b16 %v857
      %v3161 = vunpack.c.l.b16 %v858
      %v3162 = vunpack.c.h.b16 %v858
      %v3163 = vunpack.c.l.b16 %v859
      %v3164 = vunpack.c.h.b16 %v859
      %v3165 = vunpack.c.l.b16 %v860
      %v3166 = vunpack.c.h.b16 %v860
      %v3167 = vunpack.c.l.b16 %v861
      %v3168 = vunpack.c.h.b16 %v861
      %v3169 = vunpack.c.l.b16 %v862
      %v3170 = vunpack.c.h.b16 %v862
      %v3171 = vunpack.c.l.b16 %v863
      %v3172 = vunpack.c.h.b16 %v863
      %v3173 = vunpack.c.l.b16 %v864
      %v3174 = vunpack.c.h.b16 %v864
      %v3175 = vunpack.c.l.b16 %v865
      %v3176 = vunpack.c.h.b16 %v865
      %v3177 = vunpack.c.l.b16 %v866
      %v3178 = vunpack.c.h.b16 %v866
      %v3179 = vunpack.c.l.b16 %v867
      %v3180 = vunpack.c.h.b16 %v867
      %v3181 = vunpack.c.l.b16 %v868
      %v3182 = vunpack.c.h.b16 %v868
      %v3183 = vunpack.c.l.b16 %v869
      %v3184 = vunpack.c.h.b16 %v869
      %v3185 = vunpack.c.l.b16 %v870
      %v3186 = vunpack.c.h.b16 %v870
      %v3187 = vunpack.c.l.b16 %v871
      %v3188 = vunpack.c.h.b16 %v871
      %v3189 = vunpack.c.l.b16 %v872
      %v3190 = vunpack.c.h.b16 %v872
      %v3191 = vunpack.c.l.b16 %v873
      %v3192 = vunpack.c.h.b16 %v873
      %v3193 = vunpack.c.l.b16 %v874
      %v3194 = vunpack.c.h.b16 %v874
      %v3195 = vunpack.c.l.b16 %v875
      %v3196 = vunpack.c.h.b16 %v875
      %v3197 = vunpack.c.l.b16 %v876
      %v3198 = vunpack.c.h.b16 %v876
      %v3199 = vunpack.c.l.b16 %v877
      %v3200 = vunpack.c.h.b16 %v877
      %v3201 = vunpack.c.l.b16 %v878
      %v3202 = vunpack.c.h.b16 %v878
      %v3203 = vunpack.c.l.b16 %v879
      %v3204 = vunpack.c.h.b16 %v879
      %v3205 = vunpack.c.l.b16 %v880
      %v3206 = vunpack.c.h.b16 %v880
      %v3207 = vunpack.c.l.b16 %v881
      %v3208 = vunpack.c.h.b16 %v881
      %v3209 = vunpack.c.l.b16 %v882
      %v3210 = vunpack.c.h.b16 %v882
      %v3211 = vunpack.c.l.b16 %v883
      %v3212 = vunpack.c.h.b16 %v883
      %v3213 = vunpack.c.l.b16 %v884
      %v3214 = vunpack.c.h.b16 %v884
      %v3215 = vunpack.c.l.b16 %v885
      %v3216 = vunpack.c.h.b16 %v885
      %v3217 = vunpack.c.l.b16 %v886
      %v3218 = vunpack.c.h.b16 %v886
      %v3219 = vunpack.c.l.b16 %v887
      %v3220 = vunpack.c.h.b16 %v887
      %v3221 = vunpack.c.l.b16 %v888
      %v3222 = vunpack.c.h.b16 %v888
      %v3223 = vunpack.c.l.b16 %v889
      %v3224 = vunpack.c.h.b16 %v889
      %v3225 = vunpack.c.l.b16 %v890
      %v3226 = vunpack.c.h.b16 %v890
      %v3227 = vunpack.c.l.b16 %v891
      %v3228 = vunpack.c.h.b16 %v891
      %v3229 = vunpack.c.l.b16 %v892
      %v3230 = vunpack.c.h.b16 %v892
      %v3231 = vunpack.c.l.b16 %v893
      %v3232 = vunpack.c.h.b16 %v893
      %v3233 = vunpack.c.l.b16 %v894
      %v3234 = vunpack.c.h.b16 %v894
      %v3235 = vunpack.c.l.b16 %v895
      %v3236 = vunpack.c.h.b16 %v895
      %v3237 = vunpack.c.l.b16 %v896
      %v3238 = vunpack.c.h.b16 %v896
      %v3239 = vunpack.c.l.b16 %v897
      %v3240 = vunpack.c.h.b16 %v897
      %v3241 = vunpack.c.l.b16 %v898
      %v3242 = vunpack.c.h.b16 %v898
      %v3243 = vunpack.c.l.b16 %v899
      %v3244 = vunpack.c.h.b16 %v899
      %v3245 = vunpack.c.l.b16 %v900
      %v3246 = vunpack.c.h.b16 %v900
      %v3247 = vunpack.c.l.b16 %v901
      %v3248 = vunpack.c.h.b16 %v901
      %v3249 = vunpack.c.l.b16 %v902
      %v3250 = vunpack.c.h.b16 %v902
      %v3251 = vunpack.c.l.b16 %v903
      %v3252 = vunpack.c.h.b16 %v903
      %v3253 = vunpack.c.l.b16 %v904
      %v3254 = vunpack.c.h.b16 %v904
      %v3255 = vunpack.c.l.b16 %v905
      %v3256 = vunpack.c.h.b16 %v905
      %v3257 = vunpack.c.l.b16 %v906
      %v3258 = vunpack.c.h.b16 %v906
      %v3259 = vunpack.c.l.b16 %v907
      %v3260 = vunpack.c.h.b16 %v907
      %v3261 = vunpack.c.l.b16 %v908
      %v3262 = vunpack.c.h.b16 %v908
      %v3263 = vunpack.c.l.b16 %v909
      %v3264 = vunpack.c.h.b16 %v909
      %v3265 = vunpack.c.l.b16 %v910
      %v3266 = vunpack.c.h.b16 %v910
      %v3267 = vunpack.c.l.b16 %v911
      %v3268 = vunpack.c.h.b16 %v911
      %v3269 = vunpack.c.l.b16 %v912
      %v3270 = vunpack.c.h.b16 %v912
      %v3271 = vunpack.c.l.b16 %v913
      %v3272 = vunpack.c.h.b16 %v913
      %v3273 = vunpack.c.l.b16 %v914
      %v3274 = vunpack.c.h.b16 %v914
      %v3275 = vunpack.c.l.b16 %v915
      %v3276 = vunpack.c.h.b16 %v915
      %v3277 = vunpack.c.l.b16 %v916
      %v3278 = vunpack.c.h.b16 %v916
      %v3279 = vunpack.c.l.b16 %v917
      %v3280 = vunpack.c.h.b16 %v917
      %v3281 = vunpack.c.l.b16 %v918
      %v3282 = vunpack.c.h.b16 %v918
      %v3283 = vunpack.c.l.b16 %v919
      %v3284 = vunpack.c.h.b16 %v919
      %v3285 = vunpack.c.l.b16 %v920
      %v3286 = vunpack.c.h.b16 %v920
      %v3287 = vunpack.c.l.b16 %v921
      %v3288 = vunpack.c.h.b16 %v921
      %v3289 = vunpack.c.l.b16 %v922
      %v3290 = vunpack.c.h.b16 %v922
      %v3291 = vunpack.c.l.b16 %v923
      %v3292 = vunpack.c.h.b16 %v923
      %v3293 = vunpack.c.l.b16 %v924
      %v3294 = vunpack.c.h.b16 %v924
      %v3295 = vunpack.c.l.b16 %v925
      %v3296 = vunpack.c.h.b16 %v925
      %v3297 = vunpack.c.l.b16 %v926
      %v3298 = vunpack.c.h.b16 %v926
      %v3299 = vunpack.c.l.b16 %v927
      %v3300 = vunpack.c.h.b16 %v927
      %v3301 = vunpack.c.l.b16 %v928
      %v3302 = vunpack.c.h.b16 %v928
      %v3303 = vunpack.c.l.b16 %v929
      %v3304 = vunpack.c.h.b16 %v929
      %v3305 = vunpack.c.l.b16 %v930
      %v3306 = vunpack.c.h.b16 %v930
      %v3307 = vunpack.c.l.b16 %v931
      %v3308 = vunpack.c.h.b16 %v931
      %v3309 = vunpack.c.l.b16 %v932
      %v3310 = vunpack.c.h.b16 %v932
      %v3311 = vunpack.c.l.b16 %v933
      %v3312 = vunpack.c.h.b16 %v933
      %v3313 = vunpack.c.l.b16 %v934
      %v3314 = vunpack.c.h.b16 %v934
      %v3315 = vunpack.c.l.b16 %v935
      %v3316 = vunpack.c.h.b16 %v935
      %v3317 = vunpack.c.l.b16 %v936
      %v3318 = vunpack.c.h.b16 %v936
      %v3319 = vunpack.c.l.b16 %v937
      %v3320 = vunpack.c.h.b16 %v937
      %v3321 = vunpack.c.l.b16 %v938
      %v3322 = vunpack.c.h.b16 %v938
      %v3323 = vunpack.c.l.b16 %v939
      %v3324 = vunpack.c.h.b16 %v939
      %v3325 = vunpack.c.l.b16 %v940
      %v3326 = vunpack.c.h.b16 %v940
      %v3327 = vunpack.c.l.b16 %v941
      %v3328 = vunpack.c.h.b16 %v941
      %v3329 = vunpack.c.l.b16 %v942
      %v3330 = vunpack.c.h.b16 %v942
      %v3331 = vunpack.c.l.b16 %v943
      %v3332 = vunpack.c.h.b16 %v943
      %v3333 = vunpack.c.l.b16 %v944
      %v3334 = vunpack.c.h.b16 %v944
      %v3335 = vunpack.c.l.b16 %v945
      %v3336 = vunpack.c.h.b16 %v945
      %v3337 = vunpack.c.l.b16 %v946
      %v3338 = vunpack.c.h.b16 %v946
      %v3339 = vunpack.c.l.b16 %v947
      %v3340 = vunpack.c.h.b16 %v947
      %v3341 = vunpack.c.l.b16 %v948
      %v3342 = vunpack.c.h.b16 %v948
      %v3343 = vunpack.c.l.b16 %v949
      %v3344 = vunpack.c.h.b16 %v949
      %v3345 = vunpack.c.l.b16 %v950
      %v3346 = vunpack.c.h.b16 %v950
      %v3347 = vunpack.c.l.b16 %v951
      %v3348 = vunpack.c.h.b16 %v951
      %v3349 = vunpack.c.l.b16 %v952
      %v3350 = vunpack.c.h.b16 %v952
      %v3351 = vunpack.c.l.b16 %v953
      %v3352 = vunpack.c.h.b16 %v953
      %v3353 = vunpack.c.l.b16 %v954
      %v3354 = vunpack.c.h.b16 %v954
      %v3355 = vunpack.c.l.b16 %v955
      %v3356 = vunpack.c.h.b16 %v955
      %v3357 = vunpack.c.l.b16 %v956
      %v3358 = vunpack.c.h.b16 %v956
      %v3359 = vunpack.c.l.b16 %v957
      %v3360 = vunpack.c.h.b16 %v957
      %v3361 = vunpack.c.l.b16 %v958
      %v3362 = vunpack.c.h.b16 %v958
      %v3363 = vunpack.c.l.b16 %v959
      %v3364 = vunpack.c.h.b16 %v959
      %v3365 = vunpack.c.l.b16 %v960
      %v3366 = vunpack.c.h.b16 %v960
      %v3367 = vunpack.c.l.b16 %v961
      %v3368 = vunpack.c.h.b16 %v961
      %v3369 = vunpack.c.l.b16 %v962
      %v3370 = vunpack.c.h.b16 %v962
      %v3371 = vunpack.c.l.b16 %v963
      %v3372 = vunpack.c.h.b16 %v963
      %v3373 = vunpack.c.l.b16 %v964
      %v3374 = vunpack.c.h.b16 %v964
      %v3375 = vunpack.c.l.b16 %v965
      %v3376 = vunpack.c.h.b16 %v965
      %v3377 = vunpack.c.l.b16 %v966
      %v3378 = vunpack.c.h.b16 %v966
      %v3379 = vunpack.c.l.b16 %v967
      %v3380 = vunpack.c.h.b16 %v967
      %v3381 = vunpack.c.l.b16 %v968
      %v3382 = vunpack.c.h.b16 %v968
      %v3383 = vunpack.c.l.b16 %v969
      %v3384 = vunpack.c.h.b16 %v969
      %v3385 = vunpack.c.l.b16 %v970
      %v3386 = vunpack.c.h.b16 %v970
      %v3387 = vunpack.c.l.b16 %v971
      %v3388 = vunpack.c.h.b16 %v971
      %v3389 = vunpack.c.l.b16 %v972
      %v3390 = vunpack.c.h.b16 %v972
      %v3391 = vunpack.c.l.b16 %v973
      %v3392 = vunpack.c.h.b16 %v973
      %v3393 = vunpack.c.l.b16 %v974
      %v3394 = vunpack.c.h.b16 %v974
      %v3395 = vunpack.c.l.b16 %v975
      %v3396 = vunpack.c.h.b16 %v975
      %v3397 = vunpack.c.l.b16 %v976
      %v3398 = vunpack.c.h.b16 %v976
      %v3399 = vunpack.c.l.b16 %v977
      %v3400 = vunpack.c.h.b16 %v977
      %v3401 = vunpack.c.l.b16 %v978
      %v3402 = vunpack.c.h.b16 %v978
      %v3403 = vunpack.c.l.b16 %v979
      %v3404 = vunpack.c.h.b16 %v979
      %v3405 = vunpack.c.l.b16 %v980
      %v3406 = vunpack.c.h.b16 %v980
      %v3407 = vunpack.c.l.b16 %v981
      %v3408 = vunpack.c.h.b16 %v981
      %v3409 = vunpack.c.l.b16 %v982
      %v3410 = vunpack.c.h.b16 %v982
      %v3411 = vunpack.c.l.b16 %v983
      %v3412 = vunpack.c.h.b16 %v983
      %v3413 = vunpack.c.l.b16 %v984
      %v3414 = vunpack.c.h.b16 %v984
      %v3415 = vunpack.c.l.b16 %v985
      %v3416 = vunpack.c.h.b16 %v985
      %v3417 = vunpack.c.l.b16 %v986
      %v3418 = vunpack.c.h.b16 %v986
      %v3419 = vunpack.c.l.b16 %v987
      %v3420 = vunpack.c.h.b16 %v987
      %v3421 = vunpack.c.l.b16 %v988
      %v3422 = vunpack.c.h.b16 %v988
      %v3423 = vunpack.c.l.b16 %v989
      %v3424 = vunpack.c.h.b16 %v989
      %v3425 = vunpack.c.l.b16 %v990
      %v3426 = vunpack.c.h.b16 %v990
      %v3427 = vunpack.c.l.b16 %v991
      %v3428 = vunpack.c.h.b16 %v991
      %v3429 = vunpack.c.l.b16 %v992
      %v3430 = vunpack.c.h.b16 %v992
      %v3431 = vunpack.c.l.b16 %v993
      %v3432 = vunpack.c.h.b16 %v993
      %v3433 = vunpack.c.l.b16 %v994
      %v3434 = vunpack.c.h.b16 %v994
      %v3435 = vunpack.c.l.b16 %v995
      %v3436 = vunpack.c.h.b16 %v995
      %v3437 = vunpack.c.l.b16 %v996
      %v3438 = vunpack.c.h.b16 %v996
      %v3439 = vunpack.c.l.b16 %v997
      %v3440 = vunpack.c.h.b16 %v997
      %v3441 = vunpack.c.l.b16 %v998
      %v3442 = vunpack.c.h.b16 %v998
      %v3443 = vunpack.c.l.b16 %v999
      %v3444 = vunpack.c.h.b16 %v999
      %v3445 = vunpack.c.l.b16 %v1000
      %v3446 = vunpack.c.h.b16 %v1000
      %v3447 = vunpack.c.l.b16 %v1001
      %v3448 = vunpack.c.h.b16 %v1001
      %v3449 = vunpack.c.l.b16 %v1002
      %v3450 = vunpack.c.h.b16 %v1002
      %v3451 = vunpack.c.l.b16 %v1003
      %v3452 = vunpack.c.h.b16 %v1003
      %v3453 = vunpack.c.l.b16 %v1004
      %v3454 = vunpack.c.h.b16 %v1004
      %v3455 = vunpack.c.l.b16 %v1005
      %v3456 = vunpack.c.h.b16 %v1005
      %v3457 = vunpack.c.l.b16 %v1006
      %v3458 = vunpack.c.h.b16 %v1006
      %v3459 = vunpack.c.l.b16 %v1007
      %v3460 = vunpack.c.h.b16 %v1007
      %v3461 = vunpack.c.l.b16 %v1008
      %v3462 = vunpack.c.h.b16 %v1008
      %v3463 = vunpack.c.l.b16 %v1009
      %v3464 = vunpack.c.h.b16 %v1009
      %v3465 = vunpack.c.l.b16 %v1010
      %v3466 = vunpack.c.h.b16 %v1010
      %v3467 = vunpack.c.l.b16 %v1011
      %v3468 = vunpack.c.h.b16 %v1011
      %v3469 = vunpack.c.l.b16 %v1012
      %v3470 = vunpack.c.h.b16 %v1012
      %v3471 = vunpack.c.l.b16 %v1013
      %v3472 = vunpack.c.h.b16 %v1013
      %v3473 = vunpack.c.l.b16 %v1014
      %v3474 = vunpack.c.h.b16 %v1014
      %v3475 = vunpack.c.l.b16 %v1015
      %v3476 = vunpack.c.h.b16 %v1015
      %v3477 = vunpack.c.l.b16 %v1016
      %v3478 = vunpack.c.h.b16 %v1016
      %v3479 = vunpack.c.l.b16 %v1017
      %v3480 = vunpack.c.h.b16 %v1017
      %v3481 = vunpack.c.l.b16 %v1018
      %v3482 = vunpack.c.h.b16 %v1018
      %v3483 = vunpack.c.l.b16 %v1019
      %v3484 = vunpack.c.h.b16 %v1019
      %v3485 = vunpack.c.l.b16 %v1020
      %v3486 = vunpack.c.h.b16 %v1020
      %v3487 = vunpack.c.l.b16 %v1021
      %v3488 = vunpack.c.h.b16 %v1021
      %v3489 = vunpack.c.l.b16 %v1022
      %v3490 = vunpack.c.h.b16 %v1022
      %v3491 = vunpack.c.l.b16 %v1023
      %v3492 = vunpack.c.h.b16 %v1023
      %v3493 = vunpack.c.l.b16 %v1024
      %v3494 = vunpack.c.h.b16 %v1024
      %v3495 = vunpack.c.l.b16 %v1025
      %v3496 = vunpack.c.h.b16 %v1025
      %v3497 = vunpack.c.l.b16 %v1026
      %v3498 = vunpack.c.h.b16 %v1026
      %v3499 = vunpack.c.l.b16 %v1027
      %v3500 = vunpack.c.h.b16 %v1027
      %v3501 = vunpack.c.l.b16 %v1028
      %v3502 = vunpack.c.h.b16 %v1028
      %v3503 = vunpack.c.l.b16 %v1029
      %v3504 = vunpack.c.h.b16 %v1029
      %v3505 = vunpack.c.l.b16 %v1030
      %v3506 = vunpack.c.h.b16 %v1030
      %v3507 = vunpack.c.l.b16 %v1031
      %v3508 = vunpack.c.h.b16 %v1031
      %v3509 = vunpack.c.l.b16 %v1032
      %v3510 = vunpack.c.h.b16 %v1032
      %v3511 = vunpack.c.l.b16 %v1033
      %v3512 = vunpack.c.h.b16 %v1033
      %v3513 = vunpack.c.l.b16 %v1034
      %v3514 = vunpack.c.h.b16 %v1034
      %v3515 = vunpack.c.l.b16 %v1035
      %v3516 = vunpack.c.h.b16 %v1035
      %v3517 = vunpack.c.l.b16 %v1036
      %v3518 = vunpack.c.h.b16 %v1036
      %v3519 = vunpack.c.l.b16 %v1037
      %v3520 = vunpack.c.h.b16 %v1037
      %v3521 = vunpack.c.l.b16 %v1038
      %v3522 = vunpack.c.h.b16 %v1038
      %v3523 = vunpack.c.l.b16 %v1039
      %v3524 = vunpack.c.h.b16 %v1039
      %v3525 = vunpack.c.l.b16 %v1040
      %v3526 = vunpack.c.h.b16 %v1040
      %v3527 = vunpack.c.l.b16 %v1041
      %v3528 = vunpack.c.h.b16 %v1041
      %v3529 = vunpack.c.l.b16 %v1042
      %v3530 = vunpack.c.h.b16 %v1042
      %v3531 = vunpack.c.l.b16 %v1043
      %v3532 = vunpack.c.h.b16 %v1043
      %v3533 = vunpack.c.l.b16 %v1044
      %v3534 = vunpack.c.h.b16 %v1044
      %v3535 = vunpack.c.l.b16 %v1045
      %v3536 = vunpack.c.h.b16 %v1045
      %v3537 = vunpack.c.l.b16 %v1046
      %v3538 = vunpack.c.h.b16 %v1046
      %v3539 = vunpack.c.l.b16 %v1047
      %v3540 = vunpack.c.h.b16 %v1047
      %v3541 = vunpack.c.l.b16 %v1048
      %v3542 = vunpack.c.h.b16 %v1048
      %v3543 = vunpack.c.l.b16 %v1049
      %v3544 = vunpack.c.h.b16 %v1049
      %v3545 = vunpack.c.l.b16 %v1050
      %v3546 = vunpack.c.h.b16 %v1050
      %v3547 = vunpack.c.l.b16 %v1051
      %v3548 = vunpack.c.h.b16 %v1051
      %v3549 = vunpack.c.l.b16 %v1052
      %v3550 = vunpack.c.h.b16 %v1052
      %v3551 = vunpack.c.l.b16 %v1053
      %v3552 = vunpack.c.h.b16 %v1053
      %v3553 = vunpack.c.l.b16 %v1054
      %v3554 = vunpack.c.h.b16 %v1054
      %v3555 = vunpack.c.l.b16 %v1055
      %v3556 = vunpack.c.h.b16 %v1055
      %v3557 = vunpack.c.l.b16 %v1056
      %v3558 = vunpack.c.h.b16 %v1056
      %v3559 = vunpack.c.l.b16 %v1057
      %v3560 = vunpack.c.h.b16 %v1057
      %v3561 = vunpack.c.l.b16 %v1058
      %v3562 = vunpack.c.h.b16 %v1058
      %v3563 = vunpack.c.l.b16 %v1059
      %v3564 = vunpack.c.h.b16 %v1059
      %v3565 = vunpack.c.l.b16 %v1060
      %v3566 = vunpack.c.h.b16 %v1060
      %v3567 = vunpack.c.l.b16 %v1061
      %v3568 = vunpack.c.h.b16 %v1061
      %v3569 = vunpack.c.l.b16 %v1062
      %v3570 = vunpack.c.h.b16 %v1062
      %v3571 = vunpack.c.l.b16 %v1063
      %v3572 = vunpack.c.h.b16 %v1063
      %v3573 = vunpack.c.l.b16 %v1064
      %v3574 = vunpack.c.h.b16 %v1064
      %v3575 = vunpack.c.l.b16 %v1065
      %v3576 = vunpack.c.h.b16 %v1065
      %v3577 = vunpack.c.l.b16 %v1066
      %v3578 = vunpack.c.h.b16 %v1066
      %v3579 = vunpack.c.l.b16 %v1067
      %v3580 = vunpack.c.h.b16 %v1067
      %v3581 = vunpack.c.l.b16 %v1068
      %v3582 = vunpack.c.h.b16 %v1068
      %v3583 = vunpack.c.l.b16 %v1069
      %v3584 = vunpack.c.h.b16 %v1069
      %v3585 = vunpack.c.l.b16 %v1070
      %v3586 = vunpack.c.h.b16 %v1070
      %v3587 = vunpack.c.l.b16 %v1071
      %v3588 = vunpack.c.h.b16 %v1071
      %v3589 = vunpack.c.l.b16 %v1072
      %v3590 = vunpack.c.h.b16 %v1072
      %v3591 = vunpack.c.l.b16 %v1073
      %v3592 = vunpack.c.h.b16 %v1073
      %v3593 = vunpack.c.l.b16 %v1074
      %v3594 = vunpack.c.h.b16 %v1074
      %v3595 = vunpack.c.l.b16 %v1075
      %v3596 = vunpack.c.h.b16 %v1075
      %v3597 = vunpack.c.l.b16 %v1076
      %v3598 = vunpack.c.h.b16 %v1076
      %v3599 = vunpack.c.l.b16 %v1077
      %v3600 = vunpack.c.h.b16 %v1077
      %v3601 = vunpack.c.l.b16 %v1078
      %v3602 = vunpack.c.h.b16 %v1078
      %v3603 = vunpack.c.l.b16 %v1079
      %v3604 = vunpack.c.h.b16 %v1079
      %v3605 = vunpack.c.l.b16 %v1080
      %v3606 = vunpack.c.h.b16 %v1080
      %v3607 = vunpack.c.l.b16 %v1081
      %v3608 = vunpack.c.h.b16 %v1081
      %v3609 = vunpack.c.l.b16 %v1082
      %v3610 = vunpack.c.h.b16 %v1082
      %v3611 = vunpack.c.l.b16 %v1083
      %v3612 = vunpack.c.h.b16 %v1083
      %v3613 = vunpack.c.l.b16 %v1084
      %v3614 = vunpack.c.h.b16 %v1084
      %v3615 = vunpack.c.l.b16 %v1085
      %v3616 = vunpack.c.h.b16 %v1085
      %v3617 = vunpack.c.l.b16 %v1086
      %v3618 = vunpack.c.h.b16 %v1086
      %v3619 = vunpack.c.l.b16 %v1087
      %v3620 = vunpack.c.h.b16 %v1087
      %v3621 = vunpack.c.l.b16 %v1088
      %v3622 = vunpack.c.h.b16 %v1088
      %v3623 = vunpack.c.l.b16 %v1089
      %v3624 = vunpack.c.h.b16 %v1089
      %v3625 = vunpack.c.l.b16 %v1090
      %v3626 = vunpack.c.h.b16 %v1090
      %v3627 = vunpack.c.l.b16 %v1091
      %v3628 = vunpack.c.h.b16 %v1091
      %v3629 = vunpack.c.l.b16 %v1092
      %v3630 = vunpack.c.h.b16 %v1092
      %v3631 = vunpack.c.l.b16 %v1093
      %v3632 = vunpack.c.h.b16 %v1093
      %v3633 = vunpack.c.l.b16 %v1094
      %v3634 = vunpack.c.h.b16 %v1094
      %v3635 = vunpack.c.l.b16 %v1095
      %v3636 = vunpack.c.h.b16 %v1095
      %v3637 = vunpack.c.l.b16 %v1096
      %v3638 = vunpack.c.h.b16 %v1096
      %v3639 = vunpack.c.l.b16 %v1097
      %v3640 = vunpack.c.h.b16 %v1097
      %v3641 = vunpack.c.l.b16 %v1098
      %v3642 = vunpack.c.h.b16 %v1098
      %v3643 = vunpack.c.l.b16 %v1099
      %v3644 = vunpack.c.h.b16 %v1099
      %v3645 = vunpack.c.l.b16 %v1100
      %v3646 = vunpack.c.h.b16 %v1100
      %v3647 = vunpack.c.l.b16 %v1101
      %v3648 = vunpack.c.h.b16 %v1101
      %v3649 = vunpack.c.l.b16 %v1102
      %v3650 = vunpack.c.h.b16 %v1102
      %v3651 = vpack.c.b16 %v2055, %v2051
      %v3652 = vpack.c.b16 %v2056, %v2052
      %v3653 = vpack.c.b16 %v2057, %v2053
      %v3654 = vpack.c.b16 %v2058, %v2054
      %v3655 = vpack.c.b16 %v2063, %v2059
      %v3656 = vpack.c.b16 %v2064, %v2060
      %v3657 = vpack.c.b16 %v2065, %v2061
      %v3658 = vpack.c.b16 %v2066, %v2062
      %v3659 = vpack.c.b16 %v2071, %v2067
      %v3660 = vpack.c.b16 %v2072, %v2068
      %v3661 = vpack.c.b16 %v2073, %v2069
      %v3662 = vpack.c.b16 %v2074, %v2070
      %v3663 = vpack.c.b16 %v2079, %v2075
      %v3664 = vpack.c.b16 %v2080, %v2076
      %v3665 = vpack.c.b16 %v2081, %v2077
      %v3666 = vpack.c.b16 %v2082, %v2078
      %v3667 = vpack.c.b16 %v2087, %v2083
      %v3668 = vpack.c.b16 %v2088, %v2084
      %v3669 = vpack.c.b16 %v2089, %v2085
      %v3670 = vpack.c.b16 %v2090, %v2086
      %v3671 = vpack.c.b16 %v2095, %v2091
      %v3672 = vpack.c.b16 %v2096, %v2092
      %v3673 = vpack.c.b16 %v2097, %v2093
      %v3674 = vpack.c.b16 %v2098, %v2094
      %v3675 = vpack.c.b16 %v2103, %v2099
      %v3676 = vpack.c.b16 %v2104, %v2100
      %v3677 = vpack.c.b16 %v2105, %v2101
      %v3678 = vpack.c.b16 %v2106, %v2102
      %v3679 = vpack.c.b16 %v2111, %v2107
      %v3680 = vpack.c.b16 %v2112, %v2108
      %v3681 = vpack.c.b16 %v2113, %v2109
      %v3682 = vpack.c.b16 %v2114, %v2110
      %v3683 = vpack.c.b16 %v2119, %v2115
      %v3684 = vpack.c.b16 %v2120, %v2116
      %v3685 = vpack.c.b16 %v2121, %v2117
      %v3686 = vpack.c.b16 %v2122, %v2118
      %v3687 = vpack.c.b16 %v2127, %v2123
      %v3688 = vpack.c.b16 %v2128, %v2124
      %v3689 = vpack.c.b16 %v2129, %v2125
      %v3690 = vpack.c.b16 %v2130, %v2126
      %v3691 = vpack.c.b16 %v2135, %v2131
      %v3692 = vpack.c.b16 %v2136, %v2132
      %v3693 = vpack.c.b16 %v2137, %v2133
      %v3694 = vpack.c.b16 %v2138, %v2134
      %v3695 = vpack.c.b16 %v2143, %v2139
      %v3696 = vpack.c.b16 %v2144, %v2140
      %v3697 = vpack.c.b16 %v2145, %v2141
      %v3698 = vpack.c.b16 %v2146, %v2142
      %v3699 = vpack.c.b16 %v2151, %v2147
      %v3700 = vpack.c.b16 %v2152, %v2148
      %v3701 = vpack.c.b16 %v2153, %v2149
      %v3702 = vpack.c.b16 %v2154, %v2150
      %v3703 = vpack.c.b16 %v2159, %v2155
      %v3704 = vpack.c.b16 %v2160, %v2156
      %v3705 = vpack.c.b16 %v2161, %v2157
      %v3706 = vpack.c.b16 %v2162, %v2158
      %v3707 = vpack.c.b16 %v2167, %v2163
      %v3708 = vpack.c.b16 %v2168, %v2164
      %v3709 = vpack.c.b16 %v2169, %v2165
      %v3710 = vpack.c.b16 %v2170, %v2166
      %v3711 = vpack.c.b16 %v2175, %v2171
      %v3712 = vpack.c.b16 %v2176, %v2172
      %v3713 = vpack.c.b16 %v2177, %v2173
      %v3714 = vpack.c.b16 %v2178, %v2174
      %v3715 = vpack.c.b16 %v2183, %v2179
      %v3716 = vpack.c.b16 %v2184, %v2180
      %v3717 = vpack.c.b16 %v2185, %v2181
      %v3718 = vpack.c.b16 %v2186, %v2182
      %v3719 = vpack.c.b16 %v2191, %v2187
      %v3720 = vpack.c.b16 %v2192, %v2188
      %v3721 = vpack.c.b16 %v2193, %v2189
      %v3722 = vpack.c.b16 %v2194, %v2190
      %v3723 = vpack.c.b16 %v2199, %v2195
      %v3724 = vpack.c.b16 %v2200, %v2196
      %v3725 = vpack.c.b16 %v2201, %v2197
      %v3726 = vpack.c.b16 %v2202, %v2198
      %v3727 = vpack.c.b16 %v2207, %v2203
      %v3728 = vpack.c.b16 %v2208, %v2204
      %v3729 = vpack.c.b16 %v2209, %v2205
      %v3730 = vpack.c.b16 %v2210, %v2206
      %v3731 = vpack.c.b16 %v2215, %v2211
      %v3732 = vpack.c.b16 %v2216, %v2212
      %v3733 = vpack.c.b16 %v2217, %v2213
      %v3734 = vpack.c.b16 %v2218, %v2214
      %v3735 = vpack.c.b16 %v2223, %v2219
      %v3736 = vpack.c.b16 %v2224, %v2220
      %v3737 = vpack.c.b16 %v2225, %v2221
      %v3738 = vpack.c.b16 %v2226, %v2222
      %v3739 = vpack.c.b16 %v2231, %v2227
      %v3740 = vpack.c.b16 %v2232, %v2228
      %v3741 = vpack.c.b16 %v2233, %v2229
      %v3742 = vpack.c.b16 %v2234, %v2230
      %v3743 = vpack.c.b16 %v2239, %v2235
      %v3744 = vpack.c.b16 %v2240, %v2236
      %v3745 = vpack.c.b16 %v2241, %v2237
      %v3746 = vpack.c.b16 %v2242, %v2238
      %v3747 = vpack.c.b16 %v2247, %v2243
      %v3748 = vpack.c.b16 %v2248, %v2244
      %v3749 = vpack.c.b16 %v2249, %v2245
      %v3750 = vpack.c.b16 %v2250, %v2246
      %v3751 = vpack.c.b16 %v2255, %v2251
      %v3752 = vpack.c.b16 %v2256, %v2252
      %v3753 = vpack.c.b16 %v2257, %v2253
      %v3754 = vpack.c.b16 %v2258, %v2254
      %v3755 = vpack.c.b16 %v2263, %v2259
      %v3756 = vpack.c.b16 %v2264, %v2260
      %v3757 = vpack.c.b16 %v2265, %v2261
      %v3758 = vpack.c.b16 %v2266, %v2262
      %v3759 = vpack.c.b16 %v2271, %v2267
      %v3760 = vpack.c.b16 %v2272, %v2268
      %v3761 = vpack.c.b16 %v2273, %v2269
      %v3762 = vpack.c.b16 %v2274, %v2270
      %v3763 = vpack.c.b16 %v2279, %v2275
      %v3764 = vpack.c.b16 %v2280, %v2276
      %v3765 = vpack.c.b16 %v2281, %v2277
      %v3766 = vpack.c.b16 %v2282, %v2278
      %v3767 = vpack.c.b16 %v2287, %v2283
      %v3768 = vpack.c.b16 %v2288, %v2284
      %v3769 = vpack.c.b16 %v2289, %v2285
      %v3770 = vpack.c.b16 %v2290, %v2286
      %v3771 = vpack.c.b16 %v2295, %v2291
      %v3772 = vpack.c.b16 %v2296, %v2292
      %v3773 = vpack.c.b16 %v2297, %v2293
      %v3774 = vpack.c.b16 %v2298, %v2294
      %v3775 = vpack.c.b16 %v2303, %v2299
      %v3776 = vpack.c.b16 %v2304, %v2300
      %v3777 = vpack.c.b16 %v2305, %v2301
      %v3778 = vpack.c.b16 %v2306, %v2302
      %v3779 = vpack.c.b16 %v2311, %v2307
      %v3780 = vpack.c.b16 %v2312, %v2308
      %v3781 = vpack.c.b16 %v2313, %v2309
      %v3782 = vpack.c.b16 %v2314, %v2310
      %v3783 = vpack.c.b16 %v2319, %v2315
      %v3784 = vpack.c.b16 %v2320, %v2316
      %v3785 = vpack.c.b16 %v2321, %v2317
      %v3786 = vpack.c.b16 %v2322, %v2318
      %v3787 = vpack.c.b16 %v2327, %v2323
      %v3788 = vpack.c.b16 %v2328, %v2324
      %v3789 = vpack.c.b16 %v2329, %v2325
      %v3790 = vpack.c.b16 %v2330, %v2326
      %v3791 = vpack.c.b16 %v2335, %v2331
      %v3792 = vpack.c.b16 %v2336, %v2332
      %v3793 = vpack.c.b16 %v2337, %v2333
      %v3794 = vpack.c.b16 %v2338, %v2334
      %v3795 = vpack.c.b16 %v2343, %v2339
      %v3796 = vpack.c.b16 %v2344, %v2340
      %v3797 = vpack.c.b16 %v2345, %v2341
      %v3798 = vpack.c.b16 %v2346, %v2342
      %v3799 = vpack.c.b16 %v2351, %v2347
      %v3800 = vpack.c.b16 %v2352, %v2348
      %v3801 = vpack.c.b16 %v2353, %v2349
      %v3802 = vpack.c.b16 %v2354, %v2350
      %v3803 = vpack.c.b16 %v2359, %v2355
      %v3804 = vpack.c.b16 %v2360, %v2356
      %v3805 = vpack.c.b16 %v2361, %v2357
      %v3806 = vpack.c.b16 %v2362, %v2358
      %v3807 = vpack.c.b16 %v2367, %v2363
      %v3808 = vpack.c.b16 %v2368, %v2364
      %v3809 = vpack.c.b16 %v2369, %v2365
      %v3810 = vpack.c.b16 %v2370, %v2366
      %v3811 = vpack.c.b16 %v2375, %v2371
      %v3812 = vpack.c.b16 %v2376, %v2372
      %v3813 = vpack.c.b16 %v2377, %v2373
      %v3814 = vpack.c.b16 %v2378, %v2374
      %v3815 = vpack.c.b16 %v2383, %v2379
      %v3816 = vpack.c.b16 %v2384, %v2380
      %v3817 = vpack.c.b16 %v2385, %v2381
      %v3818 = vpack.c.b16 %v2386, %v2382
      %v3819 = vpack.c.b16 %v2391, %v2387
      %v3820 = vpack.c.b16 %v2392, %v2388
      %v3821 = vpack.c.b16 %v2393, %v2389
      %v3822 = vpack.c.b16 %v2394, %v2390
      %v3823 = vpack.c.b16 %v2399, %v2395
      %v3824 = vpack.c.b16 %v2400, %v2396
      %v3825 = vpack.c.b16 %v2401, %v2397
      %v3826 = vpack.c.b16 %v2402, %v2398
      %v3827 = vpack.c.b16 %v2407, %v2403
      %v3828 = vpack.c.b16 %v2408, %v2404
      %v3829 = vpack.c.b16 %v2409, %v2405
      %v3830 = vpack.c.b16 %v2410, %v2406
      %v3831 = vpack.c.b16 %v2415, %v2411
      %v3832 = vpack.c.b16 %v2416, %v2412
      %v3833 = vpack.c.b16 %v2417, %v2413
      %v3834 = vpack.c.b16 %v2418, %v2414
      %v3835 = vpack.c.b16 %v2423, %v2419
      %v3836 = vpack.c.b16 %v2424, %v2420
      %v3837 = vpack.c.b16 %v2425, %v2421
      %v3838 = vpack.c.b16 %v2426, %v2422
      %v3839 = vpack.c.b16 %v2431, %v2427
      %v3840 = vpack.c.b16 %v2432, %v2428
      %v3841 = vpack.c.b16 %v2433, %v2429
      %v3842 = vpack.c.b16 %v2434, %v2430
      %v3843 = vpack.c.b16 %v2439, %v2435
      %v3844 = vpack.c.b16 %v2440, %v2436
      %v3845 = vpack.c.b16 %v2441, %v2437
      %v3846 = vpack.c.b16 %v2442, %v2438
      %v3847 = vpack.c.b16 %v2447, %v2443
      %v3848 = vpack.c.b16 %v2448, %v2444
      %v3849 = vpack.c.b16 %v2449, %v2445
      %v3850 = vpack.c.b16 %v2450, %v2446
      %v3851 = vpack.c.b16 %v2455, %v2451
      %v3852 = vpack.c.b16 %v2456, %v2452
      %v3853 = vpack.c.b16 %v2457, %v2453
      %v3854 = vpack.c.b16 %v2458, %v2454
      %v3855 = vpack.c.b16 %v2463, %v2459
      %v3856 = vpack.c.b16 %v2464, %v2460
      %v3857 = vpack.c.b16 %v2465, %v2461
      %v3858 = vpack.c.b16 %v2466, %v2462
      %v3859 = vpack.c.b16 %v2471, %v2467
      %v3860 = vpack.c.b16 %v2472, %v2468
      %v3861 = vpack.c.b16 %v2473, %v2469
      %v3862 = vpack.c.b16 %v2474, %v2470
      %v3863 = vpack.c.b16 %v2479, %v2475
      %v3864 = vpack.c.b16 %v2480, %v2476
      %v3865 = vpack.c.b16 %v2481, %v2477
      %v3866 = vpack.c.b16 %v2482, %v2478
      %v3867 = vpack.c.b16 %v2487, %v2483
      %v3868 = vpack.c.b16 %v2488, %v2484
      %v3869 = vpack.c.b16 %v2489, %v2485
      %v3870 = vpack.c.b16 %v2490, %v2486
      %v3871 = vpack.c.b16 %v2495, %v2491
      %v3872 = vpack.c.b16 %v2496, %v2492
      %v3873 = vpack.c.b16 %v2497, %v2493
      %v3874 = vpack.c.b16 %v2498, %v2494
      %v3875 = vpack.c.b16 %v2503, %v2499
      %v3876 = vpack.c.b16 %v2504, %v2500
      %v3877 = vpack.c.b16 %v2505, %v2501
      %v3878 = vpack.c.b16 %v2506, %v2502
      %v3879 = vpack.c.b16 %v2511, %v2507
      %v3880 = vpack.c.b16 %v2512, %v2508
      %v3881 = vpack.c.b16 %v2513, %v2509
      %v3882 = vpack.c.b16 %v2514, %v2510
      %v3883 = vpack.c.b16 %v2519, %v2515
      %v3884 = vpack.c.b16 %v2520, %v2516
      %v3885 = vpack.c.b16 %v2521, %v2517
      %v3886 = vpack.c.b16 %v2522, %v2518
      %v3887 = vpack.c.b16 %v2527, %v2523
      %v3888 = vpack.c.b16 %v2528, %v2524
      %v3889 = vpack.c.b16 %v2529, %v2525
      %v3890 = vpack.c.b16 %v2530, %v2526
      %v3891 = vpack.c.b16 %v2535, %v2531
      %v3892 = vpack.c.b16 %v2536, %v2532
      %v3893 = vpack.c.b16 %v2537, %v2533
      %v3894 = vpack.c.b16 %v2538, %v2534
      %v3895 = vpack.c.b16 %v2543, %v2539
      %v3896 = vpack.c.b16 %v2544, %v2540
      %v3897 = vpack.c.b16 %v2545, %v2541
      %v3898 = vpack.c.b16 %v2546, %v2542
      %v3899 = vpack.c.b16 %v2551, %v2547
      %v3900 = vpack.c.b16 %v2552, %v2548
      %v3901 = vpack.c.b16 %v2553, %v2549
      %v3902 = vpack.c.b16 %v2554, %v2550
      %v3903 = vpack.c.b16 %v2559, %v2555
      %v3904 = vpack.c.b16 %v2560, %v2556
      %v3905 = vpack.c.b16 %v2561, %v2557
      %v3906 = vpack.c.b16 %v2562, %v2558
      %v3907 = vpack.c.b16 %v2567, %v2563
      %v3908 = vpack.c.b16 %v2568, %v2564
      %v3909 = vpack.c.b16 %v2569, %v2565
      %v3910 = vpack.c.b16 %v2570, %v2566
      %v3911 = vpack.c.b16 %v2575, %v2571
      %v3912 = vpack.c.b16 %v2576, %v2572
      %v3913 = vpack.c.b16 %v2577, %v2573
      %v3914 = vpack.c.b16 %v2578, %v2574
      %v3915 = vpack.c.b16 %v2583, %v2579
      %v3916 = vpack.c.b16 %v2584, %v2580
      %v3917 = vpack.c.b16 %v2585, %v2581
      %v3918 = vpack.c.b16 %v2586, %v2582
      %v3919 = vpack.c.b16 %v2591, %v2587
      %v3920 = vpack.c.b16 %v2592, %v2588
      %v3921 = vpack.c.b16 %v2593, %v2589
      %v3922 = vpack.c.b16 %v2594, %v2590
      %v3923 = vpack.c.b16 %v2599, %v2595
      %v3924 = vpack.c.b16 %v2600, %v2596
      %v3925 = vpack.c.b16 %v2601, %v2597
      %v3926 = vpack.c.b16 %v2602, %v2598
      %v3927 = vpack.c.b16 %v2607, %v2603
      %v3928 = vpack.c.b16 %v2608, %v2604
      %v3929 = vpack.c.b16 %v2609, %v2605
      %v3930 = vpack.c.b16 %v2610, %v2606
      %v3931 = vpack.c.b16 %v2615, %v2611
      %v3932 = vpack.c.b16 %v2616, %v2612
      %v3933 = vpack.c.b16 %v2617, %v2613
      %v3934 = vpack.c.b16 %v2618, %v2614
      %v3935 = vpack.c.b16 %v2623, %v2619
      %v3936 = vpack.c.b16 %v2624, %v2620
      %v3937 = vpack.c.b16 %v2625, %v2621
      %v3938 = vpack.c.b16 %v2626, %v2622
      %v3939 = vpack.c.b16 %v2631, %v2627
      %v3940 = vpack.c.b16 %v2632, %v2628
      %v3941 = vpack.c.b16 %v2633, %v2629
      %v3942 = vpack.c.b16 %v2634, %v2630
      %v3943 = vpack.c.b16 %v2639, %v2635
      %v3944 = vpack.c.b16 %v2640, %v2636
      %v3945 = vpack.c.b16 %v2641, %v2637
      %v3946 = vpack.c.b16 %v2642, %v2638
      %v3947 = vpack.c.b16 %v2647, %v2643
      %v3948 = vpack.c.b16 %v2648, %v2644
      %v3949 = vpack.c.b16 %v2649, %v2645
      %v3950 = vpack.c.b16 %v2650, %v2646
      %v3951 = vpack.c.b16 %v2655, %v2651
      %v3952 = vpack.c.b16 %v2656, %v2652
      %v3953 = vpack.c.b16 %v2657, %v2653
      %v3954 = vpack.c.b16 %v2658, %v2654
      %v3955 = vpack.c.b16 %v2663, %v2659
      %v3956 = vpack.c.b16 %v2664, %v2660
      %v3957 = vpack.c.b16 %v2665, %v2661
      %v3958 = vpack.c.b16 %v2666, %v2662
      %v3959 = vpack.c.b16 %v2671, %v2667
      %v3960 = vpack.c.b16 %v2672, %v2668
      %v3961 = vpack.c.b16 %v2673, %v2669
      %v3962 = vpack.c.b16 %v2674, %v2670
      %v3963 = vpack.c.b16 %v2679, %v2675
      %v3964 = vpack.c.b16 %v2680, %v2676
      %v3965 = vpack.c.b16 %v2681, %v2677
      %v3966 = vpack.c.b16 %v2682, %v2678
      %v3967 = vpack.c.b16 %v2687, %v2683
      %v3968 = vpack.c.b16 %v2688, %v2684
      %v3969 = vpack.c.b16 %v2689, %v2685
      %v3970 = vpack.c.b16 %v2690, %v2686
      %v3971 = vpack.c.b16 %v2695, %v2691
      %v3972 = vpack.c.b16 %v2696, %v2692
      %v3973 = vpack.c.b16 %v2697, %v2693
      %v3974 = vpack.c.b16 %v2698, %v2694
      %v3975 = vpack.c.b16 %v2703, %v2699
      %v3976 = vpack.c.b16 %v2704, %v2700
      %v3977 = vpack.c.b16 %v2705, %v2701
      %v3978 = vpack.c.b16 %v2706, %v2702
      %v3979 = vpack.c.b16 %v2711, %v2707
      %v3980 = vpack.c.b16 %v2712, %v2708
      %v3981 = vpack.c.b16 %v2713, %v2709
      %v3982 = vpack.c.b16 %v2714, %v2710
      %v3983 = vpack.c.b16 %v2719, %v2715
      %v3984 = vpack.c.b16 %v2720, %v2716
      %v3985 = vpack.c.b16 %v2721, %v2717
      %v3986 = vpack.c.b16 %v2722, %v2718
      %v3987 = vpack.c.b16 %v2727, %v2723
      %v3988 = vpack.c.b16 %v2728, %v2724
      %v3989 = vpack.c.b16 %v2729, %v2725
      %v3990 = vpack.c.b16 %v2730, %v2726
      %v3991 = vpack.c.b16 %v2735, %v2731
      %v3992 = vpack.c.b16 %v2736, %v2732
      %v3993 = vpack.c.b16 %v2737, %v2733
      %v3994 = vpack.c.b16 %v2738, %v2734
      %v3995 = vpack.c.b16 %v2743, %v2739
      %v3996 = vpack.c.b16 %v2744, %v2740
      %v3997 = vpack.c.b16 %v2745, %v2741
      %v3998 = vpack.c.b16 %v2746, %v2742
      %v3999 = vpack.c.b16 %v2751, %v2747
      %v4000 = vpack.c.b16 %v2752, %v2748
      %v4001 = vpack.c.b16 %v2753, %v2749
      %v4002 = vpack.c.b16 %v2754, %v2750
      %v4003 = vpack.c.b16 %v2759, %v2755
      %v4004 = vpack.c.b16 %v2760, %v2756
      %v4005 = vpack.c.b16 %v2761, %v2757
      %v4006 = vpack.c.b16 %v2762, %v2758
      %v4007 = vpack.c.b16 %v2767, %v2763
      %v4008 = vpack.c.b16 %v2768, %v2764
      %v4009 = vpack.c.b16 %v2769, %v2765
      %v4010 = vpack.c.b16 %v2770, %v2766
      %v4011 = vpack.c.b16 %v2775, %v2771
      %v4012 = vpack.c.b16 %v2776, %v2772
      %v4013 = vpack.c.b16 %v2777, %v2773
      %v4014 = vpack.c.b16 %v2778, %v2774
      %v4015 = vpack.c.b16 %v2783, %v2779
      %v4016 = vpack.c.b16 %v2784, %v2780
      %v4017 = vpack.c.b16 %v2785, %v2781
      %v4018 = vpack.c.b16 %v2786, %v2782
      %v4019 = vpack.c.b16 %v2791, %v2787
      %v4020 = vpack.c.b16 %v2792, %v2788
      %v4021 = vpack.c.b16 %v2793, %v2789
      %v4022 = vpack.c.b16 %v2794, %v2790
      %v4023 = vpack.c.b16 %v2799, %v2795
      %v4024 = vpack.c.b16 %v2800, %v2796
      %v4025 = vpack.c.b16 %v2801, %v2797
      %v4026 = vpack.c.b16 %v2802, %v2798
      %v4027 = vpack.c.b16 %v2807, %v2803
      %v4028 = vpack.c.b16 %v2808, %v2804
      %v4029 = vpack.c.b16 %v2809, %v2805
      %v4030 = vpack.c.b16 %v2810, %v2806
      %v4031 = vpack.c.b16 %v2815, %v2811
      %v4032 = vpack.c.b16 %v2816, %v2812
      %v4033 = vpack.c.b16 %v2817, %v2813
      %v4034 = vpack.c.b16 %v2818, %v2814
      %v4035 = vpack.c.b16 %v2823, %v2819
      %v4036 = vpack.c.b16 %v2824, %v2820
      %v4037 = vpack.c.b16 %v2825, %v2821
      %v4038 = vpack.c.b16 %v2826, %v2822
      %v4039 = vpack.c.b16 %v2831, %v2827
      %v4040 = vpack.c.b16 %v2832, %v2828
      %v4041 = vpack.c.b16 %v2833, %v2829
      %v4042 = vpack.c.b16 %v2834, %v2830
      %v4043 = vpack.c.b16 %v2839, %v2835
      %v4044 = vpack.c.b16 %v2840, %v2836
      %v4045 = vpack.c.b16 %v2841, %v2837
      %v4046 = vpack.c.b16 %v2842, %v2838
      %v4047 = vpack.c.b16 %v2847, %v2843
      %v4048 = vpack.c.b16 %v2848, %v2844
      %v4049 = vpack.c.b16 %v2849, %v2845
      %v4050 = vpack.c.b16 %v2850, %v2846
      %v4051 = vpack.c.b16 %v2855, %v2851
      %v4052 = vpack.c.b16 %v2856, %v2852
      %v4053 = vpack.c.b16 %v2857, %v2853
      %v4054 = vpack.c.b16 %v2858, %v2854
      %v4055 = vpack.c.b16 %v2863, %v2859
      %v4056 = vpack.c.b16 %v2864, %v2860
      %v4057 = vpack.c.b16 %v2865, %v2861
      %v4058 = vpack.c.b16 %v2866, %v2862
      %v4059 = vpack.c.b16 %v2871, %v2867
      %v4060 = vpack.c.b16 %v2872, %v2868
      %v4061 = vpack.c.b16 %v2873, %v2869
      %v4062 = vpack.c.b16 %v2874, %v2870
      %v4063 = vpack.c.b16 %v2879, %v2875
      %v4064 = vpack.c.b16 %v2880, %v2876
      %v4065 = vpack.c.b16 %v2881, %v2877
      %v4066 = vpack.c.b16 %v2882, %v2878
      %v4067 = vpack.c.b16 %v2887, %v2883
      %v4068 = vpack.c.b16 %v2888, %v2884
      %v4069 = vpack.c.b16 %v2889, %v2885
      %v4070 = vpack.c.b16 %v2890, %v2886
      %v4071 = vpack.c.b16 %v2895, %v2891
      %v4072 = vpack.c.b16 %v2896, %v2892
      %v4073 = vpack.c.b16 %v2897, %v2893
      %v4074 = vpack.c.b16 %v2898, %v2894
      %v4075 = vpack.c.b16 %v2903, %v2899
      %v4076 = vpack.c.b16 %v2904, %v2900
      %v4077 = vpack.c.b16 %v2905, %v2901
      %v4078 = vpack.c.b16 %v2906, %v2902
      %v4079 = vpack.c.b16 %v2911, %v2907
      %v4080 = vpack.c.b16 %v2912, %v2908
      %v4081 = vpack.c.b16 %v2913, %v2909
      %v4082 = vpack.c.b16 %v2914, %v2910
      %v4083 = vpack.c.b16 %v2919, %v2915
      %v4084 = vpack.c.b16 %v2920, %v2916
      %v4085 = vpack.c.b16 %v2921, %v2917
      %v4086 = vpack.c.b16 %v2922, %v2918
      %v4087 = vpack.c.b16 %v2927, %v2923
      %v4088 = vpack.c.b16 %v2928, %v2924
      %v4089 = vpack.c.b16 %v2929, %v2925
      %v4090 = vpack.c.b16 %v2930, %v2926
      %v4091 = vpack.c.b16 %v2935, %v2931
      %v4092 = vpack.c.b16 %v2936, %v2932
      %v4093 = vpack.c.b16 %v2937, %v2933
      %v4094 = vpack.c.b16 %v2938, %v2934
      %v4095 = vpack.c.b16 %v2943, %v2939
      %v4096 = vpack.c.b16 %v2944, %v2940
      %v4097 = vpack.c.b16 %v2945, %v2941
      %v4098 = vpack.c.b16 %v2946, %v2942
      %v4099 = vpack.c.b16 %v2951, %v2947
      %v4100 = vpack.c.b16 %v2952, %v2948
      %v4101 = vpack.c.b16 %v2953, %v2949
      %v4102 = vpack.c.b16 %v2954, %v2950
      %v4103 = vpack.c.b16 %v2959, %v2955
      %v4104 = vpack.c.b16 %v2960, %v2956
      %v4105 = vpack.c.b16 %v2961, %v2957
      %v4106 = vpack.c.b16 %v2962, %v2958
      %v4107 = vpack.c.b16 %v2967, %v2963
      %v4108 = vpack.c.b16 %v2968, %v2964
      %v4109 = vpack.c.b16 %v2969, %v2965
      %v4110 = vpack.c.b16 %v2970, %v2966
      %v4111 = vpack.c.b16 %v2975, %v2971
      %v4112 = vpack.c.b16 %v2976, %v2972
      %v4113 = vpack.c.b16 %v2977, %v2973
      %v4114 = vpack.c.b16 %v2978, %v2974
      %v4115 = vpack.c.b16 %v2983, %v2979
      %v4116 = vpack.c.b16 %v2984, %v2980
      %v4117 = vpack.c.b16 %v2985, %v2981
      %v4118 = vpack.c.b16 %v2986, %v2982
      %v4119 = vpack.c.b16 %v2991, %v2987
      %v4120 = vpack.c.b16 %v2992, %v2988
      %v4121 = vpack.c.b16 %v2993, %v2989
      %v4122 = vpack.c.b16 %v2994, %v2990
      %v4123 = vpack.c.b16 %v2999, %v2995
      %v4124 = vpack.c.b16 %v3000, %v2996
      %v4125 = vpack.c.b16 %v3001, %v2997
      %v4126 = vpack.c.b16 %v3002, %v2998
      %v4127 = vpack.c.b16 %v3007, %v3003
      %v4128 = vpack.c.b16 %v3008, %v3004
      %v4129 = vpack.c.b16 %v3009, %v3005
      %v4130 = vpack.c.b16 %v3010, %v3006
      %v4131 = vpack.c.b16 %v3015, %v3011
      %v4132 = vpack.c.b16 %v3016, %v3012
      %v4133 = vpack.c.b16 %v3017, %v3013
      %v4134 = vpack.c.b16 %v3018, %v3014
      %v4135 = vpack.c.b16 %v3023, %v3019
      %v4136 = vpack.c.b16 %v3024, %v3020
      %v4137 = vpack.c.b16 %v3025, %v3021
      %v4138 = vpack.c.b16 %v3026, %v3022
      %v4139 = vpack.c.b16 %v3031, %v3027
      %v4140 = vpack.c.b16 %v3032, %v3028
      %v4141 = vpack.c.b16 %v3033, %v3029
      %v4142 = vpack.c.b16 %v3034, %v3030
      %v4143 = vpack.c.b16 %v3039, %v3035
      %v4144 = vpack.c.b16 %v3040, %v3036
      %v4145 = vpack.c.b16 %v3041, %v3037
      %v4146 = vpack.c.b16 %v3042, %v3038
      %v4147 = vpack.c.b16 %v3047, %v3043
      %v4148 = vpack.c.b16 %v3048, %v3044
      %v4149 = vpack.c.b16 %v3049, %v3045
      %v4150 = vpack.c.b16 %v3050, %v3046
      %v4151 = vpack.c.b16 %v3055, %v3051
      %v4152 = vpack.c.b16 %v3056, %v3052
      %v4153 = vpack.c.b16 %v3057, %v3053
      %v4154 = vpack.c.b16 %v3058, %v3054
      %v4155 = vpack.c.b16 %v3063, %v3059
      %v4156 = vpack.c.b16 %v3064, %v3060
      %v4157 = vpack.c.b16 %v3065, %v3061
      %v4158 = vpack.c.b16 %v3066, %v3062
      %v4159 = vpack.c.b16 %v3071, %v3067
      %v4160 = vpack.c.b16 %v3072, %v3068
      %v4161 = vpack.c.b16 %v3073, %v3069
      %v4162 = vpack.c.b16 %v3074, %v3070
      %v4163 = vpack.c.b16 %v3079, %v3075
      %v4164 = vpack.c.b16 %v3080, %v3076
      %v4165 = vpack.c.b16 %v3081, %v3077
      %v4166 = vpack.c.b16 %v3082, %v3078
      %v4167 = vpack.c.b16 %v3087, %v3083
      %v4168 = vpack.c.b16 %v3088, %v3084
      %v4169 = vpack.c.b16 %v3089, %v3085
      %v4170 = vpack.c.b16 %v3090, %v3086
      %v4171 = vpack.c.b16 %v3095, %v3091
      %v4172 = vpack.c.b16 %v3096, %v3092
      %v4173 = vpack.c.b16 %v3097, %v3093
      %v4174 = vpack.c.b16 %v3098, %v3094
      %v4175 = vpack.c.b16 %v3103, %v3099
      %v4176 = vpack.c.b16 %v3104, %v3100
      %v4177 = vpack.c.b16 %v3105, %v3101
      %v4178 = vpack.c.b16 %v3106, %v3102
      %v4179 = vpack.c.b16 %v3111, %v3107
      %v4180 = vpack.c.b16 %v3112, %v3108
      %v4181 = vpack.c.b16 %v3113, %v3109
      %v4182 = vpack.c.b16 %v3114, %v3110
      %v4183 = vpack.c.b16 %v3119, %v3115
      %v4184 = vpack.c.b16 %v3120, %v3116
      %v4185 = vpack.c.b16 %v3121, %v3117
      %v4186 = vpack.c.b16 %v3122, %v3118
      %v4187 = vpack.c.b16 %v3127, %v3123
      %v4188 = vpack.c.b16 %v3128, %v3124
      %v4189 = vpack.c.b16 %v3129, %v3125
      %v4190 = vpack.c.b16 %v3130, %v3126
      %v4191 = vpack.c.b16 %v3135, %v3131
      %v4192 = vpack.c.b16 %v3136, %v3132
      %v4193 = vpack.c.b16 %v3137, %v3133
      %v4194 = vpack.c.b16 %v3138, %v3134
      %v4195 = vpack.c.b16 %v3143, %v3139
      %v4196 = vpack.c.b16 %v3144, %v3140
      %v4197 = vpack.c.b16 %v3145, %v3141
      %v4198 = vpack.c.b16 %v3146, %v3142
      %v4199 = vpack.c.b16 %v3151, %v3147
      %v4200 = vpack.c.b16 %v3152, %v3148
      %v4201 = vpack.c.b16 %v3153, %v3149
      %v4202 = vpack.c.b16 %v3154, %v3150
      %v4203 = vpack.c.b16 %v3159, %v3155
      %v4204 = vpack.c.b16 %v3160, %v3156
      %v4205 = vpack.c.b16 %v3161, %v3157
      %v4206 = vpack.c.b16 %v3162, %v3158
      %v4207 = vpack.c.b16 %v3167, %v3163
      %v4208 = vpack.c.b16 %v3168, %v3164
      %v4209 = vpack.c.b16 %v3169, %v3165
      %v4210 = vpack.c.b16 %v3170, %v3166
      %v4211 = vpack.c.b16 %v3175, %v3171
      %v4212 = vpack.c.b16 %v3176, %v3172
      %v4213 = vpack.c.b16 %v3177, %v3173
      %v4214 = vpack.c.b16 %v3178, %v3174
      %v4215 = vpack.c.b16 %v3183, %v3179
      %v4216 = vpack.c.b16 %v3184, %v3180
      %v4217 = vpack.c.b16 %v3185, %v3181
      %v4218 = vpack.c.b16 %v3186, %v3182
      %v4219 = vpack.c.b16 %v3191, %v3187
      %v4220 = vpack.c.b16 %v3192, %v3188
      %v4221 = vpack.c.b16 %v3193, %v3189
      %v4222 = vpack.c.b16 %v3194, %v3190
      %v4223 = vpack.c.b16 %v3199, %v3195
      %v4224 = vpack.c.b16 %v3200, %v3196
      %v4225 = vpack.c.b16 %v3201, %v3197
      %v4226 = vpack.c.b16 %v3202, %v3198
      %v4227 = vpack.c.b16 %v3207, %v3203
      %v4228 = vpack.c.b16 %v3208, %v3204
      %v4229 = vpack.c.b16 %v3209, %v3205
      %v4230 = vpack.c.b16 %v3210, %v3206
      %v4231 = vpack.c.b16 %v3215, %v3211
      %v4232 = vpack.c.b16 %v3216, %v3212
      %v4233 = vpack.c.b16 %v3217, %v3213
      %v4234 = vpack.c.b16 %v3218, %v3214
      %v4235 = vpack.c.b16 %v3223, %v3219
      %v4236 = vpack.c.b16 %v3224, %v3220
      %v4237 = vpack.c.b16 %v3225, %v3221
      %v4238 = vpack.c.b16 %v3226, %v3222
      %v4239 = vpack.c.b16 %v3231, %v3227
      %v4240 = vpack.c.b16 %v3232, %v3228
      %v4241 = vpack.c.b16 %v3233, %v3229
      %v4242 = vpack.c.b16 %v3234, %v3230
      %v4243 = vpack.c.b16 %v3239, %v3235
      %v4244 = vpack.c.b16 %v3240, %v3236
      %v4245 = vpack.c.b16 %v3241, %v3237
      %v4246 = vpack.c.b16 %v3242, %v3238
      %v4247 = vpack.c.b16 %v3247, %v3243
      %v4248 = vpack.c.b16 %v3248, %v3244
      %v4249 = vpack.c.b16 %v3249, %v3245
      %v4250 = vpack.c.b16 %v3250, %v3246
      %v4251 = vpack.c.b16 %v3255, %v3251
      %v4252 = vpack.c.b16 %v3256, %v3252
      %v4253 = vpack.c.b16 %v3257, %v3253
      %v4254 = vpack.c.b16 %v3258, %v3254
      %v4255 = vpack.c.b16 %v3263, %v3259
      %v4256 = vpack.c.b16 %v3264, %v3260
      %v4257 = vpack.c.b16 %v3265, %v3261
      %v4258 = vpack.c.b16 %v3266, %v3262
      %v4259 = vpack.c.b16 %v3271, %v3267
      %v4260 = vpack.c.b16 %v3272, %v3268
      %v4261 = vpack.c.b16 %v3273, %v3269
      %v4262 = vpack.c.b16 %v3274, %v3270
      %v4263 = vpack.c.b16 %v3279, %v3275
      %v4264 = vpack.c.b16 %v3280, %v3276
      %v4265 = vpack.c.b16 %v3281, %v3277
      %v4266 = vpack.c.b16 %v3282, %v3278
      %v4267 = vpack.c.b16 %v3287, %v3283
      %v4268 = vpack.c.b16 %v3288, %v3284
      %v4269 = vpack.c.b16 %v3289, %v3285
      %v4270 = vpack.c.b16 %v3290, %v3286
      %v4271 = vpack.c.b16 %v3295, %v3291
      %v4272 = vpack.c.b16 %v3296, %v3292
      %v4273 = vpack.c.b16 %v3297, %v3293
      %v4274 = vpack.c.b16 %v3298, %v3294
      %v4275 = vpack.c.b16 %v3303, %v3299
      %v4276 = vpack.c.b16 %v3304, %v3300
      %v4277 = vpack.c.b16 %v3305, %v3301
      %v4278 = vpack.c.b16 %v3306, %v3302
      %v4279 = vpack.c.b16 %v3311, %v3307
      %v4280 = vpack.c.b16 %v3312, %v3308
      %v4281 = vpack.c.b16 %v3313, %v3309
      %v4282 = vpack.c.b16 %v3314, %v3310
      %v4283 = vpack.c.b16 %v3319, %v3315
      %v4284 = vpack.c.b16 %v3320, %v3316
      %v4285 = vpack.c.b16 %v3321, %v3317
      %v4286 = vpack.c.b16 %v3322, %v3318
      %v4287 = vpack.c.b16 %v3327, %v3323
      %v4288 = vpack.c.b16 %v3328, %v3324
      %v4289 = vpack.c.b16 %v3329, %v3325
      %v4290 = vpack.c.b16 %v3330, %v3326
      %v4291 = vpack.c.b16 %v3335, %v3331
      %v4292 = vpack.c.b16 %v3336, %v3332
      %v4293 = vpack.c.b16 %v3337, %v3333
      %v4294 = vpack.c.b16 %v3338, %v3334
      %v4295 = vpack.c.b16 %v3343, %v3339
      %v4296 = vpack.c.b16 %v3344, %v3340
      %v4297 = vpack.c.b16 %v3345, %v3341
      %v4298 = vpack.c.b16 %v3346, %v3342
      %v4299 = vpack.c.b16 %v3351, %v3347
      %v4300 = vpack.c.b16 %v3352, %v3348
      %v4301 = vpack.c.b16 %v3353, %v3349
      %v4302 = vpack.c.b16 %v3354, %v3350
      %v4303 = vpack.c.b16 %v3359, %v3355
      %v4304 = vpack.c.b16 %v3360, %v3356
      %v4305 = vpack.c.b16 %v3361, %v3357
      %v4306 = vpack.c.b16 %v3362, %v3358
      %v4307 = vpack.c.b16 %v3367, %v3363
      %v4308 = vpack.c.b16 %v3368, %v3364
      %v4309 = vpack.c.b16 %v3369, %v3365
      %v4310 = vpack.c.b16 %v3370, %v3366
      %v4311 = vpack.c.b16 %v3375, %v3371
      %v4312 = vpack.c.b16 %v3376, %v3372
      %v4313 = vpack.c.b16 %v3377, %v3373
      %v4314 = vpack.c.b16 %v3378, %v3374
      %v4315 = vpack.c.b16 %v3383, %v3379
      %v4316 = vpack.c.b16 %v3384, %v3380
      %v4317 = vpack.c.b16 %v3385, %v3381
      %v4318 = vpack.c.b16 %v3386, %v3382
      %v4319 = vpack.c.b16 %v3391, %v3387
      %v4320 = vpack.c.b16 %v3392, %v3388
      %v4321 = vpack.c.b16 %v3393, %v3389
      %v4322 = vpack.c.b16 %v3394, %v3390
      %v4323 = vpack.c.b16 %v3399, %v3395
      %v4324 = vpack.c.b16 %v3400, %v3396
      %v4325 = vpack.c.b16 %v3401, %v3397
      %v4326 = vpack.c.b16 %v3402, %v3398
      %v4327 = vpack.c.b16 %v3407, %v3403
      %v4328 = vpack.c.b16 %v3408, %v3404
      %v4329 = vpack.c.b16 %v3409, %v3405
      %v4330 = vpack.c.b16 %v3410, %v3406
      %v4331 = vpack.c.b16 %v3415, %v3411
      %v4332 = vpack.c.b16 %v3416, %v3412
      %v4333 = vpack.c.b16 %v3417, %v3413
      %v4334 = vpack.c.b16 %v3418, %v3414
      %v4335 = vpack.c.b16 %v3423, %v3419
      %v4336 = vpack.c.b16 %v3424, %v3420
      %v4337 = vpack.c.b16 %v3425, %v3421
      %v4338 = vpack.c.b16 %v3426, %v3422
      %v4339 = vpack.c.b16 %v3431, %v3427
      %v4340 = vpack.c.b16 %v3432, %v3428
      %v4341 = vpack.c.b16 %v3433, %v3429
      %v4342 = vpack.c.b16 %v3434, %v3430
      %v4343 = vpack.c.b16 %v3439, %v3435
      %v4344 = vpack.c.b16 %v3440, %v3436
      %v4345 = vpack.c.b16 %v3441, %v3437
      %v4346 = vpack.c.b16 %v3442, %v3438
      %v4347 = vpack.c.b16 %v3447, %v3443
      %v4348 = vpack.c.b16 %v3448, %v3444
      %v4349 = vpack.c.b16 %v3449, %v3445
      %v4350 = vpack.c.b16 %v3450, %v3446
      %v4351 = vpack.c.b16 %v3455, %v3451
      %v4352 = vpack.c.b16 %v3456, %v3452
      %v4353 = vpack.c.b16 %v3457, %v3453
      %v4354 = vpack.c.b16 %v3458, %v3454
      %v4355 = vpack.c.b16 %v3463, %v3459
      %v4356 = vpack.c.b16 %v3464, %v3460
      %v4357 = vpack.c.b16 %v3465, %v3461
      %v4358 = vpack.c.b16 %v3466, %v3462
      %v4359 = vpack.c.b16 %v3471, %v3467
      %v4360 = vpack.c.b16 %v3472, %v3468
      %v4361 = vpack.c.b16 %v3473, %v3469
      %v4362 = vpack.c.b16 %v3474, %v3470
      %v4363 = vpack.c.b16 %v3479, %v3475
      %v4364 = vpack.c.b16 %v3480, %v3476
      %v4365 = vpack.c.b16 %v3481, %v3477
      %v4366 = vpack.c.b16 %v3482, %v3478
      %v4367 = vpack.c.b16 %v3487, %v3483
      %v4368 = vpack.c.b16 %v3488, %v3484
      %v4369 = vpack.c.b16 %v3489, %v3485
      %v4370 = vpack.c.b16 %v3490, %v3486
      %v4371 = vpack.c.b16 %v3495, %v3491
      %v4372 = vpack.c.b16 %v3496, %v3492
      %v4373 = vpack.c.b16 %v3497, %v3493
      %v4374 = vpack.c.b16 %v3498, %v3494
      %v4375 = vpack.c.b16 %v3503, %v3499
      %v4376 = vpack.c.b16 %v3504, %v3500
      %v4377 = vpack.c.b16 %v3505, %v3501
      %v4378 = vpack.c.b16 %v3506, %v3502
      %v4379 = vpack.c.b16 %v3511, %v3507
      %v4380 = vpack.c.b16 %v3512, %v3508
      %v4381 = vpack.c.b16 %v3513, %v3509
      %v4382 = vpack.c.b16 %v3514, %v3510
      %v4383 = vpack.c.b16 %v3519, %v3515
      %v4384 = vpack.c.b16 %v3520, %v3516
      %v4385 = vpack.c.b16 %v3521, %v3517
      %v4386 = vpack.c.b16 %v3522, %v3518
      %v4387 = vpack.c.b16 %v3527, %v3523
      %v4388 = vpack.c.b16 %v3528, %v3524
      %v4389 = vpack.c.b16 %v3529, %v3525
      %v4390 = vpack.c.b16 %v3530, %v3526
      %v4391 = vpack.c.b16 %v3535, %v3531
      %v4392 = vpack.c.b16 %v3536, %v3532
      %v4393 = vpack.c.b16 %v3537, %v3533
      %v4394 = vpack.c.b16 %v3538, %v3534
      %v4395 = vpack.c.b16 %v3543, %v3539
      %v4396 = vpack.c.b16 %v3544, %v3540
      %v4397 = vpack.c.b16 %v3545, %v3541
      %v4398 = vpack.c.b16 %v3546, %v3542
      %v4399 = vpack.c.b16 %v3551, %v3547
      %v4400 = vpack.c.b16 %v3552, %v3548
      %v4401 = vpack.c.b16 %v3553, %v3549
      %v4402 = vpack.c.b16 %v3554, %v3550
      %v4403 = vpack.c.b16 %v3559, %v3555
      %v4404 = vpack.c.b16 %v3560, %v3556
      %v4405 = vpack.c.b16 %v3561, %v3557
      %v4406 = vpack.c.b16 %v3562, %v3558
      %v4407 = vpack.c.b16 %v3567, %v3563
      %v4408 = vpack.c.b16 %v3568, %v3564
      %v4409 = vpack.c.b16 %v3569, %v3565
      %v4410 = vpack.c.b16 %v3570, %v3566
      %v4411 = vpack.c.b16 %v3575, %v3571
      %v4412 = vpack.c.b16 %v3576, %v3572
      %v4413 = vpack.c.b16 %v3577, %v3573
      %v4414 = vpack.c.b16 %v3578, %v3574
      %v4415 = vpack.c.b16 %v3583, %v3579
      %v4416 = vpack.c.b16 %v3584, %v3580
      %v4417 = vpack.c.b16 %v3585, %v3581
      %v4418 = vpack.c.b16 %v3586, %v3582
      %v4419 = vpack.c.b16 %v3591, %v3587
      %v4420 = vpack.c.b16 %v3592, %v3588
      %v4421 = vpack.c.b16 %v3593, %v3589
      %v4422 = vpack.c.b16 %v3594, %v3590
      %v4423 = vpack.c.b16 %v3599, %v3595
      %v4424 = vpack.c.b16 %v3600, %v3596
      %v4425 = vpack.c.b16 %v3601, %v3597
      %v4426 = vpack.c.b16 %v3602, %v3598
      %v4427 = vpack.c.b16 %v3607, %v3603
      %v4428 = vpack.c.b16 %v3608, %v3604
      %v4429 = vpack.c.b16 %v3609, %v3605
      %v4430 = vpack.c.b16 %v3610, %v3606
      %v4431 = vpack.c.b16 %v3615, %v3611
      %v4432 = vpack.c.b16 %v3616, %v3612
      %v4433 = vpack.c.b16 %v3617, %v3613
      %v4434 = vpack.c.b16 %v3618, %v3614
      %v4435 = vpack.c.b16 %v3623, %v3619
      %v4436 = vpack.c.b16 %v3624, %v3620
      %v4437 = vpack.c.b16 %v3625, %v3621
      %v4438 = vpack.c.b16 %v3626, %v3622
      %v4439 = vpack.c.b16 %v3631, %v3627
      %v4440 = vpack.c.b16 %v3632, %v3628
      %v4441 = vpack.c.b16 %v3633, %v3629
      %v4442 = vpack.c.b16 %v3634, %v3630
      %v4443 = vpack.c.b16 %v3639, %v3635
      %v4444 = vpack.c.b16 %v3640, %v3636
      %v4445 = vpack.c.b16 %v3641, %v3637
      %v4446 = vpack.c.b16 %v3642, %v3638
      %v4447 = vpack.c.b16 %v3647, %v3643
      %v4448 = vpack.c.b16 %v3648, %v3644
      %v4449 = vpack.c.b16 %v3649, %v3645
      %v4450 = vpack.c.b16 %v3650, %v3646
      %5251 = vmatprep.subr.bf16.mxu0 %v3652
      %5252 = vmatpush1.bf16.msra.mxu0 %v3651
      %5253 = vmatprep.subr.bf16.mxu0 %v3656
      %5254 = vmatpush1.bf16.msra.mxu0 %v3655
      %5255 = vmatprep.subr.bf16.mxu0 %v3660
      %5256 = vmatpush1.bf16.msra.mxu0 %v3659
      %5257 = vmatprep.subr.bf16.mxu0 %v3664
      %5258 = vmatpush1.bf16.msra.mxu0 %v3663
      %5259 = vmatprep.subr.bf16.mxu0 %v3668
      %5260 = vmatpush1.bf16.msra.mxu0 %v3667
      %5261 = vmatprep.subr.bf16.mxu0 %v3672
      %5262 = vmatpush1.bf16.msra.mxu0 %v3671
      %5263 = vmatprep.subr.bf16.mxu0 %v3676
      %5264 = vmatpush1.bf16.msra.mxu0 %v3675
      %5265 = vmatprep.subr.bf16.mxu0 %v3680
      %5266 = vmatpush1.bf16.msra.mxu0 %v3679
      %5267 = vmatprep.subr.bf16.mxu0 %v3684
      %5268 = vmatpush1.bf16.msra.mxu0 %v3683
      %5269 = vmatprep.subr.bf16.mxu0 %v3688
      %5270 = vmatpush1.bf16.msra.mxu0 %v3687
      %5271 = vmatprep.subr.bf16.mxu0 %v3692
      %5272 = vmatpush1.bf16.msra.mxu0 %v3691
      %5273 = vmatprep.subr.bf16.mxu0 %v3696
      %5274 = vmatpush1.bf16.msra.mxu0 %v3695
      %5275 = vmatprep.subr.bf16.mxu0 %v3700
      %5276 = vmatpush1.bf16.msra.mxu0 %v3699
      %5277 = vmatprep.subr.bf16.mxu0 %v3704
      %5278 = vmatpush1.bf16.msra.mxu0 %v3703
      %5279 = vmatprep.subr.bf16.mxu0 %v3708
      %5280 = vmatpush1.bf16.msra.mxu0 %v3707
      %5281 = vmatprep.subr.bf16.mxu0 %v3712
      %5282 = vmatpush1.bf16.msra.mxu0 %v3711
      %5283 = vmatprep.mubr.bf16.mxu0 %v1202
      %5284 = vmatmul.mubr.bf16.gmra.mrb[0].mxu0 %v1201
      %v5285 = vpop.f32.mrb[0].mxu0
      %v5286 = vadd.f32 %v1108, %v5285
      %v5287 = vpop.f32.mrb[0].mxu0
      %v5288 = vadd.f32 %v1112, %v5287
      %v5289 = vpop.f32.mrb[0].mxu0
      %v5290 = vadd.f32 %v1108, %v5289
      %v5291 = vpop.f32.mrb[0].mxu0
      %v5292 = vadd.f32 %v1112, %v5291
      %5293 = vdwg.mxu0
      %5294 = vmatprep.subr.bf16.mxu0 %v3716
      %5295 = vmatpush1.bf16.msra.mxu0 %v3715
      %5296 = vmatprep.subr.bf16.mxu0 %v3720
      %5297 = vmatpush1.bf16.msra.mxu0 %v3719
      %5298 = vmatprep.subr.bf16.mxu0 %v3724
      %5299 = vmatpush1.bf16.msra.mxu0 %v3723
      %5300 = vmatprep.subr.bf16.mxu0 %v3728
      %5301 = vmatpush1.bf16.msra.mxu0 %v3727
      %5302 = vmatprep.subr.bf16.mxu0 %v3732
      %5303 = vmatpush1.bf16.msra.mxu0 %v3731
      %5304 = vmatprep.subr.bf16.mxu0 %v3736
      %5305 = vmatpush1.bf16.msra.mxu0 %v3735
      %5306 = vmatprep.subr.bf16.mxu0 %v3740
      %5307 = vmatpush1.bf16.msra.mxu0 %v3739
      %5308 = vmatprep.subr.bf16.mxu0 %v3744
      %5309 = vmatpush1.bf16.msra.mxu0 %v3743
      %5310 = vmatprep.subr.bf16.mxu0 %v3748
      %5311 = vmatpush1.bf16.msra.mxu0 %v3747
      %5312 = vmatprep.subr.bf16.mxu0 %v3752
      %5313 = vmatpush1.bf16.msra.mxu0 %v3751
      %5314 = vmatprep.subr.bf16.mxu0 %v3756
      %5315 = vmatpush1.bf16.msra.mxu0 %v3755
      %5316 = vmatprep.subr.bf16.mxu0 %v3760
      %5317 = vmatpush1.bf16.msra.mxu0 %v3759
      %5318 = vmatprep.subr.bf16.mxu0 %v3764
      %5319 = vmatpush1.bf16.msra.mxu0 %v3763
      %5320 = vmatprep.subr.bf16.mxu0 %v3768
      %5321 = vmatpush1.bf16.msra.mxu0 %v3767
      %5322 = vmatprep.subr.bf16.mxu0 %v3772
      %5323 = vmatpush1.bf16.msra.mxu0 %v3771
      %5324 = vmatprep.subr.bf16.mxu0 %v3776
      %5325 = vmatpush1.bf16.msra.mxu0 %v3775
      %5326 = vmatprep.mubr.bf16.mxu0 %v1204
      %5327 = vmatmul.mubr.bf16.gmra.mrb[0].mxu0 %v1203
      %v5328 = vpop.f32.mrb[0].mxu0
      %v5329 = vadd.f32 %v5286, %v5328
      %v5330 = vpop.f32.mrb[0].mxu0
      %v5331 = vadd.f32 %v5288, %v5330
      %v5332 = vpop.f32.mrb[0].mxu0
      %v5333 = vadd.f32 %v5290, %v5332
      %v5334 = vpop.f32.mrb[0].mxu0
      %v5335 = vadd.f32 %v5292, %v5334
      %5336 = vdwg.mxu0
      %5337 = vmatprep.subr.bf16.mxu0 %v3780
      %5338 = vmatpush1.bf16.msra.mxu0 %v3779
      %5339 = vmatprep.subr.bf16.mxu0 %v3784
      %5340 = vmatpush1.bf16.msra.mxu0 %v3783
      %5341 = vmatprep.subr.bf16.mxu0 %v3788
      %5342 = vmatpush1.bf16.msra.mxu0 %v3787
      %5343 = vmatprep.subr.bf16.mxu0 %v3792
      %5344 = vmatpush1.bf16.msra.mxu0 %v3791
      %5345 = vmatprep.subr.bf16.mxu0 %v3796
      %5346 = vmatpush1.bf16.msra.mxu0 %v3795
      %5347 = vmatprep.subr.bf16.mxu0 %v3800
      %5348 = vmatpush1.bf16.msra.mxu0 %v3799
      %5349 = vmatprep.subr.bf16.mxu0 %v3804
      %5350 = vmatpush1.bf16.msra.mxu0 %v3803
      %5351 = vmatprep.subr.bf16.mxu0 %v3808
      %5352 = vmatpush1.bf16.msra.mxu0 %v3807
      %5353 = vmatprep.subr.bf16.mxu0 %v3812
      %5354 = vmatpush1.bf16.msra.mxu0 %v3811
      %5355 = vmatprep.subr.bf16.mxu0 %v3816
      %5356 = vmatpush1.bf16.msra.mxu0 %v3815
      %5357 = vmatprep.subr.bf16.mxu0 %v3820
      %5358 = vmatpush1.bf16.msra.mxu0 %v3819
      %5359 = vmatprep.subr.bf16.mxu0 %v3824
      %5360 = vmatpush1.bf16.msra.mxu0 %v3823
      %5361 = vmatprep.subr.bf16.mxu0 %v3828
      %5362 = vmatpush1.bf16.msra.mxu0 %v3827
      %5363 = vmatprep.subr.bf16.mxu0 %v3832
      %5364 = vmatpush1.bf16.msra.mxu0 %v3831
      %5365 = vmatprep.subr.bf16.mxu0 %v3836
      %5366 = vmatpush1.bf16.msra.mxu0 %v3835
      %5367 = vmatprep.subr.bf16.mxu0 %v3840
      %5368 = vmatpush1.bf16.msra.mxu0 %v3839
      %5369 = vmatprep.mubr.bf16.mxu0 %v1206
      %5370 = vmatmul.mubr.bf16.gmra.mrb[0].mxu0 %v1205
      %v5371 = vpop.f32.mrb[0].mxu0
      %v5372 = vadd.f32 %v5329, %v5371
      %v5373 = vpop.f32.mrb[0].mxu0
      %v5374 = vadd.f32 %v5331, %v5373
      %v5375 = vpop.f32.mrb[0].mxu0
      %v5376 = vadd.f32 %v5333, %v5375
      %v5377 = vpop.f32.mrb[0].mxu0
      %v5378 = vadd.f32 %v5335, %v5377
      %5379 = vdwg.mxu0
      %5380 = vmatprep.subr.bf16.mxu0 %v3844
      %5381 = vmatpush1.bf16.msra.mxu0 %v3843
      %5382 = vmatprep.subr.bf16.mxu0 %v3848
      %5383 = vmatpush1.bf16.msra.mxu0 %v3847
      %5384 = vmatprep.subr.bf16.mxu0 %v3852
      %5385 = vmatpush1.bf16.msra.mxu0 %v3851
      %5386 = vmatprep.subr.bf16.mxu0 %v3856
      %5387 = vmatpush1.bf16.msra.mxu0 %v3855
      %5388 = vmatprep.subr.bf16.mxu0 %v3860
      %5389 = vmatpush1.bf16.msra.mxu0 %v3859
      %5390 = vmatprep.subr.bf16.mxu0 %v3864
      %5391 = vmatpush1.bf16.msra.mxu0 %v3863
      %5392 = vmatprep.subr.bf16.mxu0 %v3868
      %5393 = vmatpush1.bf16.msra.mxu0 %v3867
      %5394 = vmatprep.subr.bf16.mxu0 %v3872
      %5395 = vmatpush1.bf16.msra.mxu0 %v3871
      %5396 = vmatprep.subr.bf16.mxu0 %v3876
      %5397 = vmatpush1.bf16.msra.mxu0 %v3875
      %5398 = vmatprep.subr.bf16.mxu0 %v3880
      %5399 = vmatpush1.bf16.msra.mxu0 %v3879
      %5400 = vmatprep.subr.bf16.mxu0 %v3884
      %5401 = vmatpush1.bf16.msra.mxu0 %v3883
      %5402 = vmatprep.subr.bf16.mxu0 %v3888
      %5403 = vmatpush1.bf16.msra.mxu0 %v3887
      %5404 = vmatprep.subr.bf16.mxu0 %v3892
      %5405 = vmatpush1.bf16.msra.mxu0 %v3891
      %5406 = vmatprep.subr.bf16.mxu0 %v3896
      %5407 = vmatpush1.bf16.msra.mxu0 %v3895
      %5408 = vmatprep.subr.bf16.mxu0 %v3900
      %5409 = vmatpush1.bf16.msra.mxu0 %v3899
      %5410 = vmatprep.subr.bf16.mxu0 %v3904
      %5411 = vmatpush1.bf16.msra.mxu0 %v3903
      %5412 = vmatprep.mubr.bf16.mxu0 %v1208
      %5413 = vmatmul.mubr.bf16.gmra.mrb[0].mxu0 %v1207
      %v5414 = vpop.f32.mrb[0].mxu0
      %v5415 = vadd.f32 %v5372, %v5414
      %v5416 = vpop.f32.mrb[0].mxu0
      %v5417 = vadd.f32 %v5374, %v5416
      %v5418 = vpop.f32.mrb[0].mxu0
      %v5419 = vadd.f32 %v5376, %v5418
      %v5420 = vpop.f32.mrb[0].mxu0
      %v5421 = vadd.f32 %v5378, %v5420
      %5422 = vdwg.mxu0
      %5423 = vmatprep.subr.bf16.mxu0 %v3908
      %5424 = vmatpush1.bf16.msra.mxu0 %v3907
      %5425 = vmatprep.subr.bf16.mxu0 %v3912
      %5426 = vmatpush1.bf16.msra.mxu0 %v3911
      %5427 = vmatprep.subr.bf16.mxu0 %v3916
      %5428 = vmatpush1.bf16.msra.mxu0 %v3915
      %5429 = vmatprep.subr.bf16.mxu0 %v3920
      %5430 = vmatpush1.bf16.msra.mxu0 %v3919
      %5431 = vmatprep.subr.bf16.mxu0 %v3924
      %5432 = vmatpush1.bf16.msra.mxu0 %v3923
      %5433 = vmatprep.subr.bf16.mxu0 %v3928
      %5434 = vmatpush1.bf16.msra.mxu0 %v3927
      %5435 = vmatprep.subr.bf16.mxu0 %v3932
      %5436 = vmatpush1.bf16.msra.mxu0 %v3931
      %5437 = vmatprep.subr.bf16.mxu0 %v3936
      %5438 = vmatpush1.bf16.msra.mxu0 %v3935
      %5439 = vmatprep.subr.bf16.mxu0 %v3940
      %5440 = vmatpush1.bf16.msra.mxu0 %v3939
      %5441 = vmatprep.subr.bf16.mxu0 %v3944
      %5442 = vmatpush1.bf16.msra.mxu0 %v3943
      %5443 = vmatprep.subr.bf16.mxu0 %v3948
      %5444 = vmatpush1.bf16.msra.mxu0 %v3947
      %5445 = vmatprep.subr.bf16.mxu0 %v3952
      %5446 = vmatpush1.bf16.msra.mxu0 %v3951
      %5447 = vmatprep.subr.bf16.mxu0 %v3956
      %5448 = vmatpush1.bf16.msra.mxu0 %v3955
      %5449 = vmatprep.subr.bf16.mxu0 %v3960
      %5450 = vmatpush1.bf16.msra.mxu0 %v3959
      %5451 = vmatprep.subr.bf16.mxu0 %v3964
      %5452 = vmatpush1.bf16.msra.mxu0 %v3963
      %5453 = vmatprep.subr.bf16.mxu0 %v3968
      %5454 = vmatpush1.bf16.msra.mxu0 %v3967
      %5455 = vmatprep.mubr.bf16.mxu0 %v1210
      %5456 = vmatmul.mubr.bf16.gmra.mrb[0].mxu0 %v1209
      %v5457 = vpop.f32.mrb[0].mxu0
      %v5458 = vadd.f32 %v5415, %v5457
      %v5459 = vpop.f32.mrb[0].mxu0
      %v5460 = vadd.f32 %v5417, %v5459
      %v5461 = vpop.f32.mrb[0].mxu0
      %v5462 = vadd.f32 %v5419, %v5461
      %v5463 = vpop.f32.mrb[0].mxu0
      %v5464 = vadd.f32 %v5421, %v5463
      %5465 = vdwg.mxu0
      %5466 = vmatprep.subr.bf16.mxu0 %v3972
      %5467 = vmatpush1.bf16.msra.mxu0 %v3971
      %5468 = vmatprep.subr.bf16.mxu0 %v3976
      %5469 = vmatpush1.bf16.msra.mxu0 %v3975
      %5470 = vmatprep.subr.bf16.mxu0 %v3980
      %5471 = vmatpush1.bf16.msra.mxu0 %v3979
      %5472 = vmatprep.subr.bf16.mxu0 %v3984
      %5473 = vmatpush1.bf16.msra.mxu0 %v3983
      %5474 = vmatprep.subr.bf16.mxu0 %v3988
      %5475 = vmatpush1.bf16.msra.mxu0 %v3987
      %5476 = vmatprep.subr.bf16.mxu0 %v3992
      %5477 = vmatpush1.bf16.msra.mxu0 %v3991
      %5478 = vmatprep.subr.bf16.mxu0 %v3996
      %5479 = vmatpush1.bf16.msra.mxu0 %v3995
      %5480 = vmatprep.subr.bf16.mxu0 %v4000
      %5481 = vmatpush1.bf16.msra.mxu0 %v3999
      %5482 = vmatprep.subr.bf16.mxu0 %v4004
      %5483 = vmatpush1.bf16.msra.mxu0 %v4003
      %5484 = vmatprep.subr.bf16.mxu0 %v4008
      %5485 = vmatpush1.bf16.msra.mxu0 %v4007
      %5486 = vmatprep.subr.bf16.mxu0 %v4012
      %5487 = vmatpush1.bf16.msra.mxu0 %v4011
      %5488 = vmatprep.subr.bf16.mxu0 %v4016
      %5489 = vmatpush1.bf16.msra.mxu0 %v4015
      %5490 = vmatprep.subr.bf16.mxu0 %v4020
      %5491 = vmatpush1.bf16.msra.mxu0 %v4019
      %5492 = vmatprep.subr.bf16.mxu0 %v4024
      %5493 = vmatpush1.bf16.msra.mxu0 %v4023
      %5494 = vmatprep.subr.bf16.mxu0 %v4028
      %5495 = vmatpush1.bf16.msra.mxu0 %v4027
      %5496 = vmatprep.subr.bf16.mxu0 %v4032
      %5497 = vmatpush1.bf16.msra.mxu0 %v4031
      %5498 = vmatprep.mubr.bf16.mxu0 %v1212
      %5499 = vmatmul.mubr.bf16.gmra.mrb[0].mxu0 %v1211
      %v5500 = vpop.f32.mrb[0].mxu0
      %v5501 = vadd.f32 %v5458, %v5500
      %v5502 = vpop.f32.mrb[0].mxu0
      %v5503 = vadd.f32 %v5460, %v5502
      %v5504 = vpop.f32.mrb[0].mxu0
      %v5505 = vadd.f32 %v5462, %v5504
      %v5506 = vpop.f32.mrb[0].mxu0
      %v5507 = vadd.f32 %v5464, %v5506
      %5508 = vdwg.mxu0
      %5509 = vmatprep.subr.bf16.mxu0 %v4036
      %5510 = vmatpush1.bf16.msra.mxu0 %v4035
      %5511 = vmatprep.subr.bf16.mxu0 %v4040
      %5512 = vmatpush1.bf16.msra.mxu0 %v4039
      %5513 = vmatprep.subr.bf16.mxu0 %v4044
      %5514 = vmatpush1.bf16.msra.mxu0 %v4043
      %5515 = vmatprep.subr.bf16.mxu0 %v4048
      %5516 = vmatpush1.bf16.msra.mxu0 %v4047
      %5517 = vmatprep.subr.bf16.mxu0 %v4052
      %5518 = vmatpush1.bf16.msra.mxu0 %v4051
      %5519 = vmatprep.subr.bf16.mxu0 %v4056
      %5520 = vmatpush1.bf16.msra.mxu0 %v4055
      %5521 = vmatprep.subr.bf16.mxu0 %v4060
      %5522 = vmatpush1.bf16.msra.mxu0 %v4059
      %5523 = vmatprep.subr.bf16.mxu0 %v4064
      %5524 = vmatpush1.bf16.msra.mxu0 %v4063
      %5525 = vmatprep.subr.bf16.mxu0 %v4068
      %5526 = vmatpush1.bf16.msra.mxu0 %v4067
      %5527 = vmatprep.subr.bf16.mxu0 %v4072
      %5528 = vmatpush1.bf16.msra.mxu0 %v4071
      %5529 = vmatprep.subr.bf16.mxu0 %v4076
      %5530 = vmatpush1.bf16.msra.mxu0 %v4075
      %5531 = vmatprep.subr.bf16.mxu0 %v4080
      %5532 = vmatpush1.bf16.msra.mxu0 %v4079
      %5533 = vmatprep.subr.bf16.mxu0 %v4084
      %5534 = vmatpush1.bf16.msra.mxu0 %v4083
      %5535 = vmatprep.subr.bf16.mxu0 %v4088
      %5536 = vmatpush1.bf16.msra.mxu0 %v4087
      %5537 = vmatprep.subr.bf16.mxu0 %v4092
      %5538 = vmatpush1.bf16.msra.mxu0 %v4091
      %5539 = vmatprep.subr.bf16.mxu0 %v4096
      %5540 = vmatpush1.bf16.msra.mxu0 %v4095
      %5541 = vmatprep.mubr.bf16.mxu0 %v1214
      %5542 = vmatmul.mubr.bf16.gmra.mrb[0].mxu0 %v1213
      %v5543 = vpop.f32.mrb[0].mxu0
      %v5544 = vadd.f32 %v5501, %v5543
      %v5545 = vpop.f32.mrb[0].mxu0
      %v5546 = vadd.f32 %v5503, %v5545
      %v5547 = vpop.f32.mrb[0].mxu0
      %v5548 = vadd.f32 %v5505, %v5547
      %v5549 = vpop.f32.mrb[0].mxu0
      %v5550 = vadd.f32 %v5507, %v5549
      %5551 = vdwg.mxu0
      %5552 = vmatprep.subr.bf16.mxu0 %v4100
      %5553 = vmatpush1.bf16.msra.mxu0 %v4099
      %5554 = vmatprep.subr.bf16.mxu0 %v4104
      %5555 = vmatpush1.bf16.msra.mxu0 %v4103
      %5556 = vmatprep.subr.bf16.mxu0 %v4108
      %5557 = vmatpush1.bf16.msra.mxu0 %v4107
      %5558 = vmatprep.subr.bf16.mxu0 %v4112
      %5559 = vmatpush1.bf16.msra.mxu0 %v4111
      %5560 = vmatprep.subr.bf16.mxu0 %v4116
      %5561 = vmatpush1.bf16.msra.mxu0 %v4115
      %5562 = vmatprep.subr.bf16.mxu0 %v4120
      %5563 = vmatpush1.bf16.msra.mxu0 %v4119
      %5564 = vmatprep.subr.bf16.mxu0 %v4124
      %5565 = vmatpush1.bf16.msra.mxu0 %v4123
      %5566 = vmatprep.subr.bf16.mxu0 %v4128
      %5567 = vmatpush1.bf16.msra.mxu0 %v4127
      %5568 = vmatprep.subr.bf16.mxu0 %v4132
      %5569 = vmatpush1.bf16.msra.mxu0 %v4131
      %5570 = vmatprep.subr.bf16.mxu0 %v4136
      %5571 = vmatpush1.bf16.msra.mxu0 %v4135
      %5572 = vmatprep.subr.bf16.mxu0 %v4140
      %5573 = vmatpush1.bf16.msra.mxu0 %v4139
      %5574 = vmatprep.subr.bf16.mxu0 %v4144
      %5575 = vmatpush1.bf16.msra.mxu0 %v4143
      %5576 = vmatprep.subr.bf16.mxu0 %v4148
      %5577 = vmatpush1.bf16.msra.mxu0 %v4147
      %5578 = vmatprep.subr.bf16.mxu0 %v4152
      %5579 = vmatpush1.bf16.msra.mxu0 %v4151
      %5580 = vmatprep.subr.bf16.mxu0 %v4156
      %5581 = vmatpush1.bf16.msra.mxu0 %v4155
      %5582 = vmatprep.subr.bf16.mxu0 %v4160
      %5583 = vmatpush1.bf16.msra.mxu0 %v4159
      %5584 = vmatprep.mubr.bf16.mxu0 %v1216
      %5585 = vmatmul.mubr.bf16.gmra.mrb[0].mxu0 %v1215
      %v5586 = vpop.f32.mrb[0].mxu0
      %v5587 = vadd.f32 %v5544, %v5586
      %v5588 = vpop.f32.mrb[0].mxu0
      %v5589 = vadd.f32 %v5546, %v5588
      %v5590 = vpop.f32.mrb[0].mxu0
      %v5591 = vadd.f32 %v5548, %v5590
      %v5592 = vpop.f32.mrb[0].mxu0
      %v5593 = vadd.f32 %v5550, %v5592
      %5594 = vdwg.mxu0
      %5595 = vmatprep.subr.bf16.mxu0 %v4164
      %5596 = vmatpush1.bf16.msra.mxu0 %v4163
      %5597 = vmatprep.subr.bf16.mxu0 %v4168
      %5598 = vmatpush1.bf16.msra.mxu0 %v4167
      %5599 = vmatprep.subr.bf16.mxu0 %v4172
      %5600 = vmatpush1.bf16.msra.mxu0 %v4171
      %5601 = vmatprep.subr.bf16.mxu0 %v4176
      %5602 = vmatpush1.bf16.msra.mxu0 %v4175
      %5603 = vmatprep.subr.bf16.mxu0 %v4180
      %5604 = vmatpush1.bf16.msra.mxu0 %v4179
      %5605 = vmatprep.subr.bf16.mxu0 %v4184
      %5606 = vmatpush1.bf16.msra.mxu0 %v4183
      %5607 = vmatprep.subr.bf16.mxu0 %v4188
      %5608 = vmatpush1.bf16.msra.mxu0 %v4187
      %5609 = vmatprep.subr.bf16.mxu0 %v4192
      %5610 = vmatpush1.bf16.msra.mxu0 %v4191
      %5611 = vmatprep.subr.bf16.mxu0 %v4196
      %5612 = vmatpush1.bf16.msra.mxu0 %v4195
      %5613 = vmatprep.subr.bf16.mxu0 %v4200
      %5614 = vmatpush1.bf16.msra.mxu0 %v4199
      %5615 = vmatprep.subr.bf16.mxu0 %v4204
      %5616 = vmatpush1.bf16.msra.mxu0 %v4203
      %5617 = vmatprep.subr.bf16.mxu0 %v4208
      %5618 = vmatpush1.bf16.msra.mxu0 %v4207
      %5619 = vmatprep.subr.bf16.mxu0 %v4212
      %5620 = vmatpush1.bf16.msra.mxu0 %v4211
      %5621 = vmatprep.subr.bf16.mxu0 %v4216
      %5622 = vmatpush1.bf16.msra.mxu0 %v4215
      %5623 = vmatprep.subr.bf16.mxu0 %v4220
      %5624 = vmatpush1.bf16.msra.mxu0 %v4219
      %5625 = vmatprep.subr.bf16.mxu0 %v4224
      %5626 = vmatpush1.bf16.msra.mxu0 %v4223
      %5627 = vmatprep.mubr.bf16.mxu0 %v1218
      %5628 = vmatmul.mubr.bf16.gmra.mrb[0].mxu0 %v1217
      %v5629 = vpop.f32.mrb[0].mxu0
      %v5630 = vadd.f32 %v5587, %v5629
      %v5631 = vpop.f32.mrb[0].mxu0
      %v5632 = vadd.f32 %v5589, %v5631
      %v5633 = vpop.f32.mrb[0].mxu0
      %v5634 = vadd.f32 %v5591, %v5633
      %v5635 = vpop.f32.mrb[0].mxu0
      %v5636 = vadd.f32 %v5593, %v5635
      %5637 = vdwg.mxu0
      %5638 = vmatprep.subr.bf16.mxu0 %v4228
      %5639 = vmatpush1.bf16.msra.mxu0 %v4227
      %5640 = vmatprep.subr.bf16.mxu0 %v4232
      %5641 = vmatpush1.bf16.msra.mxu0 %v4231
      %5642 = vmatprep.subr.bf16.mxu0 %v4236
      %5643 = vmatpush1.bf16.msra.mxu0 %v4235
      %5644 = vmatprep.subr.bf16.mxu0 %v4240
      %5645 = vmatpush1.bf16.msra.mxu0 %v4239
      %5646 = vmatprep.subr.bf16.mxu0 %v4244
      %5647 = vmatpush1.bf16.msra.mxu0 %v4243
      %5648 = vmatprep.subr.bf16.mxu0 %v4248
      %5649 = vmatpush1.bf16.msra.mxu0 %v4247
      %5650 = vmatprep.subr.bf16.mxu0 %v4252
      %5651 = vmatpush1.bf16.msra.mxu0 %v4251
      %5652 = vmatprep.subr.bf16.mxu0 %v4256
      %5653 = vmatpush1.bf16.msra.mxu0 %v4255
      %5654 = vmatprep.subr.bf16.mxu0 %v4260
      %5655 = vmatpush1.bf16.msra.mxu0 %v4259
      %5656 = vmatprep.subr.bf16.mxu0 %v4264
      %5657 = vmatpush1.bf16.msra.mxu0 %v4263
      %5658 = vmatprep.subr.bf16.mxu0 %v4268
      %5659 = vmatpush1.bf16.msra.mxu0 %v4267
      %5660 = vmatprep.subr.bf16.mxu0 %v4272
      %5661 = vmatpush1.bf16.msra.mxu0 %v4271
      %5662 = vmatprep.subr.bf16.mxu0 %v4276
      %5663 = vmatpush1.bf16.msra.mxu0 %v4275
      %5664 = vmatprep.subr.bf16.mxu0 %v4280
      %5665 = vmatpush1.bf16.msra.mxu0 %v4279
      %5666 = vmatprep.subr.bf16.mxu0 %v4284
      %5667 = vmatpush1.bf16.msra.mxu0 %v4283
      %5668 = vmatprep.subr.bf16.mxu0 %v4288
      %5669 = vmatpush1.bf16.msra.mxu0 %v4287
      %5670 = vmatprep.mubr.bf16.mxu0 %v1220
      %5671 = vmatmul.mubr.bf16.gmra.mrb[0].mxu0 %v1219
      %v5672 = vpop.f32.mrb[0].mxu0
      %v5673 = vadd.f32 %v5630, %v5672
      %v5674 = vpop.f32.mrb[0].mxu0
      %v5675 = vadd.f32 %v5632, %v5674
      %v5676 = vpop.f32.mrb[0].mxu0
      %v5677 = vadd.f32 %v5634, %v5676
      %v5678 = vpop.f32.mrb[0].mxu0
      %v5679 = vadd.f32 %v5636, %v5678
      %5680 = vdwg.mxu0
      %5681 = vmatprep.subr.bf16.mxu0 %v4292
      %5682 = vmatpush1.bf16.msra.mxu0 %v4291
      %5683 = vmatprep.subr.bf16.mxu0 %v4296
      %5684 = vmatpush1.bf16.msra.mxu0 %v4295
      %5685 = vmatprep.subr.bf16.mxu0 %v4300
      %5686 = vmatpush1.bf16.msra.mxu0 %v4299
      %5687 = vmatprep.subr.bf16.mxu0 %v4304
      %5688 = vmatpush1.bf16.msra.mxu0 %v4303
      %5689 = vmatprep.subr.bf16.mxu0 %v4308
      %5690 = vmatpush1.bf16.msra.mxu0 %v4307
      %5691 = vmatprep.subr.bf16.mxu0 %v4312
      %5692 = vmatpush1.bf16.msra.mxu0 %v4311
      %5693 = vmatprep.subr.bf16.mxu0 %v4316
      %5694 = vmatpush1.bf16.msra.mxu0 %v4315
      %5695 = vmatprep.subr.bf16.mxu0 %v4320
      %5696 = vmatpush1.bf16.msra.mxu0 %v4319
      %5697 = vmatprep.subr.bf16.mxu0 %v4324
      %5698 = vmatpush1.bf16.msra.mxu0 %v4323
      %5699 = vmatprep.subr.bf16.mxu0 %v4328
      %5700 = vmatpush1.bf16.msra.mxu0 %v4327
      %5701 = vmatprep.subr.bf16.mxu0 %v4332
      %5702 = vmatpush1.bf16.msra.mxu0 %v4331
      %5703 = vmatprep.subr.bf16.mxu0 %v4336
      %5704 = vmatpush1.bf16.msra.mxu0 %v4335
      %5705 = vmatprep.subr.bf16.mxu0 %v4340
      %5706 = vmatpush1.bf16.msra.mxu0 %v4339
      %5707 = vmatprep.subr.bf16.mxu0 %v4344
      %5708 = vmatpush1.bf16.msra.mxu0 %v4343
      %5709 = vmatprep.subr.bf16.mxu0 %v4348
      %5710 = vmatpush1.bf16.msra.mxu0 %v4347
      %5711 = vmatprep.subr.bf16.mxu0 %v4352
      %5712 = vmatpush1.bf16.msra.mxu0 %v4351
      %5713 = vmatprep.mubr.bf16.mxu0 %v1222
      %5714 = vmatmul.mubr.bf16.gmra.mrb[0].mxu0 %v1221
      %v5715 = vpop.f32.mrb[0].mxu0
      %v5716 = vadd.f32 %v5673, %v5715
      %v5717 = vpop.f32.mrb[0].mxu0
      %v5718 = vadd.f32 %v5675, %v5717
      %v5719 = vpop.f32.mrb[0].mxu0
      %v5720 = vadd.f32 %v5677, %v5719
      %v5721 = vpop.f32.mrb[0].mxu0
      %v5722 = vadd.f32 %v5679, %v5721
      %5723 = vdwg.mxu0
      %5724 = vmatprep.subr.bf16.mxu0 %v4356
      %5725 = vmatpush1.bf16.msra.mxu0 %v4355
      %5726 = vmatprep.subr.bf16.mxu0 %v4360
      %5727 = vmatpush1.bf16.msra.mxu0 %v4359
      %5728 = vmatprep.subr.bf16.mxu0 %v4364
      %5729 = vmatpush1.bf16.msra.mxu0 %v4363
      %5730 = vmatprep.subr.bf16.mxu0 %v4368
      %5731 = vmatpush1.bf16.msra.mxu0 %v4367
      %5732 = vmatprep.subr.bf16.mxu0 %v4372
      %5733 = vmatpush1.bf16.msra.mxu0 %v4371
      %5734 = vmatprep.subr.bf16.mxu0 %v4376
      %5735 = vmatpush1.bf16.msra.mxu0 %v4375
      %5736 = vmatprep.subr.bf16.mxu0 %v4380
      %5737 = vmatpush1.bf16.msra.mxu0 %v4379
      %5738 = vmatprep.subr.bf16.mxu0 %v4384
      %5739 = vmatpush1.bf16.msra.mxu0 %v4383
      %5740 = vmatprep.subr.bf16.mxu0 %v4388
      %5741 = vmatpush1.bf16.msra.mxu0 %v4387
      %5742 = vmatprep.subr.bf16.mxu0 %v4392
      %5743 = vmatpush1.bf16.msra.mxu0 %v4391
      %5744 = vmatprep.subr.bf16.mxu0 %v4396
      %5745 = vmatpush1.bf16.msra.mxu0 %v4395
      %5746 = vmatprep.subr.bf16.mxu0 %v4400
      %5747 = vmatpush1.bf16.msra.mxu0 %v4399
      %5748 = vmatprep.subr.bf16.mxu0 %v4404
      %5749 = vmatpush1.bf16.msra.mxu0 %v4403
      %5750 = vmatprep.subr.bf16.mxu0 %v4408
      %5751 = vmatpush1.bf16.msra.mxu0 %v4407
      %5752 = vmatprep.subr.bf16.mxu0 %v4412
      %5753 = vmatpush1.bf16.msra.mxu0 %v4411
      %5754 = vmatprep.subr.bf16.mxu0 %v4416
      %5755 = vmatpush1.bf16.msra.mxu0 %v4415
      %5756 = vmatprep.mubr.bf16.mxu0 %v1224
      %5757 = vmatmul.mubr.bf16.gmra.mrb[0].mxu0 %v1223
      %v5758 = vpop.f32.mrb[0].mxu0
      %v5759 = vadd.f32 %v5716, %v5758
      %v5760 = vpop.f32.mrb[0].mxu0
      %v5761 = vadd.f32 %v5718, %v5760
      %v5762 = vpop.f32.mrb[0].mxu0
      %v5763 = vadd.f32 %v5720, %v5762
      %v5764 = vpop.f32.mrb[0].mxu0
      %v5765 = vadd.f32 %v5722, %v5764
      %5766 = vdwg.mxu0
      %5767 = vmatprep.subr.bf16.mxu0 %v4420
      %5768 = vmatpush1.bf16.msra.mxu0 %v4419
      %5769 = vmatprep.subr.bf16.mxu0 %v4424
      %5770 = vmatpush1.bf16.msra.mxu0 %v4423
      %5771 = vmatprep.subr.bf16.mxu0 %v4428
      %5772 = vmatpush1.bf16.msra.mxu0 %v4427
      %5773 = vmatprep.subr.bf16.mxu0 %v4432
      %5774 = vmatpush1.bf16.msra.mxu0 %v4431
      %5775 = vmatprep.subr.bf16.mxu0 %v4436
      %5776 = vmatpush1.bf16.msra.mxu0 %v4435
      %5777 = vmatprep.subr.bf16.mxu0 %v4440
      %5778 = vmatpush1.bf16.msra.mxu0 %v4439
      %5779 = vmatprep.subr.bf16.mxu0 %v4444
      %5780 = vmatpush1.bf16.msra.mxu0 %v4443
      %5781 = vmatprep.subr.bf16.mxu0 %v4448
      %5782 = vmatpush1.bf16.msra.mxu0 %v4447
      %5783 = vmatprep.subr.bf16.mxu0 0
      %5784 = vmatpush1.bf16.msra.mxu0 0
      %5785 = vmatprep.subr.bf16.mxu0 0
      %5786 = vmatpush1.bf16.msra.mxu0 0
      %5787 = vmatprep.subr.bf16.mxu0 0
      %5788 = vmatpush1.bf16.msra.mxu0 0
      %5789 = vmatprep.subr.bf16.mxu0 0
      %5790 = vmatpush1.bf16.msra.mxu0 0
      %5791 = vmatprep.subr.bf16.mxu0 0
      %5792 = vmatpush1.bf16.msra.mxu0 0
      %5793 = vmatprep.subr.bf16.mxu0 0
      %5794 = vmatpush1.bf16.msra.mxu0 0
      %5795 = vmatprep.subr.bf16.mxu0 0
      %5796 = vmatpush1.bf16.msra.mxu0 0
      %5797 = vmatprep.subr.bf16.mxu0 0
      %5798 = vmatpush1.bf16.msra.mxu0 0
      %5799 = vmatprep.mubr.bf16.mxu0 0
      %5800 = vmatmul.mubr.bf16.gmra.mrb[0].mxu0 %v1225
      %v5801 = vpop.f32.mrb[0].mxu0
      %v5802 = vadd.f32 %v5759, %v5801
      %v5803 = vpop.f32.mrb[0].mxu0
      %v5804 = vadd.f32 %v5761, %v5803
      %v5805 = vpop.f32.mrb[0].mxu0
      %v5806 = vadd.f32 %v5763, %v5805
      %v5807 = vpop.f32.mrb[0].mxu0
      %v5808 = vadd.f32 %v5765, %v5807
      %5809 = vdwg.mxu0
      %5810 = vmatprep.subr.bf16.mxu0 %v3654
      %5811 = vmatpush1.bf16.msra.mxu0 %v3653
      %5812 = vmatprep.subr.bf16.mxu0 %v3658
      %5813 = vmatpush1.bf16.msra.mxu0 %v3657
      %5814 = vmatprep.subr.bf16.mxu0 %v3662
      %5815 = vmatpush1.bf16.msra.mxu0 %v3661
      %5816 = vmatprep.subr.bf16.mxu0 %v3666
      %5817 = vmatpush1.bf16.msra.mxu0 %v3665
      %5818 = vmatprep.subr.bf16.mxu0 %v3670
      %5819 = vmatpush1.bf16.msra.mxu0 %v3669
      %5820 = vmatprep.subr.bf16.mxu0 %v3674
      %5821 = vmatpush1.bf16.msra.mxu0 %v3673
      %5822 = vmatprep.subr.bf16.mxu0 %v3678
      %5823 = vmatpush1.bf16.msra.mxu0 %v3677
      %5824 = vmatprep.subr.bf16.mxu0 %v3682
      %5825 = vmatpush1.bf16.msra.mxu0 %v3681
      %5826 = vmatprep.subr.bf16.mxu0 %v3686
      %5827 = vmatpush1.bf16.msra.mxu0 %v3685
      %5828 = vmatprep.subr.bf16.mxu0 %v3690
      %5829 = vmatpush1.bf16.msra.mxu0 %v3689
      %5830 = vmatprep.subr.bf16.mxu0 %v3694
      %5831 = vmatpush1.bf16.msra.mxu0 %v3693
      %5832 = vmatprep.subr.bf16.mxu0 %v3698
      %5833 = vmatpush1.bf16.msra.mxu0 %v3697
      %5834 = vmatprep.subr.bf16.mxu0 %v3702
      %5835 = vmatpush1.bf16.msra.mxu0 %v3701
      %5836 = vmatprep.subr.bf16.mxu0 %v3706
      %5837 = vmatpush1.bf16.msra.mxu0 %v3705
      %5838 = vmatprep.subr.bf16.mxu0 %v3710
      %5839 = vmatpush1.bf16.msra.mxu0 %v3709
      %5840 = vmatprep.subr.bf16.mxu0 %v3714
      %5841 = vmatpush1.bf16.msra.mxu0 %v3713
      %5842 = vmatprep.mubr.bf16.mxu0 %v1202
      %5843 = vmatmul.mubr.bf16.gmra.mrb[0].mxu0 %v1201
      %v5844 = vpop.f32.mrb[0].mxu0
      %v5845 = vadd.f32 %v1116, %v5844
      %v5846 = vpop.f32.mrb[0].mxu0
      %v5847 = vadd.f32 %v1120, %v5846
      %v5848 = vpop.f32.mrb[0].mxu0
      %v5849 = vadd.f32 %v1116, %v5848
      %v5850 = vpop.f32.mrb[0].mxu0
      %v5851 = vadd.f32 %v1120, %v5850
      %5852 = vdwg.mxu0
      %5853 = vmatprep.subr.bf16.mxu0 %v3718
      %5854 = vmatpush1.bf16.msra.mxu0 %v3717
      %5855 = vmatprep.subr.bf16.mxu0 %v3722
      %5856 = vmatpush1.bf16.msra.mxu0 %v3721
      %5857 = vmatprep.subr.bf16.mxu0 %v3726
      %5858 = vmatpush1.bf16.msra.mxu0 %v3725
      %5859 = vmatprep.subr.bf16.mxu0 %v3730
      %5860 = vmatpush1.bf16.msra.mxu0 %v3729
      %5861 = vmatprep.subr.bf16.mxu0 %v3734
      %5862 = vmatpush1.bf16.msra.mxu0 %v3733
      %5863 = vmatprep.subr.bf16.mxu0 %v3738
      %5864 = vmatpush1.bf16.msra.mxu0 %v3737
      %5865 = vmatprep.subr.bf16.mxu0 %v3742
      %5866 = vmatpush1.bf16.msra.mxu0 %v3741
      %5867 = vmatprep.subr.bf16.mxu0 %v3746
      %5868 = vmatpush1.bf16.msra.mxu0 %v3745
      %5869 = vmatprep.subr.bf16.mxu0 %v3750
      %5870 = vmatpush1.bf16.msra.mxu0 %v3749
      %5871 = vmatprep.subr.bf16.mxu0 %v3754
      %5872 = vmatpush1.bf16.msra.mxu0 %v3753
      %5873 = vmatprep.subr.bf16.mxu0 %v3758
      %5874 = vmatpush1.bf16.msra.mxu0 %v3757
      %5875 = vmatprep.subr.bf16.mxu0 %v3762
      %5876 = vmatpush1.bf16.msra.mxu0 %v3761
      %5877 = vmatprep.subr.bf16.mxu0 %v3766
      %5878 = vmatpush1.bf16.msra.mxu0 %v3765
      %5879 = vmatprep.subr.bf16.mxu0 %v3770
      %5880 = vmatpush1.bf16.msra.mxu0 %v3769
      %5881 = vmatprep.subr.bf16.mxu0 %v3774
      %5882 = vmatpush1.bf16.msra.mxu0 %v3773
      %5883 = vmatprep.subr.bf16.mxu0 %v3778
      %5884 = vmatpush1.bf16.msra.mxu0 %v3777
      %5885 = vmatprep.mubr.bf16.mxu0 %v1204
      %5886 = vmatmul.mubr.bf16.gmra.mrb[0].mxu0 %v1203
      %v5887 = vpop.f32.mrb[0].mxu0
      %v5888 = vadd.f32 %v5845, %v5887
      %v5889 = vpop.f32.mrb[0].mxu0
      %v5890 = vadd.f32 %v5847, %v5889
      %v5891 = vpop.f32.mrb[0].mxu0
      %v5892 = vadd.f32 %v5849, %v5891
      %v5893 = vpop.f32.mrb[0].mxu0
      %v5894 = vadd.f32 %v5851, %v5893
      %5895 = vdwg.mxu0
      %5896 = vmatprep.subr.bf16.mxu0 %v3782
      %5897 = vmatpush1.bf16.msra.mxu0 %v3781
      %5898 = vmatprep.subr.bf16.mxu0 %v3786
      %5899 = vmatpush1.bf16.msra.mxu0 %v3785
      %5900 = vmatprep.subr.bf16.mxu0 %v3790
      %5901 = vmatpush1.bf16.msra.mxu0 %v3789
      %5902 = vmatprep.subr.bf16.mxu0 %v3794
      %5903 = vmatpush1.bf16.msra.mxu0 %v3793
      %5904 = vmatprep.subr.bf16.mxu0 %v3798
      %5905 = vmatpush1.bf16.msra.mxu0 %v3797
      %5906 = vmatprep.subr.bf16.mxu0 %v3802
      %5907 = vmatpush1.bf16.msra.mxu0 %v3801
      %5908 = vmatprep.subr.bf16.mxu0 %v3806
      %5909 = vmatpush1.bf16.msra.mxu0 %v3805
      %5910 = vmatprep.subr.bf16.mxu0 %v3810
      %5911 = vmatpush1.bf16.msra.mxu0 %v3809
      %5912 = vmatprep.subr.bf16.mxu0 %v3814
      %5913 = vmatpush1.bf16.msra.mxu0 %v3813
      %5914 = vmatprep.subr.bf16.mxu0 %v3818
      %5915 = vmatpush1.bf16.msra.mxu0 %v3817
      %5916 = vmatprep.subr.bf16.mxu0 %v3822
      %5917 = vmatpush1.bf16.msra.mxu0 %v3821
      %5918 = vmatprep.subr.bf16.mxu0 %v3826
      %5919 = vmatpush1.bf16.msra.mxu0 %v3825
      %5920 = vmatprep.subr.bf16.mxu0 %v3830
      %5921 = vmatpush1.bf16.msra.mxu0 %v3829
      %5922 = vmatprep.subr.bf16.mxu0 %v3834
      %5923 = vmatpush1.bf16.msra.mxu0 %v3833
      %5924 = vmatprep.subr.bf16.mxu0 %v3838
      %5925 = vmatpush1.bf16.msra.mxu0 %v3837
      %5926 = vmatprep.subr.bf16.mxu0 %v3842
      %5927 = vmatpush1.bf16.msra.mxu0 %v3841
      %5928 = vmatprep.mubr.bf16.mxu0 %v1206
      %5929 = vmatmul.mubr.bf16.gmra.mrb[0].mxu0 %v1205
      %v5930 = vpop.f32.mrb[0].mxu0
      %v5931 = vadd.f32 %v5888, %v5930
      %v5932 = vpop.f32.mrb[0].mxu0
      %v5933 = vadd.f32 %v5890, %v5932
      %v5934 = vpop.f32.mrb[0].mxu0
      %v5935 = vadd.f32 %v5892, %v5934
      %v5936 = vpop.f32.mrb[0].mxu0
      %v5937 = vadd.f32 %v5894, %v5936
      %5938 = vdwg.mxu0
      %5939 = vmatprep.subr.bf16.mxu0 %v3846
      %5940 = vmatpush1.bf16.msra.mxu0 %v3845
      %5941 = vmatprep.subr.bf16.mxu0 %v3850
      %5942 = vmatpush1.bf16.msra.mxu0 %v3849
      %5943 = vmatprep.subr.bf16.mxu0 %v3854
      %5944 = vmatpush1.bf16.msra.mxu0 %v3853
      %5945 = vmatprep.subr.bf16.mxu0 %v3858
      %5946 = vmatpush1.bf16.msra.mxu0 %v3857
      %5947 = vmatprep.subr.bf16.mxu0 %v3862
      %5948 = vmatpush1.bf16.msra.mxu0 %v3861
      %5949 = vmatprep.subr.bf16.mxu0 %v3866
      %5950 = vmatpush1.bf16.msra.mxu0 %v3865
      %5951 = vmatprep.subr.bf16.mxu0 %v3870
      %5952 = vmatpush1.bf16.msra.mxu0 %v3869
      %5953 = vmatprep.subr.bf16.mxu0 %v3874
      %5954 = vmatpush1.bf16.msra.mxu0 %v3873
      %5955 = vmatprep.subr.bf16.mxu0 %v3878
      %5956 = vmatpush1.bf16.msra.mxu0 %v3877
      %5957 = vmatprep.subr.bf16.mxu0 %v3882
      %5958 = vmatpush1.bf16.msra.mxu0 %v3881
      %5959 = vmatprep.subr.bf16.mxu0 %v3886
      %5960 = vmatpush1.bf16.msra.mxu0 %v3885
      %5961 = vmatprep.subr.bf16.mxu0 %v3890
      %5962 = vmatpush1.bf16.msra.mxu0 %v3889
      %5963 = vmatprep.subr.bf16.mxu0 %v3894
      %5964 = vmatpush1.bf16.msra.mxu0 %v3893
      %5965 = vmatprep.subr.bf16.mxu0 %v3898
      %5966 = vmatpush1.bf16.msra.mxu0 %v3897
      %5967 = vmatprep.subr.bf16.mxu0 %v3902
      %5968 = vmatpush1.bf16.msra.mxu0 %v3901
      %5969 = vmatprep.subr.bf16.mxu0 %v3906
      %5970 = vmatpush1.bf16.msra.mxu0 %v3905
      %5971 = vmatprep.mubr.bf16.mxu0 %v1208
      %5972 = vmatmul.mubr.bf16.gmra.mrb[0].mxu0 %v1207
      %v5973 = vpop.f32.mrb[0].mxu0
      %v5974 = vadd.f32 %v5931, %v5973
      %v5975 = vpop.f32.mrb[0].mxu0
      %v5976 = vadd.f32 %v5933, %v5975
      %v5977 = vpop.f32.mrb[0].mxu0
      %v5978 = vadd.f32 %v5935, %v5977
      %v5979 = vpop.f32.mrb[0].mxu0
      %v5980 = vadd.f32 %v5937, %v5979
      %5981 = vdwg.mxu0
      %5982 = vmatprep.subr.bf16.mxu0 %v3910
      %5983 = vmatpush1.bf16.msra.mxu0 %v3909
      %5984 = vmatprep.subr.bf16.mxu0 %v3914
      %5985 = vmatpush1.bf16.msra.mxu0 %v3913
      %5986 = vmatprep.subr.bf16.mxu0 %v3918
      %5987 = vmatpush1.bf16.msra.mxu0 %v3917
      %5988 = vmatprep.subr.bf16.mxu0 %v3922
      %5989 = vmatpush1.bf16.msra.mxu0 %v3921
      %5990 = vmatprep.subr.bf16.mxu0 %v3926
      %5991 = vmatpush1.bf16.msra.mxu0 %v3925
      %5992 = vmatprep.subr.bf16.mxu0 %v3930
      %5993 = vmatpush1.bf16.msra.mxu0 %v3929
      %5994 = vmatprep.subr.bf16.mxu0 %v3934
      %5995 = vmatpush1.bf16.msra.mxu0 %v3933
      %5996 = vmatprep.subr.bf16.mxu0 %v3938
      %5997 = vmatpush1.bf16.msra.mxu0 %v3937
      %5998 = vmatprep.subr.bf16.mxu0 %v3942
      %5999 = vmatpush1.bf16.msra.mxu0 %v3941
      %6000 = vmatprep.subr.bf16.mxu0 %v3946
      %6001 = vmatpush1.bf16.msra.mxu0 %v3945
      %6002 = vmatprep.subr.bf16.mxu0 %v3950
      %6003 = vmatpush1.bf16.msra.mxu0 %v3949
      %6004 = vmatprep.subr.bf16.mxu0 %v3954
      %6005 = vmatpush1.bf16.msra.mxu0 %v3953
      %6006 = vmatprep.subr.bf16.mxu0 %v3958
      %6007 = vmatpush1.bf16.msra.mxu0 %v3957
      %6008 = vmatprep.subr.bf16.mxu0 %v3962
      %6009 = vmatpush1.bf16.msra.mxu0 %v3961
      %6010 = vmatprep.subr.bf16.mxu0 %v3966
      %6011 = vmatpush1.bf16.msra.mxu0 %v3965
      %6012 = vmatprep.subr.bf16.mxu0 %v3970
      %6013 = vmatpush1.bf16.msra.mxu0 %v3969
      %6014 = vmatprep.mubr.bf16.mxu0 %v1210
      %6015 = vmatmul.mubr.bf16.gmra.mrb[0].mxu0 %v1209
      %v6016 = vpop.f32.mrb[0].mxu0
      %v6017 = vadd.f32 %v5974, %v6016
      %v6018 = vpop.f32.mrb[0].mxu0
      %v6019 = vadd.f32 %v5976, %v6018
      %v6020 = vpop.f32.mrb[0].mxu0
      %v6021 = vadd.f32 %v5978, %v6020
      %v6022 = vpop.f32.mrb[0].mxu0
      %v6023 = vadd.f32 %v5980, %v6022
      %6024 = vdwg.mxu0
      %6025 = vmatprep.subr.bf16.mxu0 %v3974
      %6026 = vmatpush1.bf16.msra.mxu0 %v3973
      %6027 = vmatprep.subr.bf16.mxu0 %v3978
      %6028 = vmatpush1.bf16.msra.mxu0 %v3977
      %6029 = vmatprep.subr.bf16.mxu0 %v3982
      %6030 = vmatpush1.bf16.msra.mxu0 %v3981
      %6031 = vmatprep.subr.bf16.mxu0 %v3986
      %6032 = vmatpush1.bf16.msra.mxu0 %v3985
      %6033 = vmatprep.subr.bf16.mxu0 %v3990
      %6034 = vmatpush1.bf16.msra.mxu0 %v3989
      %6035 = vmatprep.subr.bf16.mxu0 %v3994
      %6036 = vmatpush1.bf16.msra.mxu0 %v3993
      %6037 = vmatprep.subr.bf16.mxu0 %v3998
      %6038 = vmatpush1.bf16.msra.mxu0 %v3997
      %6039 = vmatprep.subr.bf16.mxu0 %v4002
      %6040 = vmatpush1.bf16.msra.mxu0 %v4001
      %6041 = vmatprep.subr.bf16.mxu0 %v4006
      %6042 = vmatpush1.bf16.msra.mxu0 %v4005
      %6043 = vmatprep.subr.bf16.mxu0 %v4010
      %6044 = vmatpush1.bf16.msra.mxu0 %v4009
      %6045 = vmatprep.subr.bf16.mxu0 %v4014
      %6046 = vmatpush1.bf16.msra.mxu0 %v4013
      %6047 = vmatprep.subr.bf16.mxu0 %v4018
      %6048 = vmatpush1.bf16.msra.mxu0 %v4017
      %6049 = vmatprep.subr.bf16.mxu0 %v4022
      %6050 = vmatpush1.bf16.msra.mxu0 %v4021
      %6051 = vmatprep.subr.bf16.mxu0 %v4026
      %6052 = vmatpush1.bf16.msra.mxu0 %v4025
      %6053 = vmatprep.subr.bf16.mxu0 %v4030
      %6054 = vmatpush1.bf16.msra.mxu0 %v4029
      %6055 = vmatprep.subr.bf16.mxu0 %v4034
      %6056 = vmatpush1.bf16.msra.mxu0 %v4033
      %6057 = vmatprep.mubr.bf16.mxu0 %v1212
      %6058 = vmatmul.mubr.bf16.gmra.mrb[0].mxu0 %v1211
      %v6059 = vpop.f32.mrb[0].mxu0
      %v6060 = vadd.f32 %v6017, %v6059
      %v6061 = vpop.f32.mrb[0].mxu0
      %v6062 = vadd.f32 %v6019, %v6061
      %v6063 = vpop.f32.mrb[0].mxu0
      %v6064 = vadd.f32 %v6021, %v6063
      %v6065 = vpop.f32.mrb[0].mxu0
      %v6066 = vadd.f32 %v6023, %v6065
      %6067 = vdwg.mxu0
      %6068 = vmatprep.subr.bf16.mxu0 %v4038
      %6069 = vmatpush1.bf16.msra.mxu0 %v4037
      %6070 = vmatprep.subr.bf16.mxu0 %v4042
      %6071 = vmatpush1.bf16.msra.mxu0 %v4041
      %6072 = vmatprep.subr.bf16.mxu0 %v4046
      %6073 = vmatpush1.bf16.msra.mxu0 %v4045
      %6074 = vmatprep.subr.bf16.mxu0 %v4050
      %6075 = vmatpush1.bf16.msra.mxu0 %v4049
      %6076 = vmatprep.subr.bf16.mxu0 %v4054
      %6077 = vmatpush1.bf16.msra.mxu0 %v4053
      %6078 = vmatprep.subr.bf16.mxu0 %v4058
      %6079 = vmatpush1.bf16.msra.mxu0 %v4057
      %6080 = vmatprep.subr.bf16.mxu0 %v4062
      %6081 = vmatpush1.bf16.msra.mxu0 %v4061
      %6082 = vmatprep.subr.bf16.mxu0 %v4066
      %6083 = vmatpush1.bf16.msra.mxu0 %v4065
      %6084 = vmatprep.subr.bf16.mxu0 %v4070
      %6085 = vmatpush1.bf16.msra.mxu0 %v4069
      %6086 = vmatprep.subr.bf16.mxu0 %v4074
      %6087 = vmatpush1.bf16.msra.mxu0 %v4073
      %6088 = vmatprep.subr.bf16.mxu0 %v4078
      %6089 = vmatpush1.bf16.msra.mxu0 %v4077
      %6090 = vmatprep.subr.bf16.mxu0 %v4082
      %6091 = vmatpush1.bf16.msra.mxu0 %v4081
      %6092 = vmatprep.subr.bf16.mxu0 %v4086
      %6093 = vmatpush1.bf16.msra.mxu0 %v4085
      %6094 = vmatprep.subr.bf16.mxu0 %v4090
      %6095 = vmatpush1.bf16.msra.mxu0 %v4089
      %6096 = vmatprep.subr.bf16.mxu0 %v4094
      %6097 = vmatpush1.bf16.msra.mxu0 %v4093
      %6098 = vmatprep.subr.bf16.mxu0 %v4098
      %6099 = vmatpush1.bf16.msra.mxu0 %v4097
      %6100 = vmatprep.mubr.bf16.mxu0 %v1214
      %6101 = vmatmul.mubr.bf16.gmra.mrb[0].mxu0 %v1213
      %v6102 = vpop.f32.mrb[0].mxu0
      %v6103 = vadd.f32 %v6060, %v6102
      %v6104 = vpop.f32.mrb[0].mxu0
      %v6105 = vadd.f32 %v6062, %v6104
      %v6106 = vpop.f32.mrb[0].mxu0
      %v6107 = vadd.f32 %v6064, %v6106
      %v6108 = vpop.f32.mrb[0].mxu0
      %v6109 = vadd.f32 %v6066, %v6108
      %6110 = vdwg.mxu0
      %6111 = vmatprep.subr.bf16.mxu0 %v4102
      %6112 = vmatpush1.bf16.msra.mxu0 %v4101
      %6113 = vmatprep.subr.bf16.mxu0 %v4106
      %6114 = vmatpush1.bf16.msra.mxu0 %v4105
      %6115 = vmatprep.subr.bf16.mxu0 %v4110
      %6116 = vmatpush1.bf16.msra.mxu0 %v4109
      %6117 = vmatprep.subr.bf16.mxu0 %v4114
      %6118 = vmatpush1.bf16.msra.mxu0 %v4113
      %6119 = vmatprep.subr.bf16.mxu0 %v4118
      %6120 = vmatpush1.bf16.msra.mxu0 %v4117
      %6121 = vmatprep.subr.bf16.mxu0 %v4122
      %6122 = vmatpush1.bf16.msra.mxu0 %v4121
      %6123 = vmatprep.subr.bf16.mxu0 %v4126
      %6124 = vmatpush1.bf16.msra.mxu0 %v4125
      %6125 = vmatprep.subr.bf16.mxu0 %v4130
      %6126 = vmatpush1.bf16.msra.mxu0 %v4129
      %6127 = vmatprep.subr.bf16.mxu0 %v4134
      %6128 = vmatpush1.bf16.msra.mxu0 %v4133
      %6129 = vmatprep.subr.bf16.mxu0 %v4138
      %6130 = vmatpush1.bf16.msra.mxu0 %v4137
      %6131 = vmatprep.subr.bf16.mxu0 %v4142
      %6132 = vmatpush1.bf16.msra.mxu0 %v4141
      %6133 = vmatprep.subr.bf16.mxu0 %v4146
      %6134 = vmatpush1.bf16.msra.mxu0 %v4145
      %6135 = vmatprep.subr.bf16.mxu0 %v4150
      %6136 = vmatpush1.bf16.msra.mxu0 %v4149
      %6137 = vmatprep.subr.bf16.mxu0 %v4154
      %6138 = vmatpush1.bf16.msra.mxu0 %v4153
      %6139 = vmatprep.subr.bf16.mxu0 %v4158
      %6140 = vmatpush1.bf16.msra.mxu0 %v4157
      %6141 = vmatprep.subr.bf16.mxu0 %v4162
      %6142 = vmatpush1.bf16.msra.mxu0 %v4161
      %6143 = vmatprep.mubr.bf16.mxu0 %v1216
      %6144 = vmatmul.mubr.bf16.gmra.mrb[0].mxu0 %v1215
      %v6145 = vpop.f32.mrb[0].mxu0
      %v6146 = vadd.f32 %v6103, %v6145
      %v6147 = vpop.f32.mrb[0].mxu0
      %v6148 = vadd.f32 %v6105, %v6147
      %v6149 = vpop.f32.mrb[0].mxu0
      %v6150 = vadd.f32 %v6107, %v6149
      %v6151 = vpop.f32.mrb[0].mxu0
      %v6152 = vadd.f32 %v6109, %v6151
      %6153 = vdwg.mxu0
      %6154 = vmatprep.subr.bf16.mxu0 %v4166
      %6155 = vmatpush1.bf16.msra.mxu0 %v4165
      %6156 = vmatprep.subr.bf16.mxu0 %v4170
      %6157 = vmatpush1.bf16.msra.mxu0 %v4169
      %6158 = vmatprep.subr.bf16.mxu0 %v4174
      %6159 = vmatpush1.bf16.msra.mxu0 %v4173
      %6160 = vmatprep.subr.bf16.mxu0 %v4178
      %6161 = vmatpush1.bf16.msra.mxu0 %v4177
      %6162 = vmatprep.subr.bf16.mxu0 %v4182
      %6163 = vmatpush1.bf16.msra.mxu0 %v4181
      %6164 = vmatprep.subr.bf16.mxu0 %v4186
      %6165 = vmatpush1.bf16.msra.mxu0 %v4185
      %6166 = vmatprep.subr.bf16.mxu0 %v4190
      %6167 = vmatpush1.bf16.msra.mxu0 %v4189
      %6168 = vmatprep.subr.bf16.mxu0 %v4194
      %6169 = vmatpush1.bf16.msra.mxu0 %v4193
      %6170 = vmatprep.subr.bf16.mxu0 %v4198
      %6171 = vmatpush1.bf16.msra.mxu0 %v4197
      %6172 = vmatprep.subr.bf16.mxu0 %v4202
      %6173 = vmatpush1.bf16.msra.mxu0 %v4201
      %6174 = vmatprep.subr.bf16.mxu0 %v4206
      %6175 = vmatpush1.bf16.msra.mxu0 %v4205
      %6176 = vmatprep.subr.bf16.mxu0 %v4210
      %6177 = vmatpush1.bf16.msra.mxu0 %v4209
      %6178 = vmatprep.subr.bf16.mxu0 %v4214
      %6179 = vmatpush1.bf16.msra.mxu0 %v4213
      %6180 = vmatprep.subr.bf16.mxu0 %v4218
      %6181 = vmatpush1.bf16.msra.mxu0 %v4217
      %6182 = vmatprep.subr.bf16.mxu0 %v4222
      %6183 = vmatpush1.bf16.msra.mxu0 %v4221
      %6184 = vmatprep.subr.bf16.mxu0 %v4226
      %6185 = vmatpush1.bf16.msra.mxu0 %v4225
      %6186 = vmatprep.mubr.bf16.mxu0 %v1218
      %6187 = vmatmul.mubr.bf16.gmra.mrb[0].mxu0 %v1217
      %v6188 = vpop.f32.mrb[0].mxu0
      %v6189 = vadd.f32 %v6146, %v6188
      %v6190 = vpop.f32.mrb[0].mxu0
      %v6191 = vadd.f32 %v6148, %v6190
      %v6192 = vpop.f32.mrb[0].mxu0
      %v6193 = vadd.f32 %v6150, %v6192
      %v6194 = vpop.f32.mrb[0].mxu0
      %v6195 = vadd.f32 %v6152, %v6194
      %6196 = vdwg.mxu0
      %6197 = vmatprep.subr.bf16.mxu0 %v4230
      %6198 = vmatpush1.bf16.msra.mxu0 %v4229
      %6199 = vmatprep.subr.bf16.mxu0 %v4234
      %6200 = vmatpush1.bf16.msra.mxu0 %v4233
      %6201 = vmatprep.subr.bf16.mxu0 %v4238
      %6202 = vmatpush1.bf16.msra.mxu0 %v4237
      %6203 = vmatprep.subr.bf16.mxu0 %v4242
      %6204 = vmatpush1.bf16.msra.mxu0 %v4241
      %6205 = vmatprep.subr.bf16.mxu0 %v4246
      %6206 = vmatpush1.bf16.msra.mxu0 %v4245
      %6207 = vmatprep.subr.bf16.mxu0 %v4250
      %6208 = vmatpush1.bf16.msra.mxu0 %v4249
      %6209 = vmatprep.subr.bf16.mxu0 %v4254
      %6210 = vmatpush1.bf16.msra.mxu0 %v4253
      %6211 = vmatprep.subr.bf16.mxu0 %v4258
      %6212 = vmatpush1.bf16.msra.mxu0 %v4257
      %6213 = vmatprep.subr.bf16.mxu0 %v4262
      %6214 = vmatpush1.bf16.msra.mxu0 %v4261
      %6215 = vmatprep.subr.bf16.mxu0 %v4266
      %6216 = vmatpush1.bf16.msra.mxu0 %v4265
      %6217 = vmatprep.subr.bf16.mxu0 %v4270
      %6218 = vmatpush1.bf16.msra.mxu0 %v4269
      %6219 = vmatprep.subr.bf16.mxu0 %v4274
      %6220 = vmatpush1.bf16.msra.mxu0 %v4273
      %6221 = vmatprep.subr.bf16.mxu0 %v4278
      %6222 = vmatpush1.bf16.msra.mxu0 %v4277
      %6223 = vmatprep.subr.bf16.mxu0 %v4282
      %6224 = vmatpush1.bf16.msra.mxu0 %v4281
      %6225 = vmatprep.subr.bf16.mxu0 %v4286
      %6226 = vmatpush1.bf16.msra.mxu0 %v4285
      %6227 = vmatprep.subr.bf16.mxu0 %v4290
      %6228 = vmatpush1.bf16.msra.mxu0 %v4289
      %6229 = vmatprep.mubr.bf16.mxu0 %v1220
      %6230 = vmatmul.mubr.bf16.gmra.mrb[0].mxu0 %v1219
      %v6231 = vpop.f32.mrb[0].mxu0
      %v6232 = vadd.f32 %v6189, %v6231
      %v6233 = vpop.f32.mrb[0].mxu0
      %v6234 = vadd.f32 %v6191, %v6233
      %v6235 = vpop.f32.mrb[0].mxu0
      %v6236 = vadd.f32 %v6193, %v6235
      %v6237 = vpop.f32.mrb[0].mxu0
      %v6238 = vadd.f32 %v6195, %v6237
      %6239 = vdwg.mxu0
      %6240 = vmatprep.subr.bf16.mxu0 %v4294
      %6241 = vmatpush1.bf16.msra.mxu0 %v4293
      %6242 = vmatprep.subr.bf16.mxu0 %v4298
      %6243 = vmatpush1.bf16.msra.mxu0 %v4297
      %6244 = vmatprep.subr.bf16.mxu0 %v4302
      %6245 = vmatpush1.bf16.msra.mxu0 %v4301
      %6246 = vmatprep.subr.bf16.mxu0 %v4306
      %6247 = vmatpush1.bf16.msra.mxu0 %v4305
      %6248 = vmatprep.subr.bf16.mxu0 %v4310
      %6249 = vmatpush1.bf16.msra.mxu0 %v4309
      %6250 = vmatprep.subr.bf16.mxu0 %v4314
      %6251 = vmatpush1.bf16.msra.mxu0 %v4313
      %6252 = vmatprep.subr.bf16.mxu0 %v4318
      %6253 = vmatpush1.bf16.msra.mxu0 %v4317
      %6254 = vmatprep.subr.bf16.mxu0 %v4322
      %6255 = vmatpush1.bf16.msra.mxu0 %v4321
      %6256 = vmatprep.subr.bf16.mxu0 %v4326
      %6257 = vmatpush1.bf16.msra.mxu0 %v4325
      %6258 = vmatprep.subr.bf16.mxu0 %v4330
      %6259 = vmatpush1.bf16.msra.mxu0 %v4329
      %6260 = vmatprep.subr.bf16.mxu0 %v4334
      %6261 = vmatpush1.bf16.msra.mxu0 %v4333
      %6262 = vmatprep.subr.bf16.mxu0 %v4338
      %6263 = vmatpush1.bf16.msra.mxu0 %v4337
      %6264 = vmatprep.subr.bf16.mxu0 %v4342
      %6265 = vmatpush1.bf16.msra.mxu0 %v4341
      %6266 = vmatprep.subr.bf16.mxu0 %v4346
      %6267 = vmatpush1.bf16.msra.mxu0 %v4345
      %6268 = vmatprep.subr.bf16.mxu0 %v4350
      %6269 = vmatpush1.bf16.msra.mxu0 %v4349
      %6270 = vmatprep.subr.bf16.mxu0 %v4354
      %6271 = vmatpush1.bf16.msra.mxu0 %v4353
      %6272 = vmatprep.mubr.bf16.mxu0 %v1222
      %6273 = vmatmul.mubr.bf16.gmra.mrb[0].mxu0 %v1221
      %v6274 = vpop.f32.mrb[0].mxu0
      %v6275 = vadd.f32 %v6232, %v6274
      %v6276 = vpop.f32.mrb[0].mxu0
      %v6277 = vadd.f32 %v6234, %v6276
      %v6278 = vpop.f32.mrb[0].mxu0
      %v6279 = vadd.f32 %v6236, %v6278
      %v6280 = vpop.f32.mrb[0].mxu0
      %v6281 = vadd.f32 %v6238, %v6280
      %6282 = vdwg.mxu0
      %6283 = vmatprep.subr.bf16.mxu0 %v4358
      %6284 = vmatpush1.bf16.msra.mxu0 %v4357
      %6285 = vmatprep.subr.bf16.mxu0 %v4362
      %6286 = vmatpush1.bf16.msra.mxu0 %v4361
      %6287 = vmatprep.subr.bf16.mxu0 %v4366
      %6288 = vmatpush1.bf16.msra.mxu0 %v4365
      %6289 = vmatprep.subr.bf16.mxu0 %v4370
      %6290 = vmatpush1.bf16.msra.mxu0 %v4369
      %6291 = vmatprep.subr.bf16.mxu0 %v4374
      %6292 = vmatpush1.bf16.msra.mxu0 %v4373
      %6293 = vmatprep.subr.bf16.mxu0 %v4378
      %6294 = vmatpush1.bf16.msra.mxu0 %v4377
      %6295 = vmatprep.subr.bf16.mxu0 %v4382
      %6296 = vmatpush1.bf16.msra.mxu0 %v4381
      %6297 = vmatprep.subr.bf16.mxu0 %v4386
      %6298 = vmatpush1.bf16.msra.mxu0 %v4385
      %6299 = vmatprep.subr.bf16.mxu0 %v4390
      %6300 = vmatpush1.bf16.msra.mxu0 %v4389
      %6301 = vmatprep.subr.bf16.mxu0 %v4394
      %6302 = vmatpush1.bf16.msra.mxu0 %v4393
      %6303 = vmatprep.subr.bf16.mxu0 %v4398
      %6304 = vmatpush1.bf16.msra.mxu0 %v4397
      %6305 = vmatprep.subr.bf16.mxu0 %v4402
      %6306 = vmatpush1.bf16.msra.mxu0 %v4401
      %6307 = vmatprep.subr.bf16.mxu0 %v4406
      %6308 = vmatpush1.bf16.msra.mxu0 %v4405
      %6309 = vmatprep.subr.bf16.mxu0 %v4410
      %6310 = vmatpush1.bf16.msra.mxu0 %v4409
      %6311 = vmatprep.subr.bf16.mxu0 %v4414
      %6312 = vmatpush1.bf16.msra.mxu0 %v4413
      %6313 = vmatprep.subr.bf16.mxu0 %v4418
      %6314 = vmatpush1.bf16.msra.mxu0 %v4417
      %6315 = vmatprep.mubr.bf16.mxu0 %v1224
      %6316 = vmatmul.mubr.bf16.gmra.mrb[0].mxu0 %v1223
      %v6317 = vpop.f32.mrb[0].mxu0
      %v6318 = vadd.f32 %v6275, %v6317
      %v6319 = vpop.f32.mrb[0].mxu0
      %v6320 = vadd.f32 %v6277, %v6319
      %v6321 = vpop.f32.mrb[0].mxu0
      %v6322 = vadd.f32 %v6279, %v6321
      %v6323 = vpop.f32.mrb[0].mxu0
      %v6324 = vadd.f32 %v6281, %v6323
      %6325 = vdwg.mxu0
      %6326 = vmatprep.subr.bf16.mxu0 %v4422
      %6327 = vmatpush1.bf16.msra.mxu0 %v4421
      %6328 = vmatprep.subr.bf16.mxu0 %v4426
      %6329 = vmatpush1.bf16.msra.mxu0 %v4425
      %6330 = vmatprep.subr.bf16.mxu0 %v4430
      %6331 = vmatpush1.bf16.msra.mxu0 %v4429
      %6332 = vmatprep.subr.bf16.mxu0 %v4434
      %6333 = vmatpush1.bf16.msra.mxu0 %v4433
      %6334 = vmatprep.subr.bf16.mxu0 %v4438
      %6335 = vmatpush1.bf16.msra.mxu0 %v4437
      %6336 = vmatprep.subr.bf16.mxu0 %v4442
      %6337 = vmatpush1.bf16.msra.mxu0 %v4441
      %6338 = vmatprep.subr.bf16.mxu0 %v4446
      %6339 = vmatpush1.bf16.msra.mxu0 %v4445
      %6340 = vmatprep.subr.bf16.mxu0 %v4450
      %6341 = vmatpush1.bf16.msra.mxu0 %v4449
      %6342 = vmatprep.subr.bf16.mxu0 0
      %6343 = vmatpush1.bf16.msra.mxu0 0
      %6344 = vmatprep.subr.bf16.mxu0 0
      %6345 = vmatpush1.bf16.msra.mxu0 0
      %6346 = vmatprep.subr.bf16.mxu0 0
      %6347 = vmatpush1.bf16.msra.mxu0 0
      %6348 = vmatprep.subr.bf16.mxu0 0
      %6349 = vmatpush1.bf16.msra.mxu0 0
      %6350 = vmatprep.subr.bf16.mxu0 0
      %6351 = vmatpush1.bf16.msra.mxu0 0
      %6352 = vmatprep.subr.bf16.mxu0 0
      %6353 = vmatpush1.bf16.msra.mxu0 0
      %6354 = vmatprep.subr.bf16.mxu0 0
      %6355 = vmatpush1.bf16.msra.mxu0 0
      %6356 = vmatprep.subr.bf16.mxu0 0
      %6357 = vmatpush1.bf16.msra.mxu0 0
      %6358 = vmatprep.mubr.bf16.mxu0 0
      %6359 = vmatmul.mubr.bf16.gmra.mrb[0].mxu0 %v1225
      %v6360 = vpop.f32.mrb[0].mxu0
      %v6361 = vadd.f32 %v6318, %v6360
      %v6362 = vpop.f32.mrb[0].mxu0
      %v6363 = vadd.f32 %v6320, %v6362
      %v6364 = vpop.f32.mrb[0].mxu0
      %v6365 = vadd.f32 %v6322, %v6364
      %v6366 = vpop.f32.mrb[0].mxu0
      %v6367 = vadd.f32 %v6324, %v6366
      %6368 = vdwg.mxu0
      %v6369 = vmax.f32 %v5802, 0.0
      %v6370 = vmax.f32 %v5804, 0.0
      %v6371 = vmax.f32 %v6361, 0.0
      %v6372 = vmax.f32 %v6363, 0.0
      %v6373 = vmax.f32 %v5806, 0.0
      %v6374 = vmax.f32 %v5808, 0.0
      %v6375 = vmax.f32 %v6365, 0.0
      %v6376 = vmax.f32 %v6367, 0.0
      %v6377 = vpack.c.bf16 %v6373, %v6369
      %v6378 = vpack.c.bf16 %v6374, %v6370
      %v6379 = vpack.c.bf16 %v6375, %v6371
      %v6380 = vpack.c.bf16 %v6376, %v6372
      %v6381 = vld [vmem:[%s267] sm:$0xf]
      %v6382 = vld [vmem:[%s267 + $0x4] sm:$0xf]
      %v6383 = vld [vmem:[%s267 + $0x8] sm:$0xf]
      %v6384 = vld [vmem:[%s267 + $0xc] sm:$0xf]
      %v6385 = vld [vmem:[%s267 + $0x10] sm:$0xf]
      %v6386 = vld [vmem:[%s267 + $0x14] sm:$0xf]
      %v6387 = vld [vmem:[%s267 + $0x18] sm:$0xf]
      %v6388 = vld [vmem:[%s267 + $0x1c] sm:$0xf]
      %v6389 = vld [vmem:[%s267 + $0x20] sm:$0xf]
      %v6390 = vld [vmem:[%s267 + $0x24] sm:$0xf]
      %v6391 = vld [vmem:[%s267 + $0x28] sm:$0xf]
      %v6392 = vld [vmem:[%s267 + $0x2c] sm:$0xf]
      %v6393 = vld [vmem:[%s267 + $0x30] sm:$0xf]
      %v6394 = vld [vmem:[%s267 + $0x34] sm:$0xf]
      %v6395 = vld [vmem:[%s267 + $0x38] sm:$0xf]
      %v6396 = vld [vmem:[%s267 + $0x3c] sm:$0xf]
      %v6397 = vld [vmem:[%s267 + $0x40] sm:$0xf]
      %v6398 = vld [vmem:[%s267 + $0x44] sm:$0xf]
      %v6399 = vld [vmem:[%s267 + $0x48] sm:$0xf]
      %v6400 = vld [vmem:[%s267 + $0x4c] sm:$0xf]
      %v6401 = vld [vmem:[%s267 + $0x50] sm:$0xf]
      %v6402 = vld [vmem:[%s267 + $0x54] sm:$0xf]
      %v6403 = vld [vmem:[%s267 + $0x58] sm:$0xf]
      %v6404 = vld [vmem:[%s267 + $0x5c] sm:$0xf]
      %v6405 = vld [vmem:[%s267 + $0x60] sm:$0xf]
      %v6406 = vld [vmem:[%s267 + $0x64] sm:$0xf]
      %v6407 = vld [vmem:[%s267 + $0x68] sm:$0xf]
      %v6408 = vld [vmem:[%s267 + $0x6c] sm:$0xf]
      %v6409 = vld [vmem:[%s267 + $0x70] sm:$0xf]
      %v6410 = vld [vmem:[%s267 + $0x74] sm:$0xf]
      %v6411 = vld [vmem:[%s267 + $0x78] sm:$0xf]
      %v6412 = vld [vmem:[%s267 + $0x7c] sm:$0xf]
      %v6413 = vld [vmem:[%s267 + $0x80] sm:$0xf]
      %v6414 = vld [vmem:[%s267 + $0x84] sm:$0xf]
      %v6415 = vld [vmem:[%s267 + $0x88] sm:$0xf]
      %v6416 = vld [vmem:[%s267 + $0x8c] sm:$0xf]
      %v6417 = vld [vmem:[%s267 + $0x90] sm:$0xf]
      %v6418 = vld [vmem:[%s267 + $0x94] sm:$0xf]
      %v6419 = vld [vmem:[%s267 + $0x98] sm:$0xf]
      %v6420 = vld [vmem:[%s267 + $0x9c] sm:$0xf]
      %v6421 = vld [vmem:[%s267 + $0xa0] sm:$0xf]
      %v6422 = vld [vmem:[%s267 + $0xa4] sm:$0xf]
      %v6423 = vld [vmem:[%s267 + $0xa8] sm:$0xf]
      %v6424 = vld [vmem:[%s267 + $0xac] sm:$0xf]
      %v6425 = vld [vmem:[%s267 + $0xb0] sm:$0xf]
      %v6426 = vld [vmem:[%s267 + $0xb4] sm:$0xf]
      %v6427 = vld [vmem:[%s267 + $0xb8] sm:$0xf]
      %v6428 = vld [vmem:[%s267 + $0xbc] sm:$0xf]
      %v6429 = vld [vmem:[%s267 + $0xc0] sm:$0xf]
      %v6430 = vld [vmem:[%s267 + $0xc4] sm:$0xf]
      %v6431 = vld [vmem:[%s267 + $0xc8] sm:$0xf]
      %v6432 = vld [vmem:[%s267 + $0xcc] sm:$0xf]
      %v6433 = vld [vmem:[%s267 + $0xd0] sm:$0xf]
      %v6434 = vld [vmem:[%s267 + $0xd4] sm:$0xf]
      %v6435 = vld [vmem:[%s267 + $0xd8] sm:$0xf]
      %v6436 = vld [vmem:[%s267 + $0xdc] sm:$0xf]
      %v6437 = vld [vmem:[%s267 + $0xe0] sm:$0xf]
      %v6438 = vld [vmem:[%s267 + $0xe4] sm:$0xf]
      %v6439 = vld [vmem:[%s267 + $0xe8] sm:$0xf]
      %v6440 = vld [vmem:[%s267 + $0xec] sm:$0xf]
      %v6441 = vld [vmem:[%s267 + $0xf0] sm:$0xf]
      %v6442 = vld [vmem:[%s267 + $0xf4] sm:$0xf]
      %v6443 = vld [vmem:[%s267 + $0xf8] sm:$0xf]
      %v6444 = vld [vmem:[%s267 + $0xfc] sm:$0xf]
      %v6445 = vld [vmem:[%s270] sm:$0x1]
      %v6447 = vlaneseq
      %v6448 = vshrl.u32 %v6447, 7
      %v6449 = vsub.s32 0, %v6448
      %v6450 = vrot.slane %v6445, %v6449
      %v6516 = vunpack.c.l.b16 %v6381
      %v6517 = vunpack.c.l.b16 %v6382
      %v6518 = vunpack.c.l.b16 %v6383
      %v6519 = vunpack.c.l.b16 %v6384
      %v6520 = vunpack.c.l.b16 %v6385
      %v6521 = vunpack.c.l.b16 %v6386
      %v6522 = vunpack.c.l.b16 %v6387
      %v6523 = vunpack.c.l.b16 %v6388
      %v6524 = vunpack.c.l.b16 %v6389
      %v6525 = vunpack.c.l.b16 %v6390
      %v6526 = vunpack.c.l.b16 %v6391
      %v6527 = vunpack.c.l.b16 %v6392
      %v6528 = vunpack.c.l.b16 %v6393
      %v6529 = vunpack.c.l.b16 %v6394
      %v6530 = vunpack.c.l.b16 %v6395
      %v6531 = vunpack.c.l.b16 %v6396
      %v6532 = vunpack.c.l.b16 %v6397
      %v6533 = vunpack.c.l.b16 %v6398
      %v6534 = vunpack.c.l.b16 %v6399
      %v6535 = vunpack.c.l.b16 %v6400
      %v6536 = vunpack.c.l.b16 %v6401
      %v6537 = vunpack.c.l.b16 %v6402
      %v6538 = vunpack.c.l.b16 %v6403
      %v6539 = vunpack.c.l.b16 %v6404
      %v6540 = vunpack.c.l.b16 %v6405
      %v6541 = vunpack.c.l.b16 %v6406
      %v6542 = vunpack.c.l.b16 %v6407
      %v6543 = vunpack.c.l.b16 %v6408
      %v6544 = vunpack.c.l.b16 %v6409
      %v6545 = vunpack.c.l.b16 %v6410
      %v6546 = vunpack.c.l.b16 %v6411
      %v6547 = vunpack.c.l.b16 %v6412
      %v6548 = vunpack.c.l.b16 %v6413
      %v6549 = vunpack.c.l.b16 %v6414
      %v6550 = vunpack.c.l.b16 %v6415
      %v6551 = vunpack.c.l.b16 %v6416
      %v6552 = vunpack.c.l.b16 %v6417
      %v6553 = vunpack.c.l.b16 %v6418
      %v6554 = vunpack.c.l.b16 %v6419
      %v6555 = vunpack.c.l.b16 %v6420
      %v6556 = vunpack.c.l.b16 %v6421
      %v6557 = vunpack.c.l.b16 %v6422
      %v6558 = vunpack.c.l.b16 %v6423
      %v6559 = vunpack.c.l.b16 %v6424
      %v6560 = vunpack.c.l.b16 %v6425
      %v6561 = vunpack.c.l.b16 %v6426
      %v6562 = vunpack.c.l.b16 %v6427
      %v6563 = vunpack.c.l.b16 %v6428
      %v6564 = vunpack.c.l.b16 %v6429
      %v6565 = vunpack.c.l.b16 %v6430
      %v6566 = vunpack.c.l.b16 %v6431
      %v6567 = vunpack.c.l.b16 %v6432
      %v6568 = vunpack.c.l.b16 %v6433
      %v6569 = vunpack.c.l.b16 %v6434
      %v6570 = vunpack.c.l.b16 %v6435
      %v6571 = vunpack.c.l.b16 %v6436
      %v6572 = vunpack.c.l.b16 %v6437
      %v6573 = vunpack.c.l.b16 %v6438
      %v6574 = vunpack.c.l.b16 %v6439
      %v6575 = vunpack.c.l.b16 %v6440
      %v6576 = vunpack.c.l.b16 %v6441
      %v6577 = vunpack.c.l.b16 %v6442
      %v6578 = vunpack.c.l.b16 %v6443
      %v6579 = vunpack.c.l.b16 %v6444
      %v6580 = vpack.c.b16 %v6517, %v6516
      %v6581 = vpack.c.b16 %v6519, %v6518
      %v6582 = vpack.c.b16 %v6521, %v6520
      %v6583 = vpack.c.b16 %v6523, %v6522
      %v6584 = vpack.c.b16 %v6525, %v6524
      %v6585 = vpack.c.b16 %v6527, %v6526
      %v6586 = vpack.c.b16 %v6529, %v6528
      %v6587 = vpack.c.b16 %v6531, %v6530
      %v6588 = vpack.c.b16 %v6533, %v6532
      %v6589 = vpack.c.b16 %v6535, %v6534
      %v6590 = vpack.c.b16 %v6537, %v6536
      %v6591 = vpack.c.b16 %v6539, %v6538
      %v6592 = vpack.c.b16 %v6541, %v6540
      %v6593 = vpack.c.b16 %v6543, %v6542
      %v6594 = vpack.c.b16 %v6545, %v6544
      %v6595 = vpack.c.b16 %v6547, %v6546
      %v6596 = vpack.c.b16 %v6549, %v6548
      %v6597 = vpack.c.b16 %v6551, %v6550
      %v6598 = vpack.c.b16 %v6553, %v6552
      %v6599 = vpack.c.b16 %v6555, %v6554
      %v6600 = vpack.c.b16 %v6557, %v6556
      %v6601 = vpack.c.b16 %v6559, %v6558
      %v6602 = vpack.c.b16 %v6561, %v6560
      %v6603 = vpack.c.b16 %v6563, %v6562
      %v6604 = vpack.c.b16 %v6565, %v6564
      %v6605 = vpack.c.b16 %v6567, %v6566
      %v6606 = vpack.c.b16 %v6569, %v6568
      %v6607 = vpack.c.b16 %v6571, %v6570
      %v6608 = vpack.c.b16 %v6573, %v6572
      %v6609 = vpack.c.b16 %v6575, %v6574
      %v6610 = vpack.c.b16 %v6577, %v6576
      %v6611 = vpack.c.b16 %v6579, %v6578
      %6644 = vmatprep.subr.bf16.mxu0 0
      %6645 = vmatpush1.bf16.msra.mxu0 %v6580
      %6646 = vmatprep.subr.bf16.mxu0 0
      %6647 = vmatpush1.bf16.msra.mxu0 %v6581
      %6648 = vmatprep.subr.bf16.mxu0 0
      %6649 = vmatpush1.bf16.msra.mxu0 %v6582
      %6650 = vmatprep.subr.bf16.mxu0 0
      %6651 = vmatpush1.bf16.msra.mxu0 %v6583
      %6652 = vmatprep.subr.bf16.mxu0 0
      %6653 = vmatpush1.bf16.msra.mxu0 %v6584
      %6654 = vmatprep.subr.bf16.mxu0 0
      %6655 = vmatpush1.bf16.msra.mxu0 %v6585
      %6656 = vmatprep.subr.bf16.mxu0 0
      %6657 = vmatpush1.bf16.msra.mxu0 %v6586
      %6658 = vmatprep.subr.bf16.mxu0 0
      %6659 = vmatpush1.bf16.msra.mxu0 %v6587
      %6660 = vmatprep.subr.bf16.mxu0 0
      %6661 = vmatpush1.bf16.msra.mxu0 %v6588
      %6662 = vmatprep.subr.bf16.mxu0 0
      %6663 = vmatpush1.bf16.msra.mxu0 %v6589
      %6664 = vmatprep.subr.bf16.mxu0 0
      %6665 = vmatpush1.bf16.msra.mxu0 %v6590
      %6666 = vmatprep.subr.bf16.mxu0 0
      %6667 = vmatpush1.bf16.msra.mxu0 %v6591
      %6668 = vmatprep.subr.bf16.mxu0 0
      %6669 = vmatpush1.bf16.msra.mxu0 %v6592
      %6670 = vmatprep.subr.bf16.mxu0 0
      %6671 = vmatpush1.bf16.msra.mxu0 %v6593
      %6672 = vmatprep.subr.bf16.mxu0 0
      %6673 = vmatpush1.bf16.msra.mxu0 %v6594
      %6674 = vmatprep.subr.bf16.mxu0 0
      %6675 = vmatpush1.bf16.msra.mxu0 %v6595
      %6676 = vmatprep.mubr.bf16.mxu0 %v6378
      %6677 = vmatmul.mubr.bf16.gmra.mrb[0].mxu0 %v6377
      %v6678 = vpop.f32.mrb[0].mxu0
      %v6679 = vadd.f32 %v6450, %v6678
      %v6680 = vpop.f32.mrb[0].mxu0
      %v6681 = vpop.f32.mrb[0].mxu0
      %v6682 = vadd.f32 %v6450, %v6681
      %v6683 = vpop.f32.mrb[0].mxu0
      %6684 = vdwg.mxu0
      %6685 = vmatprep.subr.bf16.mxu0 0
      %6686 = vmatpush1.bf16.msra.mxu0 %v6596
      %6687 = vmatprep.subr.bf16.mxu0 0
      %6688 = vmatpush1.bf16.msra.mxu0 %v6597
      %6689 = vmatprep.subr.bf16.mxu0 0
      %6690 = vmatpush1.bf16.msra.mxu0 %v6598
      %6691 = vmatprep.subr.bf16.mxu0 0
      %6692 = vmatpush1.bf16.msra.mxu0 %v6599
      %6693 = vmatprep.subr.bf16.mxu0 0
      %6694 = vmatpush1.bf16.msra.mxu0 %v6600
      %6695 = vmatprep.subr.bf16.mxu0 0
      %6696 = vmatpush1.bf16.msra.mxu0 %v6601
      %6697 = vmatprep.subr.bf16.mxu0 0
      %6698 = vmatpush1.bf16.msra.mxu0 %v6602
      %6699 = vmatprep.subr.bf16.mxu0 0
      %6700 = vmatpush1.bf16.msra.mxu0 %v6603
      %6701 = vmatprep.subr.bf16.mxu0 0
      %6702 = vmatpush1.bf16.msra.mxu0 %v6604
      %6703 = vmatprep.subr.bf16.mxu0 0
      %6704 = vmatpush1.bf16.msra.mxu0 %v6605
      %6705 = vmatprep.subr.bf16.mxu0 0
      %6706 = vmatpush1.bf16.msra.mxu0 %v6606
      %6707 = vmatprep.subr.bf16.mxu0 0
      %6708 = vmatpush1.bf16.msra.mxu0 %v6607
      %6709 = vmatprep.subr.bf16.mxu0 0
      %6710 = vmatpush1.bf16.msra.mxu0 %v6608
      %6711 = vmatprep.subr.bf16.mxu0 0
      %6712 = vmatpush1.bf16.msra.mxu0 %v6609
      %6713 = vmatprep.subr.bf16.mxu0 0
      %6714 = vmatpush1.bf16.msra.mxu0 %v6610
      %6715 = vmatprep.subr.bf16.mxu0 0
      %6716 = vmatpush1.bf16.msra.mxu0 %v6611
      %6717 = vmatprep.mubr.bf16.mxu0 %v6380
      %6718 = vmatmul.mubr.bf16.gmra.mrb[0].mxu0 %v6379
      %v6719 = vpop.f32.mrb[0].mxu0
      %v6720 = vadd.f32 %v6679, %v6719
      %v6721 = vpop.f32.mrb[0].mxu0
      %v6722 = vpop.f32.mrb[0].mxu0
      %v6723 = vadd.f32 %v6682, %v6722
      %v6724 = vpop.f32.mrb[0].mxu0
      %6725 = vdwg.mxu0
      %6726 = vst [vmem:[%s275] sm:$0xff] %v6720
      %6727 = vst [vmem:[%s275 + $0x8] sm:$0xff] %v6723
      %p6728 = scmp.lt.s32.totalorder %s16, 2
      %s6729 = scalar_select %p6728, %s16, 2
      %s6730 = smul.addr %s6729, 2
      %s6731 = smul.addr %s6730, 8
      %s6732 = scalar_lea.vmem %s5, %s6731
      // Predicated region
      $region41: #{_forward.7} parent=39 // pred_check
        %p6733 = pneg %p159
      $region42: #{_forward.7} parent=39 // pred_check_branch
        %6735 = sbr.rel (%p6733) target = $region44
      $region43: #{_forward.7} parent=39 // pred_region
        _
      $region44: #{_forward.7} parent=39 // pred_fallthru
        _
    $region40: #{_forward.7} parent=5 // pred_fallthru
      _
    %p6736 = scmp.le.s32.totalorder 2, %s11
    // Predicated region
    $region45: #{_forward.7} parent=5 // pred_check
      %p6737 = pneg %p6736
    $region46: #{_forward.7} parent=5 // pred_check_branch
      %6739 = sbr.rel (%p6737) target = $region48
    $region47: #{_forward.7} parent=5 // pred_region
      %s6740 = ssub.s32 %s11, 2
      // Predicated region
      $region49: #{_forward.7} parent=47 // pred_check
        %p6741 = pneg %p165
      $region50: #{_forward.7} parent=47 // pred_check_branch
        %6743 = sbr.rel (%p6741) target = $region52
      $region51: #{_forward.7} parent=47 // pred_region
        %p6744 = scmp.lt.s32.totalorder %s17, 2
        %s6745 = scalar_select %p6744, %s17, 2
        %s6746 = smul.addr %s6745, 2
        %s6747 = smul.addr %s6746, 8
        %s6748 = scalar_lea.vmem %s5, %s6747
      $region52: #{_forward.7} parent=47 // pred_fallthru
        _
    $region48: #{_forward.7} parent=5 // pred_fallthru
      _
  $region6: #{_forward.7} parent=0 // loop_footer
    %s15 = sadd.s32 1, %s11
  $region7: #{_forward.7} parent=0 // loop_footer_branch
    %10 = sbr.rel target = $region3
  $region8: #{_forward.7} parent=0 // loop_exit
    _

</llo_original>
